<compile_context>
chip_gen: v7x
topology: tpu7x:2x2x1
jax: 0.10.0
libtpu: 0.0.40
codegen_flags: <defaults>
</compile_context>

<pallas_src>
import functools
import math

import numpy as np
import jax
import jax.numpy as jnp
from jax.experimental import pallas as pl
from jax.experimental.pallas import tpu as pltpu


# ---------------------------------------------------------------------------
# Helpers
# ---------------------------------------------------------------------------
def _round_up(n, m):
    return ((n + m - 1) // m) * m


# Static layer table:  (param idx, sources, dest, is_transpose, stride, pad, out_pad)
_LAYERS = (
    ("0", ("x",),       "d1",  False, 2, 0, 0),   # Conv2d(3, 8, 3, s=2)
    ("1", ("d1",),      "d2",  False, 2, 0, 0),   # Conv2d(8, 16, 3, s=2)
    ("2", ("d2",),      "d3",  False, 2, 0, 0),   # Conv2d(16, 32, 3, s=2)
    ("3", ("d3",),      "u1",  True,  2, 0, 0),   # ConvT(32, 16, 3, s=2)
    ("4", ("d2", "u1"), "u2",  True,  2, 0, 1),   # ConvT(32, 8, 3, s=2, op=1) on cat([d2,u1])
    ("5", ("d1", "u2"), "u3",  True,  2, 0, 1),   # ConvT(16, 8, 3, s=2, op=1) on cat([d1,u2])
    ("6", ("u3",),      "out", False, 1, 1, 0),   # Conv2d(8, 6, 3, p=1)
)


def _make_layer_consts(w, b, Hi, Wi, C_parts, *, stride, pad, transpose, out_pad):
    """Build the per-layer constant matrices (host-side, one time, numpy).

    Returns:
      sht  : (3, Ho_pad, Hi_pad)              row-selection matrices (already transposed)
      g    : (n_parts, 3, WCi_pad, WCo_pad)   block-Toeplitz weight matrices
      brow : (1, WCo_pad)                     bias broadcast row
      (Ho, Wo, Co)
    """
    K = 3
    w = np.asarray(w, np.float32)
    b = np.asarray(b, np.float32)
    if transpose:
        assert pad == 0
        Ci, Co = int(w.shape[0]), int(w.shape[1])
        Ho = (Hi - 1) * stride + K + out_pad
        Wo = (Wi - 1) * stride + K + out_pad
    else:
        Co, Ci = int(w.shape[0]), int(w.shape[1])
        Ho = (Hi + 2 * pad - K) // stride + 1
        Wo = (Wi + 2 * pad - K) // stride + 1
    assert sum(C_parts) == Ci

    Hi_p, Ho_p = _round_up(Hi, 8), _round_up(Ho, 8)
    WCo_p = _round_up(Wo * Co, 128)
    WCi_ps = [_round_up(Wi * cp, 128) for cp in C_parts]
    WCi_p = WCi_ps[0]
    assert all(v == WCi_p for v in WCi_ps), "skip-connection parts must share lane padding"

    # SHT[ki][ho, hi] = 1  iff input row hi feeds output row ho at vertical tap ki.
    sht = np.zeros((K, Ho_p, Hi_p), np.float32)
    for ki in range(K):
        for ho in range(Ho):
            if transpose:
                # forward conv (stride 1) over the zero-dilated, (K-1)-padded input:
                # dilated row (ho + ki) corresponds to original row t // stride.
                t = ho + ki - (K - 1)
                if t >= 0 and t % stride == 0 and t // stride < Hi:
                    sht[ki, ho, t // stride] = 1.0
            else:
                hi = stride * ho + ki - pad
                if 0 <= hi < Hi:
                    sht[ki, ho, hi] = 1.0

    # G[part][ki][wi*Cp + ci, wo*Co + co] = weight connecting input (wi, ci) -> output (wo, co)
    g = np.zeros((len(C_parts), K, WCi_p, WCo_p), np.float32)
    c0 = 0
    for pi, cp in enumerate(C_parts):
        for ki in range(K):
            for wo in range(Wo):
                for wi in range(Wi):
                    if transpose:
                        kj = (K - 1) + stride * wi - wo
                        if not (0 <= kj < K):
                            continue
                        # flipped ConvTranspose weight: w[ci, co, K-1-ki, K-1-kj]
                        blk = w[c0:c0 + cp, :, K - 1 - ki, K - 1 - kj]          # (cp, Co)
                    else:
                        kj = wi - stride * wo + pad
                        if not (0 <= kj < K):
                            continue
                        blk = w[:, c0:c0 + cp, ki, kj].T                        # (cp, Co)
                    g[pi, ki, wi * cp:(wi + 1) * cp, wo * Co:(wo + 1) * Co] = blk
        c0 += cp

    brow = np.zeros((1, WCo_p), np.float32)
    brow[0, :Wo * Co] = np.tile(b, Wo)
    return sht, g, brow, (Ho, Wo, Co)


def prepare_network(params, img_hw):
    """One-time host-side packing of all weights into kernel constants."""
    H, W = img_hw
    shapes = {"x": (H, W, 3)}
    consts, cfgs = [], []
    for idx, (pidx, srcs, dst, transpose, stride, pad, out_pad) in enumerate(_LAYERS):
        w = params[f"w{pidx}"]
        b = params[f"b{pidx}"]
        Hi, Wi, _ = shapes[srcs[0]]
        for s in srcs:
            assert shapes[s][:2] == (Hi, Wi), "skip connection spatial mismatch"
        C_parts = [shapes[s][2] for s in srcs]
        sht, g, brow, (Ho, Wo, Co) = _make_layer_consts(
            w, b, Hi, Wi, C_parts, stride=stride, pad=pad,
            transpose=transpose, out_pad=out_pad)
        shapes[dst] = (Ho, Wo, Co)
        consts += [jnp.asarray(sht), jnp.asarray(g), jnp.asarray(brow)]
        h_first = _round_up(Ho, 8) < _round_up(Hi, 8)   # pick cheaper matmul order
        relu = idx < len(_LAYERS) - 1
        cfgs.append((srcs, dst, h_first, relu))
    meta = {
        "in_hp": _round_up(H, 8),
        "in_wcp": _round_up(W * 3, 128),
        "out_shape": shapes["out"],
        "out_hp": _round_up(shapes["out"][0], 8),
        "out_wcp": _round_up(shapes["out"][1] * shapes["out"][2], 128),
    }
    return tuple(consts), tuple(cfgs), meta


# ---------------------------------------------------------------------------
# The fused Pallas kernel: whole network per batch element.
# ---------------------------------------------------------------------------
def _fused_forward_kernel(*refs, layer_cfgs):
    x_ref = refs[0]
    out_ref = refs[-1]
    crefs = refs[1:-1]                       # 3 refs per layer: sht, g, bias
    acts = {"x": x_ref[0]}                   # (H_pad, W*C_pad) f32

    for li, (srcs, dst, h_first, relu) in enumerate(layer_cfgs):
        sht_ref = crefs[3 * li]              # (3, Ho_p, Hi_p)
        g_ref = crefs[3 * li + 1]            # (n_parts, 3, WCi_p, WCo_p)
        b_ref = crefs[3 * li + 2]            # (1, WCo_p)
        ho_p = sht_ref.shape[1]
        wco_p = g_ref.shape[3]

        acc = jnp.zeros((ho_p, wco_p), jnp.float32)
        for ki in range(3):
            sht = sht_ref[ki]                # (Ho_p, Hi_p)
            if h_first:
                # (SHT @ X) @ G  -- cheaper when the layer downsamples
                for p, s in enumerate(srcs):
                    a = jnp.dot(sht, acts[s], preferred_element_type=jnp.float32)
                    acc = acc + jnp.dot(a, g_ref[p, ki],
                                        preferred_element_type=jnp.float32)
            else:
                # SHT @ (X @ G)  -- cheaper when the layer upsamples
                u = None
                for p, s in enumerate(srcs):
                    t = jnp.dot(acts[s], g_ref[p, ki],
                                preferred_element_type=jnp.float32)
                    u = t if u is None else u + t
                acc = acc + jnp.dot(sht, u, preferred_element_type=jnp.float32)

        acc = acc + b_ref[...]               # (1, WCo_p) broadcast
        if relu:
            acc = jnp.maximum(acc, 0.0)
        acts[dst] = acc

    out_ref[0] = acts[layer_cfgs[-1][1]]


# ---------------------------------------------------------------------------
# Public wrappers
# ---------------------------------------------------------------------------
def argmax3d(x):
    """x: (B, C, H, W) -> (B, 3) int32 indices (c, h, w) of the per-batch max."""
    B, C, H, W = x.shape
    flat = jnp.argmax(x.reshape(B, -1), axis=1)
    w_idx = flat % W
    flat = flat // W
    h_idx = flat % H
    flat = flat // H
    c_idx = flat % C
    return jnp.stack([c_idx, h_idx, w_idx], axis=-1)


def make_pixelwise_qnetwork(params, img_hw=(26, 26)):
    """Returns (forward, predict) jitted callables operating on NCHW float32 input."""
    consts, cfgs, meta = prepare_network(params, img_hw)
    H, W = img_hw
    Cin, Cout = 3, 6
    H0p, WC0p = meta["in_hp"], meta["in_wcp"]
    Hop, WCop = meta["out_hp"], meta["out_wcp"]
    Ho, Wo, _ = meta["out_shape"]

    kernel = functools.partial(_fused_forward_kernel, layer_cfgs=cfgs)

    def _const_spec(arr):
        nd = arr.ndim
        return pl.BlockSpec(arr.shape, lambda b, _nd=nd: (0,) * _nd)

    in_specs = [pl.BlockSpec((1, H0p, WC0p), lambda b: (b, 0, 0))]
    in_specs += [_const_spec(a) for a in consts]
    out_spec = pl.BlockSpec((1, Hop, WCop), lambda b: (b, 0, 0))

    @jax.jit
    def forward(x_nchw):
        B = x_nchw.shape[0]
        # NCHW -> (B, H, W*C), zero-padded to lane/sublane aligned shape.
        x2 = jnp.transpose(x_nchw, (0, 2, 3, 1)).reshape(B, H, W * Cin)
        x2 = jnp.pad(x2, ((0, 0), (0, H0p - H), (0, WC0p - W * Cin)))
        y = pl.pallas_call(
            kernel,
            grid=(B,),
            in_specs=in_specs,
            out_specs=out_spec,
            out_shape=jax.ShapeDtypeStruct((B, Hop, WCop), jnp.float32),
            compiler_params=pltpu.CompilerParams(
                dimension_semantics=("parallel",)),
        )(x2, *consts)
        y = y[:, :Ho, :Wo * Cout].reshape(B, Ho, Wo, Cout)
        return jnp.transpose(y, (0, 3, 1, 2))            # -> (B, 6, H, W)

    @jax.jit
    def predict(x_nchw):
        return argmax3d(forward(x_nchw))

    return forward, predict


# ---------------------------------------------------------------------------
# Pure-JAX reference (previously validated against PyTorch) - used as a check.
# ---------------------------------------------------------------------------
def _im2col(x, K, stride):
    B, H, W, C = x.shape
    Ho = (H - K) // stride + 1
    Wo = (W - K) // stride + 1
    cols = []
    for ki in range(K):
        for kj in range(K):
            cols.append(x[:, ki:ki + stride * (Ho - 1) + 1:stride,
                             kj:kj + stride * (Wo - 1) + 1:stride, :])
    xc = jnp.concatenate(cols, axis=-1)
    return xc.reshape(B * Ho * Wo, K * K * C), (B, Ho, Wo)


def _ref_conv2d(x, w, b, stride=1, padding=0, relu=True):
    Cout, Cin, K, _ = w.shape
    if padding:
        x = jnp.pad(x, ((0, 0), (padding, padding), (padding, padding), (0, 0)))
    xc, (B, Ho, Wo) = _im2col(x, K, stride)
    wm = jnp.transpose(w, (2, 3, 1, 0)).reshape(K * K * Cin, Cout)
    y = xc @ wm + b
    if relu:
        y = jnp.maximum(y, 0.0)
    return y.reshape(B, Ho, Wo, Cout)


def _ref_conv_transpose2d(x, w, b, stride=2, output_padding=0, relu=True):
    Cin, Cout, K, _ = w.shape
    B, H, W, _ = x.shape
    Hd, Wd = (H - 1) * stride + 1, (W - 1) * stride + 1
    xd = jnp.zeros((B, Hd, Wd, Cin), x.dtype).at[:, ::stride, ::stride, :].set(x)
    p = K - 1
    xd = jnp.pad(xd, ((0, 0), (p, p + output_padding), (p, p + output_padding), (0, 0)))
    xc, (B, Ho, Wo) = _im2col(xd, K, 1)
    wm = jnp.transpose(w[:, :, ::-1, ::-1], (2, 3, 0, 1)).reshape(K * K * Cin, Cout)
    y = xc @ wm + b
    if relu:
        y = jnp.maximum(y, 0.0)
    return y.reshape(B, Ho, Wo, Cout)


def reference_forward(x_nchw, params):
    x = jnp.transpose(x_nchw, (0, 2, 3, 1))
    d1 = _ref_conv2d(x, params["w0"], params["b0"], stride=2)
    d2 = _ref_conv2d(d1, params["w1"], params["b1"], stride=2)
    d3 = _ref_conv2d(d2, params["w2"], params["b2"], stride=2)
    u1 = _ref_conv_transpose2d(d3, params["w3"], params["b3"], stride=2, output_padding=0)
    u2 = _ref_conv_transpose2d(jnp.concatenate([d2, u1], axis=-1),
                               params["w4"], params["b4"], stride=2, output_padding=1)
    u3 = _ref_conv_transpose2d(jnp.concatenate([d1, u2], axis=-1),
                               params["w5"], params["b5"], stride=2, output_padding=1)
    out = _ref_conv2d(u3, params["w6"], params["b6"], stride=1, padding=1, relu=False)
    return jnp.transpose(out, (0, 3, 1, 2))


# ---------------------------------------------------------------------------
# Deterministic parameter init (shapes match the nn.Module __init__)
# ---------------------------------------------------------------------------
def _init_conv(key, cout, cin, k):
    kw, kb = jax.random.split(key)
    bound = 1.0 / math.sqrt(cin * k * k)
    w = jax.random.uniform(kw, (cout, cin, k, k), jnp.float32, -bound, bound)
    b = jax.random.uniform(kb, (cout,), jnp.float32, -bound, bound)
    return w, b


def _init_conv_t(key, cin, cout, k):
    kw, kb = jax.random.split(key)
    bound = 1.0 / math.sqrt(cout * k * k)
    w = jax.random.uniform(kw, (cin, cout, k, k), jnp.float32, -bound, bound)
    b = jax.random.uniform(kb, (cout,), jnp.float32, -bound, bound)
    return w, b


def init_params(key):
    keys = jax.random.split(key, 7)
    p = {}
    p["w0"], p["b0"] = _init_conv(keys[0], 8, 3, 3)
    p["w1"], p["b1"] = _init_conv(keys[1], 16, 8, 3)
    p["w2"], p["b2"] = _init_conv(keys[2], 32, 16, 3)
    p["w3"], p["b3"] = _init_conv_t(keys[3], 32, 16, 3)
    p["w4"], p["b4"] = _init_conv_t(keys[4], 32, 8, 3)
    p["w5"], p["b5"] = _init_conv_t(keys[5], 16, 8, 3)
    p["w6"], p["b6"] = _init_conv(keys[6], 6, 8, 3)
    return p


if __name__ == "__main__":
    key = jax.random.PRNGKey(0)
    kp, kx = jax.random.split(key)
    params = init_params(kp)

    # H = W = 26 keeps every skip connection spatially consistent:
    # 26 -> 12 -> 5 -> 2 -> 5 -> 12 -> 26
    B, C, H, W = 2, 3, 26, 26
    x = jax.random.normal(kx, (B, C, H, W), dtype=jnp.float32)

    forward, predict = make_pixelwise_qnetwork(params, img_hw=(H, W))

    q_map = jax.block_until_ready(forward(x))
    assert q_map.shape == (B, 6, H, W), q_map.shape
    assert q_map.dtype == jnp.float32

    # Numerical check against the pure-JAX im2col reference (PyTorch-equivalent).
    q_ref = jax.block_until_ready(reference_forward(x, params))
    max_err = float(jnp.max(jnp.abs(q_map - q_ref)))
    assert max_err < 1e-3, f"fused kernel mismatch vs reference: {max_err}"

    actions = jax.block_until_ready(predict(x))
    assert actions.shape == (B, 3), actions.shape

    print("KERNEL_OK")
</pallas_src>

<mosaic_0001>
module attributes {stable_mosaic.version = 11 : i64} {
  func.func @_fused_forward_kernel(%arg0: i32, %arg1: memref<1x32x128xf32, #tpu.memory_space<vmem>>, %arg2: memref<3x16x32xf32, #tpu.memory_space<vmem>>, %arg3: memref<1x3x128x128xf32, #tpu.memory_space<vmem>>, %arg4: memref<1x128xf32, #tpu.memory_space<vmem>>, %arg5: memref<3x8x16xf32, #tpu.memory_space<vmem>>, %arg6: memref<1x3x128x128xf32, #tpu.memory_space<vmem>>, %arg7: memref<1x128xf32, #tpu.memory_space<vmem>>, %arg8: memref<3x8x8xf32, #tpu.memory_space<vmem>>, %arg9: memref<1x3x128x128xf32, #tpu.memory_space<vmem>>, %arg10: memref<1x128xf32, #tpu.memory_space<vmem>>, %arg11: memref<3x8x8xf32, #tpu.memory_space<vmem>>, %arg12: memref<1x3x128x128xf32, #tpu.memory_space<vmem>>, %arg13: memref<1x128xf32, #tpu.memory_space<vmem>>, %arg14: memref<3x16x8xf32, #tpu.memory_space<vmem>>, %arg15: memref<2x3x128x128xf32, #tpu.memory_space<vmem>>, %arg16: memref<1x128xf32, #tpu.memory_space<vmem>>, %arg17: memref<3x32x16xf32, #tpu.memory_space<vmem>>, %arg18: memref<2x3x128x256xf32, #tpu.memory_space<vmem>>, %arg19: memref<1x256xf32, #tpu.memory_space<vmem>>, %arg20: memref<3x32x32xf32, #tpu.memory_space<vmem>>, %arg21: memref<1x3x256x256xf32, #tpu.memory_space<vmem>>, %arg22: memref<1x256xf32, #tpu.memory_space<vmem>>, %arg23: memref<1x32x256xf32, #tpu.memory_space<vmem>>) attributes {dimension_semantics = [#tpu.dimension_semantics<parallel>], iteration_bounds = array<i64: 2>, scalar_prefetch = 0 : i64, scratch_operands = 0 : i64, tpu.core_type = #tpu.core_type<tc>, window_params = [{transform_indices = @transform_0, window_bounds = array<i64: 1, 32, 128>}, {pipeline_mode = #tpu.pipeline_mode<synchronous>, transform_indices = @transform_1, window_bounds = array<i64: 3, 16, 32>}, {pipeline_mode = #tpu.pipeline_mode<synchronous>, transform_indices = @transform_2, window_bounds = array<i64: 1, 3, 128, 128>}, {pipeline_mode = #tpu.pipeline_mode<synchronous>, transform_indices = @transform_3, window_bounds = array<i64: 1, 128>}, {pipeline_mode = #tpu.pipeline_mode<synchronous>, transform_indices = @transform_4, window_bounds = array<i64: 3, 8, 16>}, {pipeline_mode = #tpu.pipeline_mode<synchronous>, transform_indices = @transform_5, window_bounds = array<i64: 1, 3, 128, 128>}, {pipeline_mode = #tpu.pipeline_mode<synchronous>, transform_indices = @transform_6, window_bounds = array<i64: 1, 128>}, {pipeline_mode = #tpu.pipeline_mode<synchronous>, transform_indices = @transform_7, window_bounds = array<i64: 3, 8, 8>}, {pipeline_mode = #tpu.pipeline_mode<synchronous>, transform_indices = @transform_8, window_bounds = array<i64: 1, 3, 128, 128>}, {pipeline_mode = #tpu.pipeline_mode<synchronous>, transform_indices = @transform_9, window_bounds = array<i64: 1, 128>}, {pipeline_mode = #tpu.pipeline_mode<synchronous>, transform_indices = @transform_10, window_bounds = array<i64: 3, 8, 8>}, {pipeline_mode = #tpu.pipeline_mode<synchronous>, transform_indices = @transform_11, window_bounds = array<i64: 1, 3, 128, 128>}, {pipeline_mode = #tpu.pipeline_mode<synchronous>, transform_indices = @transform_12, window_bounds = array<i64: 1, 128>}, {pipeline_mode = #tpu.pipeline_mode<synchronous>, transform_indices = @transform_13, window_bounds = array<i64: 3, 16, 8>}, {pipeline_mode = #tpu.pipeline_mode<synchronous>, transform_indices = @transform_14, window_bounds = array<i64: 2, 3, 128, 128>}, {pipeline_mode = #tpu.pipeline_mode<synchronous>, transform_indices = @transform_15, window_bounds = array<i64: 1, 128>}, {pipeline_mode = #tpu.pipeline_mode<synchronous>, transform_indices = @transform_16, window_bounds = array<i64: 3, 32, 16>}, {pipeline_mode = #tpu.pipeline_mode<synchronous>, transform_indices = @transform_17, window_bounds = array<i64: 2, 3, 128, 256>}, {pipeline_mode = #tpu.pipeline_mode<synchronous>, transform_indices = @transform_18, window_bounds = array<i64: 1, 256>}, {pipeline_mode = #tpu.pipeline_mode<synchronous>, transform_indices = @transform_19, window_bounds = array<i64: 3, 32, 32>}, {pipeline_mode = #tpu.pipeline_mode<synchronous>, transform_indices = @transform_20, window_bounds = array<i64: 1, 3, 256, 256>}, {pipeline_mode = #tpu.pipeline_mode<synchronous>, transform_indices = @transform_21, window_bounds = array<i64: 1, 256>}, {transform_indices = @transform_22, window_bounds = array<i64: 1, 32, 256>}]} {
    %c0 = arith.constant 0 : index
    %c0_0 = arith.constant 0 : index
    %c0_1 = arith.constant 0 : index
    %0 = vector.load %arg1[%c0, %c0_0, %c0_1] : memref<1x32x128xf32, #tpu.memory_space<vmem>>, vector<1x32x128xf32>
    %1 = vector.shape_cast %0 : vector<1x32x128xf32> to vector<32x128xf32>
    %cst = arith.constant 0.000000e+00 : f32
    %2 = vector.broadcast %cst : f32 to vector<16x128xf32>
    %c0_2 = arith.constant 0 : index
    %c0_3 = arith.constant 0 : index
    %c0_4 = arith.constant 0 : index
    %3 = vector.load %arg2[%c0_2, %c0_3, %c0_4] : memref<3x16x32xf32, #tpu.memory_space<vmem>>, vector<1x16x32xf32>
    %4 = vector.shape_cast %3 : vector<1x16x32xf32> to vector<16x32xf32>
    %cst_5 = arith.constant dense<0.000000e+00> : vector<16x128xf32>
    %5 = tpu.matmul %4, %1, %cst_5 {dimension_numbers = #tpu.dot_dimension_numbers<[1], [0], [0], [1], [0, 0, 1, 1], [], []>} : vector<16x32xf32>, vector<32x128xf32>, vector<16x128xf32> -> vector<16x128xf32>
    %c0_6 = arith.constant 0 : index
    %c0_7 = arith.constant 0 : index
    %c0_8 = arith.constant 0 : index
    %c0_9 = arith.constant 0 : index
    %6 = vector.load %arg3[%c0_6, %c0_7, %c0_8, %c0_9] : memref<1x3x128x128xf32, #tpu.memory_space<vmem>>, vector<1x1x128x128xf32>
    %7 = vector.shape_cast %6 : vector<1x1x128x128xf32> to vector<128x128xf32>
    %cst_10 = arith.constant dense<0.000000e+00> : vector<16x128xf32>
    %8 = tpu.matmul %5, %7, %cst_10 {dimension_numbers = #tpu.dot_dimension_numbers<[1], [0], [0], [1], [0, 0, 1, 1], [], []>} : vector<16x128xf32>, vector<128x128xf32>, vector<16x128xf32> -> vector<16x128xf32>
    %9 = arith.addf %2, %8 : vector<16x128xf32>
    %c1 = arith.constant 1 : index
    %c0_11 = arith.constant 0 : index
    %c0_12 = arith.constant 0 : index
    %10 = vector.load %arg2[%c1, %c0_11, %c0_12] : memref<3x16x32xf32, #tpu.memory_space<vmem>>, vector<1x16x32xf32>
    %11 = vector.shape_cast %10 : vector<1x16x32xf32> to vector<16x32xf32>
    %cst_13 = arith.constant dense<0.000000e+00> : vector<16x128xf32>
    %12 = tpu.matmul %11, %1, %cst_13 {dimension_numbers = #tpu.dot_dimension_numbers<[1], [0], [0], [1], [0, 0, 1, 1], [], []>} : vector<16x32xf32>, vector<32x128xf32>, vector<16x128xf32> -> vector<16x128xf32>
    %c0_14 = arith.constant 0 : index
    %c1_15 = arith.constant 1 : index
    %c0_16 = arith.constant 0 : index
    %c0_17 = arith.constant 0 : index
    %13 = vector.load %arg3[%c0_14, %c1_15, %c0_16, %c0_17] : memref<1x3x128x128xf32, #tpu.memory_space<vmem>>, vector<1x1x128x128xf32>
    %14 = vector.shape_cast %13 : vector<1x1x128x128xf32> to vector<128x128xf32>
    %cst_18 = arith.constant dense<0.000000e+00> : vector<16x128xf32>
    %15 = tpu.matmul %12, %14, %cst_18 {dimension_numbers = #tpu.dot_dimension_numbers<[1], [0], [0], [1], [0, 0, 1, 1], [], []>} : vector<16x128xf32>, vector<128x128xf32>, vector<16x128xf32> -> vector<16x128xf32>
    %16 = arith.addf %9, %15 : vector<16x128xf32>
    %c2 = arith.constant 2 : index
    %c0_19 = arith.constant 0 : index
    %c0_20 = arith.constant 0 : index
    %17 = vector.load %arg2[%c2, %c0_19, %c0_20] : memref<3x16x32xf32, #tpu.memory_space<vmem>>, vector<1x16x32xf32>
    %18 = vector.shape_cast %17 : vector<1x16x32xf32> to vector<16x32xf32>
    %cst_21 = arith.constant dense<0.000000e+00> : vector<16x128xf32>
    %19 = tpu.matmul %18, %1, %cst_21 {dimension_numbers = #tpu.dot_dimension_numbers<[1], [0], [0], [1], [0, 0, 1, 1], [], []>} : vector<16x32xf32>, vector<32x128xf32>, vector<16x128xf32> -> vector<16x128xf32>
    %c0_22 = arith.constant 0 : index
    %c2_23 = arith.constant 2 : index
    %c0_24 = arith.constant 0 : index
    %c0_25 = arith.constant 0 : index
    %20 = vector.load %arg3[%c0_22, %c2_23, %c0_24, %c0_25] : memref<1x3x128x128xf32, #tpu.memory_space<vmem>>, vector<1x1x128x128xf32>
    %21 = vector.shape_cast %20 : vector<1x1x128x128xf32> to vector<128x128xf32>
    %cst_26 = arith.constant dense<0.000000e+00> : vector<16x128xf32>
    %22 = tpu.matmul %19, %21, %cst_26 {dimension_numbers = #tpu.dot_dimension_numbers<[1], [0], [0], [1], [0, 0, 1, 1], [], []>} : vector<16x128xf32>, vector<128x128xf32>, vector<16x128xf32> -> vector<16x128xf32>
    %23 = arith.addf %16, %22 : vector<16x128xf32>
    %c0_27 = arith.constant 0 : index
    %c0_28 = arith.constant 0 : index
    %24 = vector.load %arg4[%c0_27, %c0_28] : memref<1x128xf32, #tpu.memory_space<vmem>>, vector<1x128xf32>
    %25 = vector.broadcast %24 : vector<1x128xf32> to vector<16x128xf32>
    %26 = arith.addf %23, %25 : vector<16x128xf32>
    %cst_29 = arith.constant 0.000000e+00 : f32
    %27 = vector.broadcast %cst_29 : f32 to vector<16x128xf32>
    %28 = arith.maximumf %26, %27 : vector<16x128xf32>
    %cst_30 = arith.constant 0.000000e+00 : f32
    %29 = vector.broadcast %cst_30 : f32 to vector<8x128xf32>
    %c0_31 = arith.constant 0 : index
    %c0_32 = arith.constant 0 : index
    %c0_33 = arith.constant 0 : index
    %30 = vector.load %arg5[%c0_31, %c0_32, %c0_33] : memref<3x8x16xf32, #tpu.memory_space<vmem>>, vector<1x8x16xf32>
    %31 = vector.shape_cast %30 : vector<1x8x16xf32> to vector<8x16xf32>
    %cst_34 = arith.constant dense<0.000000e+00> : vector<8x128xf32>
    %32 = tpu.matmul %31, %28, %cst_34 {dimension_numbers = #tpu.dot_dimension_numbers<[1], [0], [0], [1], [0, 0, 1, 1], [], []>} : vector<8x16xf32>, vector<16x128xf32>, vector<8x128xf32> -> vector<8x128xf32>
    %c0_35 = arith.constant 0 : index
    %c0_36 = arith.constant 0 : index
    %c0_37 = arith.constant 0 : index
    %c0_38 = arith.constant 0 : index
    %33 = vector.load %arg6[%c0_35, %c0_36, %c0_37, %c0_38] : memref<1x3x128x128xf32, #tpu.memory_space<vmem>>, vector<1x1x128x128xf32>
    %34 = vector.shape_cast %33 : vector<1x1x128x128xf32> to vector<128x128xf32>
    %cst_39 = arith.constant dense<0.000000e+00> : vector<8x128xf32>
    %35 = tpu.matmul %32, %34, %cst_39 {dimension_numbers = #tpu.dot_dimension_numbers<[1], [0], [0], [1], [0, 0, 1, 1], [], []>} : vector<8x128xf32>, vector<128x128xf32>, vector<8x128xf32> -> vector<8x128xf32>
    %36 = arith.addf %29, %35 : vector<8x128xf32>
    %c1_40 = arith.constant 1 : index
    %c0_41 = arith.constant 0 : index
    %c0_42 = arith.constant 0 : index
    %37 = vector.load %arg5[%c1_40, %c0_41, %c0_42] : memref<3x8x16xf32, #tpu.memory_space<vmem>>, vector<1x8x16xf32>
    %38 = vector.shape_cast %37 : vector<1x8x16xf32> to vector<8x16xf32>
    %cst_43 = arith.constant dense<0.000000e+00> : vector<8x128xf32>
    %39 = tpu.matmul %38, %28, %cst_43 {dimension_numbers = #tpu.dot_dimension_numbers<[1], [0], [0], [1], [0, 0, 1, 1], [], []>} : vector<8x16xf32>, vector<16x128xf32>, vector<8x128xf32> -> vector<8x128xf32>
    %c0_44 = arith.constant 0 : index
    %c1_45 = arith.constant 1 : index
    %c0_46 = arith.constant 0 : index
    %c0_47 = arith.constant 0 : index
    %40 = vector.load %arg6[%c0_44, %c1_45, %c0_46, %c0_47] : memref<1x3x128x128xf32, #tpu.memory_space<vmem>>, vector<1x1x128x128xf32>
    %41 = vector.shape_cast %40 : vector<1x1x128x128xf32> to vector<128x128xf32>
    %cst_48 = arith.constant dense<0.000000e+00> : vector<8x128xf32>
    %42 = tpu.matmul %39, %41, %cst_48 {dimension_numbers = #tpu.dot_dimension_numbers<[1], [0], [0], [1], [0, 0, 1, 1], [], []>} : vector<8x128xf32>, vector<128x128xf32>, vector<8x128xf32> -> vector<8x128xf32>
    %43 = arith.addf %36, %42 : vector<8x128xf32>
    %c2_49 = arith.constant 2 : index
    %c0_50 = arith.constant 0 : index
    %c0_51 = arith.constant 0 : index
    %44 = vector.load %arg5[%c2_49, %c0_50, %c0_51] : memref<3x8x16xf32, #tpu.memory_space<vmem>>, vector<1x8x16xf32>
    %45 = vector.shape_cast %44 : vector<1x8x16xf32> to vector<8x16xf32>
    %cst_52 = arith.constant dense<0.000000e+00> : vector<8x128xf32>
    %46 = tpu.matmul %45, %28, %cst_52 {dimension_numbers = #tpu.dot_dimension_numbers<[1], [0], [0], [1], [0, 0, 1, 1], [], []>} : vector<8x16xf32>, vector<16x128xf32>, vector<8x128xf32> -> vector<8x128xf32>
    %c0_53 = arith.constant 0 : index
    %c2_54 = arith.constant 2 : index
    %c0_55 = arith.constant 0 : index
    %c0_56 = arith.constant 0 : index
    %47 = vector.load %arg6[%c0_53, %c2_54, %c0_55, %c0_56] : memref<1x3x128x128xf32, #tpu.memory_space<vmem>>, vector<1x1x128x128xf32>
    %48 = vector.shape_cast %47 : vector<1x1x128x128xf32> to vector<128x128xf32>
    %cst_57 = arith.constant dense<0.000000e+00> : vector<8x128xf32>
    %49 = tpu.matmul %46, %48, %cst_57 {dimension_numbers = #tpu.dot_dimension_numbers<[1], [0], [0], [1], [0, 0, 1, 1], [], []>} : vector<8x128xf32>, vector<128x128xf32>, vector<8x128xf32> -> vector<8x128xf32>
    %50 = arith.addf %43, %49 : vector<8x128xf32>
    %c0_58 = arith.constant 0 : index
    %c0_59 = arith.constant 0 : index
    %51 = vector.load %arg7[%c0_58, %c0_59] : memref<1x128xf32, #tpu.memory_space<vmem>>, vector<1x128xf32>
    %52 = vector.broadcast %51 : vector<1x128xf32> to vector<8x128xf32>
    %53 = arith.addf %50, %52 : vector<8x128xf32>
    %cst_60 = arith.constant 0.000000e+00 : f32
    %54 = vector.broadcast %cst_60 : f32 to vector<8x128xf32>
    %55 = arith.maximumf %53, %54 : vector<8x128xf32>
    %cst_61 = arith.constant 0.000000e+00 : f32
    %56 = vector.broadcast %cst_61 : f32 to vector<8x128xf32>
    %c0_62 = arith.constant 0 : index
    %c0_63 = arith.constant 0 : index
    %c0_64 = arith.constant 0 : index
    %57 = vector.load %arg8[%c0_62, %c0_63, %c0_64] : memref<3x8x8xf32, #tpu.memory_space<vmem>>, vector<1x8x8xf32>
    %58 = vector.shape_cast %57 : vector<1x8x8xf32> to vector<8x8xf32>
    %c0_65 = arith.constant 0 : index
    %c0_66 = arith.constant 0 : index
    %c0_67 = arith.constant 0 : index
    %c0_68 = arith.constant 0 : index
    %59 = vector.load %arg9[%c0_65, %c0_66, %c0_67, %c0_68] : memref<1x3x128x128xf32, #tpu.memory_space<vmem>>, vector<1x1x128x128xf32>
    %60 = vector.shape_cast %59 : vector<1x1x128x128xf32> to vector<128x128xf32>
    %cst_69 = arith.constant dense<0.000000e+00> : vector<8x128xf32>
    %61 = tpu.matmul %55, %60, %cst_69 {dimension_numbers = #tpu.dot_dimension_numbers<[1], [0], [0], [1], [0, 0, 1, 1], [], []>} : vector<8x128xf32>, vector<128x128xf32>, vector<8x128xf32> -> vector<8x128xf32>
    %cst_70 = arith.constant dense<0.000000e+00> : vector<8x128xf32>
    %62 = tpu.matmul %58, %61, %cst_70 {dimension_numbers = #tpu.dot_dimension_numbers<[1], [0], [0], [1], [0, 0, 1, 1], [], []>} : vector<8x8xf32>, vector<8x128xf32>, vector<8x128xf32> -> vector<8x128xf32>
    %63 = arith.addf %56, %62 : vector<8x128xf32>
    %c1_71 = arith.constant 1 : index
    %c0_72 = arith.constant 0 : index
    %c0_73 = arith.constant 0 : index
    %64 = vector.load %arg8[%c1_71, %c0_72, %c0_73] : memref<3x8x8xf32, #tpu.memory_space<vmem>>, vector<1x8x8xf32>
    %65 = vector.shape_cast %64 : vector<1x8x8xf32> to vector<8x8xf32>
    %c0_74 = arith.constant 0 : index
    %c1_75 = arith.constant 1 : index
    %c0_76 = arith.constant 0 : index
    %c0_77 = arith.constant 0 : index
    %66 = vector.load %arg9[%c0_74, %c1_75, %c0_76, %c0_77] : memref<1x3x128x128xf32, #tpu.memory_space<vmem>>, vector<1x1x128x128xf32>
    %67 = vector.shape_cast %66 : vector<1x1x128x128xf32> to vector<128x128xf32>
    %cst_78 = arith.constant dense<0.000000e+00> : vector<8x128xf32>
    %68 = tpu.matmul %55, %67, %cst_78 {dimension_numbers = #tpu.dot_dimension_numbers<[1], [0], [0], [1], [0, 0, 1, 1], [], []>} : vector<8x128xf32>, vector<128x128xf32>, vector<8x128xf32> -> vector<8x128xf32>
    %cst_79 = arith.constant dense<0.000000e+00> : vector<8x128xf32>
    %69 = tpu.matmul %65, %68, %cst_79 {dimension_numbers = #tpu.dot_dimension_numbers<[1], [0], [0], [1], [0, 0, 1, 1], [], []>} : vector<8x8xf32>, vector<8x128xf32>, vector<8x128xf32> -> vector<8x128xf32>
    %70 = arith.addf %63, %69 : vector<8x128xf32>
    %c2_80 = arith.constant 2 : index
    %c0_81 = arith.constant 0 : index
    %c0_82 = arith.constant 0 : index
    %71 = vector.load %arg8[%c2_80, %c0_81, %c0_82] : memref<3x8x8xf32, #tpu.memory_space<vmem>>, vector<1x8x8xf32>
    %72 = vector.shape_cast %71 : vector<1x8x8xf32> to vector<8x8xf32>
    %c0_83 = arith.constant 0 : index
    %c2_84 = arith.constant 2 : index
    %c0_85 = arith.constant 0 : index
    %c0_86 = arith.constant 0 : index
    %73 = vector.load %arg9[%c0_83, %c2_84, %c0_85, %c0_86] : memref<1x3x128x128xf32, #tpu.memory_space<vmem>>, vector<1x1x128x128xf32>
    %74 = vector.shape_cast %73 : vector<1x1x128x128xf32> to vector<128x128xf32>
    %cst_87 = arith.constant dense<0.000000e+00> : vector<8x128xf32>
    %75 = tpu.matmul %55, %74, %cst_87 {dimension_numbers = #tpu.dot_dimension_numbers<[1], [0], [0], [1], [0, 0, 1, 1], [], []>} : vector<8x128xf32>, vector<128x128xf32>, vector<8x128xf32> -> vector<8x128xf32>
    %cst_88 = arith.constant dense<0.000000e+00> : vector<8x128xf32>
    %76 = tpu.matmul %72, %75, %cst_88 {dimension_numbers = #tpu.dot_dimension_numbers<[1], [0], [0], [1], [0, 0, 1, 1], [], []>} : vector<8x8xf32>, vector<8x128xf32>, vector<8x128xf32> -> vector<8x128xf32>
    %77 = arith.addf %70, %76 : vector<8x128xf32>
    %c0_89 = arith.constant 0 : index
    %c0_90 = arith.constant 0 : index
    %78 = vector.load %arg10[%c0_89, %c0_90] : memref<1x128xf32, #tpu.memory_space<vmem>>, vector<1x128xf32>
    %79 = vector.broadcast %78 : vector<1x128xf32> to vector<8x128xf32>
    %80 = arith.addf %77, %79 : vector<8x128xf32>
    %cst_91 = arith.constant 0.000000e+00 : f32
    %81 = vector.broadcast %cst_91 : f32 to vector<8x128xf32>
    %82 = arith.maximumf %80, %81 : vector<8x128xf32>
    %cst_92 = arith.constant 0.000000e+00 : f32
    %83 = vector.broadcast %cst_92 : f32 to vector<8x128xf32>
    %c0_93 = arith.constant 0 : index
    %c0_94 = arith.constant 0 : index
    %c0_95 = arith.constant 0 : index
    %84 = vector.load %arg11[%c0_93, %c0_94, %c0_95] : memref<3x8x8xf32, #tpu.memory_space<vmem>>, vector<1x8x8xf32>
    %85 = vector.shape_cast %84 : vector<1x8x8xf32> to vector<8x8xf32>
    %c0_96 = arith.constant 0 : index
    %c0_97 = arith.constant 0 : index
    %c0_98 = arith.constant 0 : index
    %c0_99 = arith.constant 0 : index
    %86 = vector.load %arg12[%c0_96, %c0_97, %c0_98, %c0_99] : memref<1x3x128x128xf32, #tpu.memory_space<vmem>>, vector<1x1x128x128xf32>
    %87 = vector.shape_cast %86 : vector<1x1x128x128xf32> to vector<128x128xf32>
    %cst_100 = arith.constant dense<0.000000e+00> : vector<8x128xf32>
    %88 = tpu.matmul %82, %87, %cst_100 {dimension_numbers = #tpu.dot_dimension_numbers<[1], [0], [0], [1], [0, 0, 1, 1], [], []>} : vector<8x128xf32>, vector<128x128xf32>, vector<8x128xf32> -> vector<8x128xf32>
    %cst_101 = arith.constant dense<0.000000e+00> : vector<8x128xf32>
    %89 = tpu.matmul %85, %88, %cst_101 {dimension_numbers = #tpu.dot_dimension_numbers<[1], [0], [0], [1], [0, 0, 1, 1], [], []>} : vector<8x8xf32>, vector<8x128xf32>, vector<8x128xf32> -> vector<8x128xf32>
    %90 = arith.addf %83, %89 : vector<8x128xf32>
    %c1_102 = arith.constant 1 : index
    %c0_103 = arith.constant 0 : index
    %c0_104 = arith.constant 0 : index
    %91 = vector.load %arg11[%c1_102, %c0_103, %c0_104] : memref<3x8x8xf32, #tpu.memory_space<vmem>>, vector<1x8x8xf32>
    %92 = vector.shape_cast %91 : vector<1x8x8xf32> to vector<8x8xf32>
    %c0_105 = arith.constant 0 : index
    %c1_106 = arith.constant 1 : index
    %c0_107 = arith.constant 0 : index
    %c0_108 = arith.constant 0 : index
    %93 = vector.load %arg12[%c0_105, %c1_106, %c0_107, %c0_108] : memref<1x3x128x128xf32, #tpu.memory_space<vmem>>, vector<1x1x128x128xf32>
    %94 = vector.shape_cast %93 : vector<1x1x128x128xf32> to vector<128x128xf32>
    %cst_109 = arith.constant dense<0.000000e+00> : vector<8x128xf32>
    %95 = tpu.matmul %82, %94, %cst_109 {dimension_numbers = #tpu.dot_dimension_numbers<[1], [0], [0], [1], [0, 0, 1, 1], [], []>} : vector<8x128xf32>, vector<128x128xf32>, vector<8x128xf32> -> vector<8x128xf32>
    %cst_110 = arith.constant dense<0.000000e+00> : vector<8x128xf32>
    %96 = tpu.matmul %92, %95, %cst_110 {dimension_numbers = #tpu.dot_dimension_numbers<[1], [0], [0], [1], [0, 0, 1, 1], [], []>} : vector<8x8xf32>, vector<8x128xf32>, vector<8x128xf32> -> vector<8x128xf32>
    %97 = arith.addf %90, %96 : vector<8x128xf32>
    %c2_111 = arith.constant 2 : index
    %c0_112 = arith.constant 0 : index
    %c0_113 = arith.constant 0 : index
    %98 = vector.load %arg11[%c2_111, %c0_112, %c0_113] : memref<3x8x8xf32, #tpu.memory_space<vmem>>, vector<1x8x8xf32>
    %99 = vector.shape_cast %98 : vector<1x8x8xf32> to vector<8x8xf32>
    %c0_114 = arith.constant 0 : index
    %c2_115 = arith.constant 2 : index
    %c0_116 = arith.constant 0 : index
    %c0_117 = arith.constant 0 : index
    %100 = vector.load %arg12[%c0_114, %c2_115, %c0_116, %c0_117] : memref<1x3x128x128xf32, #tpu.memory_space<vmem>>, vector<1x1x128x128xf32>
    %101 = vector.shape_cast %100 : vector<1x1x128x128xf32> to vector<128x128xf32>
    %cst_118 = arith.constant dense<0.000000e+00> : vector<8x128xf32>
    %102 = tpu.matmul %82, %101, %cst_118 {dimension_numbers = #tpu.dot_dimension_numbers<[1], [0], [0], [1], [0, 0, 1, 1], [], []>} : vector<8x128xf32>, vector<128x128xf32>, vector<8x128xf32> -> vector<8x128xf32>
    %cst_119 = arith.constant dense<0.000000e+00> : vector<8x128xf32>
    %103 = tpu.matmul %99, %102, %cst_119 {dimension_numbers = #tpu.dot_dimension_numbers<[1], [0], [0], [1], [0, 0, 1, 1], [], []>} : vector<8x8xf32>, vector<8x128xf32>, vector<8x128xf32> -> vector<8x128xf32>
    %104 = arith.addf %97, %103 : vector<8x128xf32>
    %c0_120 = arith.constant 0 : index
    %c0_121 = arith.constant 0 : index
    %105 = vector.load %arg13[%c0_120, %c0_121] : memref<1x128xf32, #tpu.memory_space<vmem>>, vector<1x128xf32>
    %106 = vector.broadcast %105 : vector<1x128xf32> to vector<8x128xf32>
    %107 = arith.addf %104, %106 : vector<8x128xf32>
    %cst_122 = arith.constant 0.000000e+00 : f32
    %108 = vector.broadcast %cst_122 : f32 to vector<8x128xf32>
    %109 = arith.maximumf %107, %108 : vector<8x128xf32>
    %cst_123 = arith.constant 0.000000e+00 : f32
    %110 = vector.broadcast %cst_123 : f32 to vector<16x128xf32>
    %c0_124 = arith.constant 0 : index
    %c0_125 = arith.constant 0 : index
    %c0_126 = arith.constant 0 : index
    %111 = vector.load %arg14[%c0_124, %c0_125, %c0_126] : memref<3x16x8xf32, #tpu.memory_space<vmem>>, vector<1x16x8xf32>
    %112 = vector.shape_cast %111 : vector<1x16x8xf32> to vector<16x8xf32>
    %c0_127 = arith.constant 0 : index
    %c0_128 = arith.constant 0 : index
    %c0_129 = arith.constant 0 : index
    %c0_130 = arith.constant 0 : index
    %113 = vector.load %arg15[%c0_127, %c0_128, %c0_129, %c0_130] : memref<2x3x128x128xf32, #tpu.memory_space<vmem>>, vector<1x1x128x128xf32>
    %114 = vector.shape_cast %113 : vector<1x1x128x128xf32> to vector<128x128xf32>
    %cst_131 = arith.constant dense<0.000000e+00> : vector<8x128xf32>
    %115 = tpu.matmul %55, %114, %cst_131 {dimension_numbers = #tpu.dot_dimension_numbers<[1], [0], [0], [1], [0, 0, 1, 1], [], []>} : vector<8x128xf32>, vector<128x128xf32>, vector<8x128xf32> -> vector<8x128xf32>
    %c1_132 = arith.constant 1 : index
    %c0_133 = arith.constant 0 : index
    %c0_134 = arith.constant 0 : index
    %c0_135 = arith.constant 0 : index
    %116 = vector.load %arg15[%c1_132, %c0_133, %c0_134, %c0_135] : memref<2x3x128x128xf32, #tpu.memory_space<vmem>>, vector<1x1x128x128xf32>
    %117 = vector.shape_cast %116 : vector<1x1x128x128xf32> to vector<128x128xf32>
    %cst_136 = arith.constant dense<0.000000e+00> : vector<8x128xf32>
    %118 = tpu.matmul %109, %117, %cst_136 {dimension_numbers = #tpu.dot_dimension_numbers<[1], [0], [0], [1], [0, 0, 1, 1], [], []>} : vector<8x128xf32>, vector<128x128xf32>, vector<8x128xf32> -> vector<8x128xf32>
    %119 = arith.addf %115, %118 : vector<8x128xf32>
    %cst_137 = arith.constant dense<0.000000e+00> : vector<16x128xf32>
    %120 = tpu.matmul %112, %119, %cst_137 {dimension_numbers = #tpu.dot_dimension_numbers<[1], [0], [0], [1], [0, 0, 1, 1], [], []>} : vector<16x8xf32>, vector<8x128xf32>, vector<16x128xf32> -> vector<16x128xf32>
    %121 = arith.addf %110, %120 : vector<16x128xf32>
    %c1_138 = arith.constant 1 : index
    %c0_139 = arith.constant 0 : index
    %c0_140 = arith.constant 0 : index
    %122 = vector.load %arg14[%c1_138, %c0_139, %c0_140] : memref<3x16x8xf32, #tpu.memory_space<vmem>>, vector<1x16x8xf32>
    %123 = vector.shape_cast %122 : vector<1x16x8xf32> to vector<16x8xf32>
    %c0_141 = arith.constant 0 : index
    %c1_142 = arith.constant 1 : index
    %c0_143 = arith.constant 0 : index
    %c0_144 = arith.constant 0 : index
    %124 = vector.load %arg15[%c0_141, %c1_142, %c0_143, %c0_144] : memref<2x3x128x128xf32, #tpu.memory_space<vmem>>, vector<1x1x128x128xf32>
    %125 = vector.shape_cast %124 : vector<1x1x128x128xf32> to vector<128x128xf32>
    %cst_145 = arith.constant dense<0.000000e+00> : vector<8x128xf32>
    %126 = tpu.matmul %55, %125, %cst_145 {dimension_numbers = #tpu.dot_dimension_numbers<[1], [0], [0], [1], [0, 0, 1, 1], [], []>} : vector<8x128xf32>, vector<128x128xf32>, vector<8x128xf32> -> vector<8x128xf32>
    %c1_146 = arith.constant 1 : index
    %c1_147 = arith.constant 1 : index
    %c0_148 = arith.constant 0 : index
    %c0_149 = arith.constant 0 : index
    %127 = vector.load %arg15[%c1_146, %c1_147, %c0_148, %c0_149] : memref<2x3x128x128xf32, #tpu.memory_space<vmem>>, vector<1x1x128x128xf32>
    %128 = vector.shape_cast %127 : vector<1x1x128x128xf32> to vector<128x128xf32>
    %cst_150 = arith.constant dense<0.000000e+00> : vector<8x128xf32>
    %129 = tpu.matmul %109, %128, %cst_150 {dimension_numbers = #tpu.dot_dimension_numbers<[1], [0], [0], [1], [0, 0, 1, 1], [], []>} : vector<8x128xf32>, vector<128x128xf32>, vector<8x128xf32> -> vector<8x128xf32>
    %130 = arith.addf %126, %129 : vector<8x128xf32>
    %cst_151 = arith.constant dense<0.000000e+00> : vector<16x128xf32>
    %131 = tpu.matmul %123, %130, %cst_151 {dimension_numbers = #tpu.dot_dimension_numbers<[1], [0], [0], [1], [0, 0, 1, 1], [], []>} : vector<16x8xf32>, vector<8x128xf32>, vector<16x128xf32> -> vector<16x128xf32>
    %132 = arith.addf %121, %131 : vector<16x128xf32>
    %c2_152 = arith.constant 2 : index
    %c0_153 = arith.constant 0 : index
    %c0_154 = arith.constant 0 : index
    %133 = vector.load %arg14[%c2_152, %c0_153, %c0_154] : memref<3x16x8xf32, #tpu.memory_space<vmem>>, vector<1x16x8xf32>
    %134 = vector.shape_cast %133 : vector<1x16x8xf32> to vector<16x8xf32>
    %c0_155 = arith.constant 0 : index
    %c2_156 = arith.constant 2 : index
    %c0_157 = arith.constant 0 : index
    %c0_158 = arith.constant 0 : index
    %135 = vector.load %arg15[%c0_155, %c2_156, %c0_157, %c0_158] : memref<2x3x128x128xf32, #tpu.memory_space<vmem>>, vector<1x1x128x128xf32>
    %136 = vector.shape_cast %135 : vector<1x1x128x128xf32> to vector<128x128xf32>
    %cst_159 = arith.constant dense<0.000000e+00> : vector<8x128xf32>
    %137 = tpu.matmul %55, %136, %cst_159 {dimension_numbers = #tpu.dot_dimension_numbers<[1], [0], [0], [1], [0, 0, 1, 1], [], []>} : vector<8x128xf32>, vector<128x128xf32>, vector<8x128xf32> -> vector<8x128xf32>
    %c1_160 = arith.constant 1 : index
    %c2_161 = arith.constant 2 : index
    %c0_162 = arith.constant 0 : index
    %c0_163 = arith.constant 0 : index
    %138 = vector.load %arg15[%c1_160, %c2_161, %c0_162, %c0_163] : memref<2x3x128x128xf32, #tpu.memory_space<vmem>>, vector<1x1x128x128xf32>
    %139 = vector.shape_cast %138 : vector<1x1x128x128xf32> to vector<128x128xf32>
    %cst_164 = arith.constant dense<0.000000e+00> : vector<8x128xf32>
    %140 = tpu.matmul %109, %139, %cst_164 {dimension_numbers = #tpu.dot_dimension_numbers<[1], [0], [0], [1], [0, 0, 1, 1], [], []>} : vector<8x128xf32>, vector<128x128xf32>, vector<8x128xf32> -> vector<8x128xf32>
    %141 = arith.addf %137, %140 : vector<8x128xf32>
    %cst_165 = arith.constant dense<0.000000e+00> : vector<16x128xf32>
    %142 = tpu.matmul %134, %141, %cst_165 {dimension_numbers = #tpu.dot_dimension_numbers<[1], [0], [0], [1], [0, 0, 1, 1], [], []>} : vector<16x8xf32>, vector<8x128xf32>, vector<16x128xf32> -> vector<16x128xf32>
    %143 = arith.addf %132, %142 : vector<16x128xf32>
    %c0_166 = arith.constant 0 : index
    %c0_167 = arith.constant 0 : index
    %144 = vector.load %arg16[%c0_166, %c0_167] : memref<1x128xf32, #tpu.memory_space<vmem>>, vector<1x128xf32>
    %145 = vector.broadcast %144 : vector<1x128xf32> to vector<16x128xf32>
    %146 = arith.addf %143, %145 : vector<16x128xf32>
    %cst_168 = arith.constant 0.000000e+00 : f32
    %147 = vector.broadcast %cst_168 : f32 to vector<16x128xf32>
    %148 = arith.maximumf %146, %147 : vector<16x128xf32>
    %cst_169 = arith.constant 0.000000e+00 : f32
    %149 = vector.broadcast %cst_169 : f32 to vector<32x256xf32>
    %c0_170 = arith.constant 0 : index
    %c0_171 = arith.constant 0 : index
    %c0_172 = arith.constant 0 : index
    %150 = vector.load %arg17[%c0_170, %c0_171, %c0_172] : memref<3x32x16xf32, #tpu.memory_space<vmem>>, vector<1x32x16xf32>
    %151 = vector.shape_cast %150 : vector<1x32x16xf32> to vector<32x16xf32>
    %c0_173 = arith.constant 0 : index
    %c0_174 = arith.constant 0 : index
    %c0_175 = arith.constant 0 : index
    %c0_176 = arith.constant 0 : index
    %152 = vector.load %arg18[%c0_173, %c0_174, %c0_175, %c0_176] : memref<2x3x128x256xf32, #tpu.memory_space<vmem>>, vector<1x1x128x256xf32>
    %153 = vector.shape_cast %152 : vector<1x1x128x256xf32> to vector<128x256xf32>
    %cst_177 = arith.constant dense<0.000000e+00> : vector<16x256xf32>
    %154 = tpu.matmul %28, %153, %cst_177 {dimension_numbers = #tpu.dot_dimension_numbers<[1], [0], [0], [1], [0, 0, 1, 1], [], []>} : vector<16x128xf32>, vector<128x256xf32>, vector<16x256xf32> -> vector<16x256xf32>
    %c1_178 = arith.constant 1 : index
    %c0_179 = arith.constant 0 : index
    %c0_180 = arith.constant 0 : index
    %c0_181 = arith.constant 0 : index
    %155 = vector.load %arg18[%c1_178, %c0_179, %c0_180, %c0_181] : memref<2x3x128x256xf32, #tpu.memory_space<vmem>>, vector<1x1x128x256xf32>
    %156 = vector.shape_cast %155 : vector<1x1x128x256xf32> to vector<128x256xf32>
    %cst_182 = arith.constant dense<0.000000e+00> : vector<16x256xf32>
    %157 = tpu.matmul %148, %156, %cst_182 {dimension_numbers = #tpu.dot_dimension_numbers<[1], [0], [0], [1], [0, 0, 1, 1], [], []>} : vector<16x128xf32>, vector<128x256xf32>, vector<16x256xf32> -> vector<16x256xf32>
    %158 = arith.addf %154, %157 : vector<16x256xf32>
    %cst_183 = arith.constant dense<0.000000e+00> : vector<32x256xf32>
    %159 = tpu.matmul %151, %158, %cst_183 {dimension_numbers = #tpu.dot_dimension_numbers<[1], [0], [0], [1], [0, 0, 1, 1], [], []>} : vector<32x16xf32>, vector<16x256xf32>, vector<32x256xf32> -> vector<32x256xf32>
    %160 = arith.addf %149, %159 : vector<32x256xf32>
    %c1_184 = arith.constant 1 : index
    %c0_185 = arith.constant 0 : index
    %c0_186 = arith.constant 0 : index
    %161 = vector.load %arg17[%c1_184, %c0_185, %c0_186] : memref<3x32x16xf32, #tpu.memory_space<vmem>>, vector<1x32x16xf32>
    %162 = vector.shape_cast %161 : vector<1x32x16xf32> to vector<32x16xf32>
    %c0_187 = arith.constant 0 : index
    %c1_188 = arith.constant 1 : index
    %c0_189 = arith.constant 0 : index
    %c0_190 = arith.constant 0 : index
    %163 = vector.load %arg18[%c0_187, %c1_188, %c0_189, %c0_190] : memref<2x3x128x256xf32, #tpu.memory_space<vmem>>, vector<1x1x128x256xf32>
    %164 = vector.shape_cast %163 : vector<1x1x128x256xf32> to vector<128x256xf32>
    %cst_191 = arith.constant dense<0.000000e+00> : vector<16x256xf32>
    %165 = tpu.matmul %28, %164, %cst_191 {dimension_numbers = #tpu.dot_dimension_numbers<[1], [0], [0], [1], [0, 0, 1, 1], [], []>} : vector<16x128xf32>, vector<128x256xf32>, vector<16x256xf32> -> vector<16x256xf32>
    %c1_192 = arith.constant 1 : index
    %c1_193 = arith.constant 1 : index
    %c0_194 = arith.constant 0 : index
    %c0_195 = arith.constant 0 : index
    %166 = vector.load %arg18[%c1_192, %c1_193, %c0_194, %c0_195] : memref<2x3x128x256xf32, #tpu.memory_space<vmem>>, vector<1x1x128x256xf32>
    %167 = vector.shape_cast %166 : vector<1x1x128x256xf32> to vector<128x256xf32>
    %cst_196 = arith.constant dense<0.000000e+00> : vector<16x256xf32>
    %168 = tpu.matmul %148, %167, %cst_196 {dimension_numbers = #tpu.dot_dimension_numbers<[1], [0], [0], [1], [0, 0, 1, 1], [], []>} : vector<16x128xf32>, vector<128x256xf32>, vector<16x256xf32> -> vector<16x256xf32>
    %169 = arith.addf %165, %168 : vector<16x256xf32>
    %cst_197 = arith.constant dense<0.000000e+00> : vector<32x256xf32>
    %170 = tpu.matmul %162, %169, %cst_197 {dimension_numbers = #tpu.dot_dimension_numbers<[1], [0], [0], [1], [0, 0, 1, 1], [], []>} : vector<32x16xf32>, vector<16x256xf32>, vector<32x256xf32> -> vector<32x256xf32>
    %171 = arith.addf %160, %170 : vector<32x256xf32>
    %c2_198 = arith.constant 2 : index
    %c0_199 = arith.constant 0 : index
    %c0_200 = arith.constant 0 : index
    %172 = vector.load %arg17[%c2_198, %c0_199, %c0_200] : memref<3x32x16xf32, #tpu.memory_space<vmem>>, vector<1x32x16xf32>
    %173 = vector.shape_cast %172 : vector<1x32x16xf32> to vector<32x16xf32>
    %c0_201 = arith.constant 0 : index
    %c2_202 = arith.constant 2 : index
    %c0_203 = arith.constant 0 : index
    %c0_204 = arith.constant 0 : index
    %174 = vector.load %arg18[%c0_201, %c2_202, %c0_203, %c0_204] : memref<2x3x128x256xf32, #tpu.memory_space<vmem>>, vector<1x1x128x256xf32>
    %175 = vector.shape_cast %174 : vector<1x1x128x256xf32> to vector<128x256xf32>
    %cst_205 = arith.constant dense<0.000000e+00> : vector<16x256xf32>
    %176 = tpu.matmul %28, %175, %cst_205 {dimension_numbers = #tpu.dot_dimension_numbers<[1], [0], [0], [1], [0, 0, 1, 1], [], []>} : vector<16x128xf32>, vector<128x256xf32>, vector<16x256xf32> -> vector<16x256xf32>
    %c1_206 = arith.constant 1 : index
    %c2_207 = arith.constant 2 : index
    %c0_208 = arith.constant 0 : index
    %c0_209 = arith.constant 0 : index
    %177 = vector.load %arg18[%c1_206, %c2_207, %c0_208, %c0_209] : memref<2x3x128x256xf32, #tpu.memory_space<vmem>>, vector<1x1x128x256xf32>
    %178 = vector.shape_cast %177 : vector<1x1x128x256xf32> to vector<128x256xf32>
    %cst_210 = arith.constant dense<0.000000e+00> : vector<16x256xf32>
    %179 = tpu.matmul %148, %178, %cst_210 {dimension_numbers = #tpu.dot_dimension_numbers<[1], [0], [0], [1], [0, 0, 1, 1], [], []>} : vector<16x128xf32>, vector<128x256xf32>, vector<16x256xf32> -> vector<16x256xf32>
    %180 = arith.addf %176, %179 : vector<16x256xf32>
    %cst_211 = arith.constant dense<0.000000e+00> : vector<32x256xf32>
    %181 = tpu.matmul %173, %180, %cst_211 {dimension_numbers = #tpu.dot_dimension_numbers<[1], [0], [0], [1], [0, 0, 1, 1], [], []>} : vector<32x16xf32>, vector<16x256xf32>, vector<32x256xf32> -> vector<32x256xf32>
    %182 = arith.addf %171, %181 : vector<32x256xf32>
    %c0_212 = arith.constant 0 : index
    %c0_213 = arith.constant 0 : index
    %183 = vector.load %arg19[%c0_212, %c0_213] : memref<1x256xf32, #tpu.memory_space<vmem>>, vector<1x256xf32>
    %184 = vector.broadcast %183 : vector<1x256xf32> to vector<32x256xf32>
    %185 = arith.addf %182, %184 : vector<32x256xf32>
    %cst_214 = arith.constant 0.000000e+00 : f32
    %186 = vector.broadcast %cst_214 : f32 to vector<32x256xf32>
    %187 = arith.maximumf %185, %186 : vector<32x256xf32>
    %cst_215 = arith.constant 0.000000e+00 : f32
    %188 = vector.broadcast %cst_215 : f32 to vector<32x256xf32>
    %c0_216 = arith.constant 0 : index
    %c0_217 = arith.constant 0 : index
    %c0_218 = arith.constant 0 : index
    %189 = vector.load %arg20[%c0_216, %c0_217, %c0_218] : memref<3x32x32xf32, #tpu.memory_space<vmem>>, vector<1x32x32xf32>
    %190 = vector.shape_cast %189 : vector<1x32x32xf32> to vector<32x32xf32>
    %c0_219 = arith.constant 0 : index
    %c0_220 = arith.constant 0 : index
    %c0_221 = arith.constant 0 : index
    %c0_222 = arith.constant 0 : index
    %191 = vector.load %arg21[%c0_219, %c0_220, %c0_221, %c0_222] : memref<1x3x256x256xf32, #tpu.memory_space<vmem>>, vector<1x1x256x256xf32>
    %192 = vector.shape_cast %191 : vector<1x1x256x256xf32> to vector<256x256xf32>
    %cst_223 = arith.constant dense<0.000000e+00> : vector<32x256xf32>
    %193 = tpu.matmul %187, %192, %cst_223 {dimension_numbers = #tpu.dot_dimension_numbers<[1], [0], [0], [1], [0, 0, 1, 1], [], []>} : vector<32x256xf32>, vector<256x256xf32>, vector<32x256xf32> -> vector<32x256xf32>
    %cst_224 = arith.constant dense<0.000000e+00> : vector<32x256xf32>
    %194 = tpu.matmul %190, %193, %cst_224 {dimension_numbers = #tpu.dot_dimension_numbers<[1], [0], [0], [1], [0, 0, 1, 1], [], []>} : vector<32x32xf32>, vector<32x256xf32>, vector<32x256xf32> -> vector<32x256xf32>
    %195 = arith.addf %188, %194 : vector<32x256xf32>
    %c1_225 = arith.constant 1 : index
    %c0_226 = arith.constant 0 : index
    %c0_227 = arith.constant 0 : index
    %196 = vector.load %arg20[%c1_225, %c0_226, %c0_227] : memref<3x32x32xf32, #tpu.memory_space<vmem>>, vector<1x32x32xf32>
    %197 = vector.shape_cast %196 : vector<1x32x32xf32> to vector<32x32xf32>
    %c0_228 = arith.constant 0 : index
    %c1_229 = arith.constant 1 : index
    %c0_230 = arith.constant 0 : index
    %c0_231 = arith.constant 0 : index
    %198 = vector.load %arg21[%c0_228, %c1_229, %c0_230, %c0_231] : memref<1x3x256x256xf32, #tpu.memory_space<vmem>>, vector<1x1x256x256xf32>
    %199 = vector.shape_cast %198 : vector<1x1x256x256xf32> to vector<256x256xf32>
    %cst_232 = arith.constant dense<0.000000e+00> : vector<32x256xf32>
    %200 = tpu.matmul %187, %199, %cst_232 {dimension_numbers = #tpu.dot_dimension_numbers<[1], [0], [0], [1], [0, 0, 1, 1], [], []>} : vector<32x256xf32>, vector<256x256xf32>, vector<32x256xf32> -> vector<32x256xf32>
    %cst_233 = arith.constant dense<0.000000e+00> : vector<32x256xf32>
    %201 = tpu.matmul %197, %200, %cst_233 {dimension_numbers = #tpu.dot_dimension_numbers<[1], [0], [0], [1], [0, 0, 1, 1], [], []>} : vector<32x32xf32>, vector<32x256xf32>, vector<32x256xf32> -> vector<32x256xf32>
    %202 = arith.addf %195, %201 : vector<32x256xf32>
    %c2_234 = arith.constant 2 : index
    %c0_235 = arith.constant 0 : index
    %c0_236 = arith.constant 0 : index
    %203 = vector.load %arg20[%c2_234, %c0_235, %c0_236] : memref<3x32x32xf32, #tpu.memory_space<vmem>>, vector<1x32x32xf32>
    %204 = vector.shape_cast %203 : vector<1x32x32xf32> to vector<32x32xf32>
    %c0_237 = arith.constant 0 : index
    %c2_238 = arith.constant 2 : index
    %c0_239 = arith.constant 0 : index
    %c0_240 = arith.constant 0 : index
    %205 = vector.load %arg21[%c0_237, %c2_238, %c0_239, %c0_240] : memref<1x3x256x256xf32, #tpu.memory_space<vmem>>, vector<1x1x256x256xf32>
    %206 = vector.shape_cast %205 : vector<1x1x256x256xf32> to vector<256x256xf32>
    %cst_241 = arith.constant dense<0.000000e+00> : vector<32x256xf32>
    %207 = tpu.matmul %187, %206, %cst_241 {dimension_numbers = #tpu.dot_dimension_numbers<[1], [0], [0], [1], [0, 0, 1, 1], [], []>} : vector<32x256xf32>, vector<256x256xf32>, vector<32x256xf32> -> vector<32x256xf32>
    %cst_242 = arith.constant dense<0.000000e+00> : vector<32x256xf32>
    %208 = tpu.matmul %204, %207, %cst_242 {dimension_numbers = #tpu.dot_dimension_numbers<[1], [0], [0], [1], [0, 0, 1, 1], [], []>} : vector<32x32xf32>, vector<32x256xf32>, vector<32x256xf32> -> vector<32x256xf32>
    %209 = arith.addf %202, %208 : vector<32x256xf32>
    %c0_243 = arith.constant 0 : index
    %c0_244 = arith.constant 0 : index
    %210 = vector.load %arg22[%c0_243, %c0_244] : memref<1x256xf32, #tpu.memory_space<vmem>>, vector<1x256xf32>
    %211 = vector.broadcast %210 : vector<1x256xf32> to vector<32x256xf32>
    %212 = arith.addf %209, %211 : vector<32x256xf32>
    %c0_245 = arith.constant 0 : index
    %c0_246 = arith.constant 0 : index
    %c0_247 = arith.constant 0 : index
    %213 = vector.load %arg23[%c0_245, %c0_246, %c0_247] : memref<1x32x256xf32, #tpu.memory_space<vmem>>, vector<1x32x256xf32>
    %214 = vector.shape_cast %213 : vector<1x32x256xf32> to vector<32x256xf32>
    %215 = vector.shape_cast %212 : vector<32x256xf32> to vector<1x32x256xf32>
    tpu.vector_store %arg23[%c0_245, %c0_246, %c0_247], %215 {strides = array<i32>} : memref<1x32x256xf32, #tpu.memory_space<vmem>>, vector<1x32x256xf32>,
    return
  }
  func.func @transform_0(%arg0: i32) -> (i32, i32, i32) {
    %c0_i32 = arith.constant 0 : i32
    %c0_i32_0 = arith.constant 0 : i32
    %c0_i32_1 = arith.constant 0 : i32
    return %arg0, %c0_i32, %c0_i32_0 : i32, i32, i32
  }
  func.func @transform_1(%arg0: i32) -> (i32, i32, i32) {
    %c0_i32 = arith.constant 0 : i32
    %c0_i32_0 = arith.constant 0 : i32
    %c0_i32_1 = arith.constant 0 : i32
    %c0_i32_2 = arith.constant 0 : i32
    return %c0_i32, %c0_i32_0, %c0_i32_1 : i32, i32, i32
  }
  func.func @transform_2(%arg0: i32) -> (i32, i32, i32, i32) {
    %c0_i32 = arith.constant 0 : i32
    %c0_i32_0 = arith.constant 0 : i32
    %c0_i32_1 = arith.constant 0 : i32
    %c0_i32_2 = arith.constant 0 : i32
    %c0_i32_3 = arith.constant 0 : i32
    return %c0_i32, %c0_i32_0, %c0_i32_1, %c0_i32_2 : i32, i32, i32, i32
  }
  func.func @transform_3(%arg0: i32) -> (i32, i32) {
    %c0_i32 = arith.constant 0 : i32
    %c0_i32_0 = arith.constant 0 : i32
    %c0_i32_1 = arith.constant 0 : i32
    return %c0_i32, %c0_i32_0 : i32, i32
  }
  func.func @transform_4(%arg0: i32) -> (i32, i32, i32) {
    %c0_i32 = arith.constant 0 : i32
    %c0_i32_0 = arith.constant 0 : i32
    %c0_i32_1 = arith.constant 0 : i32
    %c0_i32_2 = arith.constant 0 : i32
    return %c0_i32, %c0_i32_0, %c0_i32_1 : i32, i32, i32
  }
  func.func @transform_5(%arg0: i32) -> (i32, i32, i32, i32) {
    %c0_i32 = arith.constant 0 : i32
    %c0_i32_0 = arith.constant 0 : i32
    %c0_i32_1 = arith.constant 0 : i32
    %c0_i32_2 = arith.constant 0 : i32
    %c0_i32_3 = arith.constant 0 : i32
    return %c0_i32, %c0_i32_0, %c0_i32_1, %c0_i32_2 : i32, i32, i32, i32
  }
  func.func @transform_6(%arg0: i32) -> (i32, i32) {
    %c0_i32 = arith.constant 0 : i32
    %c0_i32_0 = arith.constant 0 : i32
    %c0_i32_1 = arith.constant 0 : i32
    return %c0_i32, %c0_i32_0 : i32, i32
  }
  func.func @transform_7(%arg0: i32) -> (i32, i32, i32) {
    %c0_i32 = arith.constant 0 : i32
    %c0_i32_0 = arith.constant 0 : i32
    %c0_i32_1 = arith.constant 0 : i32
    %c0_i32_2 = arith.constant 0 : i32
    return %c0_i32, %c0_i32_0, %c0_i32_1 : i32, i32, i32
  }
  func.func @transform_8(%arg0: i32) -> (i32, i32, i32, i32) {
    %c0_i32 = arith.constant 0 : i32
    %c0_i32_0 = arith.constant 0 : i32
    %c0_i32_1 = arith.constant 0 : i32
    %c0_i32_2 = arith.constant 0 : i32
    %c0_i32_3 = arith.constant 0 : i32
    return %c0_i32, %c0_i32_0, %c0_i32_1, %c0_i32_2 : i32, i32, i32, i32
  }
  func.func @transform_9(%arg0: i32) -> (i32, i32) {
    %c0_i32 = arith.constant 0 : i32
    %c0_i32_0 = arith.constant 0 : i32
    %c0_i32_1 = arith.constant 0 : i32
    return %c0_i32, %c0_i32_0 : i32, i32
  }
  func.func @transform_10(%arg0: i32) -> (i32, i32, i32) {
    %c0_i32 = arith.constant 0 : i32
    %c0_i32_0 = arith.constant 0 : i32
    %c0_i32_1 = arith.constant 0 : i32
    %c0_i32_2 = arith.constant 0 : i32
    return %c0_i32, %c0_i32_0, %c0_i32_1 : i32, i32, i32
  }
  func.func @transform_11(%arg0: i32) -> (i32, i32, i32, i32) {
    %c0_i32 = arith.constant 0 : i32
    %c0_i32_0 = arith.constant 0 : i32
    %c0_i32_1 = arith.constant 0 : i32
    %c0_i32_2 = arith.constant 0 : i32
    %c0_i32_3 = arith.constant 0 : i32
    return %c0_i32, %c0_i32_0, %c0_i32_1, %c0_i32_2 : i32, i32, i32, i32
  }
  func.func @transform_12(%arg0: i32) -> (i32, i32) {
    %c0_i32 = arith.constant 0 : i32
    %c0_i32_0 = arith.constant 0 : i32
    %c0_i32_1 = arith.constant 0 : i32
    return %c0_i32, %c0_i32_0 : i32, i32
  }
  func.func @transform_13(%arg0: i32) -> (i32, i32, i32) {
    %c0_i32 = arith.constant 0 : i32
    %c0_i32_0 = arith.constant 0 : i32
    %c0_i32_1 = arith.constant 0 : i32
    %c0_i32_2 = arith.constant 0 : i32
    return %c0_i32, %c0_i32_0, %c0_i32_1 : i32, i32, i32
  }
  func.func @transform_14(%arg0: i32) -> (i32, i32, i32, i32) {
    %c0_i32 = arith.constant 0 : i32
    %c0_i32_0 = arith.constant 0 : i32
    %c0_i32_1 = arith.constant 0 : i32
    %c0_i32_2 = arith.constant 0 : i32
    %c0_i32_3 = arith.constant 0 : i32
    return %c0_i32, %c0_i32_0, %c0_i32_1, %c0_i32_2 : i32, i32, i32, i32
  }
  func.func @transform_15(%arg0: i32) -> (i32, i32) {
    %c0_i32 = arith.constant 0 : i32
    %c0_i32_0 = arith.constant 0 : i32
    %c0_i32_1 = arith.constant 0 : i32
    return %c0_i32, %c0_i32_0 : i32, i32
  }
  func.func @transform_16(%arg0: i32) -> (i32, i32, i32) {
    %c0_i32 = arith.constant 0 : i32
    %c0_i32_0 = arith.constant 0 : i32
    %c0_i32_1 = arith.constant 0 : i32
    %c0_i32_2 = arith.constant 0 : i32
    return %c0_i32, %c0_i32_0, %c0_i32_1 : i32, i32, i32
  }
  func.func @transform_17(%arg0: i32) -> (i32, i32, i32, i32) {
    %c0_i32 = arith.constant 0 : i32
    %c0_i32_0 = arith.constant 0 : i32
    %c0_i32_1 = arith.constant 0 : i32
    %c0_i32_2 = arith.constant 0 : i32
    %c0_i32_3 = arith.constant 0 : i32
    return %c0_i32, %c0_i32_0, %c0_i32_1, %c0_i32_2 : i32, i32, i32, i32
  }
  func.func @transform_18(%arg0: i32) -> (i32, i32) {
    %c0_i32 = arith.constant 0 : i32
    %c0_i32_0 = arith.constant 0 : i32
    %c0_i32_1 = arith.constant 0 : i32
    return %c0_i32, %c0_i32_0 : i32, i32
  }
  func.func @transform_19(%arg0: i32) -> (i32, i32, i32) {
    %c0_i32 = arith.constant 0 : i32
    %c0_i32_0 = arith.constant 0 : i32
    %c0_i32_1 = arith.constant 0 : i32
    %c0_i32_2 = arith.constant 0 : i32
    return %c0_i32, %c0_i32_0, %c0_i32_1 : i32, i32, i32
  }
  func.func @transform_20(%arg0: i32) -> (i32, i32, i32, i32) {
    %c0_i32 = arith.constant 0 : i32
    %c0_i32_0 = arith.constant 0 : i32
    %c0_i32_1 = arith.constant 0 : i32
    %c0_i32_2 = arith.constant 0 : i32
    %c0_i32_3 = arith.constant 0 : i32
    return %c0_i32, %c0_i32_0, %c0_i32_1, %c0_i32_2 : i32, i32, i32, i32
  }
  func.func @transform_21(%arg0: i32) -> (i32, i32) {
    %c0_i32 = arith.constant 0 : i32
    %c0_i32_0 = arith.constant 0 : i32
    %c0_i32_1 = arith.constant 0 : i32
    return %c0_i32, %c0_i32_0 : i32, i32
  }
  func.func @transform_22(%arg0: i32) -> (i32, i32, i32) {
    %c0_i32 = arith.constant 0 : i32
    %c0_i32_0 = arith.constant 0 : i32
    %c0_i32_1 = arith.constant 0 : i32
    return %arg0, %c0_i32, %c0_i32_0 : i32, i32, i32
  }
}

</mosaic_0001>

<llo_original>
// kernel: forward.1
$region0: #{forward.1}
  #allocation0 [shape = 'u32[]', space=smem, size = 0x4, offset = 0x4, fixed_abs, tag = 'smem constant byte address 0x4 - core index']
  #allocation1 [shape = 'u32[144,128]{1,0:T(1,128)}', space=vmem, size = 0x12000, scoped, tag = 'internal scratch']
  %s0 = inlined_call_operand.vmem [shape: f32[2,32,128], index: 0, kind: input, shape index: {}]
  %s1 = inlined_call_operand.vmem [shape: f32[3,16,32], index: 1, kind: input, shape index: {}]
  %s2 = inlined_call_operand.hbm [shape: f32[1,3,128,128], index: 2, kind: input, shape index: {}]
  %s3 = inlined_call_operand.vmem [shape: f32[1,128], index: 3, kind: input, shape index: {}]
  %s4 = inlined_call_operand.hbm [shape: f32[3,8,16], index: 4, kind: input, shape index: {}]
  %s5 = inlined_call_operand.hbm [shape: f32[1,3,128,128], index: 5, kind: input, shape index: {}]
  %s6 = inlined_call_operand.vmem [shape: f32[1,128], index: 6, kind: input, shape index: {}]
  %s7 = inlined_call_operand.hbm [shape: f32[3,8,8], index: 7, kind: input, shape index: {}]
  %s8 = inlined_call_operand.hbm [shape: f32[1,3,128,128], index: 8, kind: input, shape index: {}]
  %s9 = inlined_call_operand.vmem [shape: f32[1,128], index: 9, kind: input, shape index: {}]
  %s10 = inlined_call_operand.vmem [shape: f32[3,8,8], index: 10, kind: input, shape index: {}]
  %s11 = inlined_call_operand.vmem [shape: f32[1,3,128,128], index: 11, kind: input, shape index: {}]
  %s12 = inlined_call_operand.vmem [shape: f32[1,128], index: 12, kind: input, shape index: {}]
  %s13 = inlined_call_operand.vmem [shape: f32[3,16,8], index: 13, kind: input, shape index: {}]
  %s14 = inlined_call_operand.hbm [shape: f32[2,3,128,128], index: 14, kind: input, shape index: {}]
  %s15 = inlined_call_operand.vmem [shape: f32[1,128], index: 15, kind: input, shape index: {}]
  %s16 = inlined_call_operand.vmem [shape: f32[3,32,16], index: 16, kind: input, shape index: {}]
  %s17 = inlined_call_operand.hbm [shape: f32[2,3,128,256], index: 17, kind: input, shape index: {}]
  %s18 = inlined_call_operand.vmem [shape: f32[1,256], index: 18, kind: input, shape index: {}]
  %s19 = inlined_call_operand.vmem [shape: f32[3,32,32], index: 19, kind: input, shape index: {}]
  %s20 = inlined_call_operand.hbm [shape: f32[1,3,256,256], index: 20, kind: input, shape index: {}]
  %s21 = inlined_call_operand.vmem [shape: f32[1,256], index: 21, kind: input, shape index: {}]
  %s22 = inlined_call_operand.vmem [shape: f32[2,32,256], index: 22, kind: output, shape index: {}]
  %s23 = sld [smem:[#allocation0]]
  $region153: #{forward.1} parent=0
    _
  %s25 = ssub.s32 1, %s23
  %s26 = scalar_select 0, %s25, %s23
  $region1: #{forward.1} parent=0
    #allocation2 [shape = 'u8[196608]{0}', space=vmem, size = 0x30000, scoped, tag = 'input window, operand 2, single buffered']
    #allocation3 [shape = 's32[2]{0}', space=sflag, size = 0x8, scoped, tag = 'scoped memory for forward.1']
    #allocation4 [shape = 'u8[12288]{0}', space=vmem, size = 0x3000, scoped, tag = 'input window, operand 4, single buffered']
    #allocation5 [shape = 's32[1]{0}', space=sflag, size = 0x4, scoped, tag = 'scoped memory for forward.1']
    #allocation6 [shape = 'u8[196608]{0}', space=vmem, size = 0x30000, scoped, tag = 'input window, operand 5, single buffered']
    #allocation7 [shape = 'u8[12288]{0}', space=vmem, size = 0x3000, scoped, tag = 'input window, operand 7, single buffered']
    #allocation8 [shape = 's32[1]{0}', space=sflag, size = 0x4, scoped, tag = 'scoped memory for forward.1']
    #allocation9 [shape = 'u8[196608]{0}', space=vmem, size = 0x30000, scoped, tag = 'input window, operand 8, single buffered']
    #allocation10 [shape = 'u8[393216]{0}', space=vmem, size = 0x60000, scoped, tag = 'input window, operand 14, single buffered']
    #allocation11 [shape = 's32[1]{0}', space=sflag, size = 0x4, scoped, tag = 'scoped memory for forward.1']
    #allocation12 [shape = 'u8[786432]{0}', space=vmem, size = 0xc0000, scoped, tag = 'input window, operand 17, single buffered']
    #allocation13 [shape = 'u8[786432]{0}', space=vmem, size = 0xc0000, scoped, tag = 'input window, operand 20, single buffered']
    #allocation14 [shape = 's32[1]{0}', space=sflag, size = 0x4, scoped, tag = 'scoped memory for forward.1']
    %27 = vsyncpa [#allocation3], 0
    %28 = vsyncpa [#allocation5], 0
    %29 = vsyncpa [#allocation8], 0
    %30 = vsyncpa [#allocation11], 0
    %31 = vsyncpa [#allocation14], 0
    loop: start=0, step=1, limit=4
    $region2: #{forward.1} parent=1 // loop_pre_header
      _
    $region3: #{forward.1} parent=1 // loop_header
      %s33 = sphi 0, %s37
      %p34 = scmp.ge.s32.totalorder %s33, 4
      %s43 = sphi 0, %s45
      %s46 = sphi 0, %s43
      %s47 = sphi 0, %s46
      %s63 = sphi 0, %s47
      %s67 = sphi 0, %s67
      %s69 = sphi 0, %s67
      %s70 = sphi 0, %s69
      %s84 = sphi 0, %s70
      %s88 = sphi 0, %s88
      %s90 = sphi 0, %s88
      %s91 = sphi 0, %s90
      %s105 = sphi 0, %s91
      %s109 = sphi 0, %s109
      %s111 = sphi 0, %s109
      %s112 = sphi 0, %s111
      %s126 = sphi 0, %s112
      %s130 = sphi 0, %s130
      %s132 = sphi 0, %s130
      %s133 = sphi 0, %s132
      %s147 = sphi 0, %s133
      %s151 = sphi 0, %s151
      %s153 = sphi 0, %s151
      %s154 = sphi 0, %s153
      %s168 = sphi 0, %s154
      %s172 = sphi 0, %s172
      %s174 = sphi 0, %s172
      %s175 = sphi 0, %s174
      %s189 = sphi 0, %s175
      %s193 = sphi 0, %s193
      %s195 = sphi 0, %s193
      %s196 = sphi 0, %s195
      %s210 = sphi 0, %s196
      %s214 = sphi 0, %s214
      %s216 = sphi 0, %s214
      %s217 = sphi 0, %s216
      %s231 = sphi 0, %s217
      %s235 = sphi 0, %s235
      %s237 = sphi 0, %s235
      %s238 = sphi 0, %s237
      %s252 = sphi 0, %s238
      %s256 = sphi 0, %s256
      %s258 = sphi 0, %s256
      %s259 = sphi 0, %s258
      %s273 = sphi 0, %s259
      %s277 = sphi 0, %s277
      %s279 = sphi 0, %s277
      %s280 = sphi 0, %s279
      %s294 = sphi 0, %s280
      %s298 = sphi 0, %s298
      %s300 = sphi 0, %s298
      %s301 = sphi 0, %s300
      %s315 = sphi 0, %s301
      %s319 = sphi 0, %s319
      %s321 = sphi 0, %s319
      %s322 = sphi 0, %s321
      %s336 = sphi 0, %s322
      %s340 = sphi 0, %s340
      %s342 = sphi 0, %s340
      %s343 = sphi 0, %s342
      %s357 = sphi 0, %s343
      %s361 = sphi 0, %s361
      %s363 = sphi 0, %s361
      %s364 = sphi 0, %s363
      %s378 = sphi 0, %s364
      %s382 = sphi 0, %s382
      %s384 = sphi 0, %s382
      %s385 = sphi 0, %s384
      %s399 = sphi 0, %s385
      %s403 = sphi 0, %s403
      %s405 = sphi 0, %s403
      %s406 = sphi 0, %s405
      %s420 = sphi 0, %s406
      %s424 = sphi 0, %s424
      %s426 = sphi 0, %s424
      %s427 = sphi 0, %s426
      %s441 = sphi 0, %s427
      %s445 = sphi 0, %s445
      %s447 = sphi 0, %s445
      %s448 = sphi 0, %s447
      %s462 = sphi 0, %s448
      %s466 = sphi 0, %s466
      %s468 = sphi 0, %s466
      %s469 = sphi 0, %s468
      %s483 = sphi 0, %s469
      %s487 = sphi 0, %s487
      %s489 = sphi 0, %s487
      %s490 = sphi 0, %s489
      %s504 = sphi 0, %s490
      %s510 = sphi 0, %s512
      %s513 = sphi 0, %s510
      %s514 = sphi 0, %s513
      %s530 = sphi 0, %s514
    $region4: #{forward.1} parent=1 // loop_header_branch
      %36 = sbr.rel (%p34) target = $region8
    $region5: #{forward.1} parent=1 // loop_body
      %s38 = ssub.s32 %s33, 1
      %s39 = ssub.s32 %s33, 2
      %s40 = sadd.s32 %s33, 1
      %s41 = ssub.s32 %s33, %s40
      %p42 = scmp.eq.s32.totalorder %s41, 0
      %s44 = sadd.s32 %s43, 1
      %s45 = scalar_select %p42, %s43, %s44
      %p48 = pneg %p42
      %p49 = scmp.eq.s32.totalorder %s33, 1
      %p50 = por %p48, %p49
      %p51 = scmp.ne.s32.totalorder %s43, %s46
      %p52 = scmp.eq.s32.totalorder %s33, 0
      %p53 = por %p51, %p52
      %p54 = scmp.ne.s32.totalorder %s43, %s46
      %p55 = scmp.eq.s32.totalorder %s38, 1
      %p56 = por %p54, %p55
      %p57 = scmp.ne.s32.totalorder %s46, %s47
      %p58 = scmp.eq.s32.totalorder %s38, 0
      %p59 = por %p57, %p58
      %p60 = scmp.ne.s32.totalorder %s46, %s47
      %p61 = scmp.eq.s32.totalorder %s39, 1
      %p62 = por %p60, %p61
      %p64 = scmp.ne.s32.totalorder %s47, %s63
      %p65 = scmp.eq.s32.totalorder %s39, 0
      %p66 = por %p64, %p65
      %s68 = sadd.s32 %s67, 1
      %p71 = scmp.eq.s32.totalorder %s33, 1
      %p72 = scmp.ne.s32.totalorder %s67, %s69
      %p73 = scmp.eq.s32.totalorder %s33, 0
      %p74 = por %p72, %p73
      %p75 = scmp.ne.s32.totalorder %s67, %s69
      %p76 = scmp.eq.s32.totalorder %s38, 1
      %p77 = por %p75, %p76
      %p78 = scmp.ne.s32.totalorder %s69, %s70
      %p79 = scmp.eq.s32.totalorder %s38, 0
      %p80 = por %p78, %p79
      %p81 = scmp.ne.s32.totalorder %s69, %s70
      %p82 = scmp.eq.s32.totalorder %s39, 1
      %p83 = por %p81, %p82
      %p85 = scmp.ne.s32.totalorder %s70, %s84
      %p86 = scmp.eq.s32.totalorder %s39, 0
      %p87 = por %p85, %p86
      %s89 = sadd.s32 %s88, 1
      %p92 = scmp.eq.s32.totalorder %s33, 1
      %p93 = scmp.ne.s32.totalorder %s88, %s90
      %p94 = scmp.eq.s32.totalorder %s33, 0
      %p95 = por %p93, %p94
      %p96 = scmp.ne.s32.totalorder %s88, %s90
      %p97 = scmp.eq.s32.totalorder %s38, 1
      %p98 = por %p96, %p97
      %p99 = scmp.ne.s32.totalorder %s90, %s91
      %p100 = scmp.eq.s32.totalorder %s38, 0
      %p101 = por %p99, %p100
      %p102 = scmp.ne.s32.totalorder %s90, %s91
      %p103 = scmp.eq.s32.totalorder %s39, 1
      %p104 = por %p102, %p103
      %p106 = scmp.ne.s32.totalorder %s91, %s105
      %p107 = scmp.eq.s32.totalorder %s39, 0
      %p108 = por %p106, %p107
      %s110 = sadd.s32 %s109, 1
      %p113 = scmp.eq.s32.totalorder %s33, 1
      %p114 = scmp.ne.s32.totalorder %s109, %s111
      %p115 = scmp.eq.s32.totalorder %s33, 0
      %p116 = por %p114, %p115
      %p117 = scmp.ne.s32.totalorder %s109, %s111
      %p118 = scmp.eq.s32.totalorder %s38, 1
      %p119 = por %p117, %p118
      %p120 = scmp.ne.s32.totalorder %s111, %s112
      %p121 = scmp.eq.s32.totalorder %s38, 0
      %p122 = por %p120, %p121
      %p123 = scmp.ne.s32.totalorder %s111, %s112
      %p124 = scmp.eq.s32.totalorder %s39, 1
      %p125 = por %p123, %p124
      %p127 = scmp.ne.s32.totalorder %s112, %s126
      %p128 = scmp.eq.s32.totalorder %s39, 0
      %p129 = por %p127, %p128
      %s131 = sadd.s32 %s130, 1
      %p134 = scmp.eq.s32.totalorder %s33, 1
      %p135 = scmp.ne.s32.totalorder %s130, %s132
      %p136 = scmp.eq.s32.totalorder %s33, 0
      %p137 = por %p135, %p136
      %p138 = scmp.ne.s32.totalorder %s130, %s132
      %p139 = scmp.eq.s32.totalorder %s38, 1
      %p140 = por %p138, %p139
      %p141 = scmp.ne.s32.totalorder %s132, %s133
      %p142 = scmp.eq.s32.totalorder %s38, 0
      %p143 = por %p141, %p142
      %p144 = scmp.ne.s32.totalorder %s132, %s133
      %p145 = scmp.eq.s32.totalorder %s39, 1
      %p146 = por %p144, %p145
      %p148 = scmp.ne.s32.totalorder %s133, %s147
      %p149 = scmp.eq.s32.totalorder %s39, 0
      %p150 = por %p148, %p149
      %s152 = sadd.s32 %s151, 1
      %p155 = scmp.eq.s32.totalorder %s33, 1
      %p156 = scmp.ne.s32.totalorder %s151, %s153
      %p157 = scmp.eq.s32.totalorder %s33, 0
      %p158 = por %p156, %p157
      %p159 = scmp.ne.s32.totalorder %s151, %s153
      %p160 = scmp.eq.s32.totalorder %s38, 1
      %p161 = por %p159, %p160
      %p162 = scmp.ne.s32.totalorder %s153, %s154
      %p163 = scmp.eq.s32.totalorder %s38, 0
      %p164 = por %p162, %p163
      %p165 = scmp.ne.s32.totalorder %s153, %s154
      %p166 = scmp.eq.s32.totalorder %s39, 1
      %p167 = por %p165, %p166
      %p169 = scmp.ne.s32.totalorder %s154, %s168
      %p170 = scmp.eq.s32.totalorder %s39, 0
      %p171 = por %p169, %p170
      %s173 = sadd.s32 %s172, 1
      %p176 = scmp.eq.s32.totalorder %s33, 1
      %p177 = scmp.ne.s32.totalorder %s172, %s174
      %p178 = scmp.eq.s32.totalorder %s33, 0
      %p179 = por %p177, %p178
      %p180 = scmp.ne.s32.totalorder %s172, %s174
      %p181 = scmp.eq.s32.totalorder %s38, 1
      %p182 = por %p180, %p181
      %p183 = scmp.ne.s32.totalorder %s174, %s175
      %p184 = scmp.eq.s32.totalorder %s38, 0
      %p185 = por %p183, %p184
      %p186 = scmp.ne.s32.totalorder %s174, %s175
      %p187 = scmp.eq.s32.totalorder %s39, 1
      %p188 = por %p186, %p187
      %p190 = scmp.ne.s32.totalorder %s175, %s189
      %p191 = scmp.eq.s32.totalorder %s39, 0
      %p192 = por %p190, %p191
      %s194 = sadd.s32 %s193, 1
      %p197 = scmp.eq.s32.totalorder %s33, 1
      %p198 = scmp.ne.s32.totalorder %s193, %s195
      %p199 = scmp.eq.s32.totalorder %s33, 0
      %p200 = por %p198, %p199
      %p201 = scmp.ne.s32.totalorder %s193, %s195
      %p202 = scmp.eq.s32.totalorder %s38, 1
      %p203 = por %p201, %p202
      %p204 = scmp.ne.s32.totalorder %s195, %s196
      %p205 = scmp.eq.s32.totalorder %s38, 0
      %p206 = por %p204, %p205
      %p207 = scmp.ne.s32.totalorder %s195, %s196
      %p208 = scmp.eq.s32.totalorder %s39, 1
      %p209 = por %p207, %p208
      %p211 = scmp.ne.s32.totalorder %s196, %s210
      %p212 = scmp.eq.s32.totalorder %s39, 0
      %p213 = por %p211, %p212
      %s215 = sadd.s32 %s214, 1
      %p218 = scmp.eq.s32.totalorder %s33, 1
      %p219 = scmp.ne.s32.totalorder %s214, %s216
      %p220 = scmp.eq.s32.totalorder %s33, 0
      %p221 = por %p219, %p220
      %p222 = scmp.ne.s32.totalorder %s214, %s216
      %p223 = scmp.eq.s32.totalorder %s38, 1
      %p224 = por %p222, %p223
      %p225 = scmp.ne.s32.totalorder %s216, %s217
      %p226 = scmp.eq.s32.totalorder %s38, 0
      %p227 = por %p225, %p226
      %p228 = scmp.ne.s32.totalorder %s216, %s217
      %p229 = scmp.eq.s32.totalorder %s39, 1
      %p230 = por %p228, %p229
      %p232 = scmp.ne.s32.totalorder %s217, %s231
      %p233 = scmp.eq.s32.totalorder %s39, 0
      %p234 = por %p232, %p233
      %s236 = sadd.s32 %s235, 1
      %p239 = scmp.eq.s32.totalorder %s33, 1
      %p240 = scmp.ne.s32.totalorder %s235, %s237
      %p241 = scmp.eq.s32.totalorder %s33, 0
      %p242 = por %p240, %p241
      %p243 = scmp.ne.s32.totalorder %s235, %s237
      %p244 = scmp.eq.s32.totalorder %s38, 1
      %p245 = por %p243, %p244
      %p246 = scmp.ne.s32.totalorder %s237, %s238
      %p247 = scmp.eq.s32.totalorder %s38, 0
      %p248 = por %p246, %p247
      %p249 = scmp.ne.s32.totalorder %s237, %s238
      %p250 = scmp.eq.s32.totalorder %s39, 1
      %p251 = por %p249, %p250
      %p253 = scmp.ne.s32.totalorder %s238, %s252
      %p254 = scmp.eq.s32.totalorder %s39, 0
      %p255 = por %p253, %p254
      %s257 = sadd.s32 %s256, 1
      %p260 = scmp.eq.s32.totalorder %s33, 1
      %p261 = scmp.ne.s32.totalorder %s256, %s258
      %p262 = scmp.eq.s32.totalorder %s33, 0
      %p263 = por %p261, %p262
      %p264 = scmp.ne.s32.totalorder %s256, %s258
      %p265 = scmp.eq.s32.totalorder %s38, 1
      %p266 = por %p264, %p265
      %p267 = scmp.ne.s32.totalorder %s258, %s259
      %p268 = scmp.eq.s32.totalorder %s38, 0
      %p269 = por %p267, %p268
      %p270 = scmp.ne.s32.totalorder %s258, %s259
      %p271 = scmp.eq.s32.totalorder %s39, 1
      %p272 = por %p270, %p271
      %p274 = scmp.ne.s32.totalorder %s259, %s273
      %p275 = scmp.eq.s32.totalorder %s39, 0
      %p276 = por %p274, %p275
      %s278 = sadd.s32 %s277, 1
      %p281 = scmp.eq.s32.totalorder %s33, 1
      %p282 = scmp.ne.s32.totalorder %s277, %s279
      %p283 = scmp.eq.s32.totalorder %s33, 0
      %p284 = por %p282, %p283
      %p285 = scmp.ne.s32.totalorder %s277, %s279
      %p286 = scmp.eq.s32.totalorder %s38, 1
      %p287 = por %p285, %p286
      %p288 = scmp.ne.s32.totalorder %s279, %s280
      %p289 = scmp.eq.s32.totalorder %s38, 0
      %p290 = por %p288, %p289
      %p291 = scmp.ne.s32.totalorder %s279, %s280
      %p292 = scmp.eq.s32.totalorder %s39, 1
      %p293 = por %p291, %p292
      %p295 = scmp.ne.s32.totalorder %s280, %s294
      %p296 = scmp.eq.s32.totalorder %s39, 0
      %p297 = por %p295, %p296
      %s299 = sadd.s32 %s298, 1
      %p302 = scmp.eq.s32.totalorder %s33, 1
      %p303 = scmp.ne.s32.totalorder %s298, %s300
      %p304 = scmp.eq.s32.totalorder %s33, 0
      %p305 = por %p303, %p304
      %p306 = scmp.ne.s32.totalorder %s298, %s300
      %p307 = scmp.eq.s32.totalorder %s38, 1
      %p308 = por %p306, %p307
      %p309 = scmp.ne.s32.totalorder %s300, %s301
      %p310 = scmp.eq.s32.totalorder %s38, 0
      %p311 = por %p309, %p310
      %p312 = scmp.ne.s32.totalorder %s300, %s301
      %p313 = scmp.eq.s32.totalorder %s39, 1
      %p314 = por %p312, %p313
      %p316 = scmp.ne.s32.totalorder %s301, %s315
      %p317 = scmp.eq.s32.totalorder %s39, 0
      %p318 = por %p316, %p317
      %s320 = sadd.s32 %s319, 1
      %p323 = scmp.eq.s32.totalorder %s33, 1
      %p324 = scmp.ne.s32.totalorder %s319, %s321
      %p325 = scmp.eq.s32.totalorder %s33, 0
      %p326 = por %p324, %p325
      %p327 = scmp.ne.s32.totalorder %s319, %s321
      %p328 = scmp.eq.s32.totalorder %s38, 1
      %p329 = por %p327, %p328
      %p330 = scmp.ne.s32.totalorder %s321, %s322
      %p331 = scmp.eq.s32.totalorder %s38, 0
      %p332 = por %p330, %p331
      %p333 = scmp.ne.s32.totalorder %s321, %s322
      %p334 = scmp.eq.s32.totalorder %s39, 1
      %p335 = por %p333, %p334
      %p337 = scmp.ne.s32.totalorder %s322, %s336
      %p338 = scmp.eq.s32.totalorder %s39, 0
      %p339 = por %p337, %p338
      %s341 = sadd.s32 %s340, 1
      %p344 = scmp.eq.s32.totalorder %s33, 1
      %p345 = scmp.ne.s32.totalorder %s340, %s342
      %p346 = scmp.eq.s32.totalorder %s33, 0
      %p347 = por %p345, %p346
      %p348 = scmp.ne.s32.totalorder %s340, %s342
      %p349 = scmp.eq.s32.totalorder %s38, 1
      %p350 = por %p348, %p349
      %p351 = scmp.ne.s32.totalorder %s342, %s343
      %p352 = scmp.eq.s32.totalorder %s38, 0
      %p353 = por %p351, %p352
      %p354 = scmp.ne.s32.totalorder %s342, %s343
      %p355 = scmp.eq.s32.totalorder %s39, 1
      %p356 = por %p354, %p355
      %p358 = scmp.ne.s32.totalorder %s343, %s357
      %p359 = scmp.eq.s32.totalorder %s39, 0
      %p360 = por %p358, %p359
      %s362 = sadd.s32 %s361, 1
      %p365 = scmp.eq.s32.totalorder %s33, 1
      %p366 = scmp.ne.s32.totalorder %s361, %s363
      %p367 = scmp.eq.s32.totalorder %s33, 0
      %p368 = por %p366, %p367
      %p369 = scmp.ne.s32.totalorder %s361, %s363
      %p370 = scmp.eq.s32.totalorder %s38, 1
      %p371 = por %p369, %p370
      %p372 = scmp.ne.s32.totalorder %s363, %s364
      %p373 = scmp.eq.s32.totalorder %s38, 0
      %p374 = por %p372, %p373
      %p375 = scmp.ne.s32.totalorder %s363, %s364
      %p376 = scmp.eq.s32.totalorder %s39, 1
      %p377 = por %p375, %p376
      %p379 = scmp.ne.s32.totalorder %s364, %s378
      %p380 = scmp.eq.s32.totalorder %s39, 0
      %p381 = por %p379, %p380
      %s383 = sadd.s32 %s382, 1
      %p386 = scmp.eq.s32.totalorder %s33, 1
      %p387 = scmp.ne.s32.totalorder %s382, %s384
      %p388 = scmp.eq.s32.totalorder %s33, 0
      %p389 = por %p387, %p388
      %p390 = scmp.ne.s32.totalorder %s382, %s384
      %p391 = scmp.eq.s32.totalorder %s38, 1
      %p392 = por %p390, %p391
      %p393 = scmp.ne.s32.totalorder %s384, %s385
      %p394 = scmp.eq.s32.totalorder %s38, 0
      %p395 = por %p393, %p394
      %p396 = scmp.ne.s32.totalorder %s384, %s385
      %p397 = scmp.eq.s32.totalorder %s39, 1
      %p398 = por %p396, %p397
      %p400 = scmp.ne.s32.totalorder %s385, %s399
      %p401 = scmp.eq.s32.totalorder %s39, 0
      %p402 = por %p400, %p401
      %s404 = sadd.s32 %s403, 1
      %p407 = scmp.eq.s32.totalorder %s33, 1
      %p408 = scmp.ne.s32.totalorder %s403, %s405
      %p409 = scmp.eq.s32.totalorder %s33, 0
      %p410 = por %p408, %p409
      %p411 = scmp.ne.s32.totalorder %s403, %s405
      %p412 = scmp.eq.s32.totalorder %s38, 1
      %p413 = por %p411, %p412
      %p414 = scmp.ne.s32.totalorder %s405, %s406
      %p415 = scmp.eq.s32.totalorder %s38, 0
      %p416 = por %p414, %p415
      %p417 = scmp.ne.s32.totalorder %s405, %s406
      %p418 = scmp.eq.s32.totalorder %s39, 1
      %p419 = por %p417, %p418
      %p421 = scmp.ne.s32.totalorder %s406, %s420
      %p422 = scmp.eq.s32.totalorder %s39, 0
      %p423 = por %p421, %p422
      %s425 = sadd.s32 %s424, 1
      %p428 = scmp.eq.s32.totalorder %s33, 1
      %p429 = scmp.ne.s32.totalorder %s424, %s426
      %p430 = scmp.eq.s32.totalorder %s33, 0
      %p431 = por %p429, %p430
      %p432 = scmp.ne.s32.totalorder %s424, %s426
      %p433 = scmp.eq.s32.totalorder %s38, 1
      %p434 = por %p432, %p433
      %p435 = scmp.ne.s32.totalorder %s426, %s427
      %p436 = scmp.eq.s32.totalorder %s38, 0
      %p437 = por %p435, %p436
      %p438 = scmp.ne.s32.totalorder %s426, %s427
      %p439 = scmp.eq.s32.totalorder %s39, 1
      %p440 = por %p438, %p439
      %p442 = scmp.ne.s32.totalorder %s427, %s441
      %p443 = scmp.eq.s32.totalorder %s39, 0
      %p444 = por %p442, %p443
      %s446 = sadd.s32 %s445, 1
      %p449 = scmp.eq.s32.totalorder %s33, 1
      %p450 = scmp.ne.s32.totalorder %s445, %s447
      %p451 = scmp.eq.s32.totalorder %s33, 0
      %p452 = por %p450, %p451
      %p453 = scmp.ne.s32.totalorder %s445, %s447
      %p454 = scmp.eq.s32.totalorder %s38, 1
      %p455 = por %p453, %p454
      %p456 = scmp.ne.s32.totalorder %s447, %s448
      %p457 = scmp.eq.s32.totalorder %s38, 0
      %p458 = por %p456, %p457
      %p459 = scmp.ne.s32.totalorder %s447, %s448
      %p460 = scmp.eq.s32.totalorder %s39, 1
      %p461 = por %p459, %p460
      %p463 = scmp.ne.s32.totalorder %s448, %s462
      %p464 = scmp.eq.s32.totalorder %s39, 0
      %p465 = por %p463, %p464
      %s467 = sadd.s32 %s466, 1
      %p470 = scmp.eq.s32.totalorder %s33, 1
      %p471 = scmp.ne.s32.totalorder %s466, %s468
      %p472 = scmp.eq.s32.totalorder %s33, 0
      %p473 = por %p471, %p472
      %p474 = scmp.ne.s32.totalorder %s466, %s468
      %p475 = scmp.eq.s32.totalorder %s38, 1
      %p476 = por %p474, %p475
      %p477 = scmp.ne.s32.totalorder %s468, %s469
      %p478 = scmp.eq.s32.totalorder %s38, 0
      %p479 = por %p477, %p478
      %p480 = scmp.ne.s32.totalorder %s468, %s469
      %p481 = scmp.eq.s32.totalorder %s39, 1
      %p482 = por %p480, %p481
      %p484 = scmp.ne.s32.totalorder %s469, %s483
      %p485 = scmp.eq.s32.totalorder %s39, 0
      %p486 = por %p484, %p485
      %s488 = sadd.s32 %s487, 1
      %p491 = scmp.eq.s32.totalorder %s33, 1
      %p492 = scmp.ne.s32.totalorder %s487, %s489
      %p493 = scmp.eq.s32.totalorder %s33, 0
      %p494 = por %p492, %p493
      %p495 = scmp.ne.s32.totalorder %s487, %s489
      %p496 = scmp.eq.s32.totalorder %s38, 1
      %p497 = por %p495, %p496
      %p498 = scmp.ne.s32.totalorder %s489, %s490
      %p499 = scmp.eq.s32.totalorder %s38, 0
      %p500 = por %p498, %p499
      %p501 = scmp.ne.s32.totalorder %s489, %s490
      %p502 = scmp.eq.s32.totalorder %s39, 1
      %p503 = por %p501, %p502
      %p505 = scmp.ne.s32.totalorder %s490, %s504
      %p506 = scmp.eq.s32.totalorder %s39, 0
      %p507 = por %p505, %p506
      %s508 = ssub.s32 %s33, %s40
      %p509 = scmp.eq.s32.totalorder %s508, 0
      %s511 = sadd.s32 %s510, 1
      %s512 = scalar_select %p509, %s510, %s511
      %p515 = pneg %p509
      %p516 = scmp.eq.s32.totalorder %s33, 1
      %p517 = por %p515, %p516
      %p518 = scmp.ne.s32.totalorder %s510, %s513
      %p519 = scmp.eq.s32.totalorder %s33, 0
      %p520 = por %p518, %p519
      %p521 = scmp.ne.s32.totalorder %s510, %s513
      %p522 = scmp.eq.s32.totalorder %s38, 1
      %p523 = por %p521, %p522
      %p524 = scmp.ne.s32.totalorder %s513, %s514
      %p525 = scmp.eq.s32.totalorder %s38, 0
      %p526 = por %p524, %p525
      %p527 = scmp.ne.s32.totalorder %s513, %s514
      %p528 = scmp.eq.s32.totalorder %s39, 1
      %p529 = por %p527, %p528
      %p531 = scmp.ne.s32.totalorder %s514, %s530
      %p532 = scmp.eq.s32.totalorder %s39, 0
      %p533 = por %p531, %p532
      %p534 = scmp.le.s32.totalorder 1, %s33
      %p535 = scmp.lt.s32.totalorder %s33, 3
      %p536 = pnand %p534, %p535
      %p537 = pneg %p536
      // Predicated region
      $region9: #{forward.1} parent=5 // pred_check
        _
      $region10: #{forward.1} parent=5 // pred_check_branch
        %539 = sbr.rel (%p536) target = $region12
      $region11: #{forward.1} parent=5 // pred_region
        %s540 = ssub.s32 %s33, 1
        // Predicated region
        $region13: #{forward.1} parent=11 // pred_check
          %p541 = pneg %p80
        $region14: #{forward.1} parent=11 // pred_check_branch
          %543 = sbr.rel (%p541) target = $region16
        $region15: #{forward.1} parent=11 // pred_region
          _
        $region16: #{forward.1} parent=11 // pred_fallthru
          _
        // Predicated region
        $region17: #{forward.1} parent=11 // pred_check
          %p544 = pneg %p101
        $region18: #{forward.1} parent=11 // pred_check_branch
          %546 = sbr.rel (%p544) target = $region20
        $region19: #{forward.1} parent=11 // pred_region
          %s548 = ssub.s32 6144, 6144
          %549 = vsyncadd [#allocation3], %s548
          %s550 = sshll.u32 [#allocation2], 4
          %s551 = int_to_ptr.vmem [resolvable:$true] %s550
          %556 = dma.hbm_to_vmem [thread:$0]  %s2, 6144, %s551, [#allocation3], 128, 128, 8
        $region20: #{forward.1} parent=11 // pred_fallthru
          _
        // Predicated region
        $region21: #{forward.1} parent=11 // pred_check
          %p557 = pneg %p122
        $region22: #{forward.1} parent=11 // pred_check_branch
          %559 = sbr.rel (%p557) target = $region24
        $region23: #{forward.1} parent=11 // pred_region
          _
        $region24: #{forward.1} parent=11 // pred_fallthru
          _
        // Predicated region
        $region25: #{forward.1} parent=11 // pred_check
          %p560 = pneg %p143
        $region26: #{forward.1} parent=11 // pred_check_branch
          %562 = sbr.rel (%p560) target = $region28
        $region27: #{forward.1} parent=11 // pred_region
          %s564 = ssub.s32 384, 384
          %565 = vsyncadd [#allocation5], %s564
          %s566 = sshll.u32 [#allocation4], 4
          %s567 = int_to_ptr.vmem [resolvable:$true] %s566
          %572 = dma.hbm_to_vmem [thread:$0]  %s4, 384, %s567, [#allocation5], 128, 128, 8
        $region28: #{forward.1} parent=11 // pred_fallthru
          _
        // Predicated region
        $region29: #{forward.1} parent=11 // pred_check
          %p573 = pneg %p164
        $region30: #{forward.1} parent=11 // pred_check_branch
          %575 = sbr.rel (%p573) target = $region32
        $region31: #{forward.1} parent=11 // pred_region
          %s577 = ssub.s32 6144, 6144
          %578 = vsyncadd [#allocation5], %s577
          %s579 = sshll.u32 [#allocation6], 4
          %s580 = int_to_ptr.vmem [resolvable:$true] %s579
          %585 = dma.hbm_to_vmem [thread:$0]  %s5, 6144, %s580, [#allocation5], 128, 128, 8
        $region32: #{forward.1} parent=11 // pred_fallthru
          _
        // Predicated region
        $region33: #{forward.1} parent=11 // pred_check
          %p586 = pneg %p185
        $region34: #{forward.1} parent=11 // pred_check_branch
          %588 = sbr.rel (%p586) target = $region36
        $region35: #{forward.1} parent=11 // pred_region
          _
        $region36: #{forward.1} parent=11 // pred_fallthru
          _
        // Predicated region
        $region37: #{forward.1} parent=11 // pred_check
          %p589 = pneg %p206
        $region38: #{forward.1} parent=11 // pred_check_branch
          %591 = sbr.rel (%p589) target = $region40
        $region39: #{forward.1} parent=11 // pred_region
          %s593 = ssub.s32 384, 384
          %594 = vsyncadd [#allocation8], %s593
          %s595 = sshll.u32 [#allocation7], 4
          %s596 = int_to_ptr.vmem [resolvable:$true] %s595
          %601 = dma.hbm_to_vmem [thread:$0]  %s7, 384, %s596, [#allocation8], 128, 128, 8
        $region40: #{forward.1} parent=11 // pred_fallthru
          _
        // Predicated region
        $region41: #{forward.1} parent=11 // pred_check
          %p602 = pneg %p227
        $region42: #{forward.1} parent=11 // pred_check_branch
          %604 = sbr.rel (%p602) target = $region44
        $region43: #{forward.1} parent=11 // pred_region
          %s606 = ssub.s32 6144, 6144
          %607 = vsyncadd [#allocation8], %s606
          %s608 = sshll.u32 [#allocation9], 4
          %s609 = int_to_ptr.vmem [resolvable:$true] %s608
          %614 = dma.hbm_to_vmem [thread:$0]  %s8, 6144, %s609, [#allocation8], 128, 128, 8
        $region44: #{forward.1} parent=11 // pred_fallthru
          _
        // Predicated region
        $region45: #{forward.1} parent=11 // pred_check
          %p615 = pneg %p248
        $region46: #{forward.1} parent=11 // pred_check_branch
          %617 = sbr.rel (%p615) target = $region48
        $region47: #{forward.1} parent=11 // pred_region
          _
        $region48: #{forward.1} parent=11 // pred_fallthru
          _
        // Predicated region
        $region49: #{forward.1} parent=11 // pred_check
          %p618 = pneg %p269
        $region50: #{forward.1} parent=11 // pred_check_branch
          %620 = sbr.rel (%p618) target = $region52
        $region51: #{forward.1} parent=11 // pred_region
          _
        $region52: #{forward.1} parent=11 // pred_fallthru
          _
        // Predicated region
        $region53: #{forward.1} parent=11 // pred_check
          %p621 = pneg %p290
        $region54: #{forward.1} parent=11 // pred_check_branch
          %623 = sbr.rel (%p621) target = $region56
        $region55: #{forward.1} parent=11 // pred_region
          _
        $region56: #{forward.1} parent=11 // pred_fallthru
          _
        // Predicated region
        $region57: #{forward.1} parent=11 // pred_check
          %p624 = pneg %p311
        $region58: #{forward.1} parent=11 // pred_check_branch
          %626 = sbr.rel (%p624) target = $region60
        $region59: #{forward.1} parent=11 // pred_region
          _
        $region60: #{forward.1} parent=11 // pred_fallthru
          _
        // Predicated region
        $region61: #{forward.1} parent=11 // pred_check
          %p627 = pneg %p332
        $region62: #{forward.1} parent=11 // pred_check_branch
          %629 = sbr.rel (%p627) target = $region64
        $region63: #{forward.1} parent=11 // pred_region
          _
        $region64: #{forward.1} parent=11 // pred_fallthru
          _
        // Predicated region
        $region65: #{forward.1} parent=11 // pred_check
          %p630 = pneg %p353
        $region66: #{forward.1} parent=11 // pred_check_branch
          %632 = sbr.rel (%p630) target = $region68
        $region67: #{forward.1} parent=11 // pred_region
          %s634 = ssub.s32 12288, 12288
          %635 = vsyncadd [#allocation11], %s634
          %s636 = sshll.u32 [#allocation10], 4
          %s637 = int_to_ptr.vmem [resolvable:$true] %s636
          %642 = dma.hbm_to_vmem [thread:$0]  %s14, 12288, %s637, [#allocation11], 128, 128, 8
        $region68: #{forward.1} parent=11 // pred_fallthru
          _
        // Predicated region
        $region69: #{forward.1} parent=11 // pred_check
          %p643 = pneg %p374
        $region70: #{forward.1} parent=11 // pred_check_branch
          %645 = sbr.rel (%p643) target = $region72
        $region71: #{forward.1} parent=11 // pred_region
          _
        $region72: #{forward.1} parent=11 // pred_fallthru
          _
        // Predicated region
        $region73: #{forward.1} parent=11 // pred_check
          %p646 = pneg %p395
        $region74: #{forward.1} parent=11 // pred_check_branch
          %648 = sbr.rel (%p646) target = $region76
        $region75: #{forward.1} parent=11 // pred_region
          _
        $region76: #{forward.1} parent=11 // pred_fallthru
          _
        // Predicated region
        $region77: #{forward.1} parent=11 // pred_check
          %p649 = pneg %p416
        $region78: #{forward.1} parent=11 // pred_check_branch
          %651 = sbr.rel (%p649) target = $region80
        $region79: #{forward.1} parent=11 // pred_region
          %s653 = ssub.s32 24576, 24576
          %654 = vsyncadd [#allocation11], %s653
          %s655 = sshll.u32 [#allocation12], 4
          %s656 = int_to_ptr.vmem [resolvable:$true] %s655
          %661 = dma.hbm_to_vmem [thread:$0]  %s17, 24576, %s656, [#allocation11], 256, 256, 16
        $region80: #{forward.1} parent=11 // pred_fallthru
          _
        // Predicated region
        $region81: #{forward.1} parent=11 // pred_check
          %p662 = pneg %p437
        $region82: #{forward.1} parent=11 // pred_check_branch
          %664 = sbr.rel (%p662) target = $region84
        $region83: #{forward.1} parent=11 // pred_region
          _
        $region84: #{forward.1} parent=11 // pred_fallthru
          _
        // Predicated region
        $region85: #{forward.1} parent=11 // pred_check
          %p665 = pneg %p458
        $region86: #{forward.1} parent=11 // pred_check_branch
          %667 = sbr.rel (%p665) target = $region88
        $region87: #{forward.1} parent=11 // pred_region
          _
        $region88: #{forward.1} parent=11 // pred_fallthru
          _
        // Predicated region
        $region89: #{forward.1} parent=11 // pred_check
          %p668 = pneg %p479
        $region90: #{forward.1} parent=11 // pred_check_branch
          %670 = sbr.rel (%p668) target = $region92
        $region91: #{forward.1} parent=11 // pred_region
          %s672 = ssub.s32 24576, 24576
          %673 = vsyncadd [#allocation14], %s672
          %s674 = sshll.u32 [#allocation13], 4
          %s675 = int_to_ptr.vmem [resolvable:$true] %s674
          %680 = dma.hbm_to_vmem [thread:$0]  %s20, 24576, %s675, [#allocation14], 256, 256, 16
        $region92: #{forward.1} parent=11 // pred_fallthru
          _
        // Predicated region
        $region93: #{forward.1} parent=11 // pred_check
          %p681 = pneg %p500
        $region94: #{forward.1} parent=11 // pred_check_branch
          %683 = sbr.rel (%p681) target = $region96
        $region95: #{forward.1} parent=11 // pred_region
          _
        $region96: #{forward.1} parent=11 // pred_fallthru
          _
      $region12: #{forward.1} parent=5 // pred_fallthru
        _
      %p684 = scmp.lt.s32.totalorder %s33, 2
      // Predicated region
      $region97: #{forward.1} parent=5 // pred_check
        %p685 = pneg %p684
      $region98: #{forward.1} parent=5 // pred_check_branch
        %687 = sbr.rel (%p685) target = $region100
      $region99: #{forward.1} parent=5 // pred_region
        // Predicated region
        $region101: #{forward.1} parent=99 // pred_check
          %p688 = pneg %p53
        $region102: #{forward.1} parent=99 // pred_check_branch
          %690 = sbr.rel (%p688) target = $region104
        $region103: #{forward.1} parent=99 // pred_region
          %p691 = scmp.lt.s32.totalorder %s33, 1
          %s692 = scalar_select %p691, %s33, 1
          %s693 = smul.addr %s692, 4
          %s694 = smul.addr %s693, 8
          %s695 = scalar_lea.vmem %s0, %s694
        $region104: #{forward.1} parent=99 // pred_fallthru
          _
      $region100: #{forward.1} parent=5 // pred_fallthru
        _
      %p696 = scmp.le.s32.totalorder 1, %s33
      %p697 = scmp.lt.s32.totalorder %s33, 3
      %p698 = pnand %p696, %p697
      %p699 = pneg %p698
      // Predicated region
      $region105: #{forward.1} parent=5 // pred_check
        _
      $region106: #{forward.1} parent=5 // pred_check_branch
        %701 = sbr.rel (%p698) target = $region108
      $region107: #{forward.1} parent=5 // pred_region
        %s702 = ssub.s32 %s33, 1
        // Predicated region
        $region109: #{forward.1} parent=107 // pred_check
          %p703 = pneg %p101
        $region110: #{forward.1} parent=107 // pred_check_branch
          %705 = sbr.rel (%p703) target = $region112
        $region111: #{forward.1} parent=107 // pred_region
          %706 = dma.done [#allocation3], 6144
        $region112: #{forward.1} parent=107 // pred_fallthru
          _
        // Predicated region
        $region113: #{forward.1} parent=107 // pred_check
          %p707 = pneg %p143
        $region114: #{forward.1} parent=107 // pred_check_branch
          %709 = sbr.rel (%p707) target = $region116
        $region115: #{forward.1} parent=107 // pred_region
          %710 = dma.done [#allocation5], 384
        $region116: #{forward.1} parent=107 // pred_fallthru
          _
        // Predicated region
        $region117: #{forward.1} parent=107 // pred_check
          %p711 = pneg %p164
        $region118: #{forward.1} parent=107 // pred_check_branch
          %713 = sbr.rel (%p711) target = $region120
        $region119: #{forward.1} parent=107 // pred_region
          %714 = dma.done [#allocation5], 6144
        $region120: #{forward.1} parent=107 // pred_fallthru
          _
        // Predicated region
        $region121: #{forward.1} parent=107 // pred_check
          %p715 = pneg %p206
        $region122: #{forward.1} parent=107 // pred_check_branch
          %717 = sbr.rel (%p715) target = $region124
        $region123: #{forward.1} parent=107 // pred_region
          %718 = dma.done [#allocation8], 384
        $region124: #{forward.1} parent=107 // pred_fallthru
          _
        // Predicated region
        $region125: #{forward.1} parent=107 // pred_check
          %p719 = pneg %p227
        $region126: #{forward.1} parent=107 // pred_check_branch
          %721 = sbr.rel (%p719) target = $region128
        $region127: #{forward.1} parent=107 // pred_region
          %722 = dma.done [#allocation8], 6144
        $region128: #{forward.1} parent=107 // pred_fallthru
          _
        // Predicated region
        $region129: #{forward.1} parent=107 // pred_check
          %p723 = pneg %p353
        $region130: #{forward.1} parent=107 // pred_check_branch
          %725 = sbr.rel (%p723) target = $region132
        $region131: #{forward.1} parent=107 // pred_region
          %726 = dma.done [#allocation11], 12288
        $region132: #{forward.1} parent=107 // pred_fallthru
          _
        // Predicated region
        $region133: #{forward.1} parent=107 // pred_check
          %p727 = pneg %p416
        $region134: #{forward.1} parent=107 // pred_check_branch
          %729 = sbr.rel (%p727) target = $region136
        $region135: #{forward.1} parent=107 // pred_region
          %730 = dma.done [#allocation11], 24576
        $region136: #{forward.1} parent=107 // pred_fallthru
          _
        // Predicated region
        $region137: #{forward.1} parent=107 // pred_check
          %p731 = pneg %p479
        $region138: #{forward.1} parent=107 // pred_check_branch
          %733 = sbr.rel (%p731) target = $region140
        $region139: #{forward.1} parent=107 // pred_region
          %734 = dma.done [#allocation14], 24576
        $region140: #{forward.1} parent=107 // pred_fallthru
          _
        %p735 = scmp.lt.s32.totalorder %s38, 1
        %s736 = scalar_select %p735, %s38, 1
        %s737 = smul.addr %s736, 4
        %s738 = smul.addr %s737, 8
        %s739 = scalar_lea.vmem %s0, %s738
        %p740 = pneg %p59
        %p741 = pneg %p56
        %p742 = pneg %p80
        %p743 = pneg %p77
        %p744 = pneg %p101
        %p745 = pneg %p98
        %p746 = pneg %p122
        %p747 = pneg %p119
        %p748 = pneg %p143
        %p749 = pneg %p140
        %p750 = pneg %p164
        %p751 = pneg %p161
        %p752 = pneg %p185
        %p753 = pneg %p182
        %p754 = pneg %p206
        %p755 = pneg %p203
        %p756 = pneg %p227
        %p757 = pneg %p224
        %p758 = pneg %p248
        %p759 = pneg %p245
        %p760 = pneg %p269
        %p761 = pneg %p266
        %p762 = pneg %p290
        %p763 = pneg %p287
        %p764 = pneg %p311
        %p765 = pneg %p308
        %p766 = pneg %p332
        %p767 = pneg %p329
        %p768 = pneg %p353
        %p769 = pneg %p350
        %p770 = pneg %p374
        %p771 = pneg %p371
        %p772 = pneg %p395
        %p773 = pneg %p392
        %p774 = pneg %p416
        %p775 = pneg %p413
        %p776 = pneg %p437
        %p777 = pneg %p434
        %p778 = pneg %p458
        %p779 = pneg %p455
        %p780 = pneg %p479
        %p781 = pneg %p476
        %p782 = pneg %p500
        %p783 = pneg %p497
        %p784 = pneg %p526
        %p785 = pneg %p523
        %p786 = scmp.lt.s32.totalorder %s38, 1
        %s787 = scalar_select %p786, %s38, 1
        %s788 = smul.addr %s787, 8
        %s789 = smul.addr %s788, 8
        %s790 = scalar_lea.vmem %s22, %s789
        %p791 = scmp.lt.s32.totalorder %s38, 1
        %s792 = scalar_select %p791, %s38, 1
        %s793 = smul.addr %s792, 4
        %s794 = smul.addr %s793, 8
        %s795 = scalar_lea.vmem %s0, %s794
        %p796 = scmp.lt.s32.totalorder %s38, 1
        %s797 = scalar_select %p796, %s38, 1
        %s798 = smul.addr %s797, 8
        %s799 = smul.addr %s798, 8
        %s800 = scalar_lea.vmem %s22, %s799
        %v801 = vld [vmem:[%s795] sm:$0xff]
        %v802 = vld [vmem:[%s795 + $0x8] sm:$0xff]
        %v803 = vld [vmem:[%s795 + $0x10] sm:$0xff]
        %v804 = vld [vmem:[%s795 + $0x18] sm:$0xff]
        %v805 = vld [vmem:[%s1] sm:$0xff]
        %v806 = vld [vmem:[%s1 + $0x8] sm:$0xff]
        %vm807 = vcmask 261120
        %v809 = vsel %vm807, %v805, 0
        %v812 = vsel %vm807, %v806, 0
        %814 = vmatprep.subr.mxu0 0.0
        %815 = vmatpush1.msra.mxu0 %v801
        %816 = vmatprep.subr.mxu0 0.0
        %817 = vmatpush1.msra.mxu0 %v802
        %818 = vmatprep.subr.mxu0 0.0
        %819 = vmatpush1.msra.mxu0 %v803
        %820 = vmatprep.subr.mxu0 0.0
        %821 = vmatpush1.msra.mxu0 %v804
        %822 = vmatprep.subr.mxu0 0.0
        %823 = vmatpush1.msra.mxu0 0.0
        %824 = vmatprep.subr.mxu0 0.0
        %825 = vmatpush1.msra.mxu0 0.0
        %826 = vmatprep.subr.mxu0 0.0
        %827 = vmatpush1.msra.mxu0 0.0
        %828 = vmatprep.subr.mxu0 0.0
        %829 = vmatpush1.msra.mxu0 0.0
        %830 = vmatprep.subr.mxu0 0.0
        %831 = vmatpush1.msra.mxu0 0.0
        %832 = vmatprep.subr.mxu0 0.0
        %833 = vmatpush1.msra.mxu0 0.0
        %834 = vmatprep.subr.mxu0 0.0
        %835 = vmatpush1.msra.mxu0 0.0
        %836 = vmatprep.subr.mxu0 0.0
        %837 = vmatpush1.msra.mxu0 0.0
        %838 = vmatprep.subr.mxu0 0.0
        %839 = vmatpush1.msra.mxu0 0.0
        %840 = vmatprep.subr.mxu0 0.0
        %841 = vmatpush1.msra.mxu0 0.0
        %842 = vmatprep.subr.mxu0 0.0
        %843 = vmatpush1.msra.mxu0 0.0
        %844 = vmatprep.subr.mxu0 0.0
        %845 = vmatpush1.msra.mxu0 0.0
        %846 = vmatprep.subr.mxu0 0.0
        %847 = vmatpush1.msra.mxu0 0.0
        %848 = vmatprep.subr.mxu0 0.0
        %849 = vmatpush1.msra.mxu0 0.0
        %850 = vmatprep.subr.mxu0 0.0
        %851 = vmatpush1.msra.mxu0 0.0
        %852 = vmatprep.subr.mxu0 0.0
        %853 = vmatpush1.msra.mxu0 0.0
        %854 = vmatprep.subr.mxu0 0.0
        %855 = vmatpush1.msra.mxu0 0.0
        %856 = vmatprep.subr.mxu0 0.0
        %857 = vmatpush1.msra.mxu0 0.0
        %858 = vmatprep.subr.mxu0 0.0
        %859 = vmatpush1.msra.mxu0 0.0
        %860 = vmatprep.subr.mxu0 0.0
        %861 = vmatpush1.msra.mxu0 0.0
        %862 = vmatprep.subr.mxu0 0.0
        %863 = vmatpush1.msra.mxu0 0.0
        %864 = vmatprep.subr.mxu0 0.0
        %865 = vmatpush1.msra.mxu0 0.0
        %866 = vmatprep.subr.mxu0 0.0
        %867 = vmatpush1.msra.mxu0 0.0
        %868 = vmatprep.subr.mxu0 0.0
        %869 = vmatpush1.msra.mxu0 0.0
        %870 = vmatprep.subr.mxu0 0.0
        %871 = vmatpush1.msra.mxu0 0.0
        %872 = vmatprep.subr.mxu0 0.0
        %873 = vmatpush1.msra.mxu0 0.0
        %874 = vmatprep.subr.mxu0 0.0
        %875 = vmatpush1.msra.mxu0 0.0
        %876 = vmatprep.subr.mxu0 0.0
        %877 = vmatpush1.msra.mxu0 0.0
        %878 = vmatprep.mubr.f32.mxu0 0.0
        %879 = vmatmul.mubr.f32.gmra.mrb[0].mxu0 %v809
        %v880 = vpop.f32.mrb[0].mxu0
        %v881 = vadd.f32 0.0, %v880
        %v882 = vpop.f32.mrb[0].mxu0
        %883 = vmatprep.mubr.f32.mxu0 0.0
        %884 = vmatmul.mubr.f32.gmra.mrb[0].mxu0 %v812
        %v885 = vpop.f32.mrb[0].mxu0
        %v886 = vadd.f32 0.0, %v885
        %v887 = vpop.f32.mrb[0].mxu0
        %888 = vdwg.mxu0
        %v889 = vld [vmem:[#allocation2] sm:$0xff]
        %v890 = vld [vmem:[#allocation2 + $0x8] sm:$0xff]
        %v891 = vld [vmem:[#allocation2 + $0x10] sm:$0xff]
        %v892 = vld [vmem:[#allocation2 + $0x18] sm:$0xff]
        %v893 = vld [vmem:[#allocation2 + $0x20] sm:$0xff]
        %v894 = vld [vmem:[#allocation2 + $0x28] sm:$0xff]
        %v895 = vld [vmem:[#allocation2 + $0x30] sm:$0xff]
        %v896 = vld [vmem:[#allocation2 + $0x38] sm:$0xff]
        %v897 = vld [vmem:[#allocation2 + $0x40] sm:$0xff]
        %v898 = vld [vmem:[#allocation2 + $0x48] sm:$0xff]
        %v899 = vld [vmem:[#allocation2 + $0x50] sm:$0xff]
        %v900 = vld [vmem:[#allocation2 + $0x58] sm:$0xff]
        %v901 = vld [vmem:[#allocation2 + $0x60] sm:$0xff]
        %v902 = vld [vmem:[#allocation2 + $0x68] sm:$0xff]
        %v903 = vld [vmem:[#allocation2 + $0x70] sm:$0xff]
        %v904 = vld [vmem:[#allocation2 + $0x78] sm:$0xff]
        %s905 = scalar_lea.vmem %s1, 16
        %v906 = vld [vmem:[%s905] sm:$0xff]
        %v907 = vld [vmem:[%s905 + $0x8] sm:$0xff]
        %v909 = vsel %vm807, %v906, 0
        %v912 = vsel %vm807, %v907, 0
        %914 = vmatprep.subr.mxu0 0.0
        %915 = vmatpush1.msra.mxu0 %v801
        %916 = vmatprep.subr.mxu0 0.0
        %917 = vmatpush1.msra.mxu0 %v802
        %918 = vmatprep.subr.mxu0 0.0
        %919 = vmatpush1.msra.mxu0 %v803
        %920 = vmatprep.subr.mxu0 0.0
        %921 = vmatpush1.msra.mxu0 %v804
        %922 = vmatprep.subr.mxu0 0.0
        %923 = vmatpush1.msra.mxu0 0.0
        %924 = vmatprep.subr.mxu0 0.0
        %925 = vmatpush1.msra.mxu0 0.0
        %926 = vmatprep.subr.mxu0 0.0
        %927 = vmatpush1.msra.mxu0 0.0
        %928 = vmatprep.subr.mxu0 0.0
        %929 = vmatpush1.msra.mxu0 0.0
        %930 = vmatprep.subr.mxu0 0.0
        %931 = vmatpush1.msra.mxu0 0.0
        %932 = vmatprep.subr.mxu0 0.0
        %933 = vmatpush1.msra.mxu0 0.0
        %934 = vmatprep.subr.mxu0 0.0
        %935 = vmatpush1.msra.mxu0 0.0
        %936 = vmatprep.subr.mxu0 0.0
        %937 = vmatpush1.msra.mxu0 0.0
        %938 = vmatprep.subr.mxu0 0.0
        %939 = vmatpush1.msra.mxu0 0.0
        %940 = vmatprep.subr.mxu0 0.0
        %941 = vmatpush1.msra.mxu0 0.0
        %942 = vmatprep.subr.mxu0 0.0
        %943 = vmatpush1.msra.mxu0 0.0
        %944 = vmatprep.subr.mxu0 0.0
        %945 = vmatpush1.msra.mxu0 0.0
        %946 = vmatprep.subr.mxu0 0.0
        %947 = vmatpush1.msra.mxu0 0.0
        %948 = vmatprep.subr.mxu0 0.0
        %949 = vmatpush1.msra.mxu0 0.0
        %950 = vmatprep.subr.mxu0 0.0
        %951 = vmatpush1.msra.mxu0 0.0
        %952 = vmatprep.subr.mxu0 0.0
        %953 = vmatpush1.msra.mxu0 0.0
        %954 = vmatprep.subr.mxu0 0.0
        %955 = vmatpush1.msra.mxu0 0.0
        %956 = vmatprep.subr.mxu0 0.0
        %957 = vmatpush1.msra.mxu0 0.0
        %958 = vmatprep.subr.mxu0 0.0
        %959 = vmatpush1.msra.mxu0 0.0
        %960 = vmatprep.subr.mxu0 0.0
        %961 = vmatpush1.msra.mxu0 0.0
        %962 = vmatprep.subr.mxu0 0.0
        %963 = vmatpush1.msra.mxu0 0.0
        %964 = vmatprep.subr.mxu0 0.0
        %965 = vmatpush1.msra.mxu0 0.0
        %966 = vmatprep.subr.mxu0 0.0
        %967 = vmatpush1.msra.mxu0 0.0
        %968 = vmatprep.subr.mxu0 0.0
        %969 = vmatpush1.msra.mxu0 0.0
        %970 = vmatprep.subr.mxu0 0.0
        %971 = vmatpush1.msra.mxu0 0.0
        %972 = vmatprep.subr.mxu0 0.0
        %973 = vmatpush1.msra.mxu0 0.0
        %974 = vmatprep.subr.mxu0 0.0
        %975 = vmatpush1.msra.mxu0 0.0
        %976 = vmatprep.subr.mxu0 0.0
        %977 = vmatpush1.msra.mxu0 0.0
        %978 = vmatprep.mubr.f32.mxu0 0.0
        %979 = vmatmul.mubr.f32.gmra.mrb[0].mxu0 %v909
        %v980 = vpop.f32.mrb[0].mxu0
        %v981 = vadd.f32 0.0, %v980
        %v982 = vpop.f32.mrb[0].mxu0
        %983 = vmatprep.mubr.f32.mxu0 0.0
        %984 = vmatmul.mubr.f32.gmra.mrb[0].mxu0 %v912
        %v985 = vpop.f32.mrb[0].mxu0
        %v986 = vadd.f32 0.0, %v985
        %v987 = vpop.f32.mrb[0].mxu0
        %988 = vdwg.mxu0
        %s989 = scalar_lea.vmem [#allocation2], 128
        %v990 = vld [vmem:[%s989] sm:$0xff]
        %v991 = vld [vmem:[%s989 + $0x8] sm:$0xff]
        %v992 = vld [vmem:[%s989 + $0x10] sm:$0xff]
        %v993 = vld [vmem:[%s989 + $0x18] sm:$0xff]
        %v994 = vld [vmem:[%s989 + $0x20] sm:$0xff]
        %v995 = vld [vmem:[%s989 + $0x28] sm:$0xff]
        %v996 = vld [vmem:[%s989 + $0x30] sm:$0xff]
        %v997 = vld [vmem:[%s989 + $0x38] sm:$0xff]
        %v998 = vld [vmem:[%s989 + $0x40] sm:$0xff]
        %v999 = vld [vmem:[%s989 + $0x48] sm:$0xff]
        %v1000 = vld [vmem:[%s989 + $0x50] sm:$0xff]
        %v1001 = vld [vmem:[%s989 + $0x58] sm:$0xff]
        %v1002 = vld [vmem:[%s989 + $0x60] sm:$0xff]
        %v1003 = vld [vmem:[%s989 + $0x68] sm:$0xff]
        %v1004 = vld [vmem:[%s989 + $0x70] sm:$0xff]
        %v1005 = vld [vmem:[%s989 + $0x78] sm:$0xff]
        %1006 = vmatprep.subr.mxu0 0.0
        %1007 = vmatpush1.msra.mxu0 %v990
        %1008 = vmatprep.subr.mxu0 0.0
        %1009 = vmatpush1.msra.mxu0 %v991
        %1010 = vmatprep.subr.mxu0 0.0
        %1011 = vmatpush1.msra.mxu0 %v992
        %1012 = vmatprep.subr.mxu0 0.0
        %1013 = vmatpush1.msra.mxu0 %v993
        %1014 = vmatprep.subr.mxu0 0.0
        %1015 = vmatpush1.msra.mxu0 %v994
        %1016 = vmatprep.subr.mxu0 0.0
        %1017 = vmatpush1.msra.mxu0 %v995
        %1018 = vmatprep.subr.mxu0 0.0
        %1019 = vmatpush1.msra.mxu0 %v996
        %1020 = vmatprep.subr.mxu0 0.0
        %1021 = vmatpush1.msra.mxu0 %v997
        %1022 = vmatprep.subr.mxu0 0.0
        %1023 = vmatpush1.msra.mxu0 %v998
        %1024 = vmatprep.subr.mxu0 0.0
        %1025 = vmatpush1.msra.mxu0 %v999
        %1026 = vmatprep.subr.mxu0 0.0
        %1027 = vmatpush1.msra.mxu0 %v1000
        %1028 = vmatprep.subr.mxu0 0.0
        %1029 = vmatpush1.msra.mxu0 %v1001
        %1030 = vmatprep.subr.mxu0 0.0
        %1031 = vmatpush1.msra.mxu0 %v1002
        %1032 = vmatprep.subr.mxu0 0.0
        %1033 = vmatpush1.msra.mxu0 %v1003
        %1034 = vmatprep.subr.mxu0 0.0
        %1035 = vmatpush1.msra.mxu0 %v1004
        %1036 = vmatprep.subr.mxu0 0.0
        %1037 = vmatpush1.msra.mxu0 %v1005
        %1038 = vmatprep.subr.mxu0 0.0
        %1039 = vmatpush1.msra.mxu0 0.0
        %1040 = vmatprep.subr.mxu0 0.0
        %1041 = vmatpush1.msra.mxu0 0.0
        %1042 = vmatprep.subr.mxu0 0.0
        %1043 = vmatpush1.msra.mxu0 0.0
        %1044 = vmatprep.subr.mxu0 0.0
        %1045 = vmatpush1.msra.mxu0 0.0
        %1046 = vmatprep.subr.mxu0 0.0
        %1047 = vmatpush1.msra.mxu0 0.0
        %1048 = vmatprep.subr.mxu0 0.0
        %1049 = vmatpush1.msra.mxu0 0.0
        %1050 = vmatprep.subr.mxu0 0.0
        %1051 = vmatpush1.msra.mxu0 0.0
        %1052 = vmatprep.subr.mxu0 0.0
        %1053 = vmatpush1.msra.mxu0 0.0
        %1054 = vmatprep.subr.mxu0 0.0
        %1055 = vmatpush1.msra.mxu0 0.0
        %1056 = vmatprep.subr.mxu0 0.0
        %1057 = vmatpush1.msra.mxu0 0.0
        %1058 = vmatprep.subr.mxu0 0.0
        %1059 = vmatpush1.msra.mxu0 0.0
        %1060 = vmatprep.subr.mxu0 0.0
        %1061 = vmatpush1.msra.mxu0 0.0
        %1062 = vmatprep.subr.mxu0 0.0
        %1063 = vmatpush1.msra.mxu0 0.0
        %1064 = vmatprep.subr.mxu0 0.0
        %1065 = vmatpush1.msra.mxu0 0.0
        %1066 = vmatprep.subr.mxu0 0.0
        %1067 = vmatpush1.msra.mxu0 0.0
        %1068 = vmatprep.subr.mxu0 0.0
        %1069 = vmatpush1.msra.mxu0 0.0
        %1070 = vmatprep.mubr.f32.mxu0 0.0
        %1071 = vmatmul.mubr.f32.gmra.mrb[0].mxu0 %v981
        %v1072 = vpop.f32.mrb[0].mxu0
        %v1073 = vadd.f32 0.0, %v1072
        %v1074 = vpop.f32.mrb[0].mxu0
        %1075 = vmatprep.mubr.f32.mxu0 0.0
        %1076 = vmatmul.mubr.f32.gmra.mrb[0].mxu0 %v986
        %v1077 = vpop.f32.mrb[0].mxu0
        %v1078 = vadd.f32 0.0, %v1077
        %v1079 = vpop.f32.mrb[0].mxu0
        %1080 = vdwg.mxu0
        %1081 = vmatprep.subr.mxu0 0.0
        %1082 = vmatpush1.msra.mxu0 %v889
        %1083 = vmatprep.subr.mxu0 0.0
        %1084 = vmatpush1.msra.mxu0 %v890
        %1085 = vmatprep.subr.mxu0 0.0
        %1086 = vmatpush1.msra.mxu0 %v891
        %1087 = vmatprep.subr.mxu0 0.0
        %1088 = vmatpush1.msra.mxu0 %v892
        %1089 = vmatprep.subr.mxu0 0.0
        %1090 = vmatpush1.msra.mxu0 %v893
        %1091 = vmatprep.subr.mxu0 0.0
        %1092 = vmatpush1.msra.mxu0 %v894
        %1093 = vmatprep.subr.mxu0 0.0
        %1094 = vmatpush1.msra.mxu0 %v895
        %1095 = vmatprep.subr.mxu0 0.0
        %1096 = vmatpush1.msra.mxu0 %v896
        %1097 = vmatprep.subr.mxu0 0.0
        %1098 = vmatpush1.msra.mxu0 %v897
        %1099 = vmatprep.subr.mxu0 0.0
        %1100 = vmatpush1.msra.mxu0 %v898
        %1101 = vmatprep.subr.mxu0 0.0
        %1102 = vmatpush1.msra.mxu0 %v899
        %1103 = vmatprep.subr.mxu0 0.0
        %1104 = vmatpush1.msra.mxu0 %v900
        %1105 = vmatprep.subr.mxu0 0.0
        %1106 = vmatpush1.msra.mxu0 %v901
        %1107 = vmatprep.subr.mxu0 0.0
        %1108 = vmatpush1.msra.mxu0 %v902
        %1109 = vmatprep.subr.mxu0 0.0
        %1110 = vmatpush1.msra.mxu0 %v903
        %1111 = vmatprep.subr.mxu0 0.0
        %1112 = vmatpush1.msra.mxu0 %v904
        %1113 = vmatprep.subr.mxu0 0.0
        %1114 = vmatpush1.msra.mxu0 0.0
        %1115 = vmatprep.subr.mxu0 0.0
        %1116 = vmatpush1.msra.mxu0 0.0
        %1117 = vmatprep.subr.mxu0 0.0
        %1118 = vmatpush1.msra.mxu0 0.0
        %1119 = vmatprep.subr.mxu0 0.0
        %1120 = vmatpush1.msra.mxu0 0.0
        %1121 = vmatprep.subr.mxu0 0.0
        %1122 = vmatpush1.msra.mxu0 0.0
        %1123 = vmatprep.subr.mxu0 0.0
        %1124 = vmatpush1.msra.mxu0 0.0
        %1125 = vmatprep.subr.mxu0 0.0
        %1126 = vmatpush1.msra.mxu0 0.0
        %1127 = vmatprep.subr.mxu0 0.0
        %1128 = vmatpush1.msra.mxu0 0.0
        %1129 = vmatprep.subr.mxu0 0.0
        %1130 = vmatpush1.msra.mxu0 0.0
        %1131 = vmatprep.subr.mxu0 0.0
        %1132 = vmatpush1.msra.mxu0 0.0
        %1133 = vmatprep.subr.mxu0 0.0
        %1134 = vmatpush1.msra.mxu0 0.0
        %1135 = vmatprep.subr.mxu0 0.0
        %1136 = vmatpush1.msra.mxu0 0.0
        %1137 = vmatprep.subr.mxu0 0.0
        %1138 = vmatpush1.msra.mxu0 0.0
        %1139 = vmatprep.subr.mxu0 0.0
        %1140 = vmatpush1.msra.mxu0 0.0
        %1141 = vmatprep.subr.mxu0 0.0
        %1142 = vmatpush1.msra.mxu0 0.0
        %1143 = vmatprep.subr.mxu0 0.0
        %1144 = vmatpush1.msra.mxu0 0.0
        %1145 = vmatprep.mubr.f32.mxu0 0.0
        %1146 = vmatmul.mubr.f32.gmra.mrb[0].mxu0 %v881
        %v1147 = vpop.f32.mrb[0].mxu0
        %v1148 = vadd.f32 %v1073, %v1147
        %v1149 = vpop.f32.mrb[0].mxu0
        %1150 = vmatprep.mubr.f32.mxu0 0.0
        %1151 = vmatmul.mubr.f32.gmra.mrb[0].mxu0 %v886
        %v1152 = vpop.f32.mrb[0].mxu0
        %v1153 = vadd.f32 %v1078, %v1152
        %v1154 = vpop.f32.mrb[0].mxu0
        %1155 = vdwg.mxu0
        %s1156 = scalar_lea.vmem %s1, 32
        %v1157 = vld [vmem:[%s1156] sm:$0xff]
        %v1158 = vld [vmem:[%s1156 + $0x8] sm:$0xff]
        %v1160 = vsel %vm807, %v1157, 0
        %v1163 = vsel %vm807, %v1158, 0
        %1165 = vmatprep.subr.mxu0 0.0
        %1166 = vmatpush1.msra.mxu0 %v801
        %1167 = vmatprep.subr.mxu0 0.0
        %1168 = vmatpush1.msra.mxu0 %v802
        %1169 = vmatprep.subr.mxu0 0.0
        %1170 = vmatpush1.msra.mxu0 %v803
        %1171 = vmatprep.subr.mxu0 0.0
        %1172 = vmatpush1.msra.mxu0 %v804
        %1173 = vmatprep.subr.mxu0 0.0
        %1174 = vmatpush1.msra.mxu0 0.0
        %1175 = vmatprep.subr.mxu0 0.0
        %1176 = vmatpush1.msra.mxu0 0.0
        %1177 = vmatprep.subr.mxu0 0.0
        %1178 = vmatpush1.msra.mxu0 0.0
        %1179 = vmatprep.subr.mxu0 0.0
        %1180 = vmatpush1.msra.mxu0 0.0
        %1181 = vmatprep.subr.mxu0 0.0
        %1182 = vmatpush1.msra.mxu0 0.0
        %1183 = vmatprep.subr.mxu0 0.0
        %1184 = vmatpush1.msra.mxu0 0.0
        %1185 = vmatprep.subr.mxu0 0.0
        %1186 = vmatpush1.msra.mxu0 0.0
        %1187 = vmatprep.subr.mxu0 0.0
        %1188 = vmatpush1.msra.mxu0 0.0
        %1189 = vmatprep.subr.mxu0 0.0
        %1190 = vmatpush1.msra.mxu0 0.0
        %1191 = vmatprep.subr.mxu0 0.0
        %1192 = vmatpush1.msra.mxu0 0.0
        %1193 = vmatprep.subr.mxu0 0.0
        %1194 = vmatpush1.msra.mxu0 0.0
        %1195 = vmatprep.subr.mxu0 0.0
        %1196 = vmatpush1.msra.mxu0 0.0
        %1197 = vmatprep.subr.mxu0 0.0
        %1198 = vmatpush1.msra.mxu0 0.0
        %1199 = vmatprep.subr.mxu0 0.0
        %1200 = vmatpush1.msra.mxu0 0.0
        %1201 = vmatprep.subr.mxu0 0.0
        %1202 = vmatpush1.msra.mxu0 0.0
        %1203 = vmatprep.subr.mxu0 0.0
        %1204 = vmatpush1.msra.mxu0 0.0
        %1205 = vmatprep.subr.mxu0 0.0
        %1206 = vmatpush1.msra.mxu0 0.0
        %1207 = vmatprep.subr.mxu0 0.0
        %1208 = vmatpush1.msra.mxu0 0.0
        %1209 = vmatprep.subr.mxu0 0.0
        %1210 = vmatpush1.msra.mxu0 0.0
        %1211 = vmatprep.subr.mxu0 0.0
        %1212 = vmatpush1.msra.mxu0 0.0
        %1213 = vmatprep.subr.mxu0 0.0
        %1214 = vmatpush1.msra.mxu0 0.0
        %1215 = vmatprep.subr.mxu0 0.0
        %1216 = vmatpush1.msra.mxu0 0.0
        %1217 = vmatprep.subr.mxu0 0.0
        %1218 = vmatpush1.msra.mxu0 0.0
        %1219 = vmatprep.subr.mxu0 0.0
        %1220 = vmatpush1.msra.mxu0 0.0
        %1221 = vmatprep.subr.mxu0 0.0
        %1222 = vmatpush1.msra.mxu0 0.0
        %1223 = vmatprep.subr.mxu0 0.0
        %1224 = vmatpush1.msra.mxu0 0.0
        %1225 = vmatprep.subr.mxu0 0.0
        %1226 = vmatpush1.msra.mxu0 0.0
        %1227 = vmatprep.subr.mxu0 0.0
        %1228 = vmatpush1.msra.mxu0 0.0
        %1229 = vmatprep.mubr.f32.mxu0 0.0
        %1230 = vmatmul.mubr.f32.gmra.mrb[0].mxu0 %v1160
        %v1231 = vpop.f32.mrb[0].mxu0
        %v1232 = vadd.f32 0.0, %v1231
        %v1233 = vpop.f32.mrb[0].mxu0
        %1234 = vmatprep.mubr.f32.mxu0 0.0
        %1235 = vmatmul.mubr.f32.gmra.mrb[0].mxu0 %v1163
        %v1236 = vpop.f32.mrb[0].mxu0
        %v1237 = vadd.f32 0.0, %v1236
        %v1238 = vpop.f32.mrb[0].mxu0
        %1239 = vdwg.mxu0
        %s1240 = scalar_lea.vmem [#allocation2], 256
        %v1241 = vld [vmem:[%s1240] sm:$0xff]
        %v1242 = vld [vmem:[%s1240 + $0x8] sm:$0xff]
        %v1243 = vld [vmem:[%s1240 + $0x10] sm:$0xff]
        %v1244 = vld [vmem:[%s1240 + $0x18] sm:$0xff]
        %v1245 = vld [vmem:[%s1240 + $0x20] sm:$0xff]
        %v1246 = vld [vmem:[%s1240 + $0x28] sm:$0xff]
        %v1247 = vld [vmem:[%s1240 + $0x30] sm:$0xff]
        %v1248 = vld [vmem:[%s1240 + $0x38] sm:$0xff]
        %v1249 = vld [vmem:[%s1240 + $0x40] sm:$0xff]
        %v1250 = vld [vmem:[%s1240 + $0x48] sm:$0xff]
        %v1251 = vld [vmem:[%s1240 + $0x50] sm:$0xff]
        %v1252 = vld [vmem:[%s1240 + $0x58] sm:$0xff]
        %v1253 = vld [vmem:[%s1240 + $0x60] sm:$0xff]
        %v1254 = vld [vmem:[%s1240 + $0x68] sm:$0xff]
        %v1255 = vld [vmem:[%s1240 + $0x70] sm:$0xff]
        %v1256 = vld [vmem:[%s1240 + $0x78] sm:$0xff]
        %1257 = vmatprep.subr.mxu0 0.0
        %1258 = vmatpush1.msra.mxu0 %v1241
        %1259 = vmatprep.subr.mxu0 0.0
        %1260 = vmatpush1.msra.mxu0 %v1242
        %1261 = vmatprep.subr.mxu0 0.0
        %1262 = vmatpush1.msra.mxu0 %v1243
        %1263 = vmatprep.subr.mxu0 0.0
        %1264 = vmatpush1.msra.mxu0 %v1244
        %1265 = vmatprep.subr.mxu0 0.0
        %1266 = vmatpush1.msra.mxu0 %v1245
        %1267 = vmatprep.subr.mxu0 0.0
        %1268 = vmatpush1.msra.mxu0 %v1246
        %1269 = vmatprep.subr.mxu0 0.0
        %1270 = vmatpush1.msra.mxu0 %v1247
        %1271 = vmatprep.subr.mxu0 0.0
        %1272 = vmatpush1.msra.mxu0 %v1248
        %1273 = vmatprep.subr.mxu0 0.0
        %1274 = vmatpush1.msra.mxu0 %v1249
        %1275 = vmatprep.subr.mxu0 0.0
        %1276 = vmatpush1.msra.mxu0 %v1250
        %1277 = vmatprep.subr.mxu0 0.0
        %1278 = vmatpush1.msra.mxu0 %v1251
        %1279 = vmatprep.subr.mxu0 0.0
        %1280 = vmatpush1.msra.mxu0 %v1252
        %1281 = vmatprep.subr.mxu0 0.0
        %1282 = vmatpush1.msra.mxu0 %v1253
        %1283 = vmatprep.subr.mxu0 0.0
        %1284 = vmatpush1.msra.mxu0 %v1254
        %1285 = vmatprep.subr.mxu0 0.0
        %1286 = vmatpush1.msra.mxu0 %v1255
        %1287 = vmatprep.subr.mxu0 0.0
        %1288 = vmatpush1.msra.mxu0 %v1256
        %1289 = vmatprep.subr.mxu0 0.0
        %1290 = vmatpush1.msra.mxu0 0.0
        %1291 = vmatprep.subr.mxu0 0.0
        %1292 = vmatpush1.msra.mxu0 0.0
        %1293 = vmatprep.subr.mxu0 0.0
        %1294 = vmatpush1.msra.mxu0 0.0
        %1295 = vmatprep.subr.mxu0 0.0
        %1296 = vmatpush1.msra.mxu0 0.0
        %1297 = vmatprep.subr.mxu0 0.0
        %1298 = vmatpush1.msra.mxu0 0.0
        %1299 = vmatprep.subr.mxu0 0.0
        %1300 = vmatpush1.msra.mxu0 0.0
        %1301 = vmatprep.subr.mxu0 0.0
        %1302 = vmatpush1.msra.mxu0 0.0
        %1303 = vmatprep.subr.mxu0 0.0
        %1304 = vmatpush1.msra.mxu0 0.0
        %1305 = vmatprep.subr.mxu0 0.0
        %1306 = vmatpush1.msra.mxu0 0.0
        %1307 = vmatprep.subr.mxu0 0.0
        %1308 = vmatpush1.msra.mxu0 0.0
        %1309 = vmatprep.subr.mxu0 0.0
        %1310 = vmatpush1.msra.mxu0 0.0
        %1311 = vmatprep.subr.mxu0 0.0
        %1312 = vmatpush1.msra.mxu0 0.0
        %1313 = vmatprep.subr.mxu0 0.0
        %1314 = vmatpush1.msra.mxu0 0.0
        %1315 = vmatprep.subr.mxu0 0.0
        %1316 = vmatpush1.msra.mxu0 0.0
        %1317 = vmatprep.subr.mxu0 0.0
        %1318 = vmatpush1.msra.mxu0 0.0
        %1319 = vmatprep.subr.mxu0 0.0
        %1320 = vmatpush1.msra.mxu0 0.0
        %1321 = vmatprep.mubr.f32.mxu0 0.0
        %1322 = vmatmul.mubr.f32.gmra.mrb[0].mxu0 %v1232
        %v1323 = vpop.f32.mrb[0].mxu0
        %v1324 = vadd.f32 0.0, %v1323
        %v1325 = vpop.f32.mrb[0].mxu0
        %1326 = vmatprep.mubr.f32.mxu0 0.0
        %1327 = vmatmul.mubr.f32.gmra.mrb[0].mxu0 %v1237
        %v1328 = vpop.f32.mrb[0].mxu0
        %v1329 = vadd.f32 0.0, %v1328
        %v1330 = vpop.f32.mrb[0].mxu0
        %1331 = vdwg.mxu0
        %v1332 = vadd.f32 %v1148, %v1324
        %v1333 = vadd.f32 %v1153, %v1329
        %v1334 = vld [vmem:[%s3] sm:$0x1]
        %v1336 = vlaneseq
        %v1337 = vshrl.u32 %v1336, 7
        %v1338 = vsub.s32 0, %v1337
        %v1339 = vrot.slane %v1334, %v1338
        %v1341 = vadd.f32 %v1332, %v1339
        %v1342 = vadd.f32 %v1333, %v1339
        %v1343 = vmax.f32 %v1341, 0.0
        %v1344 = vmax.f32 %v1342, 0.0
        %v1345 = vld [vmem:[#allocation4] sm:$0xff]
        %vm1346 = vcmask 130048
        %v1348 = vsel %vm1346, %v1345, 0
        %1350 = vmatprep.subr.mxu0 0.0
        %1351 = vmatpush1.msra.mxu0 %v1343
        %1352 = vmatprep.subr.mxu0 0.0
        %1353 = vmatpush1.msra.mxu0 %v1344
        %1354 = vmatprep.subr.mxu0 0.0
        %1355 = vmatpush1.msra.mxu0 0.0
        %1356 = vmatprep.subr.mxu0 0.0
        %1357 = vmatpush1.msra.mxu0 0.0
        %1358 = vmatprep.subr.mxu0 0.0
        %1359 = vmatpush1.msra.mxu0 0.0
        %1360 = vmatprep.subr.mxu0 0.0
        %1361 = vmatpush1.msra.mxu0 0.0
        %1362 = vmatprep.subr.mxu0 0.0
        %1363 = vmatpush1.msra.mxu0 0.0
        %1364 = vmatprep.subr.mxu0 0.0
        %1365 = vmatpush1.msra.mxu0 0.0
        %1366 = vmatprep.subr.mxu0 0.0
        %1367 = vmatpush1.msra.mxu0 0.0
        %1368 = vmatprep.subr.mxu0 0.0
        %1369 = vmatpush1.msra.mxu0 0.0
        %1370 = vmatprep.subr.mxu0 0.0
        %1371 = vmatpush1.msra.mxu0 0.0
        %1372 = vmatprep.subr.mxu0 0.0
        %1373 = vmatpush1.msra.mxu0 0.0
        %1374 = vmatprep.subr.mxu0 0.0
        %1375 = vmatpush1.msra.mxu0 0.0
        %1376 = vmatprep.subr.mxu0 0.0
        %1377 = vmatpush1.msra.mxu0 0.0
        %1378 = vmatprep.subr.mxu0 0.0
        %1379 = vmatpush1.msra.mxu0 0.0
        %1380 = vmatprep.subr.mxu0 0.0
        %1381 = vmatpush1.msra.mxu0 0.0
        %1382 = vmatprep.subr.mxu0 0.0
        %1383 = vmatpush1.msra.mxu0 0.0
        %1384 = vmatprep.subr.mxu0 0.0
        %1385 = vmatpush1.msra.mxu0 0.0
        %1386 = vmatprep.subr.mxu0 0.0
        %1387 = vmatpush1.msra.mxu0 0.0
        %1388 = vmatprep.subr.mxu0 0.0
        %1389 = vmatpush1.msra.mxu0 0.0
        %1390 = vmatprep.subr.mxu0 0.0
        %1391 = vmatpush1.msra.mxu0 0.0
        %1392 = vmatprep.subr.mxu0 0.0
        %1393 = vmatpush1.msra.mxu0 0.0
        %1394 = vmatprep.subr.mxu0 0.0
        %1395 = vmatpush1.msra.mxu0 0.0
        %1396 = vmatprep.subr.mxu0 0.0
        %1397 = vmatpush1.msra.mxu0 0.0
        %1398 = vmatprep.subr.mxu0 0.0
        %1399 = vmatpush1.msra.mxu0 0.0
        %1400 = vmatprep.subr.mxu0 0.0
        %1401 = vmatpush1.msra.mxu0 0.0
        %1402 = vmatprep.subr.mxu0 0.0
        %1403 = vmatpush1.msra.mxu0 0.0
        %1404 = vmatprep.subr.mxu0 0.0
        %1405 = vmatpush1.msra.mxu0 0.0
        %1406 = vmatprep.subr.mxu0 0.0
        %1407 = vmatpush1.msra.mxu0 0.0
        %1408 = vmatprep.subr.mxu0 0.0
        %1409 = vmatpush1.msra.mxu0 0.0
        %1410 = vmatprep.subr.mxu0 0.0
        %1411 = vmatpush1.msra.mxu0 0.0
        %1412 = vmatprep.subr.mxu0 0.0
        %1413 = vmatpush1.msra.mxu0 0.0
        %1414 = vmatprep.mubr.f32.mxu0 0.0
        %1415 = vmatmul.mubr.f32.gmra.mrb[0].mxu0 %v1348
        %v1416 = vpop.f32.mrb[0].mxu0
        %v1417 = vadd.f32 0.0, %v1416
        %v1418 = vpop.f32.mrb[0].mxu0
        %1419 = vdwg.mxu0
        %v1420 = vld [vmem:[#allocation6] sm:$0xff]
        %v1421 = vld [vmem:[#allocation6 + $0x8] sm:$0xff]
        %v1422 = vld [vmem:[#allocation6 + $0x10] sm:$0xff]
        %v1423 = vld [vmem:[#allocation6 + $0x18] sm:$0xff]
        %v1424 = vld [vmem:[#allocation6 + $0x20] sm:$0xff]
        %v1425 = vld [vmem:[#allocation6 + $0x28] sm:$0xff]
        %v1426 = vld [vmem:[#allocation6 + $0x30] sm:$0xff]
        %v1427 = vld [vmem:[#allocation6 + $0x38] sm:$0xff]
        %v1428 = vld [vmem:[#allocation6 + $0x40] sm:$0xff]
        %v1429 = vld [vmem:[#allocation6 + $0x48] sm:$0xff]
        %v1430 = vld [vmem:[#allocation6 + $0x50] sm:$0xff]
        %v1431 = vld [vmem:[#allocation6 + $0x58] sm:$0xff]
        %v1432 = vld [vmem:[#allocation6 + $0x60] sm:$0xff]
        %v1433 = vld [vmem:[#allocation6 + $0x68] sm:$0xff]
        %v1434 = vld [vmem:[#allocation6 + $0x70] sm:$0xff]
        %v1435 = vld [vmem:[#allocation6 + $0x78] sm:$0xff]
        %s1436 = scalar_lea.vmem [#allocation4], 8
        %v1437 = vld [vmem:[%s1436] sm:$0xff]
        %v1439 = vsel %vm1346, %v1437, 0
        %1441 = vmatprep.subr.mxu0 0.0
        %1442 = vmatpush1.msra.mxu0 %v1343
        %1443 = vmatprep.subr.mxu0 0.0
        %1444 = vmatpush1.msra.mxu0 %v1344
        %1445 = vmatprep.subr.mxu0 0.0
        %1446 = vmatpush1.msra.mxu0 0.0
        %1447 = vmatprep.subr.mxu0 0.0
        %1448 = vmatpush1.msra.mxu0 0.0
        %1449 = vmatprep.subr.mxu0 0.0
        %1450 = vmatpush1.msra.mxu0 0.0
        %1451 = vmatprep.subr.mxu0 0.0
        %1452 = vmatpush1.msra.mxu0 0.0
        %1453 = vmatprep.subr.mxu0 0.0
        %1454 = vmatpush1.msra.mxu0 0.0
        %1455 = vmatprep.subr.mxu0 0.0
        %1456 = vmatpush1.msra.mxu0 0.0
        %1457 = vmatprep.subr.mxu0 0.0
        %1458 = vmatpush1.msra.mxu0 0.0
        %1459 = vmatprep.subr.mxu0 0.0
        %1460 = vmatpush1.msra.mxu0 0.0
        %1461 = vmatprep.subr.mxu0 0.0
        %1462 = vmatpush1.msra.mxu0 0.0
        %1463 = vmatprep.subr.mxu0 0.0
        %1464 = vmatpush1.msra.mxu0 0.0
        %1465 = vmatprep.subr.mxu0 0.0
        %1466 = vmatpush1.msra.mxu0 0.0
        %1467 = vmatprep.subr.mxu0 0.0
        %1468 = vmatpush1.msra.mxu0 0.0
        %1469 = vmatprep.subr.mxu0 0.0
        %1470 = vmatpush1.msra.mxu0 0.0
        %1471 = vmatprep.subr.mxu0 0.0
        %1472 = vmatpush1.msra.mxu0 0.0
        %1473 = vmatprep.subr.mxu0 0.0
        %1474 = vmatpush1.msra.mxu0 0.0
        %1475 = vmatprep.subr.mxu0 0.0
        %1476 = vmatpush1.msra.mxu0 0.0
        %1477 = vmatprep.subr.mxu0 0.0
        %1478 = vmatpush1.msra.mxu0 0.0
        %1479 = vmatprep.subr.mxu0 0.0
        %1480 = vmatpush1.msra.mxu0 0.0
        %1481 = vmatprep.subr.mxu0 0.0
        %1482 = vmatpush1.msra.mxu0 0.0
        %1483 = vmatprep.subr.mxu0 0.0
        %1484 = vmatpush1.msra.mxu0 0.0
        %1485 = vmatprep.subr.mxu0 0.0
        %1486 = vmatpush1.msra.mxu0 0.0
        %1487 = vmatprep.subr.mxu0 0.0
        %1488 = vmatpush1.msra.mxu0 0.0
        %1489 = vmatprep.subr.mxu0 0.0
        %1490 = vmatpush1.msra.mxu0 0.0
        %1491 = vmatprep.subr.mxu0 0.0
        %1492 = vmatpush1.msra.mxu0 0.0
        %1493 = vmatprep.subr.mxu0 0.0
        %1494 = vmatpush1.msra.mxu0 0.0
        %1495 = vmatprep.subr.mxu0 0.0
        %1496 = vmatpush1.msra.mxu0 0.0
        %1497 = vmatprep.subr.mxu0 0.0
        %1498 = vmatpush1.msra.mxu0 0.0
        %1499 = vmatprep.subr.mxu0 0.0
        %1500 = vmatpush1.msra.mxu0 0.0
        %1501 = vmatprep.subr.mxu0 0.0
        %1502 = vmatpush1.msra.mxu0 0.0
        %1503 = vmatprep.subr.mxu0 0.0
        %1504 = vmatpush1.msra.mxu0 0.0
        %1505 = vmatprep.mubr.f32.mxu0 0.0
        %1506 = vmatmul.mubr.f32.gmra.mrb[0].mxu0 %v1439
        %v1507 = vpop.f32.mrb[0].mxu0
        %v1508 = vadd.f32 0.0, %v1507
        %v1509 = vpop.f32.mrb[0].mxu0
        %1510 = vdwg.mxu0
        %s1511 = scalar_lea.vmem [#allocation6], 128
        %v1512 = vld [vmem:[%s1511] sm:$0xff]
        %v1513 = vld [vmem:[%s1511 + $0x8] sm:$0xff]
        %v1514 = vld [vmem:[%s1511 + $0x10] sm:$0xff]
        %v1515 = vld [vmem:[%s1511 + $0x18] sm:$0xff]
        %v1516 = vld [vmem:[%s1511 + $0x20] sm:$0xff]
        %v1517 = vld [vmem:[%s1511 + $0x28] sm:$0xff]
        %v1518 = vld [vmem:[%s1511 + $0x30] sm:$0xff]
        %v1519 = vld [vmem:[%s1511 + $0x38] sm:$0xff]
        %v1520 = vld [vmem:[%s1511 + $0x40] sm:$0xff]
        %v1521 = vld [vmem:[%s1511 + $0x48] sm:$0xff]
        %v1522 = vld [vmem:[%s1511 + $0x50] sm:$0xff]
        %v1523 = vld [vmem:[%s1511 + $0x58] sm:$0xff]
        %v1524 = vld [vmem:[%s1511 + $0x60] sm:$0xff]
        %v1525 = vld [vmem:[%s1511 + $0x68] sm:$0xff]
        %v1526 = vld [vmem:[%s1511 + $0x70] sm:$0xff]
        %v1527 = vld [vmem:[%s1511 + $0x78] sm:$0xff]
        %1528 = vmatprep.subr.mxu0 0.0
        %1529 = vmatpush1.msra.mxu0 %v1512
        %1530 = vmatprep.subr.mxu0 0.0
        %1531 = vmatpush1.msra.mxu0 %v1513
        %1532 = vmatprep.subr.mxu0 0.0
        %1533 = vmatpush1.msra.mxu0 %v1514
        %1534 = vmatprep.subr.mxu0 0.0
        %1535 = vmatpush1.msra.mxu0 %v1515
        %1536 = vmatprep.subr.mxu0 0.0
        %1537 = vmatpush1.msra.mxu0 %v1516
        %1538 = vmatprep.subr.mxu0 0.0
        %1539 = vmatpush1.msra.mxu0 %v1517
        %1540 = vmatprep.subr.mxu0 0.0
        %1541 = vmatpush1.msra.mxu0 %v1518
        %1542 = vmatprep.subr.mxu0 0.0
        %1543 = vmatpush1.msra.mxu0 %v1519
        %1544 = vmatprep.subr.mxu0 0.0
        %1545 = vmatpush1.msra.mxu0 %v1520
        %1546 = vmatprep.subr.mxu0 0.0
        %1547 = vmatpush1.msra.mxu0 %v1521
        %1548 = vmatprep.subr.mxu0 0.0
        %1549 = vmatpush1.msra.mxu0 %v1522
        %1550 = vmatprep.subr.mxu0 0.0
        %1551 = vmatpush1.msra.mxu0 %v1523
        %1552 = vmatprep.subr.mxu0 0.0
        %1553 = vmatpush1.msra.mxu0 %v1524
        %1554 = vmatprep.subr.mxu0 0.0
        %1555 = vmatpush1.msra.mxu0 %v1525
        %1556 = vmatprep.subr.mxu0 0.0
        %1557 = vmatpush1.msra.mxu0 %v1526
        %1558 = vmatprep.subr.mxu0 0.0
        %1559 = vmatpush1.msra.mxu0 %v1527
        %1560 = vmatprep.subr.mxu0 0.0
        %1561 = vmatpush1.msra.mxu0 0.0
        %1562 = vmatprep.subr.mxu0 0.0
        %1563 = vmatpush1.msra.mxu0 0.0
        %1564 = vmatprep.subr.mxu0 0.0
        %1565 = vmatpush1.msra.mxu0 0.0
        %1566 = vmatprep.subr.mxu0 0.0
        %1567 = vmatpush1.msra.mxu0 0.0
        %1568 = vmatprep.subr.mxu0 0.0
        %1569 = vmatpush1.msra.mxu0 0.0
        %1570 = vmatprep.subr.mxu0 0.0
        %1571 = vmatpush1.msra.mxu0 0.0
        %1572 = vmatprep.subr.mxu0 0.0
        %1573 = vmatpush1.msra.mxu0 0.0
        %1574 = vmatprep.subr.mxu0 0.0
        %1575 = vmatpush1.msra.mxu0 0.0
        %1576 = vmatprep.subr.mxu0 0.0
        %1577 = vmatpush1.msra.mxu0 0.0
        %1578 = vmatprep.subr.mxu0 0.0
        %1579 = vmatpush1.msra.mxu0 0.0
        %1580 = vmatprep.subr.mxu0 0.0
        %1581 = vmatpush1.msra.mxu0 0.0
        %1582 = vmatprep.subr.mxu0 0.0
        %1583 = vmatpush1.msra.mxu0 0.0
        %1584 = vmatprep.subr.mxu0 0.0
        %1585 = vmatpush1.msra.mxu0 0.0
        %1586 = vmatprep.subr.mxu0 0.0
        %1587 = vmatpush1.msra.mxu0 0.0
        %1588 = vmatprep.subr.mxu0 0.0
        %1589 = vmatpush1.msra.mxu0 0.0
        %1590 = vmatprep.subr.mxu0 0.0
        %1591 = vmatpush1.msra.mxu0 0.0
        %1592 = vmatprep.mubr.f32.mxu0 0.0
        %1593 = vmatmul.mubr.f32.gmra.mrb[0].mxu0 %v1508
        %v1594 = vpop.f32.mrb[0].mxu0
        %v1595 = vadd.f32 0.0, %v1594
        %v1596 = vpop.f32.mrb[0].mxu0
        %1597 = vdwg.mxu0
        %1598 = vmatprep.subr.mxu0 0.0
        %1599 = vmatpush1.msra.mxu0 %v1420
        %1600 = vmatprep.subr.mxu0 0.0
        %1601 = vmatpush1.msra.mxu0 %v1421
        %1602 = vmatprep.subr.mxu0 0.0
        %1603 = vmatpush1.msra.mxu0 %v1422
        %1604 = vmatprep.subr.mxu0 0.0
        %1605 = vmatpush1.msra.mxu0 %v1423
        %1606 = vmatprep.subr.mxu0 0.0
        %1607 = vmatpush1.msra.mxu0 %v1424
        %1608 = vmatprep.subr.mxu0 0.0
        %1609 = vmatpush1.msra.mxu0 %v1425
        %1610 = vmatprep.subr.mxu0 0.0
        %1611 = vmatpush1.msra.mxu0 %v1426
        %1612 = vmatprep.subr.mxu0 0.0
        %1613 = vmatpush1.msra.mxu0 %v1427
        %1614 = vmatprep.subr.mxu0 0.0
        %1615 = vmatpush1.msra.mxu0 %v1428
        %1616 = vmatprep.subr.mxu0 0.0
        %1617 = vmatpush1.msra.mxu0 %v1429
        %1618 = vmatprep.subr.mxu0 0.0
        %1619 = vmatpush1.msra.mxu0 %v1430
        %1620 = vmatprep.subr.mxu0 0.0
        %1621 = vmatpush1.msra.mxu0 %v1431
        %1622 = vmatprep.subr.mxu0 0.0
        %1623 = vmatpush1.msra.mxu0 %v1432
        %1624 = vmatprep.subr.mxu0 0.0
        %1625 = vmatpush1.msra.mxu0 %v1433
        %1626 = vmatprep.subr.mxu0 0.0
        %1627 = vmatpush1.msra.mxu0 %v1434
        %1628 = vmatprep.subr.mxu0 0.0
        %1629 = vmatpush1.msra.mxu0 %v1435
        %1630 = vmatprep.subr.mxu0 0.0
        %1631 = vmatpush1.msra.mxu0 0.0
        %1632 = vmatprep.subr.mxu0 0.0
        %1633 = vmatpush1.msra.mxu0 0.0
        %1634 = vmatprep.subr.mxu0 0.0
        %1635 = vmatpush1.msra.mxu0 0.0
        %1636 = vmatprep.subr.mxu0 0.0
        %1637 = vmatpush1.msra.mxu0 0.0
        %1638 = vmatprep.subr.mxu0 0.0
        %1639 = vmatpush1.msra.mxu0 0.0
        %1640 = vmatprep.subr.mxu0 0.0
        %1641 = vmatpush1.msra.mxu0 0.0
        %1642 = vmatprep.subr.mxu0 0.0
        %1643 = vmatpush1.msra.mxu0 0.0
        %1644 = vmatprep.subr.mxu0 0.0
        %1645 = vmatpush1.msra.mxu0 0.0
        %1646 = vmatprep.subr.mxu0 0.0
        %1647 = vmatpush1.msra.mxu0 0.0
        %1648 = vmatprep.subr.mxu0 0.0
        %1649 = vmatpush1.msra.mxu0 0.0
        %1650 = vmatprep.subr.mxu0 0.0
        %1651 = vmatpush1.msra.mxu0 0.0
        %1652 = vmatprep.subr.mxu0 0.0
        %1653 = vmatpush1.msra.mxu0 0.0
        %1654 = vmatprep.subr.mxu0 0.0
        %1655 = vmatpush1.msra.mxu0 0.0
        %1656 = vmatprep.subr.mxu0 0.0
        %1657 = vmatpush1.msra.mxu0 0.0
        %1658 = vmatprep.subr.mxu0 0.0
        %1659 = vmatpush1.msra.mxu0 0.0
        %1660 = vmatprep.subr.mxu0 0.0
        %1661 = vmatpush1.msra.mxu0 0.0
        %1662 = vmatprep.mubr.f32.mxu0 0.0
        %1663 = vmatmul.mubr.f32.gmra.mrb[0].mxu0 %v1417
        %v1664 = vpop.f32.mrb[0].mxu0
        %v1665 = vadd.f32 %v1595, %v1664
        %v1666 = vpop.f32.mrb[0].mxu0
        %1667 = vdwg.mxu0
        %s1668 = scalar_lea.vmem [#allocation4], 16
        %v1669 = vld [vmem:[%s1668] sm:$0xff]
        %v1671 = vsel %vm1346, %v1669, 0
        %1673 = vmatprep.subr.mxu0 0.0
        %1674 = vmatpush1.msra.mxu0 %v1343
        %1675 = vmatprep.subr.mxu0 0.0
        %1676 = vmatpush1.msra.mxu0 %v1344
        %1677 = vmatprep.subr.mxu0 0.0
        %1678 = vmatpush1.msra.mxu0 0.0
        %1679 = vmatprep.subr.mxu0 0.0
        %1680 = vmatpush1.msra.mxu0 0.0
        %1681 = vmatprep.subr.mxu0 0.0
        %1682 = vmatpush1.msra.mxu0 0.0
        %1683 = vmatprep.subr.mxu0 0.0
        %1684 = vmatpush1.msra.mxu0 0.0
        %1685 = vmatprep.subr.mxu0 0.0
        %1686 = vmatpush1.msra.mxu0 0.0
        %1687 = vmatprep.subr.mxu0 0.0
        %1688 = vmatpush1.msra.mxu0 0.0
        %1689 = vmatprep.subr.mxu0 0.0
        %1690 = vmatpush1.msra.mxu0 0.0
        %1691 = vmatprep.subr.mxu0 0.0
        %1692 = vmatpush1.msra.mxu0 0.0
        %1693 = vmatprep.subr.mxu0 0.0
        %1694 = vmatpush1.msra.mxu0 0.0
        %1695 = vmatprep.subr.mxu0 0.0
        %1696 = vmatpush1.msra.mxu0 0.0
        %1697 = vmatprep.subr.mxu0 0.0
        %1698 = vmatpush1.msra.mxu0 0.0
        %1699 = vmatprep.subr.mxu0 0.0
        %1700 = vmatpush1.msra.mxu0 0.0
        %1701 = vmatprep.subr.mxu0 0.0
        %1702 = vmatpush1.msra.mxu0 0.0
        %1703 = vmatprep.subr.mxu0 0.0
        %1704 = vmatpush1.msra.mxu0 0.0
        %1705 = vmatprep.subr.mxu0 0.0
        %1706 = vmatpush1.msra.mxu0 0.0
        %1707 = vmatprep.subr.mxu0 0.0
        %1708 = vmatpush1.msra.mxu0 0.0
        %1709 = vmatprep.subr.mxu0 0.0
        %1710 = vmatpush1.msra.mxu0 0.0
        %1711 = vmatprep.subr.mxu0 0.0
        %1712 = vmatpush1.msra.mxu0 0.0
        %1713 = vmatprep.subr.mxu0 0.0
        %1714 = vmatpush1.msra.mxu0 0.0
        %1715 = vmatprep.subr.mxu0 0.0
        %1716 = vmatpush1.msra.mxu0 0.0
        %1717 = vmatprep.subr.mxu0 0.0
        %1718 = vmatpush1.msra.mxu0 0.0
        %1719 = vmatprep.subr.mxu0 0.0
        %1720 = vmatpush1.msra.mxu0 0.0
        %1721 = vmatprep.subr.mxu0 0.0
        %1722 = vmatpush1.msra.mxu0 0.0
        %1723 = vmatprep.subr.mxu0 0.0
        %1724 = vmatpush1.msra.mxu0 0.0
        %1725 = vmatprep.subr.mxu0 0.0
        %1726 = vmatpush1.msra.mxu0 0.0
        %1727 = vmatprep.subr.mxu0 0.0
        %1728 = vmatpush1.msra.mxu0 0.0
        %1729 = vmatprep.subr.mxu0 0.0
        %1730 = vmatpush1.msra.mxu0 0.0
        %1731 = vmatprep.subr.mxu0 0.0
        %1732 = vmatpush1.msra.mxu0 0.0
        %1733 = vmatprep.subr.mxu0 0.0
        %1734 = vmatpush1.msra.mxu0 0.0
        %1735 = vmatprep.subr.mxu0 0.0
        %1736 = vmatpush1.msra.mxu0 0.0
        %1737 = vmatprep.mubr.f32.mxu0 0.0
        %1738 = vmatmul.mubr.f32.gmra.mrb[0].mxu0 %v1671
        %v1739 = vpop.f32.mrb[0].mxu0
        %v1740 = vadd.f32 0.0, %v1739
        %v1741 = vpop.f32.mrb[0].mxu0
        %1742 = vdwg.mxu0
        %s1743 = scalar_lea.vmem [#allocation6], 256
        %v1744 = vld [vmem:[%s1743] sm:$0xff]
        %v1745 = vld [vmem:[%s1743 + $0x8] sm:$0xff]
        %v1746 = vld [vmem:[%s1743 + $0x10] sm:$0xff]
        %v1747 = vld [vmem:[%s1743 + $0x18] sm:$0xff]
        %v1748 = vld [vmem:[%s1743 + $0x20] sm:$0xff]
        %v1749 = vld [vmem:[%s1743 + $0x28] sm:$0xff]
        %v1750 = vld [vmem:[%s1743 + $0x30] sm:$0xff]
        %v1751 = vld [vmem:[%s1743 + $0x38] sm:$0xff]
        %v1752 = vld [vmem:[%s1743 + $0x40] sm:$0xff]
        %v1753 = vld [vmem:[%s1743 + $0x48] sm:$0xff]
        %v1754 = vld [vmem:[%s1743 + $0x50] sm:$0xff]
        %v1755 = vld [vmem:[%s1743 + $0x58] sm:$0xff]
        %v1756 = vld [vmem:[%s1743 + $0x60] sm:$0xff]
        %v1757 = vld [vmem:[%s1743 + $0x68] sm:$0xff]
        %v1758 = vld [vmem:[%s1743 + $0x70] sm:$0xff]
        %v1759 = vld [vmem:[%s1743 + $0x78] sm:$0xff]
        %1760 = vmatprep.subr.mxu0 0.0
        %1761 = vmatpush1.msra.mxu0 %v1744
        %1762 = vmatprep.subr.mxu0 0.0
        %1763 = vmatpush1.msra.mxu0 %v1745
        %1764 = vmatprep.subr.mxu0 0.0
        %1765 = vmatpush1.msra.mxu0 %v1746
        %1766 = vmatprep.subr.mxu0 0.0
        %1767 = vmatpush1.msra.mxu0 %v1747
        %1768 = vmatprep.subr.mxu0 0.0
        %1769 = vmatpush1.msra.mxu0 %v1748
        %1770 = vmatprep.subr.mxu0 0.0
        %1771 = vmatpush1.msra.mxu0 %v1749
        %1772 = vmatprep.subr.mxu0 0.0
        %1773 = vmatpush1.msra.mxu0 %v1750
        %1774 = vmatprep.subr.mxu0 0.0
        %1775 = vmatpush1.msra.mxu0 %v1751
        %1776 = vmatprep.subr.mxu0 0.0
        %1777 = vmatpush1.msra.mxu0 %v1752
        %1778 = vmatprep.subr.mxu0 0.0
        %1779 = vmatpush1.msra.mxu0 %v1753
        %1780 = vmatprep.subr.mxu0 0.0
        %1781 = vmatpush1.msra.mxu0 %v1754
        %1782 = vmatprep.subr.mxu0 0.0
        %1783 = vmatpush1.msra.mxu0 %v1755
        %1784 = vmatprep.subr.mxu0 0.0
        %1785 = vmatpush1.msra.mxu0 %v1756
        %1786 = vmatprep.subr.mxu0 0.0
        %1787 = vmatpush1.msra.mxu0 %v1757
        %1788 = vmatprep.subr.mxu0 0.0
        %1789 = vmatpush1.msra.mxu0 %v1758
        %1790 = vmatprep.subr.mxu0 0.0
        %1791 = vmatpush1.msra.mxu0 %v1759
        %1792 = vmatprep.subr.mxu0 0.0
        %1793 = vmatpush1.msra.mxu0 0.0
        %1794 = vmatprep.subr.mxu0 0.0
        %1795 = vmatpush1.msra.mxu0 0.0
        %1796 = vmatprep.subr.mxu0 0.0
        %1797 = vmatpush1.msra.mxu0 0.0
        %1798 = vmatprep.subr.mxu0 0.0
        %1799 = vmatpush1.msra.mxu0 0.0
        %1800 = vmatprep.subr.mxu0 0.0
        %1801 = vmatpush1.msra.mxu0 0.0
        %1802 = vmatprep.subr.mxu0 0.0
        %1803 = vmatpush1.msra.mxu0 0.0
        %1804 = vmatprep.subr.mxu0 0.0
        %1805 = vmatpush1.msra.mxu0 0.0
        %1806 = vmatprep.subr.mxu0 0.0
        %1807 = vmatpush1.msra.mxu0 0.0
        %1808 = vmatprep.subr.mxu0 0.0
        %1809 = vmatpush1.msra.mxu0 0.0
        %1810 = vmatprep.subr.mxu0 0.0
        %1811 = vmatpush1.msra.mxu0 0.0
        %1812 = vmatprep.subr.mxu0 0.0
        %1813 = vmatpush1.msra.mxu0 0.0
        %1814 = vmatprep.subr.mxu0 0.0
        %1815 = vmatpush1.msra.mxu0 0.0
        %1816 = vmatprep.subr.mxu0 0.0
        %1817 = vmatpush1.msra.mxu0 0.0
        %1818 = vmatprep.subr.mxu0 0.0
        %1819 = vmatpush1.msra.mxu0 0.0
        %1820 = vmatprep.subr.mxu0 0.0
        %1821 = vmatpush1.msra.mxu0 0.0
        %1822 = vmatprep.subr.mxu0 0.0
        %1823 = vmatpush1.msra.mxu0 0.0
        %1824 = vmatprep.mubr.f32.mxu0 0.0
        %1825 = vmatmul.mubr.f32.gmra.mrb[0].mxu0 %v1740
        %v1826 = vpop.f32.mrb[0].mxu0
        %v1827 = vadd.f32 0.0, %v1826
        %v1828 = vpop.f32.mrb[0].mxu0
        %1829 = vdwg.mxu0
        %v1830 = vadd.f32 %v1665, %v1827
        %v1831 = vld [vmem:[%s6] sm:$0x1]
        %v1833 = vlaneseq
        %v1834 = vshrl.u32 %v1833, 7
        %v1835 = vsub.s32 0, %v1834
        %v1836 = vrot.slane %v1831, %v1835
        %v1838 = vadd.f32 %v1830, %v1836
        %v1839 = vmax.f32 %v1838, 0.0
        %v1840 = vld [vmem:[#allocation7] sm:$0xff]
        %v1841 = vld [vmem:[#allocation9] sm:$0xff]
        %v1842 = vld [vmem:[#allocation9 + $0x8] sm:$0xff]
        %v1843 = vld [vmem:[#allocation9 + $0x10] sm:$0xff]
        %v1844 = vld [vmem:[#allocation9 + $0x18] sm:$0xff]
        %v1845 = vld [vmem:[#allocation9 + $0x20] sm:$0xff]
        %v1846 = vld [vmem:[#allocation9 + $0x28] sm:$0xff]
        %v1847 = vld [vmem:[#allocation9 + $0x30] sm:$0xff]
        %v1848 = vld [vmem:[#allocation9 + $0x38] sm:$0xff]
        %v1849 = vld [vmem:[#allocation9 + $0x40] sm:$0xff]
        %v1850 = vld [vmem:[#allocation9 + $0x48] sm:$0xff]
        %v1851 = vld [vmem:[#allocation9 + $0x50] sm:$0xff]
        %v1852 = vld [vmem:[#allocation9 + $0x58] sm:$0xff]
        %v1853 = vld [vmem:[#allocation9 + $0x60] sm:$0xff]
        %v1854 = vld [vmem:[#allocation9 + $0x68] sm:$0xff]
        %v1855 = vld [vmem:[#allocation9 + $0x70] sm:$0xff]
        %v1856 = vld [vmem:[#allocation9 + $0x78] sm:$0xff]
        %1857 = vmatprep.subr.mxu0 0.0
        %1858 = vmatpush1.msra.mxu0 %v1841
        %1859 = vmatprep.subr.mxu0 0.0
        %1860 = vmatpush1.msra.mxu0 %v1842
        %1861 = vmatprep.subr.mxu0 0.0
        %1862 = vmatpush1.msra.mxu0 %v1843
        %1863 = vmatprep.subr.mxu0 0.0
        %1864 = vmatpush1.msra.mxu0 %v1844
        %1865 = vmatprep.subr.mxu0 0.0
        %1866 = vmatpush1.msra.mxu0 %v1845
        %1867 = vmatprep.subr.mxu0 0.0
        %1868 = vmatpush1.msra.mxu0 %v1846
        %1869 = vmatprep.subr.mxu0 0.0
        %1870 = vmatpush1.msra.mxu0 %v1847
        %1871 = vmatprep.subr.mxu0 0.0
        %1872 = vmatpush1.msra.mxu0 %v1848
        %1873 = vmatprep.subr.mxu0 0.0
        %1874 = vmatpush1.msra.mxu0 %v1849
        %1875 = vmatprep.subr.mxu0 0.0
        %1876 = vmatpush1.msra.mxu0 %v1850
        %1877 = vmatprep.subr.mxu0 0.0
        %1878 = vmatpush1.msra.mxu0 %v1851
        %1879 = vmatprep.subr.mxu0 0.0
        %1880 = vmatpush1.msra.mxu0 %v1852
        %1881 = vmatprep.subr.mxu0 0.0
        %1882 = vmatpush1.msra.mxu0 %v1853
        %1883 = vmatprep.subr.mxu0 0.0
        %1884 = vmatpush1.msra.mxu0 %v1854
        %1885 = vmatprep.subr.mxu0 0.0
        %1886 = vmatpush1.msra.mxu0 %v1855
        %1887 = vmatprep.subr.mxu0 0.0
        %1888 = vmatpush1.msra.mxu0 %v1856
        %1889 = vmatprep.subr.mxu0 0.0
        %1890 = vmatpush1.msra.mxu0 0.0
        %1891 = vmatprep.subr.mxu0 0.0
        %1892 = vmatpush1.msra.mxu0 0.0
        %1893 = vmatprep.subr.mxu0 0.0
        %1894 = vmatpush1.msra.mxu0 0.0
        %1895 = vmatprep.subr.mxu0 0.0
        %1896 = vmatpush1.msra.mxu0 0.0
        %1897 = vmatprep.subr.mxu0 0.0
        %1898 = vmatpush1.msra.mxu0 0.0
        %1899 = vmatprep.subr.mxu0 0.0
        %1900 = vmatpush1.msra.mxu0 0.0
        %1901 = vmatprep.subr.mxu0 0.0
        %1902 = vmatpush1.msra.mxu0 0.0
        %1903 = vmatprep.subr.mxu0 0.0
        %1904 = vmatpush1.msra.mxu0 0.0
        %1905 = vmatprep.subr.mxu0 0.0
        %1906 = vmatpush1.msra.mxu0 0.0
        %1907 = vmatprep.subr.mxu0 0.0
        %1908 = vmatpush1.msra.mxu0 0.0
        %1909 = vmatprep.subr.mxu0 0.0
        %1910 = vmatpush1.msra.mxu0 0.0
        %1911 = vmatprep.subr.mxu0 0.0
        %1912 = vmatpush1.msra.mxu0 0.0
        %1913 = vmatprep.subr.mxu0 0.0
        %1914 = vmatpush1.msra.mxu0 0.0
        %1915 = vmatprep.subr.mxu0 0.0
        %1916 = vmatpush1.msra.mxu0 0.0
        %1917 = vmatprep.subr.mxu0 0.0
        %1918 = vmatpush1.msra.mxu0 0.0
        %1919 = vmatprep.subr.mxu0 0.0
        %1920 = vmatpush1.msra.mxu0 0.0
        %1921 = vmatprep.mubr.f32.mxu0 0.0
        %1922 = vmatmul.mubr.f32.gmra.mrb[0].mxu0 %v1839
        %v1923 = vpop.f32.mrb[0].mxu0
        %v1924 = vadd.f32 0.0, %v1923
        %v1925 = vpop.f32.mrb[0].mxu0
        %1926 = vdwg.mxu0
        %s1927 = scalar_lea.vmem [#allocation7], 8
        %v1928 = vld [vmem:[%s1927] sm:$0xff]
        %s1929 = scalar_lea.vmem [#allocation9], 128
        %v1930 = vld [vmem:[%s1929] sm:$0xff]
        %v1931 = vld [vmem:[%s1929 + $0x8] sm:$0xff]
        %v1932 = vld [vmem:[%s1929 + $0x10] sm:$0xff]
        %v1933 = vld [vmem:[%s1929 + $0x18] sm:$0xff]
        %v1934 = vld [vmem:[%s1929 + $0x20] sm:$0xff]
        %v1935 = vld [vmem:[%s1929 + $0x28] sm:$0xff]
        %v1936 = vld [vmem:[%s1929 + $0x30] sm:$0xff]
        %v1937 = vld [vmem:[%s1929 + $0x38] sm:$0xff]
        %v1938 = vld [vmem:[%s1929 + $0x40] sm:$0xff]
        %v1939 = vld [vmem:[%s1929 + $0x48] sm:$0xff]
        %v1940 = vld [vmem:[%s1929 + $0x50] sm:$0xff]
        %v1941 = vld [vmem:[%s1929 + $0x58] sm:$0xff]
        %v1942 = vld [vmem:[%s1929 + $0x60] sm:$0xff]
        %v1943 = vld [vmem:[%s1929 + $0x68] sm:$0xff]
        %v1944 = vld [vmem:[%s1929 + $0x70] sm:$0xff]
        %v1945 = vld [vmem:[%s1929 + $0x78] sm:$0xff]
        %1946 = vmatprep.subr.mxu0 0.0
        %1947 = vmatpush1.msra.mxu0 %v1930
        %1948 = vmatprep.subr.mxu0 0.0
        %1949 = vmatpush1.msra.mxu0 %v1931
        %1950 = vmatprep.subr.mxu0 0.0
        %1951 = vmatpush1.msra.mxu0 %v1932
        %1952 = vmatprep.subr.mxu0 0.0
        %1953 = vmatpush1.msra.mxu0 %v1933
        %1954 = vmatprep.subr.mxu0 0.0
        %1955 = vmatpush1.msra.mxu0 %v1934
        %1956 = vmatprep.subr.mxu0 0.0
        %1957 = vmatpush1.msra.mxu0 %v1935
        %1958 = vmatprep.subr.mxu0 0.0
        %1959 = vmatpush1.msra.mxu0 %v1936
        %1960 = vmatprep.subr.mxu0 0.0
        %1961 = vmatpush1.msra.mxu0 %v1937
        %1962 = vmatprep.subr.mxu0 0.0
        %1963 = vmatpush1.msra.mxu0 %v1938
        %1964 = vmatprep.subr.mxu0 0.0
        %1965 = vmatpush1.msra.mxu0 %v1939
        %1966 = vmatprep.subr.mxu0 0.0
        %1967 = vmatpush1.msra.mxu0 %v1940
        %1968 = vmatprep.subr.mxu0 0.0
        %1969 = vmatpush1.msra.mxu0 %v1941
        %1970 = vmatprep.subr.mxu0 0.0
        %1971 = vmatpush1.msra.mxu0 %v1942
        %1972 = vmatprep.subr.mxu0 0.0
        %1973 = vmatpush1.msra.mxu0 %v1943
        %1974 = vmatprep.subr.mxu0 0.0
        %1975 = vmatpush1.msra.mxu0 %v1944
        %1976 = vmatprep.subr.mxu0 0.0
        %1977 = vmatpush1.msra.mxu0 %v1945
        %1978 = vmatprep.subr.mxu0 0.0
        %1979 = vmatpush1.msra.mxu0 0.0
        %1980 = vmatprep.subr.mxu0 0.0
        %1981 = vmatpush1.msra.mxu0 0.0
        %1982 = vmatprep.subr.mxu0 0.0
        %1983 = vmatpush1.msra.mxu0 0.0
        %1984 = vmatprep.subr.mxu0 0.0
        %1985 = vmatpush1.msra.mxu0 0.0
        %1986 = vmatprep.subr.mxu0 0.0
        %1987 = vmatpush1.msra.mxu0 0.0
        %1988 = vmatprep.subr.mxu0 0.0
        %1989 = vmatpush1.msra.mxu0 0.0
        %1990 = vmatprep.subr.mxu0 0.0
        %1991 = vmatpush1.msra.mxu0 0.0
        %1992 = vmatprep.subr.mxu0 0.0
        %1993 = vmatpush1.msra.mxu0 0.0
        %1994 = vmatprep.subr.mxu0 0.0
        %1995 = vmatpush1.msra.mxu0 0.0
        %1996 = vmatprep.subr.mxu0 0.0
        %1997 = vmatpush1.msra.mxu0 0.0
        %1998 = vmatprep.subr.mxu0 0.0
        %1999 = vmatpush1.msra.mxu0 0.0
        %2000 = vmatprep.subr.mxu0 0.0
        %2001 = vmatpush1.msra.mxu0 0.0
        %2002 = vmatprep.subr.mxu0 0.0
        %2003 = vmatpush1.msra.mxu0 0.0
        %2004 = vmatprep.subr.mxu0 0.0
        %2005 = vmatpush1.msra.mxu0 0.0
        %2006 = vmatprep.subr.mxu0 0.0
        %2007 = vmatpush1.msra.mxu0 0.0
        %2008 = vmatprep.subr.mxu0 0.0
        %2009 = vmatpush1.msra.mxu0 0.0
        %2010 = vmatprep.mubr.f32.mxu0 0.0
        %2011 = vmatmul.mubr.f32.gmra.mrb[0].mxu0 %v1839
        %v2012 = vpop.f32.mrb[0].mxu0
        %v2013 = vadd.f32 0.0, %v2012
        %v2014 = vpop.f32.mrb[0].mxu0
        %2015 = vdwg.mxu0
        %vm2016 = vcmask 64512
        %v2018 = vsel %vm2016, %v1928, 0
        %2020 = vmatprep.subr.mxu0 0.0
        %2021 = vmatpush1.msra.mxu0 %v2013
        %2022 = vmatprep.subr.mxu0 0.0
        %2023 = vmatpush1.msra.mxu0 0.0
        %2024 = vmatprep.subr.mxu0 0.0
        %2025 = vmatpush1.msra.mxu0 0.0
        %2026 = vmatprep.subr.mxu0 0.0
        %2027 = vmatpush1.msra.mxu0 0.0
        %2028 = vmatprep.subr.mxu0 0.0
        %2029 = vmatpush1.msra.mxu0 0.0
        %2030 = vmatprep.subr.mxu0 0.0
        %2031 = vmatpush1.msra.mxu0 0.0
        %2032 = vmatprep.subr.mxu0 0.0
        %2033 = vmatpush1.msra.mxu0 0.0
        %2034 = vmatprep.subr.mxu0 0.0
        %2035 = vmatpush1.msra.mxu0 0.0
        %2036 = vmatprep.subr.mxu0 0.0
        %2037 = vmatpush1.msra.mxu0 0.0
        %2038 = vmatprep.subr.mxu0 0.0
        %2039 = vmatpush1.msra.mxu0 0.0
        %2040 = vmatprep.subr.mxu0 0.0
        %2041 = vmatpush1.msra.mxu0 0.0
        %2042 = vmatprep.subr.mxu0 0.0
        %2043 = vmatpush1.msra.mxu0 0.0
        %2044 = vmatprep.subr.mxu0 0.0
        %2045 = vmatpush1.msra.mxu0 0.0
        %2046 = vmatprep.subr.mxu0 0.0
        %2047 = vmatpush1.msra.mxu0 0.0
        %2048 = vmatprep.subr.mxu0 0.0
        %2049 = vmatpush1.msra.mxu0 0.0
        %2050 = vmatprep.subr.mxu0 0.0
        %2051 = vmatpush1.msra.mxu0 0.0
        %2052 = vmatprep.subr.mxu0 0.0
        %2053 = vmatpush1.msra.mxu0 0.0
        %2054 = vmatprep.subr.mxu0 0.0
        %2055 = vmatpush1.msra.mxu0 0.0
        %2056 = vmatprep.subr.mxu0 0.0
        %2057 = vmatpush1.msra.mxu0 0.0
        %2058 = vmatprep.subr.mxu0 0.0
        %2059 = vmatpush1.msra.mxu0 0.0
        %2060 = vmatprep.subr.mxu0 0.0
        %2061 = vmatpush1.msra.mxu0 0.0
        %2062 = vmatprep.subr.mxu0 0.0
        %2063 = vmatpush1.msra.mxu0 0.0
        %2064 = vmatprep.subr.mxu0 0.0
        %2065 = vmatpush1.msra.mxu0 0.0
        %2066 = vmatprep.subr.mxu0 0.0
        %2067 = vmatpush1.msra.mxu0 0.0
        %2068 = vmatprep.subr.mxu0 0.0
        %2069 = vmatpush1.msra.mxu0 0.0
        %2070 = vmatprep.subr.mxu0 0.0
        %2071 = vmatpush1.msra.mxu0 0.0
        %2072 = vmatprep.subr.mxu0 0.0
        %2073 = vmatpush1.msra.mxu0 0.0
        %2074 = vmatprep.subr.mxu0 0.0
        %2075 = vmatpush1.msra.mxu0 0.0
        %2076 = vmatprep.subr.mxu0 0.0
        %2077 = vmatpush1.msra.mxu0 0.0
        %2078 = vmatprep.subr.mxu0 0.0
        %2079 = vmatpush1.msra.mxu0 0.0
        %2080 = vmatprep.subr.mxu0 0.0
        %2081 = vmatpush1.msra.mxu0 0.0
        %2082 = vmatprep.subr.mxu0 0.0
        %2083 = vmatpush1.msra.mxu0 0.0
        %2084 = vmatprep.mubr.f32.mxu0 0.0
        %2085 = vmatmul.mubr.f32.gmra.mrb[0].mxu0 %v2018
        %v2086 = vpop.f32.mrb[0].mxu0
        %v2087 = vadd.f32 0.0, %v2086
        %v2088 = vpop.f32.mrb[0].mxu0
        %2089 = vdwg.mxu0
        %v2091 = vsel %vm2016, %v1840, 0
        %2093 = vmatprep.subr.mxu0 0.0
        %2094 = vmatpush1.msra.mxu0 %v1924
        %2095 = vmatprep.subr.mxu0 0.0
        %2096 = vmatpush1.msra.mxu0 0.0
        %2097 = vmatprep.subr.mxu0 0.0
        %2098 = vmatpush1.msra.mxu0 0.0
        %2099 = vmatprep.subr.mxu0 0.0
        %2100 = vmatpush1.msra.mxu0 0.0
        %2101 = vmatprep.subr.mxu0 0.0
        %2102 = vmatpush1.msra.mxu0 0.0
        %2103 = vmatprep.subr.mxu0 0.0
        %2104 = vmatpush1.msra.mxu0 0.0
        %2105 = vmatprep.subr.mxu0 0.0
        %2106 = vmatpush1.msra.mxu0 0.0
        %2107 = vmatprep.subr.mxu0 0.0
        %2108 = vmatpush1.msra.mxu0 0.0
        %2109 = vmatprep.subr.mxu0 0.0
        %2110 = vmatpush1.msra.mxu0 0.0
        %2111 = vmatprep.subr.mxu0 0.0
        %2112 = vmatpush1.msra.mxu0 0.0
        %2113 = vmatprep.subr.mxu0 0.0
        %2114 = vmatpush1.msra.mxu0 0.0
        %2115 = vmatprep.subr.mxu0 0.0
        %2116 = vmatpush1.msra.mxu0 0.0
        %2117 = vmatprep.subr.mxu0 0.0
        %2118 = vmatpush1.msra.mxu0 0.0
        %2119 = vmatprep.subr.mxu0 0.0
        %2120 = vmatpush1.msra.mxu0 0.0
        %2121 = vmatprep.subr.mxu0 0.0
        %2122 = vmatpush1.msra.mxu0 0.0
        %2123 = vmatprep.subr.mxu0 0.0
        %2124 = vmatpush1.msra.mxu0 0.0
        %2125 = vmatprep.subr.mxu0 0.0
        %2126 = vmatpush1.msra.mxu0 0.0
        %2127 = vmatprep.subr.mxu0 0.0
        %2128 = vmatpush1.msra.mxu0 0.0
        %2129 = vmatprep.subr.mxu0 0.0
        %2130 = vmatpush1.msra.mxu0 0.0
        %2131 = vmatprep.subr.mxu0 0.0
        %2132 = vmatpush1.msra.mxu0 0.0
        %2133 = vmatprep.subr.mxu0 0.0
        %2134 = vmatpush1.msra.mxu0 0.0
        %2135 = vmatprep.subr.mxu0 0.0
        %2136 = vmatpush1.msra.mxu0 0.0
        %2137 = vmatprep.subr.mxu0 0.0
        %2138 = vmatpush1.msra.mxu0 0.0
        %2139 = vmatprep.subr.mxu0 0.0
        %2140 = vmatpush1.msra.mxu0 0.0
        %2141 = vmatprep.subr.mxu0 0.0
        %2142 = vmatpush1.msra.mxu0 0.0
        %2143 = vmatprep.subr.mxu0 0.0
        %2144 = vmatpush1.msra.mxu0 0.0
        %2145 = vmatprep.subr.mxu0 0.0
        %2146 = vmatpush1.msra.mxu0 0.0
        %2147 = vmatprep.subr.mxu0 0.0
        %2148 = vmatpush1.msra.mxu0 0.0
        %2149 = vmatprep.subr.mxu0 0.0
        %2150 = vmatpush1.msra.mxu0 0.0
        %2151 = vmatprep.subr.mxu0 0.0
        %2152 = vmatpush1.msra.mxu0 0.0
        %2153 = vmatprep.subr.mxu0 0.0
        %2154 = vmatpush1.msra.mxu0 0.0
        %2155 = vmatprep.subr.mxu0 0.0
        %2156 = vmatpush1.msra.mxu0 0.0
        %2157 = vmatprep.mubr.f32.mxu0 0.0
        %2158 = vmatmul.mubr.f32.gmra.mrb[0].mxu0 %v2091
        %v2159 = vpop.f32.mrb[0].mxu0
        %v2160 = vadd.f32 %v2087, %v2159
        %v2161 = vpop.f32.mrb[0].mxu0
        %2162 = vdwg.mxu0
        %s2163 = scalar_lea.vmem [#allocation7], 16
        %v2164 = vld [vmem:[%s2163] sm:$0xff]
        %s2165 = scalar_lea.vmem [#allocation9], 256
        %v2166 = vld [vmem:[%s2165] sm:$0xff]
        %v2167 = vld [vmem:[%s2165 + $0x8] sm:$0xff]
        %v2168 = vld [vmem:[%s2165 + $0x10] sm:$0xff]
        %v2169 = vld [vmem:[%s2165 + $0x18] sm:$0xff]
        %v2170 = vld [vmem:[%s2165 + $0x20] sm:$0xff]
        %v2171 = vld [vmem:[%s2165 + $0x28] sm:$0xff]
        %v2172 = vld [vmem:[%s2165 + $0x30] sm:$0xff]
        %v2173 = vld [vmem:[%s2165 + $0x38] sm:$0xff]
        %v2174 = vld [vmem:[%s2165 + $0x40] sm:$0xff]
        %v2175 = vld [vmem:[%s2165 + $0x48] sm:$0xff]
        %v2176 = vld [vmem:[%s2165 + $0x50] sm:$0xff]
        %v2177 = vld [vmem:[%s2165 + $0x58] sm:$0xff]
        %v2178 = vld [vmem:[%s2165 + $0x60] sm:$0xff]
        %v2179 = vld [vmem:[%s2165 + $0x68] sm:$0xff]
        %v2180 = vld [vmem:[%s2165 + $0x70] sm:$0xff]
        %v2181 = vld [vmem:[%s2165 + $0x78] sm:$0xff]
        %2182 = vmatprep.subr.mxu0 0.0
        %2183 = vmatpush1.msra.mxu0 %v2166
        %2184 = vmatprep.subr.mxu0 0.0
        %2185 = vmatpush1.msra.mxu0 %v2167
        %2186 = vmatprep.subr.mxu0 0.0
        %2187 = vmatpush1.msra.mxu0 %v2168
        %2188 = vmatprep.subr.mxu0 0.0
        %2189 = vmatpush1.msra.mxu0 %v2169
        %2190 = vmatprep.subr.mxu0 0.0
        %2191 = vmatpush1.msra.mxu0 %v2170
        %2192 = vmatprep.subr.mxu0 0.0
        %2193 = vmatpush1.msra.mxu0 %v2171
        %2194 = vmatprep.subr.mxu0 0.0
        %2195 = vmatpush1.msra.mxu0 %v2172
        %2196 = vmatprep.subr.mxu0 0.0
        %2197 = vmatpush1.msra.mxu0 %v2173
        %2198 = vmatprep.subr.mxu0 0.0
        %2199 = vmatpush1.msra.mxu0 %v2174
        %2200 = vmatprep.subr.mxu0 0.0
        %2201 = vmatpush1.msra.mxu0 %v2175
        %2202 = vmatprep.subr.mxu0 0.0
        %2203 = vmatpush1.msra.mxu0 %v2176
        %2204 = vmatprep.subr.mxu0 0.0
        %2205 = vmatpush1.msra.mxu0 %v2177
        %2206 = vmatprep.subr.mxu0 0.0
        %2207 = vmatpush1.msra.mxu0 %v2178
        %2208 = vmatprep.subr.mxu0 0.0
        %2209 = vmatpush1.msra.mxu0 %v2179
        %2210 = vmatprep.subr.mxu0 0.0
        %2211 = vmatpush1.msra.mxu0 %v2180
        %2212 = vmatprep.subr.mxu0 0.0
        %2213 = vmatpush1.msra.mxu0 %v2181
        %2214 = vmatprep.subr.mxu0 0.0
        %2215 = vmatpush1.msra.mxu0 0.0
        %2216 = vmatprep.subr.mxu0 0.0
        %2217 = vmatpush1.msra.mxu0 0.0
        %2218 = vmatprep.subr.mxu0 0.0
        %2219 = vmatpush1.msra.mxu0 0.0
        %2220 = vmatprep.subr.mxu0 0.0
        %2221 = vmatpush1.msra.mxu0 0.0
        %2222 = vmatprep.subr.mxu0 0.0
        %2223 = vmatpush1.msra.mxu0 0.0
        %2224 = vmatprep.subr.mxu0 0.0
        %2225 = vmatpush1.msra.mxu0 0.0
        %2226 = vmatprep.subr.mxu0 0.0
        %2227 = vmatpush1.msra.mxu0 0.0
        %2228 = vmatprep.subr.mxu0 0.0
        %2229 = vmatpush1.msra.mxu0 0.0
        %2230 = vmatprep.subr.mxu0 0.0
        %2231 = vmatpush1.msra.mxu0 0.0
        %2232 = vmatprep.subr.mxu0 0.0
        %2233 = vmatpush1.msra.mxu0 0.0
        %2234 = vmatprep.subr.mxu0 0.0
        %2235 = vmatpush1.msra.mxu0 0.0
        %2236 = vmatprep.subr.mxu0 0.0
        %2237 = vmatpush1.msra.mxu0 0.0
        %2238 = vmatprep.subr.mxu0 0.0
        %2239 = vmatpush1.msra.mxu0 0.0
        %2240 = vmatprep.subr.mxu0 0.0
        %2241 = vmatpush1.msra.mxu0 0.0
        %2242 = vmatprep.subr.mxu0 0.0
        %2243 = vmatpush1.msra.mxu0 0.0
        %2244 = vmatprep.subr.mxu0 0.0
        %2245 = vmatpush1.msra.mxu0 0.0
        %2246 = vmatprep.mubr.f32.mxu0 0.0
        %2247 = vmatmul.mubr.f32.gmra.mrb[0].mxu0 %v1839
        %v2248 = vpop.f32.mrb[0].mxu0
        %v2249 = vadd.f32 0.0, %v2248
        %v2250 = vpop.f32.mrb[0].mxu0
        %2251 = vdwg.mxu0
        %v2253 = vsel %vm2016, %v2164, 0
        %2255 = vmatprep.subr.mxu0 0.0
        %2256 = vmatpush1.msra.mxu0 %v2249
        %2257 = vmatprep.subr.mxu0 0.0
        %2258 = vmatpush1.msra.mxu0 0.0
        %2259 = vmatprep.subr.mxu0 0.0
        %2260 = vmatpush1.msra.mxu0 0.0
        %2261 = vmatprep.subr.mxu0 0.0
        %2262 = vmatpush1.msra.mxu0 0.0
        %2263 = vmatprep.subr.mxu0 0.0
        %2264 = vmatpush1.msra.mxu0 0.0
        %2265 = vmatprep.subr.mxu0 0.0
        %2266 = vmatpush1.msra.mxu0 0.0
        %2267 = vmatprep.subr.mxu0 0.0
        %2268 = vmatpush1.msra.mxu0 0.0
        %2269 = vmatprep.subr.mxu0 0.0
        %2270 = vmatpush1.msra.mxu0 0.0
        %2271 = vmatprep.subr.mxu0 0.0
        %2272 = vmatpush1.msra.mxu0 0.0
        %2273 = vmatprep.subr.mxu0 0.0
        %2274 = vmatpush1.msra.mxu0 0.0
        %2275 = vmatprep.subr.mxu0 0.0
        %2276 = vmatpush1.msra.mxu0 0.0
        %2277 = vmatprep.subr.mxu0 0.0
        %2278 = vmatpush1.msra.mxu0 0.0
        %2279 = vmatprep.subr.mxu0 0.0
        %2280 = vmatpush1.msra.mxu0 0.0
        %2281 = vmatprep.subr.mxu0 0.0
        %2282 = vmatpush1.msra.mxu0 0.0
        %2283 = vmatprep.subr.mxu0 0.0
        %2284 = vmatpush1.msra.mxu0 0.0
        %2285 = vmatprep.subr.mxu0 0.0
        %2286 = vmatpush1.msra.mxu0 0.0
        %2287 = vmatprep.subr.mxu0 0.0
        %2288 = vmatpush1.msra.mxu0 0.0
        %2289 = vmatprep.subr.mxu0 0.0
        %2290 = vmatpush1.msra.mxu0 0.0
        %2291 = vmatprep.subr.mxu0 0.0
        %2292 = vmatpush1.msra.mxu0 0.0
        %2293 = vmatprep.subr.mxu0 0.0
        %2294 = vmatpush1.msra.mxu0 0.0
        %2295 = vmatprep.subr.mxu0 0.0
        %2296 = vmatpush1.msra.mxu0 0.0
        %2297 = vmatprep.subr.mxu0 0.0
        %2298 = vmatpush1.msra.mxu0 0.0
        %2299 = vmatprep.subr.mxu0 0.0
        %2300 = vmatpush1.msra.mxu0 0.0
        %2301 = vmatprep.subr.mxu0 0.0
        %2302 = vmatpush1.msra.mxu0 0.0
        %2303 = vmatprep.subr.mxu0 0.0
        %2304 = vmatpush1.msra.mxu0 0.0
        %2305 = vmatprep.subr.mxu0 0.0
        %2306 = vmatpush1.msra.mxu0 0.0
        %2307 = vmatprep.subr.mxu0 0.0
        %2308 = vmatpush1.msra.mxu0 0.0
        %2309 = vmatprep.subr.mxu0 0.0
        %2310 = vmatpush1.msra.mxu0 0.0
        %2311 = vmatprep.subr.mxu0 0.0
        %2312 = vmatpush1.msra.mxu0 0.0
        %2313 = vmatprep.subr.mxu0 0.0
        %2314 = vmatpush1.msra.mxu0 0.0
        %2315 = vmatprep.subr.mxu0 0.0
        %2316 = vmatpush1.msra.mxu0 0.0
        %2317 = vmatprep.subr.mxu0 0.0
        %2318 = vmatpush1.msra.mxu0 0.0
        %2319 = vmatprep.mubr.f32.mxu0 0.0
        %2320 = vmatmul.mubr.f32.gmra.mrb[0].mxu0 %v2253
        %v2321 = vpop.f32.mrb[0].mxu0
        %v2322 = vadd.f32 0.0, %v2321
        %v2323 = vpop.f32.mrb[0].mxu0
        %2324 = vdwg.mxu0
        %v2325 = vadd.f32 %v2160, %v2322
        %v2326 = vld [vmem:[%s9] sm:$0x1]
        %v2328 = vlaneseq
        %v2329 = vshrl.u32 %v2328, 7
        %v2330 = vsub.s32 0, %v2329
        %v2331 = vrot.slane %v2326, %v2330
        %v2333 = vadd.f32 %v2325, %v2331
        %v2334 = vmax.f32 %v2333, 0.0
        %v2335 = vld [vmem:[%s10] sm:$0xff]
        %v2336 = vld [vmem:[%s11] sm:$0xff]
        %v2337 = vld [vmem:[%s11 + $0x8] sm:$0xff]
        %v2338 = vld [vmem:[%s11 + $0x10] sm:$0xff]
        %v2339 = vld [vmem:[%s11 + $0x18] sm:$0xff]
        %v2340 = vld [vmem:[%s11 + $0x20] sm:$0xff]
        %v2341 = vld [vmem:[%s11 + $0x28] sm:$0xff]
        %v2342 = vld [vmem:[%s11 + $0x30] sm:$0xff]
        %v2343 = vld [vmem:[%s11 + $0x38] sm:$0xff]
        %v2344 = vld [vmem:[%s11 + $0x40] sm:$0xff]
        %v2345 = vld [vmem:[%s11 + $0x48] sm:$0xff]
        %v2346 = vld [vmem:[%s11 + $0x50] sm:$0xff]
        %v2347 = vld [vmem:[%s11 + $0x58] sm:$0xff]
        %v2348 = vld [vmem:[%s11 + $0x60] sm:$0xff]
        %v2349 = vld [vmem:[%s11 + $0x68] sm:$0xff]
        %v2350 = vld [vmem:[%s11 + $0x70] sm:$0xff]
        %v2351 = vld [vmem:[%s11 + $0x78] sm:$0xff]
        %2352 = vmatprep.subr.mxu0 0.0
        %2353 = vmatpush1.msra.mxu0 %v2336
        %2354 = vmatprep.subr.mxu0 0.0
        %2355 = vmatpush1.msra.mxu0 %v2337
        %2356 = vmatprep.subr.mxu0 0.0
        %2357 = vmatpush1.msra.mxu0 %v2338
        %2358 = vmatprep.subr.mxu0 0.0
        %2359 = vmatpush1.msra.mxu0 %v2339
        %2360 = vmatprep.subr.mxu0 0.0
        %2361 = vmatpush1.msra.mxu0 %v2340
        %2362 = vmatprep.subr.mxu0 0.0
        %2363 = vmatpush1.msra.mxu0 %v2341
        %2364 = vmatprep.subr.mxu0 0.0
        %2365 = vmatpush1.msra.mxu0 %v2342
        %2366 = vmatprep.subr.mxu0 0.0
        %2367 = vmatpush1.msra.mxu0 %v2343
        %2368 = vmatprep.subr.mxu0 0.0
        %2369 = vmatpush1.msra.mxu0 %v2344
        %2370 = vmatprep.subr.mxu0 0.0
        %2371 = vmatpush1.msra.mxu0 %v2345
        %2372 = vmatprep.subr.mxu0 0.0
        %2373 = vmatpush1.msra.mxu0 %v2346
        %2374 = vmatprep.subr.mxu0 0.0
        %2375 = vmatpush1.msra.mxu0 %v2347
        %2376 = vmatprep.subr.mxu0 0.0
        %2377 = vmatpush1.msra.mxu0 %v2348
        %2378 = vmatprep.subr.mxu0 0.0
        %2379 = vmatpush1.msra.mxu0 %v2349
        %2380 = vmatprep.subr.mxu0 0.0
        %2381 = vmatpush1.msra.mxu0 %v2350
        %2382 = vmatprep.subr.mxu0 0.0
        %2383 = vmatpush1.msra.mxu0 %v2351
        %2384 = vmatprep.subr.mxu0 0.0
        %2385 = vmatpush1.msra.mxu0 0.0
        %2386 = vmatprep.subr.mxu0 0.0
        %2387 = vmatpush1.msra.mxu0 0.0
        %2388 = vmatprep.subr.mxu0 0.0
        %2389 = vmatpush1.msra.mxu0 0.0
        %2390 = vmatprep.subr.mxu0 0.0
        %2391 = vmatpush1.msra.mxu0 0.0
        %2392 = vmatprep.subr.mxu0 0.0
        %2393 = vmatpush1.msra.mxu0 0.0
        %2394 = vmatprep.subr.mxu0 0.0
        %2395 = vmatpush1.msra.mxu0 0.0
        %2396 = vmatprep.subr.mxu0 0.0
        %2397 = vmatpush1.msra.mxu0 0.0
        %2398 = vmatprep.subr.mxu0 0.0
        %2399 = vmatpush1.msra.mxu0 0.0
        %2400 = vmatprep.subr.mxu0 0.0
        %2401 = vmatpush1.msra.mxu0 0.0
        %2402 = vmatprep.subr.mxu0 0.0
        %2403 = vmatpush1.msra.mxu0 0.0
        %2404 = vmatprep.subr.mxu0 0.0
        %2405 = vmatpush1.msra.mxu0 0.0
        %2406 = vmatprep.subr.mxu0 0.0
        %2407 = vmatpush1.msra.mxu0 0.0
        %2408 = vmatprep.subr.mxu0 0.0
        %2409 = vmatpush1.msra.mxu0 0.0
        %2410 = vmatprep.subr.mxu0 0.0
        %2411 = vmatpush1.msra.mxu0 0.0
        %2412 = vmatprep.subr.mxu0 0.0
        %2413 = vmatpush1.msra.mxu0 0.0
        %2414 = vmatprep.subr.mxu0 0.0
        %2415 = vmatpush1.msra.mxu0 0.0
        %2416 = vmatprep.mubr.f32.mxu0 0.0
        %2417 = vmatmul.mubr.f32.gmra.mrb[0].mxu0 %v2334
        %v2418 = vpop.f32.mrb[0].mxu0
        %v2419 = vadd.f32 0.0, %v2418
        %v2420 = vpop.f32.mrb[0].mxu0
        %2421 = vdwg.mxu0
        %s2422 = scalar_lea.vmem %s10, 8
        %v2423 = vld [vmem:[%s2422] sm:$0xff]
        %s2424 = scalar_lea.vmem %s11, 128
        %v2425 = vld [vmem:[%s2424] sm:$0xff]
        %v2426 = vld [vmem:[%s2424 + $0x8] sm:$0xff]
        %v2427 = vld [vmem:[%s2424 + $0x10] sm:$0xff]
        %v2428 = vld [vmem:[%s2424 + $0x18] sm:$0xff]
        %v2429 = vld [vmem:[%s2424 + $0x20] sm:$0xff]
        %v2430 = vld [vmem:[%s2424 + $0x28] sm:$0xff]
        %v2431 = vld [vmem:[%s2424 + $0x30] sm:$0xff]
        %v2432 = vld [vmem:[%s2424 + $0x38] sm:$0xff]
        %v2433 = vld [vmem:[%s2424 + $0x40] sm:$0xff]
        %v2434 = vld [vmem:[%s2424 + $0x48] sm:$0xff]
        %v2435 = vld [vmem:[%s2424 + $0x50] sm:$0xff]
        %v2436 = vld [vmem:[%s2424 + $0x58] sm:$0xff]
        %v2437 = vld [vmem:[%s2424 + $0x60] sm:$0xff]
        %v2438 = vld [vmem:[%s2424 + $0x68] sm:$0xff]
        %v2439 = vld [vmem:[%s2424 + $0x70] sm:$0xff]
        %v2440 = vld [vmem:[%s2424 + $0x78] sm:$0xff]
        %2441 = vmatprep.subr.mxu0 0.0
        %2442 = vmatpush1.msra.mxu0 %v2425
        %2443 = vmatprep.subr.mxu0 0.0
        %2444 = vmatpush1.msra.mxu0 %v2426
        %2445 = vmatprep.subr.mxu0 0.0
        %2446 = vmatpush1.msra.mxu0 %v2427
        %2447 = vmatprep.subr.mxu0 0.0
        %2448 = vmatpush1.msra.mxu0 %v2428
        %2449 = vmatprep.subr.mxu0 0.0
        %2450 = vmatpush1.msra.mxu0 %v2429
        %2451 = vmatprep.subr.mxu0 0.0
        %2452 = vmatpush1.msra.mxu0 %v2430
        %2453 = vmatprep.subr.mxu0 0.0
        %2454 = vmatpush1.msra.mxu0 %v2431
        %2455 = vmatprep.subr.mxu0 0.0
        %2456 = vmatpush1.msra.mxu0 %v2432
        %2457 = vmatprep.subr.mxu0 0.0
        %2458 = vmatpush1.msra.mxu0 %v2433
        %2459 = vmatprep.subr.mxu0 0.0
        %2460 = vmatpush1.msra.mxu0 %v2434
        %2461 = vmatprep.subr.mxu0 0.0
        %2462 = vmatpush1.msra.mxu0 %v2435
        %2463 = vmatprep.subr.mxu0 0.0
        %2464 = vmatpush1.msra.mxu0 %v2436
        %2465 = vmatprep.subr.mxu0 0.0
        %2466 = vmatpush1.msra.mxu0 %v2437
        %2467 = vmatprep.subr.mxu0 0.0
        %2468 = vmatpush1.msra.mxu0 %v2438
        %2469 = vmatprep.subr.mxu0 0.0
        %2470 = vmatpush1.msra.mxu0 %v2439
        %2471 = vmatprep.subr.mxu0 0.0
        %2472 = vmatpush1.msra.mxu0 %v2440
        %2473 = vmatprep.subr.mxu0 0.0
        %2474 = vmatpush1.msra.mxu0 0.0
        %2475 = vmatprep.subr.mxu0 0.0
        %2476 = vmatpush1.msra.mxu0 0.0
        %2477 = vmatprep.subr.mxu0 0.0
        %2478 = vmatpush1.msra.mxu0 0.0
        %2479 = vmatprep.subr.mxu0 0.0
        %2480 = vmatpush1.msra.mxu0 0.0
        %2481 = vmatprep.subr.mxu0 0.0
        %2482 = vmatpush1.msra.mxu0 0.0
        %2483 = vmatprep.subr.mxu0 0.0
        %2484 = vmatpush1.msra.mxu0 0.0
        %2485 = vmatprep.subr.mxu0 0.0
        %2486 = vmatpush1.msra.mxu0 0.0
        %2487 = vmatprep.subr.mxu0 0.0
        %2488 = vmatpush1.msra.mxu0 0.0
        %2489 = vmatprep.subr.mxu0 0.0
        %2490 = vmatpush1.msra.mxu0 0.0
        %2491 = vmatprep.subr.mxu0 0.0
        %2492 = vmatpush1.msra.mxu0 0.0
        %2493 = vmatprep.subr.mxu0 0.0
        %2494 = vmatpush1.msra.mxu0 0.0
        %2495 = vmatprep.subr.mxu0 0.0
        %2496 = vmatpush1.msra.mxu0 0.0
        %2497 = vmatprep.subr.mxu0 0.0
        %2498 = vmatpush1.msra.mxu0 0.0
        %2499 = vmatprep.subr.mxu0 0.0
        %2500 = vmatpush1.msra.mxu0 0.0
        %2501 = vmatprep.subr.mxu0 0.0
        %2502 = vmatpush1.msra.mxu0 0.0
        %2503 = vmatprep.subr.mxu0 0.0
        %2504 = vmatpush1.msra.mxu0 0.0
        %2505 = vmatprep.mubr.f32.mxu0 0.0
        %2506 = vmatmul.mubr.f32.gmra.mrb[0].mxu0 %v2334
        %v2507 = vpop.f32.mrb[0].mxu0
        %v2508 = vadd.f32 0.0, %v2507
        %v2509 = vpop.f32.mrb[0].mxu0
        %2510 = vdwg.mxu0
        %v2512 = vsel %vm2016, %v2423, 0
        %2514 = vmatprep.subr.mxu0 0.0
        %2515 = vmatpush1.msra.mxu0 %v2508
        %2516 = vmatprep.subr.mxu0 0.0
        %2517 = vmatpush1.msra.mxu0 0.0
        %2518 = vmatprep.subr.mxu0 0.0
        %2519 = vmatpush1.msra.mxu0 0.0
        %2520 = vmatprep.subr.mxu0 0.0
        %2521 = vmatpush1.msra.mxu0 0.0
        %2522 = vmatprep.subr.mxu0 0.0
        %2523 = vmatpush1.msra.mxu0 0.0
        %2524 = vmatprep.subr.mxu0 0.0
        %2525 = vmatpush1.msra.mxu0 0.0
        %2526 = vmatprep.subr.mxu0 0.0
        %2527 = vmatpush1.msra.mxu0 0.0
        %2528 = vmatprep.subr.mxu0 0.0
        %2529 = vmatpush1.msra.mxu0 0.0
        %2530 = vmatprep.subr.mxu0 0.0
        %2531 = vmatpush1.msra.mxu0 0.0
        %2532 = vmatprep.subr.mxu0 0.0
        %2533 = vmatpush1.msra.mxu0 0.0
        %2534 = vmatprep.subr.mxu0 0.0
        %2535 = vmatpush1.msra.mxu0 0.0
        %2536 = vmatprep.subr.mxu0 0.0
        %2537 = vmatpush1.msra.mxu0 0.0
        %2538 = vmatprep.subr.mxu0 0.0
        %2539 = vmatpush1.msra.mxu0 0.0
        %2540 = vmatprep.subr.mxu0 0.0
        %2541 = vmatpush1.msra.mxu0 0.0
        %2542 = vmatprep.subr.mxu0 0.0
        %2543 = vmatpush1.msra.mxu0 0.0
        %2544 = vmatprep.subr.mxu0 0.0
        %2545 = vmatpush1.msra.mxu0 0.0
        %2546 = vmatprep.subr.mxu0 0.0
        %2547 = vmatpush1.msra.mxu0 0.0
        %2548 = vmatprep.subr.mxu0 0.0
        %2549 = vmatpush1.msra.mxu0 0.0
        %2550 = vmatprep.subr.mxu0 0.0
        %2551 = vmatpush1.msra.mxu0 0.0
        %2552 = vmatprep.subr.mxu0 0.0
        %2553 = vmatpush1.msra.mxu0 0.0
        %2554 = vmatprep.subr.mxu0 0.0
        %2555 = vmatpush1.msra.mxu0 0.0
        %2556 = vmatprep.subr.mxu0 0.0
        %2557 = vmatpush1.msra.mxu0 0.0
        %2558 = vmatprep.subr.mxu0 0.0
        %2559 = vmatpush1.msra.mxu0 0.0
        %2560 = vmatprep.subr.mxu0 0.0
        %2561 = vmatpush1.msra.mxu0 0.0
        %2562 = vmatprep.subr.mxu0 0.0
        %2563 = vmatpush1.msra.mxu0 0.0
        %2564 = vmatprep.subr.mxu0 0.0
        %2565 = vmatpush1.msra.mxu0 0.0
        %2566 = vmatprep.subr.mxu0 0.0
        %2567 = vmatpush1.msra.mxu0 0.0
        %2568 = vmatprep.subr.mxu0 0.0
        %2569 = vmatpush1.msra.mxu0 0.0
        %2570 = vmatprep.subr.mxu0 0.0
        %2571 = vmatpush1.msra.mxu0 0.0
        %2572 = vmatprep.subr.mxu0 0.0
        %2573 = vmatpush1.msra.mxu0 0.0
        %2574 = vmatprep.subr.mxu0 0.0
        %2575 = vmatpush1.msra.mxu0 0.0
        %2576 = vmatprep.subr.mxu0 0.0
        %2577 = vmatpush1.msra.mxu0 0.0
        %2578 = vmatprep.mubr.f32.mxu0 0.0
        %2579 = vmatmul.mubr.f32.gmra.mrb[0].mxu0 %v2512
        %v2580 = vpop.f32.mrb[0].mxu0
        %v2581 = vadd.f32 0.0, %v2580
        %v2582 = vpop.f32.mrb[0].mxu0
        %2583 = vdwg.mxu0
        %v2585 = vsel %vm2016, %v2335, 0
        %2587 = vmatprep.subr.mxu0 0.0
        %2588 = vmatpush1.msra.mxu0 %v2419
        %2589 = vmatprep.subr.mxu0 0.0
        %2590 = vmatpush1.msra.mxu0 0.0
        %2591 = vmatprep.subr.mxu0 0.0
        %2592 = vmatpush1.msra.mxu0 0.0
        %2593 = vmatprep.subr.mxu0 0.0
        %2594 = vmatpush1.msra.mxu0 0.0
        %2595 = vmatprep.subr.mxu0 0.0
        %2596 = vmatpush1.msra.mxu0 0.0
        %2597 = vmatprep.subr.mxu0 0.0
        %2598 = vmatpush1.msra.mxu0 0.0
        %2599 = vmatprep.subr.mxu0 0.0
        %2600 = vmatpush1.msra.mxu0 0.0
        %2601 = vmatprep.subr.mxu0 0.0
        %2602 = vmatpush1.msra.mxu0 0.0
        %2603 = vmatprep.subr.mxu0 0.0
        %2604 = vmatpush1.msra.mxu0 0.0
        %2605 = vmatprep.subr.mxu0 0.0
        %2606 = vmatpush1.msra.mxu0 0.0
        %2607 = vmatprep.subr.mxu0 0.0
        %2608 = vmatpush1.msra.mxu0 0.0
        %2609 = vmatprep.subr.mxu0 0.0
        %2610 = vmatpush1.msra.mxu0 0.0
        %2611 = vmatprep.subr.mxu0 0.0
        %2612 = vmatpush1.msra.mxu0 0.0
        %2613 = vmatprep.subr.mxu0 0.0
        %2614 = vmatpush1.msra.mxu0 0.0
        %2615 = vmatprep.subr.mxu0 0.0
        %2616 = vmatpush1.msra.mxu0 0.0
        %2617 = vmatprep.subr.mxu0 0.0
        %2618 = vmatpush1.msra.mxu0 0.0
        %2619 = vmatprep.subr.mxu0 0.0
        %2620 = vmatpush1.msra.mxu0 0.0
        %2621 = vmatprep.subr.mxu0 0.0
        %2622 = vmatpush1.msra.mxu0 0.0
        %2623 = vmatprep.subr.mxu0 0.0
        %2624 = vmatpush1.msra.mxu0 0.0
        %2625 = vmatprep.subr.mxu0 0.0
        %2626 = vmatpush1.msra.mxu0 0.0
        %2627 = vmatprep.subr.mxu0 0.0
        %2628 = vmatpush1.msra.mxu0 0.0
        %2629 = vmatprep.subr.mxu0 0.0
        %2630 = vmatpush1.msra.mxu0 0.0
        %2631 = vmatprep.subr.mxu0 0.0
        %2632 = vmatpush1.msra.mxu0 0.0
        %2633 = vmatprep.subr.mxu0 0.0
        %2634 = vmatpush1.msra.mxu0 0.0
        %2635 = vmatprep.subr.mxu0 0.0
        %2636 = vmatpush1.msra.mxu0 0.0
        %2637 = vmatprep.subr.mxu0 0.0
        %2638 = vmatpush1.msra.mxu0 0.0
        %2639 = vmatprep.subr.mxu0 0.0
        %2640 = vmatpush1.msra.mxu0 0.0
        %2641 = vmatprep.subr.mxu0 0.0
        %2642 = vmatpush1.msra.mxu0 0.0
        %2643 = vmatprep.subr.mxu0 0.0
        %2644 = vmatpush1.msra.mxu0 0.0
        %2645 = vmatprep.subr.mxu0 0.0
        %2646 = vmatpush1.msra.mxu0 0.0
        %2647 = vmatprep.subr.mxu0 0.0
        %2648 = vmatpush1.msra.mxu0 0.0
        %2649 = vmatprep.subr.mxu0 0.0
        %2650 = vmatpush1.msra.mxu0 0.0
        %2651 = vmatprep.mubr.f32.mxu0 0.0
        %2652 = vmatmul.mubr.f32.gmra.mrb[0].mxu0 %v2585
        %v2653 = vpop.f32.mrb[0].mxu0
        %v2654 = vadd.f32 %v2581, %v2653
        %v2655 = vpop.f32.mrb[0].mxu0
        %2656 = vdwg.mxu0
        %s2657 = scalar_lea.vmem %s10, 16
        %v2658 = vld [vmem:[%s2657] sm:$0xff]
        %s2659 = scalar_lea.vmem %s11, 256
        %v2660 = vld [vmem:[%s2659] sm:$0xff]
        %v2661 = vld [vmem:[%s2659 + $0x8] sm:$0xff]
        %v2662 = vld [vmem:[%s2659 + $0x10] sm:$0xff]
        %v2663 = vld [vmem:[%s2659 + $0x18] sm:$0xff]
        %v2664 = vld [vmem:[%s2659 + $0x20] sm:$0xff]
        %v2665 = vld [vmem:[%s2659 + $0x28] sm:$0xff]
        %v2666 = vld [vmem:[%s2659 + $0x30] sm:$0xff]
        %v2667 = vld [vmem:[%s2659 + $0x38] sm:$0xff]
        %v2668 = vld [vmem:[%s2659 + $0x40] sm:$0xff]
        %v2669 = vld [vmem:[%s2659 + $0x48] sm:$0xff]
        %v2670 = vld [vmem:[%s2659 + $0x50] sm:$0xff]
        %v2671 = vld [vmem:[%s2659 + $0x58] sm:$0xff]
        %v2672 = vld [vmem:[%s2659 + $0x60] sm:$0xff]
        %v2673 = vld [vmem:[%s2659 + $0x68] sm:$0xff]
        %v2674 = vld [vmem:[%s2659 + $0x70] sm:$0xff]
        %v2675 = vld [vmem:[%s2659 + $0x78] sm:$0xff]
        %2676 = vmatprep.subr.mxu0 0.0
        %2677 = vmatpush1.msra.mxu0 %v2660
        %2678 = vmatprep.subr.mxu0 0.0
        %2679 = vmatpush1.msra.mxu0 %v2661
        %2680 = vmatprep.subr.mxu0 0.0
        %2681 = vmatpush1.msra.mxu0 %v2662
        %2682 = vmatprep.subr.mxu0 0.0
        %2683 = vmatpush1.msra.mxu0 %v2663
        %2684 = vmatprep.subr.mxu0 0.0
        %2685 = vmatpush1.msra.mxu0 %v2664
        %2686 = vmatprep.subr.mxu0 0.0
        %2687 = vmatpush1.msra.mxu0 %v2665
        %2688 = vmatprep.subr.mxu0 0.0
        %2689 = vmatpush1.msra.mxu0 %v2666
        %2690 = vmatprep.subr.mxu0 0.0
        %2691 = vmatpush1.msra.mxu0 %v2667
        %2692 = vmatprep.subr.mxu0 0.0
        %2693 = vmatpush1.msra.mxu0 %v2668
        %2694 = vmatprep.subr.mxu0 0.0
        %2695 = vmatpush1.msra.mxu0 %v2669
        %2696 = vmatprep.subr.mxu0 0.0
        %2697 = vmatpush1.msra.mxu0 %v2670
        %2698 = vmatprep.subr.mxu0 0.0
        %2699 = vmatpush1.msra.mxu0 %v2671
        %2700 = vmatprep.subr.mxu0 0.0
        %2701 = vmatpush1.msra.mxu0 %v2672
        %2702 = vmatprep.subr.mxu0 0.0
        %2703 = vmatpush1.msra.mxu0 %v2673
        %2704 = vmatprep.subr.mxu0 0.0
        %2705 = vmatpush1.msra.mxu0 %v2674
        %2706 = vmatprep.subr.mxu0 0.0
        %2707 = vmatpush1.msra.mxu0 %v2675
        %2708 = vmatprep.subr.mxu0 0.0
        %2709 = vmatpush1.msra.mxu0 0.0
        %2710 = vmatprep.subr.mxu0 0.0
        %2711 = vmatpush1.msra.mxu0 0.0
        %2712 = vmatprep.subr.mxu0 0.0
        %2713 = vmatpush1.msra.mxu0 0.0
        %2714 = vmatprep.subr.mxu0 0.0
        %2715 = vmatpush1.msra.mxu0 0.0
        %2716 = vmatprep.subr.mxu0 0.0
        %2717 = vmatpush1.msra.mxu0 0.0
        %2718 = vmatprep.subr.mxu0 0.0
        %2719 = vmatpush1.msra.mxu0 0.0
        %2720 = vmatprep.subr.mxu0 0.0
        %2721 = vmatpush1.msra.mxu0 0.0
        %2722 = vmatprep.subr.mxu0 0.0
        %2723 = vmatpush1.msra.mxu0 0.0
        %2724 = vmatprep.subr.mxu0 0.0
        %2725 = vmatpush1.msra.mxu0 0.0
        %2726 = vmatprep.subr.mxu0 0.0
        %2727 = vmatpush1.msra.mxu0 0.0
        %2728 = vmatprep.subr.mxu0 0.0
        %2729 = vmatpush1.msra.mxu0 0.0
        %2730 = vmatprep.subr.mxu0 0.0
        %2731 = vmatpush1.msra.mxu0 0.0
        %2732 = vmatprep.subr.mxu0 0.0
        %2733 = vmatpush1.msra.mxu0 0.0
        %2734 = vmatprep.subr.mxu0 0.0
        %2735 = vmatpush1.msra.mxu0 0.0
        %2736 = vmatprep.subr.mxu0 0.0
        %2737 = vmatpush1.msra.mxu0 0.0
        %2738 = vmatprep.subr.mxu0 0.0
        %2739 = vmatpush1.msra.mxu0 0.0
        %2740 = vmatprep.mubr.f32.mxu0 0.0
        %2741 = vmatmul.mubr.f32.gmra.mrb[0].mxu0 %v2334
        %v2742 = vpop.f32.mrb[0].mxu0
        %v2743 = vadd.f32 0.0, %v2742
        %v2744 = vpop.f32.mrb[0].mxu0
        %2745 = vdwg.mxu0
        %v2747 = vsel %vm2016, %v2658, 0
        %2749 = vmatprep.subr.mxu0 0.0
        %2750 = vmatpush1.msra.mxu0 %v2743
        %2751 = vmatprep.subr.mxu0 0.0
        %2752 = vmatpush1.msra.mxu0 0.0
        %2753 = vmatprep.subr.mxu0 0.0
        %2754 = vmatpush1.msra.mxu0 0.0
        %2755 = vmatprep.subr.mxu0 0.0
        %2756 = vmatpush1.msra.mxu0 0.0
        %2757 = vmatprep.subr.mxu0 0.0
        %2758 = vmatpush1.msra.mxu0 0.0
        %2759 = vmatprep.subr.mxu0 0.0
        %2760 = vmatpush1.msra.mxu0 0.0
        %2761 = vmatprep.subr.mxu0 0.0
        %2762 = vmatpush1.msra.mxu0 0.0
        %2763 = vmatprep.subr.mxu0 0.0
        %2764 = vmatpush1.msra.mxu0 0.0
        %2765 = vmatprep.subr.mxu0 0.0
        %2766 = vmatpush1.msra.mxu0 0.0
        %2767 = vmatprep.subr.mxu0 0.0
        %2768 = vmatpush1.msra.mxu0 0.0
        %2769 = vmatprep.subr.mxu0 0.0
        %2770 = vmatpush1.msra.mxu0 0.0
        %2771 = vmatprep.subr.mxu0 0.0
        %2772 = vmatpush1.msra.mxu0 0.0
        %2773 = vmatprep.subr.mxu0 0.0
        %2774 = vmatpush1.msra.mxu0 0.0
        %2775 = vmatprep.subr.mxu0 0.0
        %2776 = vmatpush1.msra.mxu0 0.0
        %2777 = vmatprep.subr.mxu0 0.0
        %2778 = vmatpush1.msra.mxu0 0.0
        %2779 = vmatprep.subr.mxu0 0.0
        %2780 = vmatpush1.msra.mxu0 0.0
        %2781 = vmatprep.subr.mxu0 0.0
        %2782 = vmatpush1.msra.mxu0 0.0
        %2783 = vmatprep.subr.mxu0 0.0
        %2784 = vmatpush1.msra.mxu0 0.0
        %2785 = vmatprep.subr.mxu0 0.0
        %2786 = vmatpush1.msra.mxu0 0.0
        %2787 = vmatprep.subr.mxu0 0.0
        %2788 = vmatpush1.msra.mxu0 0.0
        %2789 = vmatprep.subr.mxu0 0.0
        %2790 = vmatpush1.msra.mxu0 0.0
        %2791 = vmatprep.subr.mxu0 0.0
        %2792 = vmatpush1.msra.mxu0 0.0
        %2793 = vmatprep.subr.mxu0 0.0
        %2794 = vmatpush1.msra.mxu0 0.0
        %2795 = vmatprep.subr.mxu0 0.0
        %2796 = vmatpush1.msra.mxu0 0.0
        %2797 = vmatprep.subr.mxu0 0.0
        %2798 = vmatpush1.msra.mxu0 0.0
        %2799 = vmatprep.subr.mxu0 0.0
        %2800 = vmatpush1.msra.mxu0 0.0
        %2801 = vmatprep.subr.mxu0 0.0
        %2802 = vmatpush1.msra.mxu0 0.0
        %2803 = vmatprep.subr.mxu0 0.0
        %2804 = vmatpush1.msra.mxu0 0.0
        %2805 = vmatprep.subr.mxu0 0.0
        %2806 = vmatpush1.msra.mxu0 0.0
        %2807 = vmatprep.subr.mxu0 0.0
        %2808 = vmatpush1.msra.mxu0 0.0
        %2809 = vmatprep.subr.mxu0 0.0
        %2810 = vmatpush1.msra.mxu0 0.0
        %2811 = vmatprep.subr.mxu0 0.0
        %2812 = vmatpush1.msra.mxu0 0.0
        %2813 = vmatprep.mubr.f32.mxu0 0.0
        %2814 = vmatmul.mubr.f32.gmra.mrb[0].mxu0 %v2747
        %v2815 = vpop.f32.mrb[0].mxu0
        %v2816 = vadd.f32 0.0, %v2815
        %v2817 = vpop.f32.mrb[0].mxu0
        %2818 = vdwg.mxu0
        %v2819 = vadd.f32 %v2654, %v2816
        %v2820 = vld [vmem:[%s12] sm:$0x1]
        %v2822 = vlaneseq
        %v2823 = vshrl.u32 %v2822, 7
        %v2824 = vsub.s32 0, %v2823
        %v2825 = vrot.slane %v2820, %v2824
        %v2827 = vadd.f32 %v2819, %v2825
        %v2828 = vmax.f32 %v2827, 0.0
        %v2829 = vld [vmem:[%s13] sm:$0xff]
        %v2830 = vld [vmem:[%s13 + $0x8] sm:$0xff]
        %v2831 = vld [vmem:[#allocation10] sm:$0xff]
        %v2832 = vld [vmem:[#allocation10 + $0x8] sm:$0xff]
        %v2833 = vld [vmem:[#allocation10 + $0x10] sm:$0xff]
        %v2834 = vld [vmem:[#allocation10 + $0x18] sm:$0xff]
        %v2835 = vld [vmem:[#allocation10 + $0x20] sm:$0xff]
        %v2836 = vld [vmem:[#allocation10 + $0x28] sm:$0xff]
        %v2837 = vld [vmem:[#allocation10 + $0x30] sm:$0xff]
        %v2838 = vld [vmem:[#allocation10 + $0x38] sm:$0xff]
        %v2839 = vld [vmem:[#allocation10 + $0x40] sm:$0xff]
        %v2840 = vld [vmem:[#allocation10 + $0x48] sm:$0xff]
        %v2841 = vld [vmem:[#allocation10 + $0x50] sm:$0xff]
        %v2842 = vld [vmem:[#allocation10 + $0x58] sm:$0xff]
        %v2843 = vld [vmem:[#allocation10 + $0x60] sm:$0xff]
        %v2844 = vld [vmem:[#allocation10 + $0x68] sm:$0xff]
        %v2845 = vld [vmem:[#allocation10 + $0x70] sm:$0xff]
        %v2846 = vld [vmem:[#allocation10 + $0x78] sm:$0xff]
        %s2847 = scalar_lea.vmem [#allocation10], 384
        %v2848 = vld [vmem:[%s2847] sm:$0xff]
        %v2849 = vld [vmem:[%s2847 + $0x8] sm:$0xff]
        %v2850 = vld [vmem:[%s2847 + $0x10] sm:$0xff]
        %v2851 = vld [vmem:[%s2847 + $0x18] sm:$0xff]
        %v2852 = vld [vmem:[%s2847 + $0x20] sm:$0xff]
        %v2853 = vld [vmem:[%s2847 + $0x28] sm:$0xff]
        %v2854 = vld [vmem:[%s2847 + $0x30] sm:$0xff]
        %v2855 = vld [vmem:[%s2847 + $0x38] sm:$0xff]
        %v2856 = vld [vmem:[%s2847 + $0x40] sm:$0xff]
        %v2857 = vld [vmem:[%s2847 + $0x48] sm:$0xff]
        %v2858 = vld [vmem:[%s2847 + $0x50] sm:$0xff]
        %v2859 = vld [vmem:[%s2847 + $0x58] sm:$0xff]
        %v2860 = vld [vmem:[%s2847 + $0x60] sm:$0xff]
        %v2861 = vld [vmem:[%s2847 + $0x68] sm:$0xff]
        %v2862 = vld [vmem:[%s2847 + $0x70] sm:$0xff]
        %v2863 = vld [vmem:[%s2847 + $0x78] sm:$0xff]
        %2864 = vmatprep.subr.mxu0 0.0
        %2865 = vmatpush1.msra.mxu0 %v2848
        %2866 = vmatprep.subr.mxu0 0.0
        %2867 = vmatpush1.msra.mxu0 %v2849
        %2868 = vmatprep.subr.mxu0 0.0
        %2869 = vmatpush1.msra.mxu0 %v2850
        %2870 = vmatprep.subr.mxu0 0.0
        %2871 = vmatpush1.msra.mxu0 %v2851
        %2872 = vmatprep.subr.mxu0 0.0
        %2873 = vmatpush1.msra.mxu0 %v2852
        %2874 = vmatprep.subr.mxu0 0.0
        %2875 = vmatpush1.msra.mxu0 %v2853
        %2876 = vmatprep.subr.mxu0 0.0
        %2877 = vmatpush1.msra.mxu0 %v2854
        %2878 = vmatprep.subr.mxu0 0.0
        %2879 = vmatpush1.msra.mxu0 %v2855
        %2880 = vmatprep.subr.mxu0 0.0
        %2881 = vmatpush1.msra.mxu0 %v2856
        %2882 = vmatprep.subr.mxu0 0.0
        %2883 = vmatpush1.msra.mxu0 %v2857
        %2884 = vmatprep.subr.mxu0 0.0
        %2885 = vmatpush1.msra.mxu0 %v2858
        %2886 = vmatprep.subr.mxu0 0.0
        %2887 = vmatpush1.msra.mxu0 %v2859
        %2888 = vmatprep.subr.mxu0 0.0
        %2889 = vmatpush1.msra.mxu0 %v2860
        %2890 = vmatprep.subr.mxu0 0.0
        %2891 = vmatpush1.msra.mxu0 %v2861
        %2892 = vmatprep.subr.mxu0 0.0
        %2893 = vmatpush1.msra.mxu0 %v2862
        %2894 = vmatprep.subr.mxu0 0.0
        %2895 = vmatpush1.msra.mxu0 %v2863
        %2896 = vmatprep.subr.mxu0 0.0
        %2897 = vmatpush1.msra.mxu0 0.0
        %2898 = vmatprep.subr.mxu0 0.0
        %2899 = vmatpush1.msra.mxu0 0.0
        %2900 = vmatprep.subr.mxu0 0.0
        %2901 = vmatpush1.msra.mxu0 0.0
        %2902 = vmatprep.subr.mxu0 0.0
        %2903 = vmatpush1.msra.mxu0 0.0
        %2904 = vmatprep.subr.mxu0 0.0
        %2905 = vmatpush1.msra.mxu0 0.0
        %2906 = vmatprep.subr.mxu0 0.0
        %2907 = vmatpush1.msra.mxu0 0.0
        %2908 = vmatprep.subr.mxu0 0.0
        %2909 = vmatpush1.msra.mxu0 0.0
        %2910 = vmatprep.subr.mxu0 0.0
        %2911 = vmatpush1.msra.mxu0 0.0
        %2912 = vmatprep.subr.mxu0 0.0
        %2913 = vmatpush1.msra.mxu0 0.0
        %2914 = vmatprep.subr.mxu0 0.0
        %2915 = vmatpush1.msra.mxu0 0.0
        %2916 = vmatprep.subr.mxu0 0.0
        %2917 = vmatpush1.msra.mxu0 0.0
        %2918 = vmatprep.subr.mxu0 0.0
        %2919 = vmatpush1.msra.mxu0 0.0
        %2920 = vmatprep.subr.mxu0 0.0
        %2921 = vmatpush1.msra.mxu0 0.0
        %2922 = vmatprep.subr.mxu0 0.0
        %2923 = vmatpush1.msra.mxu0 0.0
        %2924 = vmatprep.subr.mxu0 0.0
        %2925 = vmatpush1.msra.mxu0 0.0
        %2926 = vmatprep.subr.mxu0 0.0
        %2927 = vmatpush1.msra.mxu0 0.0
        %2928 = vmatprep.mubr.f32.mxu0 0.0
        %2929 = vmatmul.mubr.f32.gmra.mrb[0].mxu0 %v2828
        %v2930 = vpop.f32.mrb[0].mxu0
        %v2931 = vadd.f32 0.0, %v2930
        %v2932 = vpop.f32.mrb[0].mxu0
        %2933 = vdwg.mxu0
        %2934 = vmatprep.subr.mxu0 0.0
        %2935 = vmatpush1.msra.mxu0 %v2831
        %2936 = vmatprep.subr.mxu0 0.0
        %2937 = vmatpush1.msra.mxu0 %v2832
        %2938 = vmatprep.subr.mxu0 0.0
        %2939 = vmatpush1.msra.mxu0 %v2833
        %2940 = vmatprep.subr.mxu0 0.0
        %2941 = vmatpush1.msra.mxu0 %v2834
        %2942 = vmatprep.subr.mxu0 0.0
        %2943 = vmatpush1.msra.mxu0 %v2835
        %2944 = vmatprep.subr.mxu0 0.0
        %2945 = vmatpush1.msra.mxu0 %v2836
        %2946 = vmatprep.subr.mxu0 0.0
        %2947 = vmatpush1.msra.mxu0 %v2837
        %2948 = vmatprep.subr.mxu0 0.0
        %2949 = vmatpush1.msra.mxu0 %v2838
        %2950 = vmatprep.subr.mxu0 0.0
        %2951 = vmatpush1.msra.mxu0 %v2839
        %2952 = vmatprep.subr.mxu0 0.0
        %2953 = vmatpush1.msra.mxu0 %v2840
        %2954 = vmatprep.subr.mxu0 0.0
        %2955 = vmatpush1.msra.mxu0 %v2841
        %2956 = vmatprep.subr.mxu0 0.0
        %2957 = vmatpush1.msra.mxu0 %v2842
        %2958 = vmatprep.subr.mxu0 0.0
        %2959 = vmatpush1.msra.mxu0 %v2843
        %2960 = vmatprep.subr.mxu0 0.0
        %2961 = vmatpush1.msra.mxu0 %v2844
        %2962 = vmatprep.subr.mxu0 0.0
        %2963 = vmatpush1.msra.mxu0 %v2845
        %2964 = vmatprep.subr.mxu0 0.0
        %2965 = vmatpush1.msra.mxu0 %v2846
        %2966 = vmatprep.subr.mxu0 0.0
        %2967 = vmatpush1.msra.mxu0 0.0
        %2968 = vmatprep.subr.mxu0 0.0
        %2969 = vmatpush1.msra.mxu0 0.0
        %2970 = vmatprep.subr.mxu0 0.0
        %2971 = vmatpush1.msra.mxu0 0.0
        %2972 = vmatprep.subr.mxu0 0.0
        %2973 = vmatpush1.msra.mxu0 0.0
        %2974 = vmatprep.subr.mxu0 0.0
        %2975 = vmatpush1.msra.mxu0 0.0
        %2976 = vmatprep.subr.mxu0 0.0
        %2977 = vmatpush1.msra.mxu0 0.0
        %2978 = vmatprep.subr.mxu0 0.0
        %2979 = vmatpush1.msra.mxu0 0.0
        %2980 = vmatprep.subr.mxu0 0.0
        %2981 = vmatpush1.msra.mxu0 0.0
        %2982 = vmatprep.subr.mxu0 0.0
        %2983 = vmatpush1.msra.mxu0 0.0
        %2984 = vmatprep.subr.mxu0 0.0
        %2985 = vmatpush1.msra.mxu0 0.0
        %2986 = vmatprep.subr.mxu0 0.0
        %2987 = vmatpush1.msra.mxu0 0.0
        %2988 = vmatprep.subr.mxu0 0.0
        %2989 = vmatpush1.msra.mxu0 0.0
        %2990 = vmatprep.subr.mxu0 0.0
        %2991 = vmatpush1.msra.mxu0 0.0
        %2992 = vmatprep.subr.mxu0 0.0
        %2993 = vmatpush1.msra.mxu0 0.0
        %2994 = vmatprep.subr.mxu0 0.0
        %2995 = vmatpush1.msra.mxu0 0.0
        %2996 = vmatprep.subr.mxu0 0.0
        %2997 = vmatpush1.msra.mxu0 0.0
        %2998 = vmatprep.mubr.f32.mxu0 0.0
        %2999 = vmatmul.mubr.f32.gmra.mrb[0].mxu0 %v1839
        %v3000 = vpop.f32.mrb[0].mxu0
        %v3001 = vadd.f32 %v2931, %v3000
        %v3002 = vpop.f32.mrb[0].mxu0
        %3003 = vdwg.mxu0
        %s3004 = scalar_lea.vmem %s13, 16
        %v3005 = vld [vmem:[%s3004] sm:$0xff]
        %v3006 = vld [vmem:[%s3004 + $0x8] sm:$0xff]
        %s3007 = scalar_lea.vmem [#allocation10], 128
        %v3008 = vld [vmem:[%s3007] sm:$0xff]
        %v3009 = vld [vmem:[%s3007 + $0x8] sm:$0xff]
        %v3010 = vld [vmem:[%s3007 + $0x10] sm:$0xff]
        %v3011 = vld [vmem:[%s3007 + $0x18] sm:$0xff]
        %v3012 = vld [vmem:[%s3007 + $0x20] sm:$0xff]
        %v3013 = vld [vmem:[%s3007 + $0x28] sm:$0xff]
        %v3014 = vld [vmem:[%s3007 + $0x30] sm:$0xff]
        %v3015 = vld [vmem:[%s3007 + $0x38] sm:$0xff]
        %v3016 = vld [vmem:[%s3007 + $0x40] sm:$0xff]
        %v3017 = vld [vmem:[%s3007 + $0x48] sm:$0xff]
        %v3018 = vld [vmem:[%s3007 + $0x50] sm:$0xff]
        %v3019 = vld [vmem:[%s3007 + $0x58] sm:$0xff]
        %v3020 = vld [vmem:[%s3007 + $0x60] sm:$0xff]
        %v3021 = vld [vmem:[%s3007 + $0x68] sm:$0xff]
        %v3022 = vld [vmem:[%s3007 + $0x70] sm:$0xff]
        %v3023 = vld [vmem:[%s3007 + $0x78] sm:$0xff]
        %s3024 = scalar_lea.vmem [#allocation10], 512
        %v3025 = vld [vmem:[%s3024] sm:$0xff]
        %v3026 = vld [vmem:[%s3024 + $0x8] sm:$0xff]
        %v3027 = vld [vmem:[%s3024 + $0x10] sm:$0xff]
        %v3028 = vld [vmem:[%s3024 + $0x18] sm:$0xff]
        %v3029 = vld [vmem:[%s3024 + $0x20] sm:$0xff]
        %v3030 = vld [vmem:[%s3024 + $0x28] sm:$0xff]
        %v3031 = vld [vmem:[%s3024 + $0x30] sm:$0xff]
        %v3032 = vld [vmem:[%s3024 + $0x38] sm:$0xff]
        %v3033 = vld [vmem:[%s3024 + $0x40] sm:$0xff]
        %v3034 = vld [vmem:[%s3024 + $0x48] sm:$0xff]
        %v3035 = vld [vmem:[%s3024 + $0x50] sm:$0xff]
        %v3036 = vld [vmem:[%s3024 + $0x58] sm:$0xff]
        %v3037 = vld [vmem:[%s3024 + $0x60] sm:$0xff]
        %v3038 = vld [vmem:[%s3024 + $0x68] sm:$0xff]
        %v3039 = vld [vmem:[%s3024 + $0x70] sm:$0xff]
        %v3040 = vld [vmem:[%s3024 + $0x78] sm:$0xff]
        %3041 = vmatprep.subr.mxu0 0.0
        %3042 = vmatpush1.msra.mxu0 %v3025
        %3043 = vmatprep.subr.mxu0 0.0
        %3044 = vmatpush1.msra.mxu0 %v3026
        %3045 = vmatprep.subr.mxu0 0.0
        %3046 = vmatpush1.msra.mxu0 %v3027
        %3047 = vmatprep.subr.mxu0 0.0
        %3048 = vmatpush1.msra.mxu0 %v3028
        %3049 = vmatprep.subr.mxu0 0.0
        %3050 = vmatpush1.msra.mxu0 %v3029
        %3051 = vmatprep.subr.mxu0 0.0
        %3052 = vmatpush1.msra.mxu0 %v3030
        %3053 = vmatprep.subr.mxu0 0.0
        %3054 = vmatpush1.msra.mxu0 %v3031
        %3055 = vmatprep.subr.mxu0 0.0
        %3056 = vmatpush1.msra.mxu0 %v3032
        %3057 = vmatprep.subr.mxu0 0.0
        %3058 = vmatpush1.msra.mxu0 %v3033
        %3059 = vmatprep.subr.mxu0 0.0
        %3060 = vmatpush1.msra.mxu0 %v3034
        %3061 = vmatprep.subr.mxu0 0.0
        %3062 = vmatpush1.msra.mxu0 %v3035
        %3063 = vmatprep.subr.mxu0 0.0
        %3064 = vmatpush1.msra.mxu0 %v3036
        %3065 = vmatprep.subr.mxu0 0.0
        %3066 = vmatpush1.msra.mxu0 %v3037
        %3067 = vmatprep.subr.mxu0 0.0
        %3068 = vmatpush1.msra.mxu0 %v3038
        %3069 = vmatprep.subr.mxu0 0.0
        %3070 = vmatpush1.msra.mxu0 %v3039
        %3071 = vmatprep.subr.mxu0 0.0
        %3072 = vmatpush1.msra.mxu0 %v3040
        %3073 = vmatprep.subr.mxu0 0.0
        %3074 = vmatpush1.msra.mxu0 0.0
        %3075 = vmatprep.subr.mxu0 0.0
        %3076 = vmatpush1.msra.mxu0 0.0
        %3077 = vmatprep.subr.mxu0 0.0
        %3078 = vmatpush1.msra.mxu0 0.0
        %3079 = vmatprep.subr.mxu0 0.0
        %3080 = vmatpush1.msra.mxu0 0.0
        %3081 = vmatprep.subr.mxu0 0.0
        %3082 = vmatpush1.msra.mxu0 0.0
        %3083 = vmatprep.subr.mxu0 0.0
        %3084 = vmatpush1.msra.mxu0 0.0
        %3085 = vmatprep.subr.mxu0 0.0
        %3086 = vmatpush1.msra.mxu0 0.0
        %3087 = vmatprep.subr.mxu0 0.0
        %3088 = vmatpush1.msra.mxu0 0.0
        %3089 = vmatprep.subr.mxu0 0.0
        %3090 = vmatpush1.msra.mxu0 0.0
        %3091 = vmatprep.subr.mxu0 0.0
        %3092 = vmatpush1.msra.mxu0 0.0
        %3093 = vmatprep.subr.mxu0 0.0
        %3094 = vmatpush1.msra.mxu0 0.0
        %3095 = vmatprep.subr.mxu0 0.0
        %3096 = vmatpush1.msra.mxu0 0.0
        %3097 = vmatprep.subr.mxu0 0.0
        %3098 = vmatpush1.msra.mxu0 0.0
        %3099 = vmatprep.subr.mxu0 0.0
        %3100 = vmatpush1.msra.mxu0 0.0
        %3101 = vmatprep.subr.mxu0 0.0
        %3102 = vmatpush1.msra.mxu0 0.0
        %3103 = vmatprep.subr.mxu0 0.0
        %3104 = vmatpush1.msra.mxu0 0.0
        %3105 = vmatprep.mubr.f32.mxu0 0.0
        %3106 = vmatmul.mubr.f32.gmra.mrb[0].mxu0 %v2828
        %v3107 = vpop.f32.mrb[0].mxu0
        %v3108 = vadd.f32 0.0, %v3107
        %v3109 = vpop.f32.mrb[0].mxu0
        %3110 = vdwg.mxu0
        %3111 = vmatprep.subr.mxu0 0.0
        %3112 = vmatpush1.msra.mxu0 %v3008
        %3113 = vmatprep.subr.mxu0 0.0
        %3114 = vmatpush1.msra.mxu0 %v3009
        %3115 = vmatprep.subr.mxu0 0.0
        %3116 = vmatpush1.msra.mxu0 %v3010
        %3117 = vmatprep.subr.mxu0 0.0
        %3118 = vmatpush1.msra.mxu0 %v3011
        %3119 = vmatprep.subr.mxu0 0.0
        %3120 = vmatpush1.msra.mxu0 %v3012
        %3121 = vmatprep.subr.mxu0 0.0
        %3122 = vmatpush1.msra.mxu0 %v3013
        %3123 = vmatprep.subr.mxu0 0.0
        %3124 = vmatpush1.msra.mxu0 %v3014
        %3125 = vmatprep.subr.mxu0 0.0
        %3126 = vmatpush1.msra.mxu0 %v3015
        %3127 = vmatprep.subr.mxu0 0.0
        %3128 = vmatpush1.msra.mxu0 %v3016
        %3129 = vmatprep.subr.mxu0 0.0
        %3130 = vmatpush1.msra.mxu0 %v3017
        %3131 = vmatprep.subr.mxu0 0.0
        %3132 = vmatpush1.msra.mxu0 %v3018
        %3133 = vmatprep.subr.mxu0 0.0
        %3134 = vmatpush1.msra.mxu0 %v3019
        %3135 = vmatprep.subr.mxu0 0.0
        %3136 = vmatpush1.msra.mxu0 %v3020
        %3137 = vmatprep.subr.mxu0 0.0
        %3138 = vmatpush1.msra.mxu0 %v3021
        %3139 = vmatprep.subr.mxu0 0.0
        %3140 = vmatpush1.msra.mxu0 %v3022
        %3141 = vmatprep.subr.mxu0 0.0
        %3142 = vmatpush1.msra.mxu0 %v3023
        %3143 = vmatprep.subr.mxu0 0.0
        %3144 = vmatpush1.msra.mxu0 0.0
        %3145 = vmatprep.subr.mxu0 0.0
        %3146 = vmatpush1.msra.mxu0 0.0
        %3147 = vmatprep.subr.mxu0 0.0
        %3148 = vmatpush1.msra.mxu0 0.0
        %3149 = vmatprep.subr.mxu0 0.0
        %3150 = vmatpush1.msra.mxu0 0.0
        %3151 = vmatprep.subr.mxu0 0.0
        %3152 = vmatpush1.msra.mxu0 0.0
        %3153 = vmatprep.subr.mxu0 0.0
        %3154 = vmatpush1.msra.mxu0 0.0
        %3155 = vmatprep.subr.mxu0 0.0
        %3156 = vmatpush1.msra.mxu0 0.0
        %3157 = vmatprep.subr.mxu0 0.0
        %3158 = vmatpush1.msra.mxu0 0.0
        %3159 = vmatprep.subr.mxu0 0.0
        %3160 = vmatpush1.msra.mxu0 0.0
        %3161 = vmatprep.subr.mxu0 0.0
        %3162 = vmatpush1.msra.mxu0 0.0
        %3163 = vmatprep.subr.mxu0 0.0
        %3164 = vmatpush1.msra.mxu0 0.0
        %3165 = vmatprep.subr.mxu0 0.0
        %3166 = vmatpush1.msra.mxu0 0.0
        %3167 = vmatprep.subr.mxu0 0.0
        %3168 = vmatpush1.msra.mxu0 0.0
        %3169 = vmatprep.subr.mxu0 0.0
        %3170 = vmatpush1.msra.mxu0 0.0
        %3171 = vmatprep.subr.mxu0 0.0
        %3172 = vmatpush1.msra.mxu0 0.0
        %3173 = vmatprep.subr.mxu0 0.0
        %3174 = vmatpush1.msra.mxu0 0.0
        %3175 = vmatprep.mubr.f32.mxu0 0.0
        %3176 = vmatmul.mubr.f32.gmra.mrb[0].mxu0 %v1839
        %v3177 = vpop.f32.mrb[0].mxu0
        %v3178 = vadd.f32 %v3108, %v3177
        %v3179 = vpop.f32.mrb[0].mxu0
        %3180 = vdwg.mxu0
        %v3182 = vsel %vm2016, %v3005, 0
        %v3185 = vsel %vm2016, %v3006, 0
        %3187 = vmatprep.subr.mxu0 0.0
        %3188 = vmatpush1.msra.mxu0 %v3178
        %3189 = vmatprep.subr.mxu0 0.0
        %3190 = vmatpush1.msra.mxu0 0.0
        %3191 = vmatprep.subr.mxu0 0.0
        %3192 = vmatpush1.msra.mxu0 0.0
        %3193 = vmatprep.subr.mxu0 0.0
        %3194 = vmatpush1.msra.mxu0 0.0
        %3195 = vmatprep.subr.mxu0 0.0
        %3196 = vmatpush1.msra.mxu0 0.0
        %3197 = vmatprep.subr.mxu0 0.0
        %3198 = vmatpush1.msra.mxu0 0.0
        %3199 = vmatprep.subr.mxu0 0.0
        %3200 = vmatpush1.msra.mxu0 0.0
        %3201 = vmatprep.subr.mxu0 0.0
        %3202 = vmatpush1.msra.mxu0 0.0
        %3203 = vmatprep.subr.mxu0 0.0
        %3204 = vmatpush1.msra.mxu0 0.0
        %3205 = vmatprep.subr.mxu0 0.0
        %3206 = vmatpush1.msra.mxu0 0.0
        %3207 = vmatprep.subr.mxu0 0.0
        %3208 = vmatpush1.msra.mxu0 0.0
        %3209 = vmatprep.subr.mxu0 0.0
        %3210 = vmatpush1.msra.mxu0 0.0
        %3211 = vmatprep.subr.mxu0 0.0
        %3212 = vmatpush1.msra.mxu0 0.0
        %3213 = vmatprep.subr.mxu0 0.0
        %3214 = vmatpush1.msra.mxu0 0.0
        %3215 = vmatprep.subr.mxu0 0.0
        %3216 = vmatpush1.msra.mxu0 0.0
        %3217 = vmatprep.subr.mxu0 0.0
        %3218 = vmatpush1.msra.mxu0 0.0
        %3219 = vmatprep.subr.mxu0 0.0
        %3220 = vmatpush1.msra.mxu0 0.0
        %3221 = vmatprep.subr.mxu0 0.0
        %3222 = vmatpush1.msra.mxu0 0.0
        %3223 = vmatprep.subr.mxu0 0.0
        %3224 = vmatpush1.msra.mxu0 0.0
        %3225 = vmatprep.subr.mxu0 0.0
        %3226 = vmatpush1.msra.mxu0 0.0
        %3227 = vmatprep.subr.mxu0 0.0
        %3228 = vmatpush1.msra.mxu0 0.0
        %3229 = vmatprep.subr.mxu0 0.0
        %3230 = vmatpush1.msra.mxu0 0.0
        %3231 = vmatprep.subr.mxu0 0.0
        %3232 = vmatpush1.msra.mxu0 0.0
        %3233 = vmatprep.subr.mxu0 0.0
        %3234 = vmatpush1.msra.mxu0 0.0
        %3235 = vmatprep.subr.mxu0 0.0
        %3236 = vmatpush1.msra.mxu0 0.0
        %3237 = vmatprep.subr.mxu0 0.0
        %3238 = vmatpush1.msra.mxu0 0.0
        %3239 = vmatprep.subr.mxu0 0.0
        %3240 = vmatpush1.msra.mxu0 0.0
        %3241 = vmatprep.subr.mxu0 0.0
        %3242 = vmatpush1.msra.mxu0 0.0
        %3243 = vmatprep.subr.mxu0 0.0
        %3244 = vmatpush1.msra.mxu0 0.0
        %3245 = vmatprep.subr.mxu0 0.0
        %3246 = vmatpush1.msra.mxu0 0.0
        %3247 = vmatprep.subr.mxu0 0.0
        %3248 = vmatpush1.msra.mxu0 0.0
        %3249 = vmatprep.subr.mxu0 0.0
        %3250 = vmatpush1.msra.mxu0 0.0
        %3251 = vmatprep.mubr.f32.mxu0 0.0
        %3252 = vmatmul.mubr.f32.gmra.mrb[0].mxu0 %v3182
        %v3253 = vpop.f32.mrb[0].mxu0
        %v3254 = vadd.f32 0.0, %v3253
        %v3255 = vpop.f32.mrb[0].mxu0
        %3256 = vmatprep.mubr.f32.mxu0 0.0
        %3257 = vmatmul.mubr.f32.gmra.mrb[0].mxu0 %v3185
        %v3258 = vpop.f32.mrb[0].mxu0
        %v3259 = vadd.f32 0.0, %v3258
        %v3260 = vpop.f32.mrb[0].mxu0
        %3261 = vdwg.mxu0
        %v3263 = vsel %vm2016, %v2829, 0
        %v3266 = vsel %vm2016, %v2830, 0
        %3268 = vmatprep.subr.mxu0 0.0
        %3269 = vmatpush1.msra.mxu0 %v3001
        %3270 = vmatprep.subr.mxu0 0.0
        %3271 = vmatpush1.msra.mxu0 0.0
        %3272 = vmatprep.subr.mxu0 0.0
        %3273 = vmatpush1.msra.mxu0 0.0
        %3274 = vmatprep.subr.mxu0 0.0
        %3275 = vmatpush1.msra.mxu0 0.0
        %3276 = vmatprep.subr.mxu0 0.0
        %3277 = vmatpush1.msra.mxu0 0.0
        %3278 = vmatprep.subr.mxu0 0.0
        %3279 = vmatpush1.msra.mxu0 0.0
        %3280 = vmatprep.subr.mxu0 0.0
        %3281 = vmatpush1.msra.mxu0 0.0
        %3282 = vmatprep.subr.mxu0 0.0
        %3283 = vmatpush1.msra.mxu0 0.0
        %3284 = vmatprep.subr.mxu0 0.0
        %3285 = vmatpush1.msra.mxu0 0.0
        %3286 = vmatprep.subr.mxu0 0.0
        %3287 = vmatpush1.msra.mxu0 0.0
        %3288 = vmatprep.subr.mxu0 0.0
        %3289 = vmatpush1.msra.mxu0 0.0
        %3290 = vmatprep.subr.mxu0 0.0
        %3291 = vmatpush1.msra.mxu0 0.0
        %3292 = vmatprep.subr.mxu0 0.0
        %3293 = vmatpush1.msra.mxu0 0.0
        %3294 = vmatprep.subr.mxu0 0.0
        %3295 = vmatpush1.msra.mxu0 0.0
        %3296 = vmatprep.subr.mxu0 0.0
        %3297 = vmatpush1.msra.mxu0 0.0
        %3298 = vmatprep.subr.mxu0 0.0
        %3299 = vmatpush1.msra.mxu0 0.0
        %3300 = vmatprep.subr.mxu0 0.0
        %3301 = vmatpush1.msra.mxu0 0.0
        %3302 = vmatprep.subr.mxu0 0.0
        %3303 = vmatpush1.msra.mxu0 0.0
        %3304 = vmatprep.subr.mxu0 0.0
        %3305 = vmatpush1.msra.mxu0 0.0
        %3306 = vmatprep.subr.mxu0 0.0
        %3307 = vmatpush1.msra.mxu0 0.0
        %3308 = vmatprep.subr.mxu0 0.0
        %3309 = vmatpush1.msra.mxu0 0.0
        %3310 = vmatprep.subr.mxu0 0.0
        %3311 = vmatpush1.msra.mxu0 0.0
        %3312 = vmatprep.subr.mxu0 0.0
        %3313 = vmatpush1.msra.mxu0 0.0
        %3314 = vmatprep.subr.mxu0 0.0
        %3315 = vmatpush1.msra.mxu0 0.0
        %3316 = vmatprep.subr.mxu0 0.0
        %3317 = vmatpush1.msra.mxu0 0.0
        %3318 = vmatprep.subr.mxu0 0.0
        %3319 = vmatpush1.msra.mxu0 0.0
        %3320 = vmatprep.subr.mxu0 0.0
        %3321 = vmatpush1.msra.mxu0 0.0
        %3322 = vmatprep.subr.mxu0 0.0
        %3323 = vmatpush1.msra.mxu0 0.0
        %3324 = vmatprep.subr.mxu0 0.0
        %3325 = vmatpush1.msra.mxu0 0.0
        %3326 = vmatprep.subr.mxu0 0.0
        %3327 = vmatpush1.msra.mxu0 0.0
        %3328 = vmatprep.subr.mxu0 0.0
        %3329 = vmatpush1.msra.mxu0 0.0
        %3330 = vmatprep.subr.mxu0 0.0
        %3331 = vmatpush1.msra.mxu0 0.0
        %3332 = vmatprep.mubr.f32.mxu0 0.0
        %3333 = vmatmul.mubr.f32.gmra.mrb[0].mxu0 %v3263
        %v3334 = vpop.f32.mrb[0].mxu0
        %v3335 = vadd.f32 %v3254, %v3334
        %v3336 = vpop.f32.mrb[0].mxu0
        %3337 = vmatprep.mubr.f32.mxu0 0.0
        %3338 = vmatmul.mubr.f32.gmra.mrb[0].mxu0 %v3266
        %v3339 = vpop.f32.mrb[0].mxu0
        %v3340 = vadd.f32 %v3259, %v3339
        %v3341 = vpop.f32.mrb[0].mxu0
        %3342 = vdwg.mxu0
        %s3343 = scalar_lea.vmem %s13, 32
        %v3344 = vld [vmem:[%s3343] sm:$0xff]
        %v3345 = vld [vmem:[%s3343 + $0x8] sm:$0xff]
        %s3346 = scalar_lea.vmem [#allocation10], 256
        %v3347 = vld [vmem:[%s3346] sm:$0xff]
        %v3348 = vld [vmem:[%s3346 + $0x8] sm:$0xff]
        %v3349 = vld [vmem:[%s3346 + $0x10] sm:$0xff]
        %v3350 = vld [vmem:[%s3346 + $0x18] sm:$0xff]
        %v3351 = vld [vmem:[%s3346 + $0x20] sm:$0xff]
        %v3352 = vld [vmem:[%s3346 + $0x28] sm:$0xff]
        %v3353 = vld [vmem:[%s3346 + $0x30] sm:$0xff]
        %v3354 = vld [vmem:[%s3346 + $0x38] sm:$0xff]
        %v3355 = vld [vmem:[%s3346 + $0x40] sm:$0xff]
        %v3356 = vld [vmem:[%s3346 + $0x48] sm:$0xff]
        %v3357 = vld [vmem:[%s3346 + $0x50] sm:$0xff]
        %v3358 = vld [vmem:[%s3346 + $0x58] sm:$0xff]
        %v3359 = vld [vmem:[%s3346 + $0x60] sm:$0xff]
        %v3360 = vld [vmem:[%s3346 + $0x68] sm:$0xff]
        %v3361 = vld [vmem:[%s3346 + $0x70] sm:$0xff]
        %v3362 = vld [vmem:[%s3346 + $0x78] sm:$0xff]
        %s3363 = scalar_lea.vmem [#allocation10], 640
        %v3364 = vld [vmem:[%s3363] sm:$0xff]
        %v3365 = vld [vmem:[%s3363 + $0x8] sm:$0xff]
        %v3366 = vld [vmem:[%s3363 + $0x10] sm:$0xff]
        %v3367 = vld [vmem:[%s3363 + $0x18] sm:$0xff]
        %v3368 = vld [vmem:[%s3363 + $0x20] sm:$0xff]
        %v3369 = vld [vmem:[%s3363 + $0x28] sm:$0xff]
        %v3370 = vld [vmem:[%s3363 + $0x30] sm:$0xff]
        %v3371 = vld [vmem:[%s3363 + $0x38] sm:$0xff]
        %v3372 = vld [vmem:[%s3363 + $0x40] sm:$0xff]
        %v3373 = vld [vmem:[%s3363 + $0x48] sm:$0xff]
        %v3374 = vld [vmem:[%s3363 + $0x50] sm:$0xff]
        %v3375 = vld [vmem:[%s3363 + $0x58] sm:$0xff]
        %v3376 = vld [vmem:[%s3363 + $0x60] sm:$0xff]
        %v3377 = vld [vmem:[%s3363 + $0x68] sm:$0xff]
        %v3378 = vld [vmem:[%s3363 + $0x70] sm:$0xff]
        %v3379 = vld [vmem:[%s3363 + $0x78] sm:$0xff]
        %3380 = vmatprep.subr.mxu0 0.0
        %3381 = vmatpush1.msra.mxu0 %v3364
        %3382 = vmatprep.subr.mxu0 0.0
        %3383 = vmatpush1.msra.mxu0 %v3365
        %3384 = vmatprep.subr.mxu0 0.0
        %3385 = vmatpush1.msra.mxu0 %v3366
        %3386 = vmatprep.subr.mxu0 0.0
        %3387 = vmatpush1.msra.mxu0 %v3367
        %3388 = vmatprep.subr.mxu0 0.0
        %3389 = vmatpush1.msra.mxu0 %v3368
        %3390 = vmatprep.subr.mxu0 0.0
        %3391 = vmatpush1.msra.mxu0 %v3369
        %3392 = vmatprep.subr.mxu0 0.0
        %3393 = vmatpush1.msra.mxu0 %v3370
        %3394 = vmatprep.subr.mxu0 0.0
        %3395 = vmatpush1.msra.mxu0 %v3371
        %3396 = vmatprep.subr.mxu0 0.0
        %3397 = vmatpush1.msra.mxu0 %v3372
        %3398 = vmatprep.subr.mxu0 0.0
        %3399 = vmatpush1.msra.mxu0 %v3373
        %3400 = vmatprep.subr.mxu0 0.0
        %3401 = vmatpush1.msra.mxu0 %v3374
        %3402 = vmatprep.subr.mxu0 0.0
        %3403 = vmatpush1.msra.mxu0 %v3375
        %3404 = vmatprep.subr.mxu0 0.0
        %3405 = vmatpush1.msra.mxu0 %v3376
        %3406 = vmatprep.subr.mxu0 0.0
        %3407 = vmatpush1.msra.mxu0 %v3377
        %3408 = vmatprep.subr.mxu0 0.0
        %3409 = vmatpush1.msra.mxu0 %v3378
        %3410 = vmatprep.subr.mxu0 0.0
        %3411 = vmatpush1.msra.mxu0 %v3379
        %3412 = vmatprep.subr.mxu0 0.0
        %3413 = vmatpush1.msra.mxu0 0.0
        %3414 = vmatprep.subr.mxu0 0.0
        %3415 = vmatpush1.msra.mxu0 0.0
        %3416 = vmatprep.subr.mxu0 0.0
        %3417 = vmatpush1.msra.mxu0 0.0
        %3418 = vmatprep.subr.mxu0 0.0
        %3419 = vmatpush1.msra.mxu0 0.0
        %3420 = vmatprep.subr.mxu0 0.0
        %3421 = vmatpush1.msra.mxu0 0.0
        %3422 = vmatprep.subr.mxu0 0.0
        %3423 = vmatpush1.msra.mxu0 0.0
        %3424 = vmatprep.subr.mxu0 0.0
        %3425 = vmatpush1.msra.mxu0 0.0
        %3426 = vmatprep.subr.mxu0 0.0
        %3427 = vmatpush1.msra.mxu0 0.0
        %3428 = vmatprep.subr.mxu0 0.0
        %3429 = vmatpush1.msra.mxu0 0.0
        %3430 = vmatprep.subr.mxu0 0.0
        %3431 = vmatpush1.msra.mxu0 0.0
        %3432 = vmatprep.subr.mxu0 0.0
        %3433 = vmatpush1.msra.mxu0 0.0
        %3434 = vmatprep.subr.mxu0 0.0
        %3435 = vmatpush1.msra.mxu0 0.0
        %3436 = vmatprep.subr.mxu0 0.0
        %3437 = vmatpush1.msra.mxu0 0.0
        %3438 = vmatprep.subr.mxu0 0.0
        %3439 = vmatpush1.msra.mxu0 0.0
        %3440 = vmatprep.subr.mxu0 0.0
        %3441 = vmatpush1.msra.mxu0 0.0
        %3442 = vmatprep.subr.mxu0 0.0
        %3443 = vmatpush1.msra.mxu0 0.0
        %3444 = vmatprep.mubr.f32.mxu0 0.0
        %3445 = vmatmul.mubr.f32.gmra.mrb[0].mxu0 %v2828
        %v3446 = vpop.f32.mrb[0].mxu0
        %v3447 = vadd.f32 0.0, %v3446
        %v3448 = vpop.f32.mrb[0].mxu0
        %3449 = vdwg.mxu0
        %3450 = vmatprep.subr.mxu0 0.0
        %3451 = vmatpush1.msra.mxu0 %v3347
        %3452 = vmatprep.subr.mxu0 0.0
        %3453 = vmatpush1.msra.mxu0 %v3348
        %3454 = vmatprep.subr.mxu0 0.0
        %3455 = vmatpush1.msra.mxu0 %v3349
        %3456 = vmatprep.subr.mxu0 0.0
        %3457 = vmatpush1.msra.mxu0 %v3350
        %3458 = vmatprep.subr.mxu0 0.0
        %3459 = vmatpush1.msra.mxu0 %v3351
        %3460 = vmatprep.subr.mxu0 0.0
        %3461 = vmatpush1.msra.mxu0 %v3352
        %3462 = vmatprep.subr.mxu0 0.0
        %3463 = vmatpush1.msra.mxu0 %v3353
        %3464 = vmatprep.subr.mxu0 0.0
        %3465 = vmatpush1.msra.mxu0 %v3354
        %3466 = vmatprep.subr.mxu0 0.0
        %3467 = vmatpush1.msra.mxu0 %v3355
        %3468 = vmatprep.subr.mxu0 0.0
        %3469 = vmatpush1.msra.mxu0 %v3356
        %3470 = vmatprep.subr.mxu0 0.0
        %3471 = vmatpush1.msra.mxu0 %v3357
        %3472 = vmatprep.subr.mxu0 0.0
        %3473 = vmatpush1.msra.mxu0 %v3358
        %3474 = vmatprep.subr.mxu0 0.0
        %3475 = vmatpush1.msra.mxu0 %v3359
        %3476 = vmatprep.subr.mxu0 0.0
        %3477 = vmatpush1.msra.mxu0 %v3360
        %3478 = vmatprep.subr.mxu0 0.0
        %3479 = vmatpush1.msra.mxu0 %v3361
        %3480 = vmatprep.subr.mxu0 0.0
        %3481 = vmatpush1.msra.mxu0 %v3362
        %3482 = vmatprep.subr.mxu0 0.0
        %3483 = vmatpush1.msra.mxu0 0.0
        %3484 = vmatprep.subr.mxu0 0.0
        %3485 = vmatpush1.msra.mxu0 0.0
        %3486 = vmatprep.subr.mxu0 0.0
        %3487 = vmatpush1.msra.mxu0 0.0
        %3488 = vmatprep.subr.mxu0 0.0
        %3489 = vmatpush1.msra.mxu0 0.0
        %3490 = vmatprep.subr.mxu0 0.0
        %3491 = vmatpush1.msra.mxu0 0.0
        %3492 = vmatprep.subr.mxu0 0.0
        %3493 = vmatpush1.msra.mxu0 0.0
        %3494 = vmatprep.subr.mxu0 0.0
        %3495 = vmatpush1.msra.mxu0 0.0
        %3496 = vmatprep.subr.mxu0 0.0
        %3497 = vmatpush1.msra.mxu0 0.0
        %3498 = vmatprep.subr.mxu0 0.0
        %3499 = vmatpush1.msra.mxu0 0.0
        %3500 = vmatprep.subr.mxu0 0.0
        %3501 = vmatpush1.msra.mxu0 0.0
        %3502 = vmatprep.subr.mxu0 0.0
        %3503 = vmatpush1.msra.mxu0 0.0
        %3504 = vmatprep.subr.mxu0 0.0
        %3505 = vmatpush1.msra.mxu0 0.0
        %3506 = vmatprep.subr.mxu0 0.0
        %3507 = vmatpush1.msra.mxu0 0.0
        %3508 = vmatprep.subr.mxu0 0.0
        %3509 = vmatpush1.msra.mxu0 0.0
        %3510 = vmatprep.subr.mxu0 0.0
        %3511 = vmatpush1.msra.mxu0 0.0
        %3512 = vmatprep.subr.mxu0 0.0
        %3513 = vmatpush1.msra.mxu0 0.0
        %3514 = vmatprep.mubr.f32.mxu0 0.0
        %3515 = vmatmul.mubr.f32.gmra.mrb[0].mxu0 %v1839
        %v3516 = vpop.f32.mrb[0].mxu0
        %v3517 = vadd.f32 %v3447, %v3516
        %v3518 = vpop.f32.mrb[0].mxu0
        %3519 = vdwg.mxu0
        %v3521 = vsel %vm2016, %v3344, 0
        %v3524 = vsel %vm2016, %v3345, 0
        %3526 = vmatprep.subr.mxu0 0.0
        %3527 = vmatpush1.msra.mxu0 %v3517
        %3528 = vmatprep.subr.mxu0 0.0
        %3529 = vmatpush1.msra.mxu0 0.0
        %3530 = vmatprep.subr.mxu0 0.0
        %3531 = vmatpush1.msra.mxu0 0.0
        %3532 = vmatprep.subr.mxu0 0.0
        %3533 = vmatpush1.msra.mxu0 0.0
        %3534 = vmatprep.subr.mxu0 0.0
        %3535 = vmatpush1.msra.mxu0 0.0
        %3536 = vmatprep.subr.mxu0 0.0
        %3537 = vmatpush1.msra.mxu0 0.0
        %3538 = vmatprep.subr.mxu0 0.0
        %3539 = vmatpush1.msra.mxu0 0.0
        %3540 = vmatprep.subr.mxu0 0.0
        %3541 = vmatpush1.msra.mxu0 0.0
        %3542 = vmatprep.subr.mxu0 0.0
        %3543 = vmatpush1.msra.mxu0 0.0
        %3544 = vmatprep.subr.mxu0 0.0
        %3545 = vmatpush1.msra.mxu0 0.0
        %3546 = vmatprep.subr.mxu0 0.0
        %3547 = vmatpush1.msra.mxu0 0.0
        %3548 = vmatprep.subr.mxu0 0.0
        %3549 = vmatpush1.msra.mxu0 0.0
        %3550 = vmatprep.subr.mxu0 0.0
        %3551 = vmatpush1.msra.mxu0 0.0
        %3552 = vmatprep.subr.mxu0 0.0
        %3553 = vmatpush1.msra.mxu0 0.0
        %3554 = vmatprep.subr.mxu0 0.0
        %3555 = vmatpush1.msra.mxu0 0.0
        %3556 = vmatprep.subr.mxu0 0.0
        %3557 = vmatpush1.msra.mxu0 0.0
        %3558 = vmatprep.subr.mxu0 0.0
        %3559 = vmatpush1.msra.mxu0 0.0
        %3560 = vmatprep.subr.mxu0 0.0
        %3561 = vmatpush1.msra.mxu0 0.0
        %3562 = vmatprep.subr.mxu0 0.0
        %3563 = vmatpush1.msra.mxu0 0.0
        %3564 = vmatprep.subr.mxu0 0.0
        %3565 = vmatpush1.msra.mxu0 0.0
        %3566 = vmatprep.subr.mxu0 0.0
        %3567 = vmatpush1.msra.mxu0 0.0
        %3568 = vmatprep.subr.mxu0 0.0
        %3569 = vmatpush1.msra.mxu0 0.0
        %3570 = vmatprep.subr.mxu0 0.0
        %3571 = vmatpush1.msra.mxu0 0.0
        %3572 = vmatprep.subr.mxu0 0.0
        %3573 = vmatpush1.msra.mxu0 0.0
        %3574 = vmatprep.subr.mxu0 0.0
        %3575 = vmatpush1.msra.mxu0 0.0
        %3576 = vmatprep.subr.mxu0 0.0
        %3577 = vmatpush1.msra.mxu0 0.0
        %3578 = vmatprep.subr.mxu0 0.0
        %3579 = vmatpush1.msra.mxu0 0.0
        %3580 = vmatprep.subr.mxu0 0.0
        %3581 = vmatpush1.msra.mxu0 0.0
        %3582 = vmatprep.subr.mxu0 0.0
        %3583 = vmatpush1.msra.mxu0 0.0
        %3584 = vmatprep.subr.mxu0 0.0
        %3585 = vmatpush1.msra.mxu0 0.0
        %3586 = vmatprep.subr.mxu0 0.0
        %3587 = vmatpush1.msra.mxu0 0.0
        %3588 = vmatprep.subr.mxu0 0.0
        %3589 = vmatpush1.msra.mxu0 0.0
        %3590 = vmatprep.mubr.f32.mxu0 0.0
        %3591 = vmatmul.mubr.f32.gmra.mrb[0].mxu0 %v3521
        %v3592 = vpop.f32.mrb[0].mxu0
        %v3593 = vadd.f32 0.0, %v3592
        %v3594 = vpop.f32.mrb[0].mxu0
        %3595 = vmatprep.mubr.f32.mxu0 0.0
        %3596 = vmatmul.mubr.f32.gmra.mrb[0].mxu0 %v3524
        %v3597 = vpop.f32.mrb[0].mxu0
        %v3598 = vadd.f32 0.0, %v3597
        %v3599 = vpop.f32.mrb[0].mxu0
        %3600 = vdwg.mxu0
        %v3601 = vadd.f32 %v3335, %v3593
        %v3602 = vadd.f32 %v3340, %v3598
        %v3603 = vld [vmem:[%s15] sm:$0x1]
        %v3605 = vlaneseq
        %v3606 = vshrl.u32 %v3605, 7
        %v3607 = vsub.s32 0, %v3606
        %v3608 = vrot.slane %v3603, %v3607
        %v3610 = vadd.f32 %v3601, %v3608
        %v3611 = vadd.f32 %v3602, %v3608
        %v3612 = vmax.f32 %v3610, 0.0
        %v3613 = vmax.f32 %v3611, 0.0
        %v3614 = vld [vmem:[%s16] sm:$0xff]
        %v3615 = vld [vmem:[%s16 + $0x8] sm:$0xff]
        %v3616 = vld [vmem:[%s16 + $0x10] sm:$0xff]
        %v3617 = vld [vmem:[%s16 + $0x18] sm:$0xff]
        %v3618 = vld [vmem:[#allocation12] sm:$0xff]
        %v3619 = vld [vmem:[#allocation12 + $0x8] sm:$0xff]
        %v3620 = vld [vmem:[#allocation12 + $0x10] sm:$0xff]
        %v3621 = vld [vmem:[#allocation12 + $0x18] sm:$0xff]
        %v3622 = vld [vmem:[#allocation12 + $0x20] sm:$0xff]
        %v3623 = vld [vmem:[#allocation12 + $0x28] sm:$0xff]
        %v3624 = vld [vmem:[#allocation12 + $0x30] sm:$0xff]
        %v3625 = vld [vmem:[#allocation12 + $0x38] sm:$0xff]
        %v3626 = vld [vmem:[#allocation12 + $0x40] sm:$0xff]
        %v3627 = vld [vmem:[#allocation12 + $0x48] sm:$0xff]
        %v3628 = vld [vmem:[#allocation12 + $0x50] sm:$0xff]
        %v3629 = vld [vmem:[#allocation12 + $0x58] sm:$0xff]
        %v3630 = vld [vmem:[#allocation12 + $0x60] sm:$0xff]
        %v3631 = vld [vmem:[#allocation12 + $0x68] sm:$0xff]
        %v3632 = vld [vmem:[#allocation12 + $0x70] sm:$0xff]
        %v3633 = vld [vmem:[#allocation12 + $0x78] sm:$0xff]
        %v3634 = vld [vmem:[#allocation12 + $0x80] sm:$0xff]
        %v3635 = vld [vmem:[#allocation12 + $0x88] sm:$0xff]
        %v3636 = vld [vmem:[#allocation12 + $0x90] sm:$0xff]
        %v3637 = vld [vmem:[#allocation12 + $0x98] sm:$0xff]
        %v3638 = vld [vmem:[#allocation12 + $0xa0] sm:$0xff]
        %v3639 = vld [vmem:[#allocation12 + $0xa8] sm:$0xff]
        %v3640 = vld [vmem:[#allocation12 + $0xb0] sm:$0xff]
        %v3641 = vld [vmem:[#allocation12 + $0xb8] sm:$0xff]
        %v3642 = vld [vmem:[#allocation12 + $0xc0] sm:$0xff]
        %v3643 = vld [vmem:[#allocation12 + $0xc8] sm:$0xff]
        %v3644 = vld [vmem:[#allocation12 + $0xd0] sm:$0xff]
        %v3645 = vld [vmem:[#allocation12 + $0xd8] sm:$0xff]
        %v3646 = vld [vmem:[#allocation12 + $0xe0] sm:$0xff]
        %v3647 = vld [vmem:[#allocation12 + $0xe8] sm:$0xff]
        %v3648 = vld [vmem:[#allocation12 + $0xf0] sm:$0xff]
        %v3649 = vld [vmem:[#allocation12 + $0xf8] sm:$0xff]
        %s3650 = scalar_lea.vmem [#allocation12], 768
        %v3651 = vld [vmem:[%s3650] sm:$0xff]
        %v3652 = vld [vmem:[%s3650 + $0x8] sm:$0xff]
        %v3653 = vld [vmem:[%s3650 + $0x10] sm:$0xff]
        %v3654 = vld [vmem:[%s3650 + $0x18] sm:$0xff]
        %v3655 = vld [vmem:[%s3650 + $0x20] sm:$0xff]
        %v3656 = vld [vmem:[%s3650 + $0x28] sm:$0xff]
        %v3657 = vld [vmem:[%s3650 + $0x30] sm:$0xff]
        %v3658 = vld [vmem:[%s3650 + $0x38] sm:$0xff]
        %v3659 = vld [vmem:[%s3650 + $0x40] sm:$0xff]
        %v3660 = vld [vmem:[%s3650 + $0x48] sm:$0xff]
        %v3661 = vld [vmem:[%s3650 + $0x50] sm:$0xff]
        %v3662 = vld [vmem:[%s3650 + $0x58] sm:$0xff]
        %v3663 = vld [vmem:[%s3650 + $0x60] sm:$0xff]
        %v3664 = vld [vmem:[%s3650 + $0x68] sm:$0xff]
        %v3665 = vld [vmem:[%s3650 + $0x70] sm:$0xff]
        %v3666 = vld [vmem:[%s3650 + $0x78] sm:$0xff]
        %v3667 = vld [vmem:[%s3650 + $0x80] sm:$0xff]
        %v3668 = vld [vmem:[%s3650 + $0x88] sm:$0xff]
        %v3669 = vld [vmem:[%s3650 + $0x90] sm:$0xff]
        %v3670 = vld [vmem:[%s3650 + $0x98] sm:$0xff]
        %v3671 = vld [vmem:[%s3650 + $0xa0] sm:$0xff]
        %v3672 = vld [vmem:[%s3650 + $0xa8] sm:$0xff]
        %v3673 = vld [vmem:[%s3650 + $0xb0] sm:$0xff]
        %v3674 = vld [vmem:[%s3650 + $0xb8] sm:$0xff]
        %v3675 = vld [vmem:[%s3650 + $0xc0] sm:$0xff]
        %v3676 = vld [vmem:[%s3650 + $0xc8] sm:$0xff]
        %v3677 = vld [vmem:[%s3650 + $0xd0] sm:$0xff]
        %v3678 = vld [vmem:[%s3650 + $0xd8] sm:$0xff]
        %v3679 = vld [vmem:[%s3650 + $0xe0] sm:$0xff]
        %v3680 = vld [vmem:[%s3650 + $0xe8] sm:$0xff]
        %v3681 = vld [vmem:[%s3650 + $0xf0] sm:$0xff]
        %v3682 = vld [vmem:[%s3650 + $0xf8] sm:$0xff]
        %3683 = vmatprep.subr.mxu0 %v3652
        %3684 = vmatpush1.msra.mxu0 %v3651
        %3685 = vmatprep.subr.mxu0 %v3654
        %3686 = vmatpush1.msra.mxu0 %v3653
        %3687 = vmatprep.subr.mxu0 %v3656
        %3688 = vmatpush1.msra.mxu0 %v3655
        %3689 = vmatprep.subr.mxu0 %v3658
        %3690 = vmatpush1.msra.mxu0 %v3657
        %3691 = vmatprep.subr.mxu0 %v3660
        %3692 = vmatpush1.msra.mxu0 %v3659
        %3693 = vmatprep.subr.mxu0 %v3662
        %3694 = vmatpush1.msra.mxu0 %v3661
        %3695 = vmatprep.subr.mxu0 %v3664
        %3696 = vmatpush1.msra.mxu0 %v3663
        %3697 = vmatprep.subr.mxu0 %v3666
        %3698 = vmatpush1.msra.mxu0 %v3665
        %3699 = vmatprep.subr.mxu0 %v3668
        %3700 = vmatpush1.msra.mxu0 %v3667
        %3701 = vmatprep.subr.mxu0 %v3670
        %3702 = vmatpush1.msra.mxu0 %v3669
        %3703 = vmatprep.subr.mxu0 %v3672
        %3704 = vmatpush1.msra.mxu0 %v3671
        %3705 = vmatprep.subr.mxu0 %v3674
        %3706 = vmatpush1.msra.mxu0 %v3673
        %3707 = vmatprep.subr.mxu0 %v3676
        %3708 = vmatpush1.msra.mxu0 %v3675
        %3709 = vmatprep.subr.mxu0 %v3678
        %3710 = vmatpush1.msra.mxu0 %v3677
        %3711 = vmatprep.subr.mxu0 %v3680
        %3712 = vmatpush1.msra.mxu0 %v3679
        %3713 = vmatprep.subr.mxu0 %v3682
        %3714 = vmatpush1.msra.mxu0 %v3681
        %3715 = vmatprep.subr.mxu0 0.0
        %3716 = vmatpush1.msra.mxu0 0.0
        %3717 = vmatprep.subr.mxu0 0.0
        %3718 = vmatpush1.msra.mxu0 0.0
        %3719 = vmatprep.subr.mxu0 0.0
        %3720 = vmatpush1.msra.mxu0 0.0
        %3721 = vmatprep.subr.mxu0 0.0
        %3722 = vmatpush1.msra.mxu0 0.0
        %3723 = vmatprep.subr.mxu0 0.0
        %3724 = vmatpush1.msra.mxu0 0.0
        %3725 = vmatprep.subr.mxu0 0.0
        %3726 = vmatpush1.msra.mxu0 0.0
        %3727 = vmatprep.subr.mxu0 0.0
        %3728 = vmatpush1.msra.mxu0 0.0
        %3729 = vmatprep.subr.mxu0 0.0
        %3730 = vmatpush1.msra.mxu0 0.0
        %3731 = vmatprep.subr.mxu0 0.0
        %3732 = vmatpush1.msra.mxu0 0.0
        %3733 = vmatprep.subr.mxu0 0.0
        %3734 = vmatpush1.msra.mxu0 0.0
        %3735 = vmatprep.subr.mxu0 0.0
        %3736 = vmatpush1.msra.mxu0 0.0
        %3737 = vmatprep.subr.mxu0 0.0
        %3738 = vmatpush1.msra.mxu0 0.0
        %3739 = vmatprep.subr.mxu0 0.0
        %3740 = vmatpush1.msra.mxu0 0.0
        %3741 = vmatprep.subr.mxu0 0.0
        %3742 = vmatpush1.msra.mxu0 0.0
        %3743 = vmatprep.subr.mxu0 0.0
        %3744 = vmatpush1.msra.mxu0 0.0
        %3745 = vmatprep.subr.mxu0 0.0
        %3746 = vmatpush1.msra.mxu0 0.0
        %3747 = vmatprep.mubr.f32.mxu0 0.0
        %3748 = vmatmul.mubr.f32.gmra.mrb[0].mxu0 %v3612
        %v3749 = vpop.f32.mrb[0].mxu0
        %v3750 = vadd.f32 0.0, %v3749
        %v3751 = vpop.f32.mrb[0].mxu0
        %v3752 = vadd.f32 0.0, %v3751
        %3753 = vmatprep.mubr.f32.mxu0 0.0
        %3754 = vmatmul.mubr.f32.gmra.mrb[0].mxu0 %v3613
        %v3755 = vpop.f32.mrb[0].mxu0
        %v3756 = vadd.f32 0.0, %v3755
        %v3757 = vpop.f32.mrb[0].mxu0
        %v3758 = vadd.f32 0.0, %v3757
        %3759 = vdwg.mxu0
        %3760 = vmatprep.subr.mxu0 %v3619
        %3761 = vmatpush1.msra.mxu0 %v3618
        %3762 = vmatprep.subr.mxu0 %v3621
        %3763 = vmatpush1.msra.mxu0 %v3620
        %3764 = vmatprep.subr.mxu0 %v3623
        %3765 = vmatpush1.msra.mxu0 %v3622
        %3766 = vmatprep.subr.mxu0 %v3625
        %3767 = vmatpush1.msra.mxu0 %v3624
        %3768 = vmatprep.subr.mxu0 %v3627
        %3769 = vmatpush1.msra.mxu0 %v3626
        %3770 = vmatprep.subr.mxu0 %v3629
        %3771 = vmatpush1.msra.mxu0 %v3628
        %3772 = vmatprep.subr.mxu0 %v3631
        %3773 = vmatpush1.msra.mxu0 %v3630
        %3774 = vmatprep.subr.mxu0 %v3633
        %3775 = vmatpush1.msra.mxu0 %v3632
        %3776 = vmatprep.subr.mxu0 %v3635
        %3777 = vmatpush1.msra.mxu0 %v3634
        %3778 = vmatprep.subr.mxu0 %v3637
        %3779 = vmatpush1.msra.mxu0 %v3636
        %3780 = vmatprep.subr.mxu0 %v3639
        %3781 = vmatpush1.msra.mxu0 %v3638
        %3782 = vmatprep.subr.mxu0 %v3641
        %3783 = vmatpush1.msra.mxu0 %v3640
        %3784 = vmatprep.subr.mxu0 %v3643
        %3785 = vmatpush1.msra.mxu0 %v3642
        %3786 = vmatprep.subr.mxu0 %v3645
        %3787 = vmatpush1.msra.mxu0 %v3644
        %3788 = vmatprep.subr.mxu0 %v3647
        %3789 = vmatpush1.msra.mxu0 %v3646
        %3790 = vmatprep.subr.mxu0 %v3649
        %3791 = vmatpush1.msra.mxu0 %v3648
        %3792 = vmatprep.subr.mxu0 0.0
        %3793 = vmatpush1.msra.mxu0 0.0
        %3794 = vmatprep.subr.mxu0 0.0
        %3795 = vmatpush1.msra.mxu0 0.0
        %3796 = vmatprep.subr.mxu0 0.0
        %3797 = vmatpush1.msra.mxu0 0.0
        %3798 = vmatprep.subr.mxu0 0.0
        %3799 = vmatpush1.msra.mxu0 0.0
        %3800 = vmatprep.subr.mxu0 0.0
        %3801 = vmatpush1.msra.mxu0 0.0
        %3802 = vmatprep.subr.mxu0 0.0
        %3803 = vmatpush1.msra.mxu0 0.0
        %3804 = vmatprep.subr.mxu0 0.0
        %3805 = vmatpush1.msra.mxu0 0.0
        %3806 = vmatprep.subr.mxu0 0.0
        %3807 = vmatpush1.msra.mxu0 0.0
        %3808 = vmatprep.subr.mxu0 0.0
        %3809 = vmatpush1.msra.mxu0 0.0
        %3810 = vmatprep.subr.mxu0 0.0
        %3811 = vmatpush1.msra.mxu0 0.0
        %3812 = vmatprep.subr.mxu0 0.0
        %3813 = vmatpush1.msra.mxu0 0.0
        %3814 = vmatprep.subr.mxu0 0.0
        %3815 = vmatpush1.msra.mxu0 0.0
        %3816 = vmatprep.subr.mxu0 0.0
        %3817 = vmatpush1.msra.mxu0 0.0
        %3818 = vmatprep.subr.mxu0 0.0
        %3819 = vmatpush1.msra.mxu0 0.0
        %3820 = vmatprep.subr.mxu0 0.0
        %3821 = vmatpush1.msra.mxu0 0.0
        %3822 = vmatprep.subr.mxu0 0.0
        %3823 = vmatpush1.msra.mxu0 0.0
        %3824 = vmatprep.mubr.f32.mxu0 0.0
        %3825 = vmatmul.mubr.f32.gmra.mrb[0].mxu0 %v1343
        %v3826 = vpop.f32.mrb[0].mxu0
        %v3827 = vadd.f32 %v3750, %v3826
        %v3828 = vpop.f32.mrb[0].mxu0
        %v3829 = vadd.f32 %v3752, %v3828
        %3830 = vmatprep.mubr.f32.mxu0 0.0
        %3831 = vmatmul.mubr.f32.gmra.mrb[0].mxu0 %v1344
        %v3832 = vpop.f32.mrb[0].mxu0
        %v3833 = vadd.f32 %v3756, %v3832
        %v3834 = vpop.f32.mrb[0].mxu0
        %v3835 = vadd.f32 %v3758, %v3834
        %3836 = vdwg.mxu0
        %s3837 = scalar_lea.vmem %s16, 32
        %v3838 = vld [vmem:[%s3837] sm:$0xff]
        %v3839 = vld [vmem:[%s3837 + $0x8] sm:$0xff]
        %v3840 = vld [vmem:[%s3837 + $0x10] sm:$0xff]
        %v3841 = vld [vmem:[%s3837 + $0x18] sm:$0xff]
        %s3842 = scalar_lea.vmem [#allocation12], 256
        %v3843 = vld [vmem:[%s3842] sm:$0xff]
        %v3844 = vld [vmem:[%s3842 + $0x8] sm:$0xff]
        %v3845 = vld [vmem:[%s3842 + $0x10] sm:$0xff]
        %v3846 = vld [vmem:[%s3842 + $0x18] sm:$0xff]
        %v3847 = vld [vmem:[%s3842 + $0x20] sm:$0xff]
        %v3848 = vld [vmem:[%s3842 + $0x28] sm:$0xff]
        %v3849 = vld [vmem:[%s3842 + $0x30] sm:$0xff]
        %v3850 = vld [vmem:[%s3842 + $0x38] sm:$0xff]
        %v3851 = vld [vmem:[%s3842 + $0x40] sm:$0xff]
        %v3852 = vld [vmem:[%s3842 + $0x48] sm:$0xff]
        %v3853 = vld [vmem:[%s3842 + $0x50] sm:$0xff]
        %v3854 = vld [vmem:[%s3842 + $0x58] sm:$0xff]
        %v3855 = vld [vmem:[%s3842 + $0x60] sm:$0xff]
        %v3856 = vld [vmem:[%s3842 + $0x68] sm:$0xff]
        %v3857 = vld [vmem:[%s3842 + $0x70] sm:$0xff]
        %v3858 = vld [vmem:[%s3842 + $0x78] sm:$0xff]
        %v3859 = vld [vmem:[%s3842 + $0x80] sm:$0xff]
        %v3860 = vld [vmem:[%s3842 + $0x88] sm:$0xff]
        %v3861 = vld [vmem:[%s3842 + $0x90] sm:$0xff]
        %v3862 = vld [vmem:[%s3842 + $0x98] sm:$0xff]
        %v3863 = vld [vmem:[%s3842 + $0xa0] sm:$0xff]
        %v3864 = vld [vmem:[%s3842 + $0xa8] sm:$0xff]
        %v3865 = vld [vmem:[%s3842 + $0xb0] sm:$0xff]
        %v3866 = vld [vmem:[%s3842 + $0xb8] sm:$0xff]
        %v3867 = vld [vmem:[%s3842 + $0xc0] sm:$0xff]
        %v3868 = vld [vmem:[%s3842 + $0xc8] sm:$0xff]
        %v3869 = vld [vmem:[%s3842 + $0xd0] sm:$0xff]
        %v3870 = vld [vmem:[%s3842 + $0xd8] sm:$0xff]
        %v3871 = vld [vmem:[%s3842 + $0xe0] sm:$0xff]
        %v3872 = vld [vmem:[%s3842 + $0xe8] sm:$0xff]
        %v3873 = vld [vmem:[%s3842 + $0xf0] sm:$0xff]
        %v3874 = vld [vmem:[%s3842 + $0xf8] sm:$0xff]
        %s3875 = scalar_lea.vmem [#allocation12], 1024
        %v3876 = vld [vmem:[%s3875] sm:$0xff]
        %v3877 = vld [vmem:[%s3875 + $0x8] sm:$0xff]
        %v3878 = vld [vmem:[%s3875 + $0x10] sm:$0xff]
        %v3879 = vld [vmem:[%s3875 + $0x18] sm:$0xff]
        %v3880 = vld [vmem:[%s3875 + $0x20] sm:$0xff]
        %v3881 = vld [vmem:[%s3875 + $0x28] sm:$0xff]
        %v3882 = vld [vmem:[%s3875 + $0x30] sm:$0xff]
        %v3883 = vld [vmem:[%s3875 + $0x38] sm:$0xff]
        %v3884 = vld [vmem:[%s3875 + $0x40] sm:$0xff]
        %v3885 = vld [vmem:[%s3875 + $0x48] sm:$0xff]
        %v3886 = vld [vmem:[%s3875 + $0x50] sm:$0xff]
        %v3887 = vld [vmem:[%s3875 + $0x58] sm:$0xff]
        %v3888 = vld [vmem:[%s3875 + $0x60] sm:$0xff]
        %v3889 = vld [vmem:[%s3875 + $0x68] sm:$0xff]
        %v3890 = vld [vmem:[%s3875 + $0x70] sm:$0xff]
        %v3891 = vld [vmem:[%s3875 + $0x78] sm:$0xff]
        %v3892 = vld [vmem:[%s3875 + $0x80] sm:$0xff]
        %v3893 = vld [vmem:[%s3875 + $0x88] sm:$0xff]
        %v3894 = vld [vmem:[%s3875 + $0x90] sm:$0xff]
        %v3895 = vld [vmem:[%s3875 + $0x98] sm:$0xff]
        %v3896 = vld [vmem:[%s3875 + $0xa0] sm:$0xff]
        %v3897 = vld [vmem:[%s3875 + $0xa8] sm:$0xff]
        %v3898 = vld [vmem:[%s3875 + $0xb0] sm:$0xff]
        %v3899 = vld [vmem:[%s3875 + $0xb8] sm:$0xff]
        %v3900 = vld [vmem:[%s3875 + $0xc0] sm:$0xff]
        %v3901 = vld [vmem:[%s3875 + $0xc8] sm:$0xff]
        %v3902 = vld [vmem:[%s3875 + $0xd0] sm:$0xff]
        %v3903 = vld [vmem:[%s3875 + $0xd8] sm:$0xff]
        %v3904 = vld [vmem:[%s3875 + $0xe0] sm:$0xff]
        %v3905 = vld [vmem:[%s3875 + $0xe8] sm:$0xff]
        %v3906 = vld [vmem:[%s3875 + $0xf0] sm:$0xff]
        %v3907 = vld [vmem:[%s3875 + $0xf8] sm:$0xff]
        %3908 = vmatprep.subr.mxu0 %v3877
        %3909 = vmatpush1.msra.mxu0 %v3876
        %3910 = vmatprep.subr.mxu0 %v3879
        %3911 = vmatpush1.msra.mxu0 %v3878
        %3912 = vmatprep.subr.mxu0 %v3881
        %3913 = vmatpush1.msra.mxu0 %v3880
        %3914 = vmatprep.subr.mxu0 %v3883
        %3915 = vmatpush1.msra.mxu0 %v3882
        %3916 = vmatprep.subr.mxu0 %v3885
        %3917 = vmatpush1.msra.mxu0 %v3884
        %3918 = vmatprep.subr.mxu0 %v3887
        %3919 = vmatpush1.msra.mxu0 %v3886
        %3920 = vmatprep.subr.mxu0 %v3889
        %3921 = vmatpush1.msra.mxu0 %v3888
        %3922 = vmatprep.subr.mxu0 %v3891
        %3923 = vmatpush1.msra.mxu0 %v3890
        %3924 = vmatprep.subr.mxu0 %v3893
        %3925 = vmatpush1.msra.mxu0 %v3892
        %3926 = vmatprep.subr.mxu0 %v3895
        %3927 = vmatpush1.msra.mxu0 %v3894
        %3928 = vmatprep.subr.mxu0 %v3897
        %3929 = vmatpush1.msra.mxu0 %v3896
        %3930 = vmatprep.subr.mxu0 %v3899
        %3931 = vmatpush1.msra.mxu0 %v3898
        %3932 = vmatprep.subr.mxu0 %v3901
        %3933 = vmatpush1.msra.mxu0 %v3900
        %3934 = vmatprep.subr.mxu0 %v3903
        %3935 = vmatpush1.msra.mxu0 %v3902
        %3936 = vmatprep.subr.mxu0 %v3905
        %3937 = vmatpush1.msra.mxu0 %v3904
        %3938 = vmatprep.subr.mxu0 %v3907
        %3939 = vmatpush1.msra.mxu0 %v3906
        %3940 = vmatprep.subr.mxu0 0.0
        %3941 = vmatpush1.msra.mxu0 0.0
        %3942 = vmatprep.subr.mxu0 0.0
        %3943 = vmatpush1.msra.mxu0 0.0
        %3944 = vmatprep.subr.mxu0 0.0
        %3945 = vmatpush1.msra.mxu0 0.0
        %3946 = vmatprep.subr.mxu0 0.0
        %3947 = vmatpush1.msra.mxu0 0.0
        %3948 = vmatprep.subr.mxu0 0.0
        %3949 = vmatpush1.msra.mxu0 0.0
        %3950 = vmatprep.subr.mxu0 0.0
        %3951 = vmatpush1.msra.mxu0 0.0
        %3952 = vmatprep.subr.mxu0 0.0
        %3953 = vmatpush1.msra.mxu0 0.0
        %3954 = vmatprep.subr.mxu0 0.0
        %3955 = vmatpush1.msra.mxu0 0.0
        %3956 = vmatprep.subr.mxu0 0.0
        %3957 = vmatpush1.msra.mxu0 0.0
        %3958 = vmatprep.subr.mxu0 0.0
        %3959 = vmatpush1.msra.mxu0 0.0
        %3960 = vmatprep.subr.mxu0 0.0
        %3961 = vmatpush1.msra.mxu0 0.0
        %3962 = vmatprep.subr.mxu0 0.0
        %3963 = vmatpush1.msra.mxu0 0.0
        %3964 = vmatprep.subr.mxu0 0.0
        %3965 = vmatpush1.msra.mxu0 0.0
        %3966 = vmatprep.subr.mxu0 0.0
        %3967 = vmatpush1.msra.mxu0 0.0
        %3968 = vmatprep.subr.mxu0 0.0
        %3969 = vmatpush1.msra.mxu0 0.0
        %3970 = vmatprep.subr.mxu0 0.0
        %3971 = vmatpush1.msra.mxu0 0.0
        %3972 = vmatprep.mubr.f32.mxu0 0.0
        %3973 = vmatmul.mubr.f32.gmra.mrb[0].mxu0 %v3612
        %v3974 = vpop.f32.mrb[0].mxu0
        %v3975 = vadd.f32 0.0, %v3974
        %v3976 = vpop.f32.mrb[0].mxu0
        %v3977 = vadd.f32 0.0, %v3976
        %3978 = vmatprep.mubr.f32.mxu0 0.0
        %3979 = vmatmul.mubr.f32.gmra.mrb[0].mxu0 %v3613
        %v3980 = vpop.f32.mrb[0].mxu0
        %v3981 = vadd.f32 0.0, %v3980
        %v3982 = vpop.f32.mrb[0].mxu0
        %v3983 = vadd.f32 0.0, %v3982
        %3984 = vdwg.mxu0
        %3985 = vmatprep.subr.mxu0 %v3844
        %3986 = vmatpush1.msra.mxu0 %v3843
        %3987 = vmatprep.subr.mxu0 %v3846
        %3988 = vmatpush1.msra.mxu0 %v3845
        %3989 = vmatprep.subr.mxu0 %v3848
        %3990 = vmatpush1.msra.mxu0 %v3847
        %3991 = vmatprep.subr.mxu0 %v3850
        %3992 = vmatpush1.msra.mxu0 %v3849
        %3993 = vmatprep.subr.mxu0 %v3852
        %3994 = vmatpush1.msra.mxu0 %v3851
        %3995 = vmatprep.subr.mxu0 %v3854
        %3996 = vmatpush1.msra.mxu0 %v3853
        %3997 = vmatprep.subr.mxu0 %v3856
        %3998 = vmatpush1.msra.mxu0 %v3855
        %3999 = vmatprep.subr.mxu0 %v3858
        %4000 = vmatpush1.msra.mxu0 %v3857
        %4001 = vmatprep.subr.mxu0 %v3860
        %4002 = vmatpush1.msra.mxu0 %v3859
        %4003 = vmatprep.subr.mxu0 %v3862
        %4004 = vmatpush1.msra.mxu0 %v3861
        %4005 = vmatprep.subr.mxu0 %v3864
        %4006 = vmatpush1.msra.mxu0 %v3863
        %4007 = vmatprep.subr.mxu0 %v3866
        %4008 = vmatpush1.msra.mxu0 %v3865
        %4009 = vmatprep.subr.mxu0 %v3868
        %4010 = vmatpush1.msra.mxu0 %v3867
        %4011 = vmatprep.subr.mxu0 %v3870
        %4012 = vmatpush1.msra.mxu0 %v3869
        %4013 = vmatprep.subr.mxu0 %v3872
        %4014 = vmatpush1.msra.mxu0 %v3871
        %4015 = vmatprep.subr.mxu0 %v3874
        %4016 = vmatpush1.msra.mxu0 %v3873
        %4017 = vmatprep.subr.mxu0 0.0
        %4018 = vmatpush1.msra.mxu0 0.0
        %4019 = vmatprep.subr.mxu0 0.0
        %4020 = vmatpush1.msra.mxu0 0.0
        %4021 = vmatprep.subr.mxu0 0.0
        %4022 = vmatpush1.msra.mxu0 0.0
        %4023 = vmatprep.subr.mxu0 0.0
        %4024 = vmatpush1.msra.mxu0 0.0
        %4025 = vmatprep.subr.mxu0 0.0
        %4026 = vmatpush1.msra.mxu0 0.0
        %4027 = vmatprep.subr.mxu0 0.0
        %4028 = vmatpush1.msra.mxu0 0.0
        %4029 = vmatprep.subr.mxu0 0.0
        %4030 = vmatpush1.msra.mxu0 0.0
        %4031 = vmatprep.subr.mxu0 0.0
        %4032 = vmatpush1.msra.mxu0 0.0
        %4033 = vmatprep.subr.mxu0 0.0
        %4034 = vmatpush1.msra.mxu0 0.0
        %4035 = vmatprep.subr.mxu0 0.0
        %4036 = vmatpush1.msra.mxu0 0.0
        %4037 = vmatprep.subr.mxu0 0.0
        %4038 = vmatpush1.msra.mxu0 0.0
        %4039 = vmatprep.subr.mxu0 0.0
        %4040 = vmatpush1.msra.mxu0 0.0
        %4041 = vmatprep.subr.mxu0 0.0
        %4042 = vmatpush1.msra.mxu0 0.0
        %4043 = vmatprep.subr.mxu0 0.0
        %4044 = vmatpush1.msra.mxu0 0.0
        %4045 = vmatprep.subr.mxu0 0.0
        %4046 = vmatpush1.msra.mxu0 0.0
        %4047 = vmatprep.subr.mxu0 0.0
        %4048 = vmatpush1.msra.mxu0 0.0
        %4049 = vmatprep.mubr.f32.mxu0 0.0
        %4050 = vmatmul.mubr.f32.gmra.mrb[0].mxu0 %v1343
        %v4051 = vpop.f32.mrb[0].mxu0
        %v4052 = vadd.f32 %v3975, %v4051
        %v4053 = vpop.f32.mrb[0].mxu0
        %v4054 = vadd.f32 %v3977, %v4053
        %4055 = vmatprep.mubr.f32.mxu0 0.0
        %4056 = vmatmul.mubr.f32.gmra.mrb[0].mxu0 %v1344
        %v4057 = vpop.f32.mrb[0].mxu0
        %v4058 = vadd.f32 %v3981, %v4057
        %v4059 = vpop.f32.mrb[0].mxu0
        %v4060 = vadd.f32 %v3983, %v4059
        %4061 = vdwg.mxu0
        %v4063 = vsel %vm1346, %v3838, 0
        %v4066 = vsel %vm1346, %v3839, 0
        %v4069 = vsel %vm1346, %v3840, 0
        %v4072 = vsel %vm1346, %v3841, 0
        %4074 = vmatprep.subr.mxu0 %v4054
        %4075 = vmatpush1.msra.mxu0 %v4052
        %4076 = vmatprep.subr.mxu0 %v4060
        %4077 = vmatpush1.msra.mxu0 %v4058
        %4078 = vmatprep.subr.mxu0 0.0
        %4079 = vmatpush1.msra.mxu0 0.0
        %4080 = vmatprep.subr.mxu0 0.0
        %4081 = vmatpush1.msra.mxu0 0.0
        %4082 = vmatprep.subr.mxu0 0.0
        %4083 = vmatpush1.msra.mxu0 0.0
        %4084 = vmatprep.subr.mxu0 0.0
        %4085 = vmatpush1.msra.mxu0 0.0
        %4086 = vmatprep.subr.mxu0 0.0
        %4087 = vmatpush1.msra.mxu0 0.0
        %4088 = vmatprep.subr.mxu0 0.0
        %4089 = vmatpush1.msra.mxu0 0.0
        %4090 = vmatprep.subr.mxu0 0.0
        %4091 = vmatpush1.msra.mxu0 0.0
        %4092 = vmatprep.subr.mxu0 0.0
        %4093 = vmatpush1.msra.mxu0 0.0
        %4094 = vmatprep.subr.mxu0 0.0
        %4095 = vmatpush1.msra.mxu0 0.0
        %4096 = vmatprep.subr.mxu0 0.0
        %4097 = vmatpush1.msra.mxu0 0.0
        %4098 = vmatprep.subr.mxu0 0.0
        %4099 = vmatpush1.msra.mxu0 0.0
        %4100 = vmatprep.subr.mxu0 0.0
        %4101 = vmatpush1.msra.mxu0 0.0
        %4102 = vmatprep.subr.mxu0 0.0
        %4103 = vmatpush1.msra.mxu0 0.0
        %4104 = vmatprep.subr.mxu0 0.0
        %4105 = vmatpush1.msra.mxu0 0.0
        %4106 = vmatprep.subr.mxu0 0.0
        %4107 = vmatpush1.msra.mxu0 0.0
        %4108 = vmatprep.subr.mxu0 0.0
        %4109 = vmatpush1.msra.mxu0 0.0
        %4110 = vmatprep.subr.mxu0 0.0
        %4111 = vmatpush1.msra.mxu0 0.0
        %4112 = vmatprep.subr.mxu0 0.0
        %4113 = vmatpush1.msra.mxu0 0.0
        %4114 = vmatprep.subr.mxu0 0.0
        %4115 = vmatpush1.msra.mxu0 0.0
        %4116 = vmatprep.subr.mxu0 0.0
        %4117 = vmatpush1.msra.mxu0 0.0
        %4118 = vmatprep.subr.mxu0 0.0
        %4119 = vmatpush1.msra.mxu0 0.0
        %4120 = vmatprep.subr.mxu0 0.0
        %4121 = vmatpush1.msra.mxu0 0.0
        %4122 = vmatprep.subr.mxu0 0.0
        %4123 = vmatpush1.msra.mxu0 0.0
        %4124 = vmatprep.subr.mxu0 0.0
        %4125 = vmatpush1.msra.mxu0 0.0
        %4126 = vmatprep.subr.mxu0 0.0
        %4127 = vmatpush1.msra.mxu0 0.0
        %4128 = vmatprep.subr.mxu0 0.0
        %4129 = vmatpush1.msra.mxu0 0.0
        %4130 = vmatprep.subr.mxu0 0.0
        %4131 = vmatpush1.msra.mxu0 0.0
        %4132 = vmatprep.subr.mxu0 0.0
        %4133 = vmatpush1.msra.mxu0 0.0
        %4134 = vmatprep.subr.mxu0 0.0
        %4135 = vmatpush1.msra.mxu0 0.0
        %4136 = vmatprep.subr.mxu0 0.0
        %4137 = vmatpush1.msra.mxu0 0.0
        %4138 = vmatprep.mubr.f32.mxu0 0.0
        %4139 = vmatmul.mubr.f32.gmra.mrb[0].mxu0 %v4063
        %v4140 = vpop.f32.mrb[0].mxu0
        %v4141 = vadd.f32 0.0, %v4140
        %v4142 = vpop.f32.mrb[0].mxu0
        %v4143 = vadd.f32 0.0, %v4142
        %4144 = vmatprep.mubr.f32.mxu0 0.0
        %4145 = vmatmul.mubr.f32.gmra.mrb[0].mxu0 %v4066
        %v4146 = vpop.f32.mrb[0].mxu0
        %v4147 = vadd.f32 0.0, %v4146
        %v4148 = vpop.f32.mrb[0].mxu0
        %v4149 = vadd.f32 0.0, %v4148
        %4150 = vmatprep.mubr.f32.mxu0 0.0
        %4151 = vmatmul.mubr.f32.gmra.mrb[0].mxu0 %v4069
        %v4152 = vpop.f32.mrb[0].mxu0
        %v4153 = vadd.f32 0.0, %v4152
        %v4154 = vpop.f32.mrb[0].mxu0
        %v4155 = vadd.f32 0.0, %v4154
        %4156 = vmatprep.mubr.f32.mxu0 0.0
        %4157 = vmatmul.mubr.f32.gmra.mrb[0].mxu0 %v4072
        %v4158 = vpop.f32.mrb[0].mxu0
        %v4159 = vadd.f32 0.0, %v4158
        %v4160 = vpop.f32.mrb[0].mxu0
        %v4161 = vadd.f32 0.0, %v4160
        %4162 = vdwg.mxu0
        %v4164 = vsel %vm1346, %v3614, 0
        %v4167 = vsel %vm1346, %v3615, 0
        %v4170 = vsel %vm1346, %v3616, 0
        %v4173 = vsel %vm1346, %v3617, 0
        %4175 = vmatprep.subr.mxu0 %v3829
        %4176 = vmatpush1.msra.mxu0 %v3827
        %4177 = vmatprep.subr.mxu0 %v3835
        %4178 = vmatpush1.msra.mxu0 %v3833
        %4179 = vmatprep.subr.mxu0 0.0
        %4180 = vmatpush1.msra.mxu0 0.0
        %4181 = vmatprep.subr.mxu0 0.0
        %4182 = vmatpush1.msra.mxu0 0.0
        %4183 = vmatprep.subr.mxu0 0.0
        %4184 = vmatpush1.msra.mxu0 0.0
        %4185 = vmatprep.subr.mxu0 0.0
        %4186 = vmatpush1.msra.mxu0 0.0
        %4187 = vmatprep.subr.mxu0 0.0
        %4188 = vmatpush1.msra.mxu0 0.0
        %4189 = vmatprep.subr.mxu0 0.0
        %4190 = vmatpush1.msra.mxu0 0.0
        %4191 = vmatprep.subr.mxu0 0.0
        %4192 = vmatpush1.msra.mxu0 0.0
        %4193 = vmatprep.subr.mxu0 0.0
        %4194 = vmatpush1.msra.mxu0 0.0
        %4195 = vmatprep.subr.mxu0 0.0
        %4196 = vmatpush1.msra.mxu0 0.0
        %4197 = vmatprep.subr.mxu0 0.0
        %4198 = vmatpush1.msra.mxu0 0.0
        %4199 = vmatprep.subr.mxu0 0.0
        %4200 = vmatpush1.msra.mxu0 0.0
        %4201 = vmatprep.subr.mxu0 0.0
        %4202 = vmatpush1.msra.mxu0 0.0
        %4203 = vmatprep.subr.mxu0 0.0
        %4204 = vmatpush1.msra.mxu0 0.0
        %4205 = vmatprep.subr.mxu0 0.0
        %4206 = vmatpush1.msra.mxu0 0.0
        %4207 = vmatprep.subr.mxu0 0.0
        %4208 = vmatpush1.msra.mxu0 0.0
        %4209 = vmatprep.subr.mxu0 0.0
        %4210 = vmatpush1.msra.mxu0 0.0
        %4211 = vmatprep.subr.mxu0 0.0
        %4212 = vmatpush1.msra.mxu0 0.0
        %4213 = vmatprep.subr.mxu0 0.0
        %4214 = vmatpush1.msra.mxu0 0.0
        %4215 = vmatprep.subr.mxu0 0.0
        %4216 = vmatpush1.msra.mxu0 0.0
        %4217 = vmatprep.subr.mxu0 0.0
        %4218 = vmatpush1.msra.mxu0 0.0
        %4219 = vmatprep.subr.mxu0 0.0
        %4220 = vmatpush1.msra.mxu0 0.0
        %4221 = vmatprep.subr.mxu0 0.0
        %4222 = vmatpush1.msra.mxu0 0.0
        %4223 = vmatprep.subr.mxu0 0.0
        %4224 = vmatpush1.msra.mxu0 0.0
        %4225 = vmatprep.subr.mxu0 0.0
        %4226 = vmatpush1.msra.mxu0 0.0
        %4227 = vmatprep.subr.mxu0 0.0
        %4228 = vmatpush1.msra.mxu0 0.0
        %4229 = vmatprep.subr.mxu0 0.0
        %4230 = vmatpush1.msra.mxu0 0.0
        %4231 = vmatprep.subr.mxu0 0.0
        %4232 = vmatpush1.msra.mxu0 0.0
        %4233 = vmatprep.subr.mxu0 0.0
        %4234 = vmatpush1.msra.mxu0 0.0
        %4235 = vmatprep.subr.mxu0 0.0
        %4236 = vmatpush1.msra.mxu0 0.0
        %4237 = vmatprep.subr.mxu0 0.0
        %4238 = vmatpush1.msra.mxu0 0.0
        %4239 = vmatprep.mubr.f32.mxu0 0.0
        %4240 = vmatmul.mubr.f32.gmra.mrb[0].mxu0 %v4164
        %v4241 = vpop.f32.mrb[0].mxu0
        %v4242 = vadd.f32 %v4141, %v4241
        %v4243 = vpop.f32.mrb[0].mxu0
        %v4244 = vadd.f32 %v4143, %v4243
        %4245 = vmatprep.mubr.f32.mxu0 0.0
        %4246 = vmatmul.mubr.f32.gmra.mrb[0].mxu0 %v4167
        %v4247 = vpop.f32.mrb[0].mxu0
        %v4248 = vadd.f32 %v4147, %v4247
        %v4249 = vpop.f32.mrb[0].mxu0
        %v4250 = vadd.f32 %v4149, %v4249
        %4251 = vmatprep.mubr.f32.mxu0 0.0
        %4252 = vmatmul.mubr.f32.gmra.mrb[0].mxu0 %v4170
        %v4253 = vpop.f32.mrb[0].mxu0
        %v4254 = vadd.f32 %v4153, %v4253
        %v4255 = vpop.f32.mrb[0].mxu0
        %v4256 = vadd.f32 %v4155, %v4255
        %4257 = vmatprep.mubr.f32.mxu0 0.0
        %4258 = vmatmul.mubr.f32.gmra.mrb[0].mxu0 %v4173
        %v4259 = vpop.f32.mrb[0].mxu0
        %v4260 = vadd.f32 %v4159, %v4259
        %v4261 = vpop.f32.mrb[0].mxu0
        %v4262 = vadd.f32 %v4161, %v4261
        %4263 = vdwg.mxu0
        %s4264 = scalar_lea.vmem %s16, 64
        %v4265 = vld [vmem:[%s4264] sm:$0xff]
        %v4266 = vld [vmem:[%s4264 + $0x8] sm:$0xff]
        %v4267 = vld [vmem:[%s4264 + $0x10] sm:$0xff]
        %v4268 = vld [vmem:[%s4264 + $0x18] sm:$0xff]
        %s4269 = scalar_lea.vmem [#allocation12], 512
        %v4270 = vld [vmem:[%s4269] sm:$0xff]
        %v4271 = vld [vmem:[%s4269 + $0x8] sm:$0xff]
        %v4272 = vld [vmem:[%s4269 + $0x10] sm:$0xff]
        %v4273 = vld [vmem:[%s4269 + $0x18] sm:$0xff]
        %v4274 = vld [vmem:[%s4269 + $0x20] sm:$0xff]
        %v4275 = vld [vmem:[%s4269 + $0x28] sm:$0xff]
        %v4276 = vld [vmem:[%s4269 + $0x30] sm:$0xff]
        %v4277 = vld [vmem:[%s4269 + $0x38] sm:$0xff]
        %v4278 = vld [vmem:[%s4269 + $0x40] sm:$0xff]
        %v4279 = vld [vmem:[%s4269 + $0x48] sm:$0xff]
        %v4280 = vld [vmem:[%s4269 + $0x50] sm:$0xff]
        %v4281 = vld [vmem:[%s4269 + $0x58] sm:$0xff]
        %v4282 = vld [vmem:[%s4269 + $0x60] sm:$0xff]
        %v4283 = vld [vmem:[%s4269 + $0x68] sm:$0xff]
        %v4284 = vld [vmem:[%s4269 + $0x70] sm:$0xff]
        %v4285 = vld [vmem:[%s4269 + $0x78] sm:$0xff]
        %v4286 = vld [vmem:[%s4269 + $0x80] sm:$0xff]
        %v4287 = vld [vmem:[%s4269 + $0x88] sm:$0xff]
        %v4288 = vld [vmem:[%s4269 + $0x90] sm:$0xff]
        %v4289 = vld [vmem:[%s4269 + $0x98] sm:$0xff]
        %v4290 = vld [vmem:[%s4269 + $0xa0] sm:$0xff]
        %v4291 = vld [vmem:[%s4269 + $0xa8] sm:$0xff]
        %v4292 = vld [vmem:[%s4269 + $0xb0] sm:$0xff]
        %v4293 = vld [vmem:[%s4269 + $0xb8] sm:$0xff]
        %v4294 = vld [vmem:[%s4269 + $0xc0] sm:$0xff]
        %v4295 = vld [vmem:[%s4269 + $0xc8] sm:$0xff]
        %v4296 = vld [vmem:[%s4269 + $0xd0] sm:$0xff]
        %v4297 = vld [vmem:[%s4269 + $0xd8] sm:$0xff]
        %v4298 = vld [vmem:[%s4269 + $0xe0] sm:$0xff]
        %v4299 = vld [vmem:[%s4269 + $0xe8] sm:$0xff]
        %v4300 = vld [vmem:[%s4269 + $0xf0] sm:$0xff]
        %v4301 = vld [vmem:[%s4269 + $0xf8] sm:$0xff]
        %s4302 = scalar_lea.vmem [#allocation12], 1280
        %v4303 = vld [vmem:[%s4302] sm:$0xff]
        %v4304 = vld [vmem:[%s4302 + $0x8] sm:$0xff]
        %v4305 = vld [vmem:[%s4302 + $0x10] sm:$0xff]
        %v4306 = vld [vmem:[%s4302 + $0x18] sm:$0xff]
        %v4307 = vld [vmem:[%s4302 + $0x20] sm:$0xff]
        %v4308 = vld [vmem:[%s4302 + $0x28] sm:$0xff]
        %v4309 = vld [vmem:[%s4302 + $0x30] sm:$0xff]
        %v4310 = vld [vmem:[%s4302 + $0x38] sm:$0xff]
        %v4311 = vld [vmem:[%s4302 + $0x40] sm:$0xff]
        %v4312 = vld [vmem:[%s4302 + $0x48] sm:$0xff]
        %v4313 = vld [vmem:[%s4302 + $0x50] sm:$0xff]
        %v4314 = vld [vmem:[%s4302 + $0x58] sm:$0xff]
        %v4315 = vld [vmem:[%s4302 + $0x60] sm:$0xff]
        %v4316 = vld [vmem:[%s4302 + $0x68] sm:$0xff]
        %v4317 = vld [vmem:[%s4302 + $0x70] sm:$0xff]
        %v4318 = vld [vmem:[%s4302 + $0x78] sm:$0xff]
        %v4319 = vld [vmem:[%s4302 + $0x80] sm:$0xff]
        %v4320 = vld [vmem:[%s4302 + $0x88] sm:$0xff]
        %v4321 = vld [vmem:[%s4302 + $0x90] sm:$0xff]
        %v4322 = vld [vmem:[%s4302 + $0x98] sm:$0xff]
        %v4323 = vld [vmem:[%s4302 + $0xa0] sm:$0xff]
        %v4324 = vld [vmem:[%s4302 + $0xa8] sm:$0xff]
        %v4325 = vld [vmem:[%s4302 + $0xb0] sm:$0xff]
        %v4326 = vld [vmem:[%s4302 + $0xb8] sm:$0xff]
        %v4327 = vld [vmem:[%s4302 + $0xc0] sm:$0xff]
        %v4328 = vld [vmem:[%s4302 + $0xc8] sm:$0xff]
        %v4329 = vld [vmem:[%s4302 + $0xd0] sm:$0xff]
        %v4330 = vld [vmem:[%s4302 + $0xd8] sm:$0xff]
        %v4331 = vld [vmem:[%s4302 + $0xe0] sm:$0xff]
        %v4332 = vld [vmem:[%s4302 + $0xe8] sm:$0xff]
        %v4333 = vld [vmem:[%s4302 + $0xf0] sm:$0xff]
        %v4334 = vld [vmem:[%s4302 + $0xf8] sm:$0xff]
        %4335 = vmatprep.subr.mxu0 %v4304
        %4336 = vmatpush1.msra.mxu0 %v4303
        %4337 = vmatprep.subr.mxu0 %v4306
        %4338 = vmatpush1.msra.mxu0 %v4305
        %4339 = vmatprep.subr.mxu0 %v4308
        %4340 = vmatpush1.msra.mxu0 %v4307
        %4341 = vmatprep.subr.mxu0 %v4310
        %4342 = vmatpush1.msra.mxu0 %v4309
        %4343 = vmatprep.subr.mxu0 %v4312
        %4344 = vmatpush1.msra.mxu0 %v4311
        %4345 = vmatprep.subr.mxu0 %v4314
        %4346 = vmatpush1.msra.mxu0 %v4313
        %4347 = vmatprep.subr.mxu0 %v4316
        %4348 = vmatpush1.msra.mxu0 %v4315
        %4349 = vmatprep.subr.mxu0 %v4318
        %4350 = vmatpush1.msra.mxu0 %v4317
        %4351 = vmatprep.subr.mxu0 %v4320
        %4352 = vmatpush1.msra.mxu0 %v4319
        %4353 = vmatprep.subr.mxu0 %v4322
        %4354 = vmatpush1.msra.mxu0 %v4321
        %4355 = vmatprep.subr.mxu0 %v4324
        %4356 = vmatpush1.msra.mxu0 %v4323
        %4357 = vmatprep.subr.mxu0 %v4326
        %4358 = vmatpush1.msra.mxu0 %v4325
        %4359 = vmatprep.subr.mxu0 %v4328
        %4360 = vmatpush1.msra.mxu0 %v4327
        %4361 = vmatprep.subr.mxu0 %v4330
        %4362 = vmatpush1.msra.mxu0 %v4329
        %4363 = vmatprep.subr.mxu0 %v4332
        %4364 = vmatpush1.msra.mxu0 %v4331
        %4365 = vmatprep.subr.mxu0 %v4334
        %4366 = vmatpush1.msra.mxu0 %v4333
        %4367 = vmatprep.subr.mxu0 0.0
        %4368 = vmatpush1.msra.mxu0 0.0
        %4369 = vmatprep.subr.mxu0 0.0
        %4370 = vmatpush1.msra.mxu0 0.0
        %4371 = vmatprep.subr.mxu0 0.0
        %4372 = vmatpush1.msra.mxu0 0.0
        %4373 = vmatprep.subr.mxu0 0.0
        %4374 = vmatpush1.msra.mxu0 0.0
        %4375 = vmatprep.subr.mxu0 0.0
        %4376 = vmatpush1.msra.mxu0 0.0
        %4377 = vmatprep.subr.mxu0 0.0
        %4378 = vmatpush1.msra.mxu0 0.0
        %4379 = vmatprep.subr.mxu0 0.0
        %4380 = vmatpush1.msra.mxu0 0.0
        %4381 = vmatprep.subr.mxu0 0.0
        %4382 = vmatpush1.msra.mxu0 0.0
        %4383 = vmatprep.subr.mxu0 0.0
        %4384 = vmatpush1.msra.mxu0 0.0
        %4385 = vmatprep.subr.mxu0 0.0
        %4386 = vmatpush1.msra.mxu0 0.0
        %4387 = vmatprep.subr.mxu0 0.0
        %4388 = vmatpush1.msra.mxu0 0.0
        %4389 = vmatprep.subr.mxu0 0.0
        %4390 = vmatpush1.msra.mxu0 0.0
        %4391 = vmatprep.subr.mxu0 0.0
        %4392 = vmatpush1.msra.mxu0 0.0
        %4393 = vmatprep.subr.mxu0 0.0
        %4394 = vmatpush1.msra.mxu0 0.0
        %4395 = vmatprep.subr.mxu0 0.0
        %4396 = vmatpush1.msra.mxu0 0.0
        %4397 = vmatprep.subr.mxu0 0.0
        %4398 = vmatpush1.msra.mxu0 0.0
        %4399 = vmatprep.mubr.f32.mxu0 0.0
        %4400 = vmatmul.mubr.f32.gmra.mrb[0].mxu0 %v3612
        %v4401 = vpop.f32.mrb[0].mxu0
        %v4402 = vadd.f32 0.0, %v4401
        %v4403 = vpop.f32.mrb[0].mxu0
        %v4404 = vadd.f32 0.0, %v4403
        %4405 = vmatprep.mubr.f32.mxu0 0.0
        %4406 = vmatmul.mubr.f32.gmra.mrb[0].mxu0 %v3613
        %v4407 = vpop.f32.mrb[0].mxu0
        %v4408 = vadd.f32 0.0, %v4407
        %v4409 = vpop.f32.mrb[0].mxu0
        %v4410 = vadd.f32 0.0, %v4409
        %4411 = vdwg.mxu0
        %4412 = vmatprep.subr.mxu0 %v4271
        %4413 = vmatpush1.msra.mxu0 %v4270
        %4414 = vmatprep.subr.mxu0 %v4273
        %4415 = vmatpush1.msra.mxu0 %v4272
        %4416 = vmatprep.subr.mxu0 %v4275
        %4417 = vmatpush1.msra.mxu0 %v4274
        %4418 = vmatprep.subr.mxu0 %v4277
        %4419 = vmatpush1.msra.mxu0 %v4276
        %4420 = vmatprep.subr.mxu0 %v4279
        %4421 = vmatpush1.msra.mxu0 %v4278
        %4422 = vmatprep.subr.mxu0 %v4281
        %4423 = vmatpush1.msra.mxu0 %v4280
        %4424 = vmatprep.subr.mxu0 %v4283
        %4425 = vmatpush1.msra.mxu0 %v4282
        %4426 = vmatprep.subr.mxu0 %v4285
        %4427 = vmatpush1.msra.mxu0 %v4284
        %4428 = vmatprep.subr.mxu0 %v4287
        %4429 = vmatpush1.msra.mxu0 %v4286
        %4430 = vmatprep.subr.mxu0 %v4289
        %4431 = vmatpush1.msra.mxu0 %v4288
        %4432 = vmatprep.subr.mxu0 %v4291
        %4433 = vmatpush1.msra.mxu0 %v4290
        %4434 = vmatprep.subr.mxu0 %v4293
        %4435 = vmatpush1.msra.mxu0 %v4292
        %4436 = vmatprep.subr.mxu0 %v4295
        %4437 = vmatpush1.msra.mxu0 %v4294
        %4438 = vmatprep.subr.mxu0 %v4297
        %4439 = vmatpush1.msra.mxu0 %v4296
        %4440 = vmatprep.subr.mxu0 %v4299
        %4441 = vmatpush1.msra.mxu0 %v4298
        %4442 = vmatprep.subr.mxu0 %v4301
        %4443 = vmatpush1.msra.mxu0 %v4300
        %4444 = vmatprep.subr.mxu0 0.0
        %4445 = vmatpush1.msra.mxu0 0.0
        %4446 = vmatprep.subr.mxu0 0.0
        %4447 = vmatpush1.msra.mxu0 0.0
        %4448 = vmatprep.subr.mxu0 0.0
        %4449 = vmatpush1.msra.mxu0 0.0
        %4450 = vmatprep.subr.mxu0 0.0
        %4451 = vmatpush1.msra.mxu0 0.0
        %4452 = vmatprep.subr.mxu0 0.0
        %4453 = vmatpush1.msra.mxu0 0.0
        %4454 = vmatprep.subr.mxu0 0.0
        %4455 = vmatpush1.msra.mxu0 0.0
        %4456 = vmatprep.subr.mxu0 0.0
        %4457 = vmatpush1.msra.mxu0 0.0
        %4458 = vmatprep.subr.mxu0 0.0
        %4459 = vmatpush1.msra.mxu0 0.0
        %4460 = vmatprep.subr.mxu0 0.0
        %4461 = vmatpush1.msra.mxu0 0.0
        %4462 = vmatprep.subr.mxu0 0.0
        %4463 = vmatpush1.msra.mxu0 0.0
        %4464 = vmatprep.subr.mxu0 0.0
        %4465 = vmatpush1.msra.mxu0 0.0
        %4466 = vmatprep.subr.mxu0 0.0
        %4467 = vmatpush1.msra.mxu0 0.0
        %4468 = vmatprep.subr.mxu0 0.0
        %4469 = vmatpush1.msra.mxu0 0.0
        %4470 = vmatprep.subr.mxu0 0.0
        %4471 = vmatpush1.msra.mxu0 0.0
        %4472 = vmatprep.subr.mxu0 0.0
        %4473 = vmatpush1.msra.mxu0 0.0
        %4474 = vmatprep.subr.mxu0 0.0
        %4475 = vmatpush1.msra.mxu0 0.0
        %4476 = vmatprep.mubr.f32.mxu0 0.0
        %4477 = vmatmul.mubr.f32.gmra.mrb[0].mxu0 %v1343
        %v4478 = vpop.f32.mrb[0].mxu0
        %v4479 = vadd.f32 %v4402, %v4478
        %v4480 = vpop.f32.mrb[0].mxu0
        %v4481 = vadd.f32 %v4404, %v4480
        %4482 = vmatprep.mubr.f32.mxu0 0.0
        %4483 = vmatmul.mubr.f32.gmra.mrb[0].mxu0 %v1344
        %v4484 = vpop.f32.mrb[0].mxu0
        %v4485 = vadd.f32 %v4408, %v4484
        %v4486 = vpop.f32.mrb[0].mxu0
        %v4487 = vadd.f32 %v4410, %v4486
        %4488 = vdwg.mxu0
        %v4490 = vsel %vm1346, %v4265, 0
        %v4493 = vsel %vm1346, %v4266, 0
        %v4496 = vsel %vm1346, %v4267, 0
        %v4499 = vsel %vm1346, %v4268, 0
        %4501 = vmatprep.subr.mxu0 %v4481
        %4502 = vmatpush1.msra.mxu0 %v4479
        %4503 = vmatprep.subr.mxu0 %v4487
        %4504 = vmatpush1.msra.mxu0 %v4485
        %4505 = vmatprep.subr.mxu0 0.0
        %4506 = vmatpush1.msra.mxu0 0.0
        %4507 = vmatprep.subr.mxu0 0.0
        %4508 = vmatpush1.msra.mxu0 0.0
        %4509 = vmatprep.subr.mxu0 0.0
        %4510 = vmatpush1.msra.mxu0 0.0
        %4511 = vmatprep.subr.mxu0 0.0
        %4512 = vmatpush1.msra.mxu0 0.0
        %4513 = vmatprep.subr.mxu0 0.0
        %4514 = vmatpush1.msra.mxu0 0.0
        %4515 = vmatprep.subr.mxu0 0.0
        %4516 = vmatpush1.msra.mxu0 0.0
        %4517 = vmatprep.subr.mxu0 0.0
        %4518 = vmatpush1.msra.mxu0 0.0
        %4519 = vmatprep.subr.mxu0 0.0
        %4520 = vmatpush1.msra.mxu0 0.0
        %4521 = vmatprep.subr.mxu0 0.0
        %4522 = vmatpush1.msra.mxu0 0.0
        %4523 = vmatprep.subr.mxu0 0.0
        %4524 = vmatpush1.msra.mxu0 0.0
        %4525 = vmatprep.subr.mxu0 0.0
        %4526 = vmatpush1.msra.mxu0 0.0
        %4527 = vmatprep.subr.mxu0 0.0
        %4528 = vmatpush1.msra.mxu0 0.0
        %4529 = vmatprep.subr.mxu0 0.0
        %4530 = vmatpush1.msra.mxu0 0.0
        %4531 = vmatprep.subr.mxu0 0.0
        %4532 = vmatpush1.msra.mxu0 0.0
        %4533 = vmatprep.subr.mxu0 0.0
        %4534 = vmatpush1.msra.mxu0 0.0
        %4535 = vmatprep.subr.mxu0 0.0
        %4536 = vmatpush1.msra.mxu0 0.0
        %4537 = vmatprep.subr.mxu0 0.0
        %4538 = vmatpush1.msra.mxu0 0.0
        %4539 = vmatprep.subr.mxu0 0.0
        %4540 = vmatpush1.msra.mxu0 0.0
        %4541 = vmatprep.subr.mxu0 0.0
        %4542 = vmatpush1.msra.mxu0 0.0
        %4543 = vmatprep.subr.mxu0 0.0
        %4544 = vmatpush1.msra.mxu0 0.0
        %4545 = vmatprep.subr.mxu0 0.0
        %4546 = vmatpush1.msra.mxu0 0.0
        %4547 = vmatprep.subr.mxu0 0.0
        %4548 = vmatpush1.msra.mxu0 0.0
        %4549 = vmatprep.subr.mxu0 0.0
        %4550 = vmatpush1.msra.mxu0 0.0
        %4551 = vmatprep.subr.mxu0 0.0
        %4552 = vmatpush1.msra.mxu0 0.0
        %4553 = vmatprep.subr.mxu0 0.0
        %4554 = vmatpush1.msra.mxu0 0.0
        %4555 = vmatprep.subr.mxu0 0.0
        %4556 = vmatpush1.msra.mxu0 0.0
        %4557 = vmatprep.subr.mxu0 0.0
        %4558 = vmatpush1.msra.mxu0 0.0
        %4559 = vmatprep.subr.mxu0 0.0
        %4560 = vmatpush1.msra.mxu0 0.0
        %4561 = vmatprep.subr.mxu0 0.0
        %4562 = vmatpush1.msra.mxu0 0.0
        %4563 = vmatprep.subr.mxu0 0.0
        %4564 = vmatpush1.msra.mxu0 0.0
        %4565 = vmatprep.mubr.f32.mxu0 0.0
        %4566 = vmatmul.mubr.f32.gmra.mrb[0].mxu0 %v4490
        %v4567 = vpop.f32.mrb[0].mxu0
        %v4568 = vadd.f32 0.0, %v4567
        %v4569 = vpop.f32.mrb[0].mxu0
        %v4570 = vadd.f32 0.0, %v4569
        %4571 = vmatprep.mubr.f32.mxu0 0.0
        %4572 = vmatmul.mubr.f32.gmra.mrb[0].mxu0 %v4493
        %v4573 = vpop.f32.mrb[0].mxu0
        %v4574 = vadd.f32 0.0, %v4573
        %v4575 = vpop.f32.mrb[0].mxu0
        %v4576 = vadd.f32 0.0, %v4575
        %4577 = vmatprep.mubr.f32.mxu0 0.0
        %4578 = vmatmul.mubr.f32.gmra.mrb[0].mxu0 %v4496
        %v4579 = vpop.f32.mrb[0].mxu0
        %v4580 = vadd.f32 0.0, %v4579
        %v4581 = vpop.f32.mrb[0].mxu0
        %v4582 = vadd.f32 0.0, %v4581
        %4583 = vmatprep.mubr.f32.mxu0 0.0
        %4584 = vmatmul.mubr.f32.gmra.mrb[0].mxu0 %v4499
        %v4585 = vpop.f32.mrb[0].mxu0
        %v4586 = vadd.f32 0.0, %v4585
        %v4587 = vpop.f32.mrb[0].mxu0
        %v4588 = vadd.f32 0.0, %v4587
        %4589 = vdwg.mxu0
        %v4590 = vadd.f32 %v4242, %v4568
        %v4591 = vadd.f32 %v4244, %v4570
        %v4592 = vadd.f32 %v4248, %v4574
        %v4593 = vadd.f32 %v4250, %v4576
        %v4594 = vadd.f32 %v4254, %v4580
        %v4595 = vadd.f32 %v4256, %v4582
        %v4596 = vadd.f32 %v4260, %v4586
        %v4597 = vadd.f32 %v4262, %v4588
        %v4598 = vld [vmem:[%s18] sm:$0x3]
        %v4600 = vlaneseq
        %v4601 = vshrl.u32 %v4600, 7
        %v4602 = vsub.s32 0, %v4601
        %v4603 = vrot.slane %v4598, %v4602
        %v4604 = vlaneseq
        %v4605 = vshrl.u32 %v4604, 7
        %v4606 = vsub.s32 1, %v4605
        %v4607 = vrot.slane %v4598, %v4606
        %v4610 = vadd.f32 %v4590, %v4603
        %v4611 = vadd.f32 %v4591, %v4607
        %v4612 = vadd.f32 %v4592, %v4603
        %v4613 = vadd.f32 %v4593, %v4607
        %v4614 = vadd.f32 %v4594, %v4603
        %v4615 = vadd.f32 %v4595, %v4607
        %v4616 = vadd.f32 %v4596, %v4603
        %v4617 = vadd.f32 %v4597, %v4607
        %v4618 = vmax.f32 %v4610, 0.0
        %v4619 = vmax.f32 %v4611, 0.0
        %v4620 = vmax.f32 %v4612, 0.0
        %v4621 = vmax.f32 %v4613, 0.0
        %v4622 = vmax.f32 %v4614, 0.0
        %v4623 = vmax.f32 %v4615, 0.0
        %v4624 = vmax.f32 %v4616, 0.0
        %v4625 = vmax.f32 %v4617, 0.0
        %v4626 = vld [vmem:[%s19] sm:$0xff]
        %v4627 = vld [vmem:[%s19 + $0x8] sm:$0xff]
        %v4628 = vld [vmem:[%s19 + $0x10] sm:$0xff]
        %v4629 = vld [vmem:[%s19 + $0x18] sm:$0xff]
        %v4630 = vld [vmem:[#allocation13] sm:$0xff]
        %v4631 = vld [vmem:[#allocation13 + $0x8] sm:$0xff]
        %v4632 = vld [vmem:[#allocation13 + $0x10] sm:$0xff]
        %v4633 = vld [vmem:[#allocation13 + $0x18] sm:$0xff]
        %v4634 = vld [vmem:[#allocation13 + $0x20] sm:$0xff]
        %v4635 = vld [vmem:[#allocation13 + $0x28] sm:$0xff]
        %v4636 = vld [vmem:[#allocation13 + $0x30] sm:$0xff]
        %v4637 = vld [vmem:[#allocation13 + $0x38] sm:$0xff]
        %v4638 = vld [vmem:[#allocation13 + $0x40] sm:$0xff]
        %v4639 = vld [vmem:[#allocation13 + $0x48] sm:$0xff]
        %v4640 = vld [vmem:[#allocation13 + $0x50] sm:$0xff]
        %v4641 = vld [vmem:[#allocation13 + $0x58] sm:$0xff]
        %v4642 = vld [vmem:[#allocation13 + $0x60] sm:$0xff]
        %v4643 = vld [vmem:[#allocation13 + $0x68] sm:$0xff]
        %v4644 = vld [vmem:[#allocation13 + $0x70] sm:$0xff]
        %v4645 = vld [vmem:[#allocation13 + $0x78] sm:$0xff]
        %v4646 = vld [vmem:[#allocation13 + $0x80] sm:$0xff]
        %v4647 = vld [vmem:[#allocation13 + $0x88] sm:$0xff]
        %v4648 = vld [vmem:[#allocation13 + $0x90] sm:$0xff]
        %v4649 = vld [vmem:[#allocation13 + $0x98] sm:$0xff]
        %v4650 = vld [vmem:[#allocation13 + $0xa0] sm:$0xff]
        %v4651 = vld [vmem:[#allocation13 + $0xa8] sm:$0xff]
        %v4652 = vld [vmem:[#allocation13 + $0xb0] sm:$0xff]
        %v4653 = vld [vmem:[#allocation13 + $0xb8] sm:$0xff]
        %v4654 = vld [vmem:[#allocation13 + $0xc0] sm:$0xff]
        %v4655 = vld [vmem:[#allocation13 + $0xc8] sm:$0xff]
        %v4656 = vld [vmem:[#allocation13 + $0xd0] sm:$0xff]
        %v4657 = vld [vmem:[#allocation13 + $0xd8] sm:$0xff]
        %v4658 = vld [vmem:[#allocation13 + $0xe0] sm:$0xff]
        %v4659 = vld [vmem:[#allocation13 + $0xe8] sm:$0xff]
        %v4660 = vld [vmem:[#allocation13 + $0xf0] sm:$0xff]
        %v4661 = vld [vmem:[#allocation13 + $0xf8] sm:$0xff]
        %v4662 = vld [vmem:[#allocation13 + $0x100] sm:$0xff]
        %v4663 = vld [vmem:[#allocation13 + $0x108] sm:$0xff]
        %v4664 = vld [vmem:[#allocation13 + $0x110] sm:$0xff]
        %v4665 = vld [vmem:[#allocation13 + $0x118] sm:$0xff]
        %v4666 = vld [vmem:[#allocation13 + $0x120] sm:$0xff]
        %v4667 = vld [vmem:[#allocation13 + $0x128] sm:$0xff]
        %v4668 = vld [vmem:[#allocation13 + $0x130] sm:$0xff]
        %v4669 = vld [vmem:[#allocation13 + $0x138] sm:$0xff]
        %v4670 = vld [vmem:[#allocation13 + $0x140] sm:$0xff]
        %v4671 = vld [vmem:[#allocation13 + $0x148] sm:$0xff]
        %v4672 = vld [vmem:[#allocation13 + $0x150] sm:$0xff]
        %v4673 = vld [vmem:[#allocation13 + $0x158] sm:$0xff]
        %v4674 = vld [vmem:[#allocation13 + $0x160] sm:$0xff]
        %v4675 = vld [vmem:[#allocation13 + $0x168] sm:$0xff]
        %v4676 = vld [vmem:[#allocation13 + $0x170] sm:$0xff]
        %v4677 = vld [vmem:[#allocation13 + $0x178] sm:$0xff]
        %v4678 = vld [vmem:[#allocation13 + $0x180] sm:$0xff]
        %v4679 = vld [vmem:[#allocation13 + $0x188] sm:$0xff]
        %v4680 = vld [vmem:[#allocation13 + $0x190] sm:$0xff]
        %v4681 = vld [vmem:[#allocation13 + $0x198] sm:$0xff]
        %v4682 = vld [vmem:[#allocation13 + $0x1a0] sm:$0xff]
        %v4683 = vld [vmem:[#allocation13 + $0x1a8] sm:$0xff]
        %v4684 = vld [vmem:[#allocation13 + $0x1b0] sm:$0xff]
        %v4685 = vld [vmem:[#allocation13 + $0x1b8] sm:$0xff]
        %v4686 = vld [vmem:[#allocation13 + $0x1c0] sm:$0xff]
        %v4687 = vld [vmem:[#allocation13 + $0x1c8] sm:$0xff]
        %v4688 = vld [vmem:[#allocation13 + $0x1d0] sm:$0xff]
        %v4689 = vld [vmem:[#allocation13 + $0x1d8] sm:$0xff]
        %v4690 = vld [vmem:[#allocation13 + $0x1e0] sm:$0xff]
        %v4691 = vld [vmem:[#allocation13 + $0x1e8] sm:$0xff]
        %v4692 = vld [vmem:[#allocation13 + $0x1f0] sm:$0xff]
        %v4693 = vld [vmem:[#allocation13 + $0x1f8] sm:$0xff]
        %4694 = vmatprep.subr.mxu0 %v4631
        %4695 = vmatpush1.msra.mxu0 %v4630
        %4696 = vmatprep.subr.mxu0 %v4633
        %4697 = vmatpush1.msra.mxu0 %v4632
        %4698 = vmatprep.subr.mxu0 %v4635
        %4699 = vmatpush1.msra.mxu0 %v4634
        %4700 = vmatprep.subr.mxu0 %v4637
        %4701 = vmatpush1.msra.mxu0 %v4636
        %4702 = vmatprep.subr.mxu0 %v4639
        %4703 = vmatpush1.msra.mxu0 %v4638
        %4704 = vmatprep.subr.mxu0 %v4641
        %4705 = vmatpush1.msra.mxu0 %v4640
        %4706 = vmatprep.subr.mxu0 %v4643
        %4707 = vmatpush1.msra.mxu0 %v4642
        %4708 = vmatprep.subr.mxu0 %v4645
        %4709 = vmatpush1.msra.mxu0 %v4644
        %4710 = vmatprep.subr.mxu0 %v4647
        %4711 = vmatpush1.msra.mxu0 %v4646
        %4712 = vmatprep.subr.mxu0 %v4649
        %4713 = vmatpush1.msra.mxu0 %v4648
        %4714 = vmatprep.subr.mxu0 %v4651
        %4715 = vmatpush1.msra.mxu0 %v4650
        %4716 = vmatprep.subr.mxu0 %v4653
        %4717 = vmatpush1.msra.mxu0 %v4652
        %4718 = vmatprep.subr.mxu0 %v4655
        %4719 = vmatpush1.msra.mxu0 %v4654
        %4720 = vmatprep.subr.mxu0 %v4657
        %4721 = vmatpush1.msra.mxu0 %v4656
        %4722 = vmatprep.subr.mxu0 %v4659
        %4723 = vmatpush1.msra.mxu0 %v4658
        %4724 = vmatprep.subr.mxu0 %v4661
        %4725 = vmatpush1.msra.mxu0 %v4660
        %4726 = vmatprep.subr.mxu0 %v4663
        %4727 = vmatpush1.msra.mxu0 %v4662
        %4728 = vmatprep.subr.mxu0 %v4665
        %4729 = vmatpush1.msra.mxu0 %v4664
        %4730 = vmatprep.subr.mxu0 %v4667
        %4731 = vmatpush1.msra.mxu0 %v4666
        %4732 = vmatprep.subr.mxu0 %v4669
        %4733 = vmatpush1.msra.mxu0 %v4668
        %4734 = vmatprep.subr.mxu0 %v4671
        %4735 = vmatpush1.msra.mxu0 %v4670
        %4736 = vmatprep.subr.mxu0 %v4673
        %4737 = vmatpush1.msra.mxu0 %v4672
        %4738 = vmatprep.subr.mxu0 %v4675
        %4739 = vmatpush1.msra.mxu0 %v4674
        %4740 = vmatprep.subr.mxu0 %v4677
        %4741 = vmatpush1.msra.mxu0 %v4676
        %4742 = vmatprep.subr.mxu0 %v4679
        %4743 = vmatpush1.msra.mxu0 %v4678
        %4744 = vmatprep.subr.mxu0 %v4681
        %4745 = vmatpush1.msra.mxu0 %v4680
        %4746 = vmatprep.subr.mxu0 %v4683
        %4747 = vmatpush1.msra.mxu0 %v4682
        %4748 = vmatprep.subr.mxu0 %v4685
        %4749 = vmatpush1.msra.mxu0 %v4684
        %4750 = vmatprep.subr.mxu0 %v4687
        %4751 = vmatpush1.msra.mxu0 %v4686
        %4752 = vmatprep.subr.mxu0 %v4689
        %4753 = vmatpush1.msra.mxu0 %v4688
        %4754 = vmatprep.subr.mxu0 %v4691
        %4755 = vmatpush1.msra.mxu0 %v4690
        %4756 = vmatprep.subr.mxu0 %v4693
        %4757 = vmatpush1.msra.mxu0 %v4692
        %4758 = vmatprep.mubr.f32.mxu0 %v4619
        %4759 = vmatmul.mubr.f32.gmra.mrb[0].mxu0 %v4618
        %v4760 = vpop.f32.mrb[0].mxu0
        %v4761 = vadd.f32 0.0, %v4760
        %v4762 = vpop.f32.mrb[0].mxu0
        %v4763 = vadd.f32 0.0, %v4762
        %4764 = vmatprep.mubr.f32.mxu0 %v4621
        %4765 = vmatmul.mubr.f32.gmra.mrb[0].mxu0 %v4620
        %v4766 = vpop.f32.mrb[0].mxu0
        %v4767 = vadd.f32 0.0, %v4766
        %v4768 = vpop.f32.mrb[0].mxu0
        %v4769 = vadd.f32 0.0, %v4768
        %4770 = vmatprep.mubr.f32.mxu0 %v4623
        %4771 = vmatmul.mubr.f32.gmra.mrb[0].mxu0 %v4622
        %v4772 = vpop.f32.mrb[0].mxu0
        %v4773 = vadd.f32 0.0, %v4772
        %v4774 = vpop.f32.mrb[0].mxu0
        %v4775 = vadd.f32 0.0, %v4774
        %4776 = vmatprep.mubr.f32.mxu0 %v4625
        %4777 = vmatmul.mubr.f32.gmra.mrb[0].mxu0 %v4624
        %v4778 = vpop.f32.mrb[0].mxu0
        %v4779 = vadd.f32 0.0, %v4778
        %v4780 = vpop.f32.mrb[0].mxu0
        %v4781 = vadd.f32 0.0, %v4780
        %4782 = vdwg.mxu0
        %s4783 = scalar_lea.vmem %s19, 32
        %v4784 = vld [vmem:[%s4783] sm:$0xff]
        %v4785 = vld [vmem:[%s4783 + $0x8] sm:$0xff]
        %v4786 = vld [vmem:[%s4783 + $0x10] sm:$0xff]
        %v4787 = vld [vmem:[%s4783 + $0x18] sm:$0xff]
        %s4788 = scalar_lea.vmem [#allocation13], 512
        %v4789 = vld [vmem:[%s4788] sm:$0xff]
        %v4790 = vld [vmem:[%s4788 + $0x8] sm:$0xff]
        %v4791 = vld [vmem:[%s4788 + $0x10] sm:$0xff]
        %v4792 = vld [vmem:[%s4788 + $0x18] sm:$0xff]
        %v4793 = vld [vmem:[%s4788 + $0x20] sm:$0xff]
        %v4794 = vld [vmem:[%s4788 + $0x28] sm:$0xff]
        %v4795 = vld [vmem:[%s4788 + $0x30] sm:$0xff]
        %v4796 = vld [vmem:[%s4788 + $0x38] sm:$0xff]
        %v4797 = vld [vmem:[%s4788 + $0x40] sm:$0xff]
        %v4798 = vld [vmem:[%s4788 + $0x48] sm:$0xff]
        %v4799 = vld [vmem:[%s4788 + $0x50] sm:$0xff]
        %v4800 = vld [vmem:[%s4788 + $0x58] sm:$0xff]
        %v4801 = vld [vmem:[%s4788 + $0x60] sm:$0xff]
        %v4802 = vld [vmem:[%s4788 + $0x68] sm:$0xff]
        %v4803 = vld [vmem:[%s4788 + $0x70] sm:$0xff]
        %v4804 = vld [vmem:[%s4788 + $0x78] sm:$0xff]
        %v4805 = vld [vmem:[%s4788 + $0x80] sm:$0xff]
        %v4806 = vld [vmem:[%s4788 + $0x88] sm:$0xff]
        %v4807 = vld [vmem:[%s4788 + $0x90] sm:$0xff]
        %v4808 = vld [vmem:[%s4788 + $0x98] sm:$0xff]
        %v4809 = vld [vmem:[%s4788 + $0xa0] sm:$0xff]
        %v4810 = vld [vmem:[%s4788 + $0xa8] sm:$0xff]
        %v4811 = vld [vmem:[%s4788 + $0xb0] sm:$0xff]
        %v4812 = vld [vmem:[%s4788 + $0xb8] sm:$0xff]
        %v4813 = vld [vmem:[%s4788 + $0xc0] sm:$0xff]
        %v4814 = vld [vmem:[%s4788 + $0xc8] sm:$0xff]
        %v4815 = vld [vmem:[%s4788 + $0xd0] sm:$0xff]
        %v4816 = vld [vmem:[%s4788 + $0xd8] sm:$0xff]
        %v4817 = vld [vmem:[%s4788 + $0xe0] sm:$0xff]
        %v4818 = vld [vmem:[%s4788 + $0xe8] sm:$0xff]
        %v4819 = vld [vmem:[%s4788 + $0xf0] sm:$0xff]
        %v4820 = vld [vmem:[%s4788 + $0xf8] sm:$0xff]
        %v4821 = vld [vmem:[%s4788 + $0x100] sm:$0xff]
        %v4822 = vld [vmem:[%s4788 + $0x108] sm:$0xff]
        %v4823 = vld [vmem:[%s4788 + $0x110] sm:$0xff]
        %v4824 = vld [vmem:[%s4788 + $0x118] sm:$0xff]
        %v4825 = vld [vmem:[%s4788 + $0x120] sm:$0xff]
        %v4826 = vld [vmem:[%s4788 + $0x128] sm:$0xff]
        %v4827 = vld [vmem:[%s4788 + $0x130] sm:$0xff]
        %v4828 = vld [vmem:[%s4788 + $0x138] sm:$0xff]
        %v4829 = vld [vmem:[%s4788 + $0x140] sm:$0xff]
        %v4830 = vld [vmem:[%s4788 + $0x148] sm:$0xff]
        %v4831 = vld [vmem:[%s4788 + $0x150] sm:$0xff]
        %v4832 = vld [vmem:[%s4788 + $0x158] sm:$0xff]
        %v4833 = vld [vmem:[%s4788 + $0x160] sm:$0xff]
        %v4834 = vld [vmem:[%s4788 + $0x168] sm:$0xff]
        %v4835 = vld [vmem:[%s4788 + $0x170] sm:$0xff]
        %v4836 = vld [vmem:[%s4788 + $0x178] sm:$0xff]
        %v4837 = vld [vmem:[%s4788 + $0x180] sm:$0xff]
        %v4838 = vld [vmem:[%s4788 + $0x188] sm:$0xff]
        %v4839 = vld [vmem:[%s4788 + $0x190] sm:$0xff]
        %v4840 = vld [vmem:[%s4788 + $0x198] sm:$0xff]
        %v4841 = vld [vmem:[%s4788 + $0x1a0] sm:$0xff]
        %v4842 = vld [vmem:[%s4788 + $0x1a8] sm:$0xff]
        %v4843 = vld [vmem:[%s4788 + $0x1b0] sm:$0xff]
        %v4844 = vld [vmem:[%s4788 + $0x1b8] sm:$0xff]
        %v4845 = vld [vmem:[%s4788 + $0x1c0] sm:$0xff]
        %v4846 = vld [vmem:[%s4788 + $0x1c8] sm:$0xff]
        %v4847 = vld [vmem:[%s4788 + $0x1d0] sm:$0xff]
        %v4848 = vld [vmem:[%s4788 + $0x1d8] sm:$0xff]
        %v4849 = vld [vmem:[%s4788 + $0x1e0] sm:$0xff]
        %v4850 = vld [vmem:[%s4788 + $0x1e8] sm:$0xff]
        %v4851 = vld [vmem:[%s4788 + $0x1f0] sm:$0xff]
        %v4852 = vld [vmem:[%s4788 + $0x1f8] sm:$0xff]
        %4853 = vmatprep.subr.mxu0 %v4790
        %4854 = vmatpush1.msra.mxu0 %v4789
        %4855 = vmatprep.subr.mxu0 %v4792
        %4856 = vmatpush1.msra.mxu0 %v4791
        %4857 = vmatprep.subr.mxu0 %v4794
        %4858 = vmatpush1.msra.mxu0 %v4793
        %4859 = vmatprep.subr.mxu0 %v4796
        %4860 = vmatpush1.msra.mxu0 %v4795
        %4861 = vmatprep.subr.mxu0 %v4798
        %4862 = vmatpush1.msra.mxu0 %v4797
        %4863 = vmatprep.subr.mxu0 %v4800
        %4864 = vmatpush1.msra.mxu0 %v4799
        %4865 = vmatprep.subr.mxu0 %v4802
        %4866 = vmatpush1.msra.mxu0 %v4801
        %4867 = vmatprep.subr.mxu0 %v4804
        %4868 = vmatpush1.msra.mxu0 %v4803
        %4869 = vmatprep.subr.mxu0 %v4806
        %4870 = vmatpush1.msra.mxu0 %v4805
        %4871 = vmatprep.subr.mxu0 %v4808
        %4872 = vmatpush1.msra.mxu0 %v4807
        %4873 = vmatprep.subr.mxu0 %v4810
        %4874 = vmatpush1.msra.mxu0 %v4809
        %4875 = vmatprep.subr.mxu0 %v4812
        %4876 = vmatpush1.msra.mxu0 %v4811
        %4877 = vmatprep.subr.mxu0 %v4814
        %4878 = vmatpush1.msra.mxu0 %v4813
        %4879 = vmatprep.subr.mxu0 %v4816
        %4880 = vmatpush1.msra.mxu0 %v4815
        %4881 = vmatprep.subr.mxu0 %v4818
        %4882 = vmatpush1.msra.mxu0 %v4817
        %4883 = vmatprep.subr.mxu0 %v4820
        %4884 = vmatpush1.msra.mxu0 %v4819
        %4885 = vmatprep.subr.mxu0 %v4822
        %4886 = vmatpush1.msra.mxu0 %v4821
        %4887 = vmatprep.subr.mxu0 %v4824
        %4888 = vmatpush1.msra.mxu0 %v4823
        %4889 = vmatprep.subr.mxu0 %v4826
        %4890 = vmatpush1.msra.mxu0 %v4825
        %4891 = vmatprep.subr.mxu0 %v4828
        %4892 = vmatpush1.msra.mxu0 %v4827
        %4893 = vmatprep.subr.mxu0 %v4830
        %4894 = vmatpush1.msra.mxu0 %v4829
        %4895 = vmatprep.subr.mxu0 %v4832
        %4896 = vmatpush1.msra.mxu0 %v4831
        %4897 = vmatprep.subr.mxu0 %v4834
        %4898 = vmatpush1.msra.mxu0 %v4833
        %4899 = vmatprep.subr.mxu0 %v4836
        %4900 = vmatpush1.msra.mxu0 %v4835
        %4901 = vmatprep.subr.mxu0 %v4838
        %4902 = vmatpush1.msra.mxu0 %v4837
        %4903 = vmatprep.subr.mxu0 %v4840
        %4904 = vmatpush1.msra.mxu0 %v4839
        %4905 = vmatprep.subr.mxu0 %v4842
        %4906 = vmatpush1.msra.mxu0 %v4841
        %4907 = vmatprep.subr.mxu0 %v4844
        %4908 = vmatpush1.msra.mxu0 %v4843
        %4909 = vmatprep.subr.mxu0 %v4846
        %4910 = vmatpush1.msra.mxu0 %v4845
        %4911 = vmatprep.subr.mxu0 %v4848
        %4912 = vmatpush1.msra.mxu0 %v4847
        %4913 = vmatprep.subr.mxu0 %v4850
        %4914 = vmatpush1.msra.mxu0 %v4849
        %4915 = vmatprep.subr.mxu0 %v4852
        %4916 = vmatpush1.msra.mxu0 %v4851
        %4917 = vmatprep.mubr.f32.mxu0 %v4619
        %4918 = vmatmul.mubr.f32.gmra.mrb[0].mxu0 %v4618
        %v4919 = vpop.f32.mrb[0].mxu0
        %v4920 = vadd.f32 0.0, %v4919
        %v4921 = vpop.f32.mrb[0].mxu0
        %v4922 = vadd.f32 0.0, %v4921
        %4923 = vmatprep.mubr.f32.mxu0 %v4621
        %4924 = vmatmul.mubr.f32.gmra.mrb[0].mxu0 %v4620
        %v4925 = vpop.f32.mrb[0].mxu0
        %v4926 = vadd.f32 0.0, %v4925
        %v4927 = vpop.f32.mrb[0].mxu0
        %v4928 = vadd.f32 0.0, %v4927
        %4929 = vmatprep.mubr.f32.mxu0 %v4623
        %4930 = vmatmul.mubr.f32.gmra.mrb[0].mxu0 %v4622
        %v4931 = vpop.f32.mrb[0].mxu0
        %v4932 = vadd.f32 0.0, %v4931
        %v4933 = vpop.f32.mrb[0].mxu0
        %v4934 = vadd.f32 0.0, %v4933
        %4935 = vmatprep.mubr.f32.mxu0 %v4625
        %4936 = vmatmul.mubr.f32.gmra.mrb[0].mxu0 %v4624
        %v4937 = vpop.f32.mrb[0].mxu0
        %v4938 = vadd.f32 0.0, %v4937
        %v4939 = vpop.f32.mrb[0].mxu0
        %v4940 = vadd.f32 0.0, %v4939
        %4941 = vdwg.mxu0
        %v4943 = vsel %vm807, %v4784, 0
        %v4946 = vsel %vm807, %v4785, 0
        %v4949 = vsel %vm807, %v4786, 0
        %v4952 = vsel %vm807, %v4787, 0
        %4954 = vmatprep.subr.mxu0 %v4922
        %4955 = vmatpush1.msra.mxu0 %v4920
        %4956 = vmatprep.subr.mxu0 %v4928
        %4957 = vmatpush1.msra.mxu0 %v4926
        %4958 = vmatprep.subr.mxu0 %v4934
        %4959 = vmatpush1.msra.mxu0 %v4932
        %4960 = vmatprep.subr.mxu0 %v4940
        %4961 = vmatpush1.msra.mxu0 %v4938
        %4962 = vmatprep.subr.mxu0 0.0
        %4963 = vmatpush1.msra.mxu0 0.0
        %4964 = vmatprep.subr.mxu0 0.0
        %4965 = vmatpush1.msra.mxu0 0.0
        %4966 = vmatprep.subr.mxu0 0.0
        %4967 = vmatpush1.msra.mxu0 0.0
        %4968 = vmatprep.subr.mxu0 0.0
        %4969 = vmatpush1.msra.mxu0 0.0
        %4970 = vmatprep.subr.mxu0 0.0
        %4971 = vmatpush1.msra.mxu0 0.0
        %4972 = vmatprep.subr.mxu0 0.0
        %4973 = vmatpush1.msra.mxu0 0.0
        %4974 = vmatprep.subr.mxu0 0.0
        %4975 = vmatpush1.msra.mxu0 0.0
        %4976 = vmatprep.subr.mxu0 0.0
        %4977 = vmatpush1.msra.mxu0 0.0
        %4978 = vmatprep.subr.mxu0 0.0
        %4979 = vmatpush1.msra.mxu0 0.0
        %4980 = vmatprep.subr.mxu0 0.0
        %4981 = vmatpush1.msra.mxu0 0.0
        %4982 = vmatprep.subr.mxu0 0.0
        %4983 = vmatpush1.msra.mxu0 0.0
        %4984 = vmatprep.subr.mxu0 0.0
        %4985 = vmatpush1.msra.mxu0 0.0
        %4986 = vmatprep.subr.mxu0 0.0
        %4987 = vmatpush1.msra.mxu0 0.0
        %4988 = vmatprep.subr.mxu0 0.0
        %4989 = vmatpush1.msra.mxu0 0.0
        %4990 = vmatprep.subr.mxu0 0.0
        %4991 = vmatpush1.msra.mxu0 0.0
        %4992 = vmatprep.subr.mxu0 0.0
        %4993 = vmatpush1.msra.mxu0 0.0
        %4994 = vmatprep.subr.mxu0 0.0
        %4995 = vmatpush1.msra.mxu0 0.0
        %4996 = vmatprep.subr.mxu0 0.0
        %4997 = vmatpush1.msra.mxu0 0.0
        %4998 = vmatprep.subr.mxu0 0.0
        %4999 = vmatpush1.msra.mxu0 0.0
        %5000 = vmatprep.subr.mxu0 0.0
        %5001 = vmatpush1.msra.mxu0 0.0
        %5002 = vmatprep.subr.mxu0 0.0
        %5003 = vmatpush1.msra.mxu0 0.0
        %5004 = vmatprep.subr.mxu0 0.0
        %5005 = vmatpush1.msra.mxu0 0.0
        %5006 = vmatprep.subr.mxu0 0.0
        %5007 = vmatpush1.msra.mxu0 0.0
        %5008 = vmatprep.subr.mxu0 0.0
        %5009 = vmatpush1.msra.mxu0 0.0
        %5010 = vmatprep.subr.mxu0 0.0
        %5011 = vmatpush1.msra.mxu0 0.0
        %5012 = vmatprep.subr.mxu0 0.0
        %5013 = vmatpush1.msra.mxu0 0.0
        %5014 = vmatprep.subr.mxu0 0.0
        %5015 = vmatpush1.msra.mxu0 0.0
        %5016 = vmatprep.subr.mxu0 0.0
        %5017 = vmatpush1.msra.mxu0 0.0
        %5018 = vmatprep.mubr.f32.mxu0 0.0
        %5019 = vmatmul.mubr.f32.gmra.mrb[0].mxu0 %v4943
        %v5020 = vpop.f32.mrb[0].mxu0
        %v5021 = vadd.f32 0.0, %v5020
        %v5022 = vpop.f32.mrb[0].mxu0
        %v5023 = vadd.f32 0.0, %v5022
        %5024 = vmatprep.mubr.f32.mxu0 0.0
        %5025 = vmatmul.mubr.f32.gmra.mrb[0].mxu0 %v4946
        %v5026 = vpop.f32.mrb[0].mxu0
        %v5027 = vadd.f32 0.0, %v5026
        %v5028 = vpop.f32.mrb[0].mxu0
        %v5029 = vadd.f32 0.0, %v5028
        %5030 = vmatprep.mubr.f32.mxu0 0.0
        %5031 = vmatmul.mubr.f32.gmra.mrb[0].mxu0 %v4949
        %v5032 = vpop.f32.mrb[0].mxu0
        %v5033 = vadd.f32 0.0, %v5032
        %v5034 = vpop.f32.mrb[0].mxu0
        %v5035 = vadd.f32 0.0, %v5034
        %5036 = vmatprep.mubr.f32.mxu0 0.0
        %5037 = vmatmul.mubr.f32.gmra.mrb[0].mxu0 %v4952
        %v5038 = vpop.f32.mrb[0].mxu0
        %v5039 = vadd.f32 0.0, %v5038
        %v5040 = vpop.f32.mrb[0].mxu0
        %v5041 = vadd.f32 0.0, %v5040
        %5042 = vdwg.mxu0
        %v5044 = vsel %vm807, %v4626, 0
        %v5047 = vsel %vm807, %v4627, 0
        %v5050 = vsel %vm807, %v4628, 0
        %v5053 = vsel %vm807, %v4629, 0
        %5055 = vmatprep.subr.mxu0 %v4763
        %5056 = vmatpush1.msra.mxu0 %v4761
        %5057 = vmatprep.subr.mxu0 %v4769
        %5058 = vmatpush1.msra.mxu0 %v4767
        %5059 = vmatprep.subr.mxu0 %v4775
        %5060 = vmatpush1.msra.mxu0 %v4773
        %5061 = vmatprep.subr.mxu0 %v4781
        %5062 = vmatpush1.msra.mxu0 %v4779
        %5063 = vmatprep.subr.mxu0 0.0
        %5064 = vmatpush1.msra.mxu0 0.0
        %5065 = vmatprep.subr.mxu0 0.0
        %5066 = vmatpush1.msra.mxu0 0.0
        %5067 = vmatprep.subr.mxu0 0.0
        %5068 = vmatpush1.msra.mxu0 0.0
        %5069 = vmatprep.subr.mxu0 0.0
        %5070 = vmatpush1.msra.mxu0 0.0
        %5071 = vmatprep.subr.mxu0 0.0
        %5072 = vmatpush1.msra.mxu0 0.0
        %5073 = vmatprep.subr.mxu0 0.0
        %5074 = vmatpush1.msra.mxu0 0.0
        %5075 = vmatprep.subr.mxu0 0.0
        %5076 = vmatpush1.msra.mxu0 0.0
        %5077 = vmatprep.subr.mxu0 0.0
        %5078 = vmatpush1.msra.mxu0 0.0
        %5079 = vmatprep.subr.mxu0 0.0
        %5080 = vmatpush1.msra.mxu0 0.0
        %5081 = vmatprep.subr.mxu0 0.0
        %5082 = vmatpush1.msra.mxu0 0.0
        %5083 = vmatprep.subr.mxu0 0.0
        %5084 = vmatpush1.msra.mxu0 0.0
        %5085 = vmatprep.subr.mxu0 0.0
        %5086 = vmatpush1.msra.mxu0 0.0
        %5087 = vmatprep.subr.mxu0 0.0
        %5088 = vmatpush1.msra.mxu0 0.0
        %5089 = vmatprep.subr.mxu0 0.0
        %5090 = vmatpush1.msra.mxu0 0.0
        %5091 = vmatprep.subr.mxu0 0.0
        %5092 = vmatpush1.msra.mxu0 0.0
        %5093 = vmatprep.subr.mxu0 0.0
        %5094 = vmatpush1.msra.mxu0 0.0
        %5095 = vmatprep.subr.mxu0 0.0
        %5096 = vmatpush1.msra.mxu0 0.0
        %5097 = vmatprep.subr.mxu0 0.0
        %5098 = vmatpush1.msra.mxu0 0.0
        %5099 = vmatprep.subr.mxu0 0.0
        %5100 = vmatpush1.msra.mxu0 0.0
        %5101 = vmatprep.subr.mxu0 0.0
        %5102 = vmatpush1.msra.mxu0 0.0
        %5103 = vmatprep.subr.mxu0 0.0
        %5104 = vmatpush1.msra.mxu0 0.0
        %5105 = vmatprep.subr.mxu0 0.0
        %5106 = vmatpush1.msra.mxu0 0.0
        %5107 = vmatprep.subr.mxu0 0.0
        %5108 = vmatpush1.msra.mxu0 0.0
        %5109 = vmatprep.subr.mxu0 0.0
        %5110 = vmatpush1.msra.mxu0 0.0
        %5111 = vmatprep.subr.mxu0 0.0
        %5112 = vmatpush1.msra.mxu0 0.0
        %5113 = vmatprep.subr.mxu0 0.0
        %5114 = vmatpush1.msra.mxu0 0.0
        %5115 = vmatprep.subr.mxu0 0.0
        %5116 = vmatpush1.msra.mxu0 0.0
        %5117 = vmatprep.subr.mxu0 0.0
        %5118 = vmatpush1.msra.mxu0 0.0
        %5119 = vmatprep.mubr.f32.mxu0 0.0
        %5120 = vmatmul.mubr.f32.gmra.mrb[0].mxu0 %v5044
        %v5121 = vpop.f32.mrb[0].mxu0
        %v5122 = vadd.f32 %v5021, %v5121
        %v5123 = vpop.f32.mrb[0].mxu0
        %v5124 = vadd.f32 %v5023, %v5123
        %5125 = vmatprep.mubr.f32.mxu0 0.0
        %5126 = vmatmul.mubr.f32.gmra.mrb[0].mxu0 %v5047
        %v5127 = vpop.f32.mrb[0].mxu0
        %v5128 = vadd.f32 %v5027, %v5127
        %v5129 = vpop.f32.mrb[0].mxu0
        %v5130 = vadd.f32 %v5029, %v5129
        %5131 = vmatprep.mubr.f32.mxu0 0.0
        %5132 = vmatmul.mubr.f32.gmra.mrb[0].mxu0 %v5050
        %v5133 = vpop.f32.mrb[0].mxu0
        %v5134 = vadd.f32 %v5033, %v5133
        %v5135 = vpop.f32.mrb[0].mxu0
        %v5136 = vadd.f32 %v5035, %v5135
        %5137 = vmatprep.mubr.f32.mxu0 0.0
        %5138 = vmatmul.mubr.f32.gmra.mrb[0].mxu0 %v5053
        %v5139 = vpop.f32.mrb[0].mxu0
        %v5140 = vadd.f32 %v5039, %v5139
        %v5141 = vpop.f32.mrb[0].mxu0
        %v5142 = vadd.f32 %v5041, %v5141
        %5143 = vdwg.mxu0
        %s5144 = scalar_lea.vmem %s19, 64
        %v5145 = vld [vmem:[%s5144] sm:$0xff]
        %v5146 = vld [vmem:[%s5144 + $0x8] sm:$0xff]
        %v5147 = vld [vmem:[%s5144 + $0x10] sm:$0xff]
        %v5148 = vld [vmem:[%s5144 + $0x18] sm:$0xff]
        %s5149 = scalar_lea.vmem [#allocation13], 1024
        %v5150 = vld [vmem:[%s5149] sm:$0xff]
        %v5151 = vld [vmem:[%s5149 + $0x8] sm:$0xff]
        %v5152 = vld [vmem:[%s5149 + $0x10] sm:$0xff]
        %v5153 = vld [vmem:[%s5149 + $0x18] sm:$0xff]
        %v5154 = vld [vmem:[%s5149 + $0x20] sm:$0xff]
        %v5155 = vld [vmem:[%s5149 + $0x28] sm:$0xff]
        %v5156 = vld [vmem:[%s5149 + $0x30] sm:$0xff]
        %v5157 = vld [vmem:[%s5149 + $0x38] sm:$0xff]
        %v5158 = vld [vmem:[%s5149 + $0x40] sm:$0xff]
        %v5159 = vld [vmem:[%s5149 + $0x48] sm:$0xff]
        %v5160 = vld [vmem:[%s5149 + $0x50] sm:$0xff]
        %v5161 = vld [vmem:[%s5149 + $0x58] sm:$0xff]
        %v5162 = vld [vmem:[%s5149 + $0x60] sm:$0xff]
        %v5163 = vld [vmem:[%s5149 + $0x68] sm:$0xff]
        %v5164 = vld [vmem:[%s5149 + $0x70] sm:$0xff]
        %v5165 = vld [vmem:[%s5149 + $0x78] sm:$0xff]
        %v5166 = vld [vmem:[%s5149 + $0x80] sm:$0xff]
        %v5167 = vld [vmem:[%s5149 + $0x88] sm:$0xff]
        %v5168 = vld [vmem:[%s5149 + $0x90] sm:$0xff]
        %v5169 = vld [vmem:[%s5149 + $0x98] sm:$0xff]
        %v5170 = vld [vmem:[%s5149 + $0xa0] sm:$0xff]
        %v5171 = vld [vmem:[%s5149 + $0xa8] sm:$0xff]
        %v5172 = vld [vmem:[%s5149 + $0xb0] sm:$0xff]
        %v5173 = vld [vmem:[%s5149 + $0xb8] sm:$0xff]
        %v5174 = vld [vmem:[%s5149 + $0xc0] sm:$0xff]
        %v5175 = vld [vmem:[%s5149 + $0xc8] sm:$0xff]
        %v5176 = vld [vmem:[%s5149 + $0xd0] sm:$0xff]
        %v5177 = vld [vmem:[%s5149 + $0xd8] sm:$0xff]
        %v5178 = vld [vmem:[%s5149 + $0xe0] sm:$0xff]
        %v5179 = vld [vmem:[%s5149 + $0xe8] sm:$0xff]
        %v5180 = vld [vmem:[%s5149 + $0xf0] sm:$0xff]
        %v5181 = vld [vmem:[%s5149 + $0xf8] sm:$0xff]
        %v5182 = vld [vmem:[%s5149 + $0x100] sm:$0xff]
        %v5183 = vld [vmem:[%s5149 + $0x108] sm:$0xff]
        %v5184 = vld [vmem:[%s5149 + $0x110] sm:$0xff]
        %v5185 = vld [vmem:[%s5149 + $0x118] sm:$0xff]
        %v5186 = vld [vmem:[%s5149 + $0x120] sm:$0xff]
        %v5187 = vld [vmem:[%s5149 + $0x128] sm:$0xff]
        %v5188 = vld [vmem:[%s5149 + $0x130] sm:$0xff]
        %v5189 = vld [vmem:[%s5149 + $0x138] sm:$0xff]
        %v5190 = vld [vmem:[%s5149 + $0x140] sm:$0xff]
        %v5191 = vld [vmem:[%s5149 + $0x148] sm:$0xff]
        %v5192 = vld [vmem:[%s5149 + $0x150] sm:$0xff]
        %v5193 = vld [vmem:[%s5149 + $0x158] sm:$0xff]
        %v5194 = vld [vmem:[%s5149 + $0x160] sm:$0xff]
        %v5195 = vld [vmem:[%s5149 + $0x168] sm:$0xff]
        %v5196 = vld [vmem:[%s5149 + $0x170] sm:$0xff]
        %v5197 = vld [vmem:[%s5149 + $0x178] sm:$0xff]
        %v5198 = vld [vmem:[%s5149 + $0x180] sm:$0xff]
        %v5199 = vld [vmem:[%s5149 + $0x188] sm:$0xff]
        %v5200 = vld [vmem:[%s5149 + $0x190] sm:$0xff]
        %v5201 = vld [vmem:[%s5149 + $0x198] sm:$0xff]
        %v5202 = vld [vmem:[%s5149 + $0x1a0] sm:$0xff]
        %v5203 = vld [vmem:[%s5149 + $0x1a8] sm:$0xff]
        %v5204 = vld [vmem:[%s5149 + $0x1b0] sm:$0xff]
        %v5205 = vld [vmem:[%s5149 + $0x1b8] sm:$0xff]
        %v5206 = vld [vmem:[%s5149 + $0x1c0] sm:$0xff]
        %v5207 = vld [vmem:[%s5149 + $0x1c8] sm:$0xff]
        %v5208 = vld [vmem:[%s5149 + $0x1d0] sm:$0xff]
        %v5209 = vld [vmem:[%s5149 + $0x1d8] sm:$0xff]
        %v5210 = vld [vmem:[%s5149 + $0x1e0] sm:$0xff]
        %v5211 = vld [vmem:[%s5149 + $0x1e8] sm:$0xff]
        %v5212 = vld [vmem:[%s5149 + $0x1f0] sm:$0xff]
        %v5213 = vld [vmem:[%s5149 + $0x1f8] sm:$0xff]
        %5214 = vmatprep.subr.mxu0 %v5151
        %5215 = vmatpush1.msra.mxu0 %v5150
        %5216 = vmatprep.subr.mxu0 %v5153
        %5217 = vmatpush1.msra.mxu0 %v5152
        %5218 = vmatprep.subr.mxu0 %v5155
        %5219 = vmatpush1.msra.mxu0 %v5154
        %5220 = vmatprep.subr.mxu0 %v5157
        %5221 = vmatpush1.msra.mxu0 %v5156
        %5222 = vmatprep.subr.mxu0 %v5159
        %5223 = vmatpush1.msra.mxu0 %v5158
        %5224 = vmatprep.subr.mxu0 %v5161
        %5225 = vmatpush1.msra.mxu0 %v5160
        %5226 = vmatprep.subr.mxu0 %v5163
        %5227 = vmatpush1.msra.mxu0 %v5162
        %5228 = vmatprep.subr.mxu0 %v5165
        %5229 = vmatpush1.msra.mxu0 %v5164
        %5230 = vmatprep.subr.mxu0 %v5167
        %5231 = vmatpush1.msra.mxu0 %v5166
        %5232 = vmatprep.subr.mxu0 %v5169
        %5233 = vmatpush1.msra.mxu0 %v5168
        %5234 = vmatprep.subr.mxu0 %v5171
        %5235 = vmatpush1.msra.mxu0 %v5170
        %5236 = vmatprep.subr.mxu0 %v5173
        %5237 = vmatpush1.msra.mxu0 %v5172
        %5238 = vmatprep.subr.mxu0 %v5175
        %5239 = vmatpush1.msra.mxu0 %v5174
        %5240 = vmatprep.subr.mxu0 %v5177
        %5241 = vmatpush1.msra.mxu0 %v5176
        %5242 = vmatprep.subr.mxu0 %v5179
        %5243 = vmatpush1.msra.mxu0 %v5178
        %5244 = vmatprep.subr.mxu0 %v5181
        %5245 = vmatpush1.msra.mxu0 %v5180
        %5246 = vmatprep.subr.mxu0 %v5183
        %5247 = vmatpush1.msra.mxu0 %v5182
        %5248 = vmatprep.subr.mxu0 %v5185
        %5249 = vmatpush1.msra.mxu0 %v5184
        %5250 = vmatprep.subr.mxu0 %v5187
        %5251 = vmatpush1.msra.mxu0 %v5186
        %5252 = vmatprep.subr.mxu0 %v5189
        %5253 = vmatpush1.msra.mxu0 %v5188
        %5254 = vmatprep.subr.mxu0 %v5191
        %5255 = vmatpush1.msra.mxu0 %v5190
        %5256 = vmatprep.subr.mxu0 %v5193
        %5257 = vmatpush1.msra.mxu0 %v5192
        %5258 = vmatprep.subr.mxu0 %v5195
        %5259 = vmatpush1.msra.mxu0 %v5194
        %5260 = vmatprep.subr.mxu0 %v5197
        %5261 = vmatpush1.msra.mxu0 %v5196
        %5262 = vmatprep.subr.mxu0 %v5199
        %5263 = vmatpush1.msra.mxu0 %v5198
        %5264 = vmatprep.subr.mxu0 %v5201
        %5265 = vmatpush1.msra.mxu0 %v5200
        %5266 = vmatprep.subr.mxu0 %v5203
        %5267 = vmatpush1.msra.mxu0 %v5202
        %5268 = vmatprep.subr.mxu0 %v5205
        %5269 = vmatpush1.msra.mxu0 %v5204
        %5270 = vmatprep.subr.mxu0 %v5207
        %5271 = vmatpush1.msra.mxu0 %v5206
        %5272 = vmatprep.subr.mxu0 %v5209
        %5273 = vmatpush1.msra.mxu0 %v5208
        %5274 = vmatprep.subr.mxu0 %v5211
        %5275 = vmatpush1.msra.mxu0 %v5210
        %5276 = vmatprep.subr.mxu0 %v5213
        %5277 = vmatpush1.msra.mxu0 %v5212
        %5278 = vmatprep.mubr.f32.mxu0 %v4619
        %5279 = vmatmul.mubr.f32.gmra.mrb[0].mxu0 %v4618
        %v5280 = vpop.f32.mrb[0].mxu0
        %v5281 = vadd.f32 0.0, %v5280
        %v5282 = vpop.f32.mrb[0].mxu0
        %v5283 = vadd.f32 0.0, %v5282
        %5284 = vmatprep.mubr.f32.mxu0 %v4621
        %5285 = vmatmul.mubr.f32.gmra.mrb[0].mxu0 %v4620
        %v5286 = vpop.f32.mrb[0].mxu0
        %v5287 = vadd.f32 0.0, %v5286
        %v5288 = vpop.f32.mrb[0].mxu0
        %v5289 = vadd.f32 0.0, %v5288
        %5290 = vmatprep.mubr.f32.mxu0 %v4623
        %5291 = vmatmul.mubr.f32.gmra.mrb[0].mxu0 %v4622
        %v5292 = vpop.f32.mrb[0].mxu0
        %v5293 = vadd.f32 0.0, %v5292
        %v5294 = vpop.f32.mrb[0].mxu0
        %v5295 = vadd.f32 0.0, %v5294
        %5296 = vmatprep.mubr.f32.mxu0 %v4625
        %5297 = vmatmul.mubr.f32.gmra.mrb[0].mxu0 %v4624
        %v5298 = vpop.f32.mrb[0].mxu0
        %v5299 = vadd.f32 0.0, %v5298
        %v5300 = vpop.f32.mrb[0].mxu0
        %v5301 = vadd.f32 0.0, %v5300
        %5302 = vdwg.mxu0
        %v5304 = vsel %vm807, %v5145, 0
        %v5307 = vsel %vm807, %v5146, 0
        %v5310 = vsel %vm807, %v5147, 0
        %v5313 = vsel %vm807, %v5148, 0
        %5315 = vmatprep.subr.mxu0 %v5283
        %5316 = vmatpush1.msra.mxu0 %v5281
        %5317 = vmatprep.subr.mxu0 %v5289
        %5318 = vmatpush1.msra.mxu0 %v5287
        %5319 = vmatprep.subr.mxu0 %v5295
        %5320 = vmatpush1.msra.mxu0 %v5293
        %5321 = vmatprep.subr.mxu0 %v5301
        %5322 = vmatpush1.msra.mxu0 %v5299
        %5323 = vmatprep.subr.mxu0 0.0
        %5324 = vmatpush1.msra.mxu0 0.0
        %5325 = vmatprep.subr.mxu0 0.0
        %5326 = vmatpush1.msra.mxu0 0.0
        %5327 = vmatprep.subr.mxu0 0.0
        %5328 = vmatpush1.msra.mxu0 0.0
        %5329 = vmatprep.subr.mxu0 0.0
        %5330 = vmatpush1.msra.mxu0 0.0
        %5331 = vmatprep.subr.mxu0 0.0
        %5332 = vmatpush1.msra.mxu0 0.0
        %5333 = vmatprep.subr.mxu0 0.0
        %5334 = vmatpush1.msra.mxu0 0.0
        %5335 = vmatprep.subr.mxu0 0.0
        %5336 = vmatpush1.msra.mxu0 0.0
        %5337 = vmatprep.subr.mxu0 0.0
        %5338 = vmatpush1.msra.mxu0 0.0
        %5339 = vmatprep.subr.mxu0 0.0
        %5340 = vmatpush1.msra.mxu0 0.0
        %5341 = vmatprep.subr.mxu0 0.0
        %5342 = vmatpush1.msra.mxu0 0.0
        %5343 = vmatprep.subr.mxu0 0.0
        %5344 = vmatpush1.msra.mxu0 0.0
        %5345 = vmatprep.subr.mxu0 0.0
        %5346 = vmatpush1.msra.mxu0 0.0
        %5347 = vmatprep.subr.mxu0 0.0
        %5348 = vmatpush1.msra.mxu0 0.0
        %5349 = vmatprep.subr.mxu0 0.0
        %5350 = vmatpush1.msra.mxu0 0.0
        %5351 = vmatprep.subr.mxu0 0.0
        %5352 = vmatpush1.msra.mxu0 0.0
        %5353 = vmatprep.subr.mxu0 0.0
        %5354 = vmatpush1.msra.mxu0 0.0
        %5355 = vmatprep.subr.mxu0 0.0
        %5356 = vmatpush1.msra.mxu0 0.0
        %5357 = vmatprep.subr.mxu0 0.0
        %5358 = vmatpush1.msra.mxu0 0.0
        %5359 = vmatprep.subr.mxu0 0.0
        %5360 = vmatpush1.msra.mxu0 0.0
        %5361 = vmatprep.subr.mxu0 0.0
        %5362 = vmatpush1.msra.mxu0 0.0
        %5363 = vmatprep.subr.mxu0 0.0
        %5364 = vmatpush1.msra.mxu0 0.0
        %5365 = vmatprep.subr.mxu0 0.0
        %5366 = vmatpush1.msra.mxu0 0.0
        %5367 = vmatprep.subr.mxu0 0.0
        %5368 = vmatpush1.msra.mxu0 0.0
        %5369 = vmatprep.subr.mxu0 0.0
        %5370 = vmatpush1.msra.mxu0 0.0
        %5371 = vmatprep.subr.mxu0 0.0
        %5372 = vmatpush1.msra.mxu0 0.0
        %5373 = vmatprep.subr.mxu0 0.0
        %5374 = vmatpush1.msra.mxu0 0.0
        %5375 = vmatprep.subr.mxu0 0.0
        %5376 = vmatpush1.msra.mxu0 0.0
        %5377 = vmatprep.subr.mxu0 0.0
        %5378 = vmatpush1.msra.mxu0 0.0
        %5379 = vmatprep.mubr.f32.mxu0 0.0
        %5380 = vmatmul.mubr.f32.gmra.mrb[0].mxu0 %v5304
        %v5381 = vpop.f32.mrb[0].mxu0
        %v5382 = vadd.f32 0.0, %v5381
        %v5383 = vpop.f32.mrb[0].mxu0
        %v5384 = vadd.f32 0.0, %v5383
        %5385 = vmatprep.mubr.f32.mxu0 0.0
        %5386 = vmatmul.mubr.f32.gmra.mrb[0].mxu0 %v5307
        %v5387 = vpop.f32.mrb[0].mxu0
        %v5388 = vadd.f32 0.0, %v5387
        %v5389 = vpop.f32.mrb[0].mxu0
        %v5390 = vadd.f32 0.0, %v5389
        %5391 = vmatprep.mubr.f32.mxu0 0.0
        %5392 = vmatmul.mubr.f32.gmra.mrb[0].mxu0 %v5310
        %v5393 = vpop.f32.mrb[0].mxu0
        %v5394 = vadd.f32 0.0, %v5393
        %v5395 = vpop.f32.mrb[0].mxu0
        %v5396 = vadd.f32 0.0, %v5395
        %5397 = vmatprep.mubr.f32.mxu0 0.0
        %5398 = vmatmul.mubr.f32.gmra.mrb[0].mxu0 %v5313
        %v5399 = vpop.f32.mrb[0].mxu0
        %v5400 = vadd.f32 0.0, %v5399
        %v5401 = vpop.f32.mrb[0].mxu0
        %v5402 = vadd.f32 0.0, %v5401
        %5403 = vdwg.mxu0
        %v5404 = vadd.f32 %v5122, %v5382
        %v5405 = vadd.f32 %v5124, %v5384
        %v5406 = vadd.f32 %v5128, %v5388
        %v5407 = vadd.f32 %v5130, %v5390
        %v5408 = vadd.f32 %v5134, %v5394
        %v5409 = vadd.f32 %v5136, %v5396
        %v5410 = vadd.f32 %v5140, %v5400
        %v5411 = vadd.f32 %v5142, %v5402
        %v5412 = vld [vmem:[%s21] sm:$0x3]
        %v5414 = vlaneseq
        %v5415 = vshrl.u32 %v5414, 7
        %v5416 = vsub.s32 0, %v5415
        %v5417 = vrot.slane %v5412, %v5416
        %v5418 = vlaneseq
        %v5419 = vshrl.u32 %v5418, 7
        %v5420 = vsub.s32 1, %v5419
        %v5421 = vrot.slane %v5412, %v5420
        %v5424 = vadd.f32 %v5404, %v5417
        %v5425 = vadd.f32 %v5405, %v5421
        %v5426 = vadd.f32 %v5406, %v5417
        %v5427 = vadd.f32 %v5407, %v5421
        %v5428 = vadd.f32 %v5408, %v5417
        %v5429 = vadd.f32 %v5409, %v5421
        %v5430 = vadd.f32 %v5410, %v5417
        %v5431 = vadd.f32 %v5411, %v5421
        %5432 = vst [vmem:[%s800] sm:$0xff] %v5424
        %5433 = vst [vmem:[%s800 + $0x8] sm:$0xff] %v5425
        %5434 = vst [vmem:[%s800 + $0x10] sm:$0xff] %v5426
        %5435 = vst [vmem:[%s800 + $0x18] sm:$0xff] %v5427
        %5436 = vst [vmem:[%s800 + $0x20] sm:$0xff] %v5428
        %5437 = vst [vmem:[%s800 + $0x28] sm:$0xff] %v5429
        %5438 = vst [vmem:[%s800 + $0x30] sm:$0xff] %v5430
        %5439 = vst [vmem:[%s800 + $0x38] sm:$0xff] %v5431
        %p5440 = scmp.lt.s32.totalorder %s38, 1
        %s5441 = scalar_select %p5440, %s38, 1
        %s5442 = smul.addr %s5441, 8
        %s5443 = smul.addr %s5442, 8
        %s5444 = scalar_lea.vmem %s22, %s5443
        // Predicated region
        $region141: #{forward.1} parent=107 // pred_check
          %p5445 = pneg %p523
        $region142: #{forward.1} parent=107 // pred_check_branch
          %5447 = sbr.rel (%p5445) target = $region144
        $region143: #{forward.1} parent=107 // pred_region
          _
        $region144: #{forward.1} parent=107 // pred_fallthru
          _
      $region108: #{forward.1} parent=5 // pred_fallthru
        _
      %p5448 = scmp.le.s32.totalorder 2, %s33
      // Predicated region
      $region145: #{forward.1} parent=5 // pred_check
        %p5449 = pneg %p5448
      $region146: #{forward.1} parent=5 // pred_check_branch
        %5451 = sbr.rel (%p5449) target = $region148
      $region147: #{forward.1} parent=5 // pred_region
        %s5452 = ssub.s32 %s33, 2
        // Predicated region
        $region149: #{forward.1} parent=147 // pred_check
          %p5453 = pneg %p529
        $region150: #{forward.1} parent=147 // pred_check_branch
          %5455 = sbr.rel (%p5453) target = $region152
        $region151: #{forward.1} parent=147 // pred_region
          %p5456 = scmp.lt.s32.totalorder %s39, 1
          %s5457 = scalar_select %p5456, %s39, 1
          %s5458 = smul.addr %s5457, 8
          %s5459 = smul.addr %s5458, 8
          %s5460 = scalar_lea.vmem %s22, %s5459
        $region152: #{forward.1} parent=147 // pred_fallthru
          _
      $region148: #{forward.1} parent=5 // pred_fallthru
        _
    $region6: #{forward.1} parent=1 // loop_footer
      %s37 = sadd.s32 1, %s33
    $region7: #{forward.1} parent=1 // loop_footer_branch
      %32 = sbr.rel target = $region3
    $region8: #{forward.1} parent=1 // loop_exit
      _
    %5461 = vsyncpa [#allocation3], 1
    %s5462 = scalar_lea.sflag [#allocation3], 1
    %5463 = vsyncpa %s5462, 1
    %5464 = vsyncpa [#allocation5], 1
    %5465 = vsyncpa [#allocation8], 1
    %5466 = vsyncpa [#allocation11], 1
    %5467 = vsyncpa [#allocation14], 1

</llo_original>
